<compile_context>
chip_gen: v7x
topology: tpu7x:2x2x1
jax: 0.10.0
libtpu: 0.0.40
codegen_flags: <defaults>
</compile_context>

<pallas_src>
import math

import jax
import jax.numpy as jnp
from jax.experimental import pallas as pl
from jax.experimental.pallas import tpu as pltpu


# ------------------------------------------------------------- fused kernel --

def _make_fused_kernel(B, H0, W0, C0, C1, C2, C3, ncls, fv, out_w):
    """Builds the fused forward kernel for the given static shapes."""
    H1, W1 = H0 // 2, W0 // 2          # after pool 1
    H2, W2 = H1 // 2, W1 // 2          # after pool 2

    def conv3x3_relu(xpad_ref, w_ref, b_ref, H, W, Cin):
        # im2col built from the VMEM-resident zero-padded activation, then one
        # (B*H*W, 9*Cin) x (9*Cin, Cout) matmul + bias (BN folded) + ReLU.
        taps = []
        for dy in range(3):
            for dx in range(3):
                t = xpad_ref[:, dy:dy + H, dx:dx + W, :]        # (B, H, W, Cin)
                taps.append(t.reshape(B * H * W, Cin))
        p = jnp.concatenate(taps, axis=-1)                      # (B*H*W, 9*Cin)
        y = jnp.dot(p, w_ref[...], preferred_element_type=jnp.float32)
        return jnp.maximum(y + b_ref[...], 0.0)                 # (B*H*W, Cout)

    def maxpool2x2(y, H, W, C):
        # y: (B*H*W, C), rows ordered (b, h, w).
        #   stage A: max over w-pairs  (size-2 sublane-axis reduce)
        #   stage B: max over h-pairs  (leading-axis slices)
        Ho, Wo = H // 2, W // 2
        wmax = jnp.max(y.reshape(B * H * Wo, 2, C), axis=1)     # (B*H*Wo, C)
        w4 = wmax.reshape(B * Ho, 2, Wo, C)
        pooled = jnp.maximum(w4[:, 0, :, :], w4[:, 1, :, :])    # (B*Ho, Wo, C)
        return pooled.reshape(B, Ho, Wo, C)

    def kernel(x_ref, w1_ref, b1_ref, w2_ref, b2_ref, w3_ref, b3_ref,
               wl_ref, bl_ref, wif_ref, bif_ref,
               out_ref, xpad1_ref, xpad2_ref, xpad3_ref):
        # ---- stage 1: conv(C0->C1)+BN+ReLU, maxpool 2x2 ---------------------
        xpad1_ref[...] = jnp.zeros_like(xpad1_ref)
        xpad1_ref[:, 1:H0 + 1, 1:W0 + 1, :] = x_ref[...]
        y1 = conv3x3_relu(xpad1_ref, w1_ref, b1_ref, H0, W0, C0)
        p1 = maxpool2x2(y1, H0, W0, C1)                          # (B, H1, W1, C1)

        # ---- stage 2: conv(C1->C2)+BN+ReLU, maxpool 2x2 ---------------------
        xpad2_ref[...] = jnp.zeros_like(xpad2_ref)
        xpad2_ref[:, 1:H1 + 1, 1:W1 + 1, :] = p1
        y2 = conv3x3_relu(xpad2_ref, w2_ref, b2_ref, H1, W1, C1)
        p2 = maxpool2x2(y2, H1, W1, C2)                          # (B, H2, W2, C2)

        # ---- stage 3: conv(C2->C3)+BN+ReLU ----------------------------------
        xpad3_ref[...] = jnp.zeros_like(xpad3_ref)
        xpad3_ref[:, 1:H2 + 1, 1:W2 + 1, :] = p2
        y3 = conv3x3_relu(xpad3_ref, w3_ref, b3_ref, H2, W2, C2)  # (B*H2*W2, C3)

        # ---- global average pool + ReLU (ReLU is a no-op on averaged ReLU) --
        fe = jnp.maximum(
            jnp.mean(y3.reshape(B, H2 * W2, C3), axis=1), 0.0)    # (B, C3)

        # ---- label classifier + log_softmax(dim=1) --------------------------
        logits = jnp.dot(fe, wl_ref[...],
                         preferred_element_type=jnp.float32) + bl_ref[...]
        m = jnp.max(logits, axis=-1, keepdims=True)
        lse = m + jnp.log(jnp.sum(jnp.exp(logits - m), axis=-1, keepdims=True))
        labels = logits - lse                                     # (B, ncls)

        # ---- IF features: shared IF head folded with 'narrower' -------------
        feats = jnp.dot(fe, wif_ref[...],
                        preferred_element_type=jnp.float32) + bif_ref[...]  # (B, fv)

        # ---- single lane-padded output slab ---------------------------------
        parts = [labels, fe, feats]
        rem = out_w - (ncls + C3 + fv)
        if rem > 0:
            parts.append(jnp.zeros((B, rem), jnp.float32))
        out_ref[...] = jnp.concatenate(parts, axis=-1)

    return kernel


# ---------------------------------------------------------------- parameters --

def init_params(key, in_channels=4, class_count=10, feature_vector_size=32):
    ks = jax.random.split(key, 6)
    chans = [in_channels, 2, 4, 8]          # OriginalFeatureExtractorModel cfg
    eps = 1e-5
    bn_scale = 1.0 / math.sqrt(1.0 + eps)   # eval-mode BN: gamma=1, var=1, mean=0
    convs = []
    for i in range(3):
        cin, cout = chans[i], chans[i + 1]
        std = math.sqrt(2.0 / (cin * 9))                       # kaiming_normal_
        w = jax.random.normal(ks[i], (3, 3, cin, cout), jnp.float32) * std
        # fold eval-mode BatchNorm into the conv weight / bias
        w = w.reshape(9 * cin, cout) * bn_scale
        b = jnp.zeros((1, cout), jnp.float32) * bn_scale       # conv bias init 0
        convs.append(dict(w=w, b=b))

    def xavier(k, fan_in, fan_out):
        std = math.sqrt(2.0 / (fan_in + fan_out))              # xavier_normal_
        return jax.random.normal(k, (fan_in, fan_out), jnp.float32) * std

    fe_out = chans[-1]                                         # 8
    return dict(
        convs=convs,
        wl=xavier(ks[3], fe_out, class_count),                 # label classifier
        bl=jnp.zeros((1, class_count), jnp.float32),
        ws=xavier(ks[4], fe_out, 1024),                        # shared IF head Linear(8,1024)
        bs=jnp.zeros((1, 1024), jnp.float32),
        wn=xavier(ks[5], 1024, feature_vector_size),           # narrower Linear(1024,fv)
        bn=jnp.zeros((1, feature_vector_size), jnp.float32),
    )


# ------------------------------------------------------------------ forward --

def _full_spec(shape):
    return pl.BlockSpec(shape, lambda i: (0,) * len(shape))


def asif_forward(params, x_nchw):
    """Returns (label log-probs, raw feature vector, IF-head feature vector)."""
    x = jnp.transpose(x_nchw, (0, 2, 3, 1)).astype(jnp.float32)   # NCHW -> NHWC
    B, H0, W0, C0 = x.shape
    c1, c2, c3 = params['convs']
    C1, C2, C3 = c1['w'].shape[1], c2['w'].shape[1], c3['w'].shape[1]
    ncls = params['wl'].shape[1]

    # Shared IF head (Linear 8->1024) and narrower (Linear 1024->32) have no
    # nonlinearity between them in the reference model (layer_count=1), so the
    # two Linears fold exactly into a single (8, fv) matmul.
    wif = jnp.dot(params['ws'], params['wn'],
                  precision=jax.lax.Precision.HIGHEST)            # (C3, fv)
    bif = jnp.dot(params['bs'], params['wn'],
                  precision=jax.lax.Precision.HIGHEST) + params['bn']
    fv = wif.shape[1]

    out_w = max(128, ((ncls + C3 + fv + 127) // 128) * 128)
    H1, W1 = H0 // 2, W0 // 2
    H2, W2 = H1 // 2, W1 // 2

    kernel = _make_fused_kernel(B, H0, W0, C0, C1, C2, C3, ncls, fv, out_w)
    ins = (x, c1['w'], c1['b'], c2['w'], c2['b'], c3['w'], c3['b'],
           params['wl'], params['bl'], wif, bif)

    out = pl.pallas_call(
        kernel,
        out_shape=jax.ShapeDtypeStruct((B, out_w), jnp.float32),
        grid=(1,),
        in_specs=[_full_spec(a.shape) for a in ins],
        out_specs=_full_spec((B, out_w)),
        scratch_shapes=[
            pltpu.VMEM((B, H0 + 2, W0 + 2, C0), jnp.float32),   # padded input, stage 1
            pltpu.VMEM((B, H1 + 2, W1 + 2, C1), jnp.float32),   # padded input, stage 2
            pltpu.VMEM((B, H2 + 2, W2 + 2, C2), jnp.float32),   # padded input, stage 3
        ],
        compiler_params=pltpu.CompilerParams(
            dimension_semantics=("arbitrary",)),
    )(*ins)

    labels = out[:, :ncls]
    fe_output_features = out[:, ncls:ncls + C3]
    features = out[:, ncls + C3:ncls + C3 + fv]
    return labels, fe_output_features, features


# TODO(synk): group classifiers and gradient-reversal / dropout / BN training-time
# dynamics are not part of AsifModel.forward (backward-only or unused), so they
# are not implemented here.


# ------------------------------------------------------- pure-jnp reference --

def reference_forward(params, x_nchw):
    """Straight-line jnp/XLA reference with identical math (for verification)."""
    hi = jax.lax.Precision.HIGHEST

    def conv(xh, w, b):
        B, H, W, C = xh.shape
        xp = jnp.pad(xh, ((0, 0), (1, 1), (1, 1), (0, 0)))
        taps = [xp[:, dy:dy + H, dx:dx + W, :]
                for dy in range(3) for dx in range(3)]
        p = jnp.concatenate(taps, axis=-1).reshape(B * H * W, 9 * C)
        y = jnp.maximum(jnp.dot(p, w, precision=hi) + b, 0.0)
        return y.reshape(B, H, W, w.shape[1])

    def pool(xh):
        B, H, W, C = xh.shape
        return xh.reshape(B, H // 2, 2, W // 2, 2, C).max(axis=(2, 4))

    xh = jnp.transpose(x_nchw, (0, 2, 3, 1)).astype(jnp.float32)
    c1, c2, c3 = params['convs']
    xh = pool(conv(xh, c1['w'], c1['b']))
    xh = pool(conv(xh, c2['w'], c2['b']))
    xh = conv(xh, c3['w'], c3['b'])
    fe = jnp.maximum(jnp.mean(xh, axis=(1, 2)), 0.0)
    logits = jnp.dot(fe, params['wl'], precision=hi) + params['bl']
    labels = jax.nn.log_softmax(logits, axis=-1)
    h = jnp.dot(fe, params['ws'], precision=hi) + params['bs']
    feats = jnp.dot(h, params['wn'], precision=hi) + params['bn']
    return labels, fe, feats


# --------------------------------------------------------------------- main --

if __name__ == "__main__":
    key = jax.random.PRNGKey(0)
    pkey, xkey = jax.random.split(key)

    in_channels, class_count, fv = 4, 10, 32
    params = init_params(pkey, in_channels, class_count, fv)

    x = jax.random.normal(xkey, (2, in_channels, 16, 16), jnp.float32)  # NCHW

    labels, fe_feats, if_feats = jax.block_until_ready(
        jax.jit(asif_forward)(params, x))

    assert labels.shape == (2, class_count)
    assert fe_feats.shape == (2, 8)
    assert if_feats.shape == (2, fv)
    # log_softmax rows must sum to 1 in prob space
    assert bool(jnp.all(jnp.abs(jnp.sum(jnp.exp(labels), axis=1) - 1.0) < 1e-4))
    assert bool(jnp.all(fe_feats >= 0.0))   # ReLU'd feature vector

    # cross-check against a pure-jnp reference with identical math
    rl, rf, ri = jax.jit(reference_forward)(params, x)
    assert bool(jnp.max(jnp.abs(labels - rl)) < 5e-2)
    assert bool(jnp.max(jnp.abs(fe_feats - rf)) < 5e-2)
    assert bool(jnp.max(jnp.abs(if_feats - ri)) < 5e-2)

    print("KERNEL_OK")
</pallas_src>

<mosaic_0001>
module attributes {stable_mosaic.version = 11 : i64} {
  func.func @kernel(%arg0: i32, %arg1: memref<2x16x16x4xf32, #tpu.memory_space<vmem>>, %arg2: memref<36x2xf32, #tpu.memory_space<vmem>>, %arg3: memref<1x2xf32, #tpu.memory_space<vmem>>, %arg4: memref<18x4xf32, #tpu.memory_space<vmem>>, %arg5: memref<1x4xf32, #tpu.memory_space<vmem>>, %arg6: memref<36x8xf32, #tpu.memory_space<vmem>>, %arg7: memref<1x8xf32, #tpu.memory_space<vmem>>, %arg8: memref<8x10xf32, #tpu.memory_space<vmem>>, %arg9: memref<1x10xf32, #tpu.memory_space<vmem>>, %arg10: memref<8x32xf32, #tpu.memory_space<vmem>>, %arg11: memref<1x32xf32, #tpu.memory_space<vmem>>, %arg12: memref<2x128xf32, #tpu.memory_space<vmem>>, %arg13: memref<2x18x18x4xf32, #tpu.memory_space<vmem>>, %arg14: memref<2x10x10x2xf32, #tpu.memory_space<vmem>>, %arg15: memref<2x6x6x4xf32, #tpu.memory_space<vmem>>) attributes {dimension_semantics = [#tpu.dimension_semantics<arbitrary>], iteration_bounds = array<i64: 1>, scalar_prefetch = 0 : i64, scratch_operands = 3 : i64, tpu.core_type = #tpu.core_type<tc>, window_params = [{pipeline_mode = #tpu.pipeline_mode<synchronous>, transform_indices = @transform_0, window_bounds = array<i64: 2, 16, 16, 4>}, {pipeline_mode = #tpu.pipeline_mode<synchronous>, transform_indices = @transform_1, window_bounds = array<i64: 36, 2>}, {pipeline_mode = #tpu.pipeline_mode<synchronous>, transform_indices = @transform_2, window_bounds = array<i64: 1, 2>}, {pipeline_mode = #tpu.pipeline_mode<synchronous>, transform_indices = @transform_3, window_bounds = array<i64: 18, 4>}, {pipeline_mode = #tpu.pipeline_mode<synchronous>, transform_indices = @transform_4, window_bounds = array<i64: 1, 4>}, {pipeline_mode = #tpu.pipeline_mode<synchronous>, transform_indices = @transform_5, window_bounds = array<i64: 36, 8>}, {pipeline_mode = #tpu.pipeline_mode<synchronous>, transform_indices = @transform_6, window_bounds = array<i64: 1, 8>}, {pipeline_mode = #tpu.pipeline_mode<synchronous>, transform_indices = @transform_7, window_bounds = array<i64: 8, 10>}, {pipeline_mode = #tpu.pipeline_mode<synchronous>, transform_indices = @transform_8, window_bounds = array<i64: 1, 10>}, {pipeline_mode = #tpu.pipeline_mode<synchronous>, transform_indices = @transform_9, window_bounds = array<i64: 8, 32>}, {pipeline_mode = #tpu.pipeline_mode<synchronous>, transform_indices = @transform_10, window_bounds = array<i64: 1, 32>}, {pipeline_mode = #tpu.pipeline_mode<synchronous>, transform_indices = @transform_11, window_bounds = array<i64: 2, 128>}]} {
    %cst = arith.constant 0.000000e+00 : f32
    %0 = vector.broadcast %cst : f32 to vector<2x18x18x4xf32>
    %c0 = arith.constant 0 : index
    %c0_0 = arith.constant 0 : index
    %c0_1 = arith.constant 0 : index
    %c0_2 = arith.constant 0 : index
    %1 = vector.load %arg13[%c0, %c0_0, %c0_1, %c0_2] : memref<2x18x18x4xf32, #tpu.memory_space<vmem>>, vector<2x18x18x4xf32>
    tpu.vector_store %arg13[%c0, %c0_0, %c0_1, %c0_2], %0 {strides = array<i32>} : memref<2x18x18x4xf32, #tpu.memory_space<vmem>>, vector<2x18x18x4xf32>,
    %c0_3 = arith.constant 0 : index
    %c0_4 = arith.constant 0 : index
    %c0_5 = arith.constant 0 : index
    %c0_6 = arith.constant 0 : index
    %2 = vector.load %arg1[%c0_3, %c0_4, %c0_5, %c0_6] : memref<2x16x16x4xf32, #tpu.memory_space<vmem>>, vector<2x16x16x4xf32>
    %c0_7 = arith.constant 0 : index
    %c1 = arith.constant 1 : index
    %c1_8 = arith.constant 1 : index
    %c0_9 = arith.constant 0 : index
    %3 = vector.load %arg13[%c0_7, %c1, %c1_8, %c0_9] : memref<2x18x18x4xf32, #tpu.memory_space<vmem>>, vector<2x16x16x4xf32>
    tpu.vector_store %arg13[%c0_7, %c1, %c1_8, %c0_9], %2 {strides = array<i32>} : memref<2x18x18x4xf32, #tpu.memory_space<vmem>>, vector<2x16x16x4xf32>,
    %c0_10 = arith.constant 0 : index
    %c0_11 = arith.constant 0 : index
    %c0_12 = arith.constant 0 : index
    %c0_13 = arith.constant 0 : index
    %4 = vector.load %arg13[%c0_10, %c0_11, %c0_12, %c0_13] : memref<2x18x18x4xf32, #tpu.memory_space<vmem>>, vector<2x16x16x4xf32>
    %5 = vector.shape_cast %4 : vector<2x16x16x4xf32> to vector<512x4xf32>
    %c0_14 = arith.constant 0 : index
    %c0_15 = arith.constant 0 : index
    %c1_16 = arith.constant 1 : index
    %c0_17 = arith.constant 0 : index
    %6 = vector.load %arg13[%c0_14, %c0_15, %c1_16, %c0_17] : memref<2x18x18x4xf32, #tpu.memory_space<vmem>>, vector<2x16x16x4xf32>
    %7 = vector.shape_cast %6 : vector<2x16x16x4xf32> to vector<512x4xf32>
    %c0_18 = arith.constant 0 : index
    %c0_19 = arith.constant 0 : index
    %c2 = arith.constant 2 : index
    %c0_20 = arith.constant 0 : index
    %8 = vector.load %arg13[%c0_18, %c0_19, %c2, %c0_20] : memref<2x18x18x4xf32, #tpu.memory_space<vmem>>, vector<2x16x16x4xf32>
    %9 = vector.shape_cast %8 : vector<2x16x16x4xf32> to vector<512x4xf32>
    %c0_21 = arith.constant 0 : index
    %c1_22 = arith.constant 1 : index
    %c0_23 = arith.constant 0 : index
    %c0_24 = arith.constant 0 : index
    %10 = vector.load %arg13[%c0_21, %c1_22, %c0_23, %c0_24] : memref<2x18x18x4xf32, #tpu.memory_space<vmem>>, vector<2x16x16x4xf32>
    %11 = vector.shape_cast %10 : vector<2x16x16x4xf32> to vector<512x4xf32>
    %c0_25 = arith.constant 0 : index
    %c1_26 = arith.constant 1 : index
    %c1_27 = arith.constant 1 : index
    %c0_28 = arith.constant 0 : index
    %12 = vector.load %arg13[%c0_25, %c1_26, %c1_27, %c0_28] : memref<2x18x18x4xf32, #tpu.memory_space<vmem>>, vector<2x16x16x4xf32>
    %13 = vector.shape_cast %12 : vector<2x16x16x4xf32> to vector<512x4xf32>
    %c0_29 = arith.constant 0 : index
    %c1_30 = arith.constant 1 : index
    %c2_31 = arith.constant 2 : index
    %c0_32 = arith.constant 0 : index
    %14 = vector.load %arg13[%c0_29, %c1_30, %c2_31, %c0_32] : memref<2x18x18x4xf32, #tpu.memory_space<vmem>>, vector<2x16x16x4xf32>
    %15 = vector.shape_cast %14 : vector<2x16x16x4xf32> to vector<512x4xf32>
    %c0_33 = arith.constant 0 : index
    %c2_34 = arith.constant 2 : index
    %c0_35 = arith.constant 0 : index
    %c0_36 = arith.constant 0 : index
    %16 = vector.load %arg13[%c0_33, %c2_34, %c0_35, %c0_36] : memref<2x18x18x4xf32, #tpu.memory_space<vmem>>, vector<2x16x16x4xf32>
    %17 = vector.shape_cast %16 : vector<2x16x16x4xf32> to vector<512x4xf32>
    %c0_37 = arith.constant 0 : index
    %c2_38 = arith.constant 2 : index
    %c1_39 = arith.constant 1 : index
    %c0_40 = arith.constant 0 : index
    %18 = vector.load %arg13[%c0_37, %c2_38, %c1_39, %c0_40] : memref<2x18x18x4xf32, #tpu.memory_space<vmem>>, vector<2x16x16x4xf32>
    %19 = vector.shape_cast %18 : vector<2x16x16x4xf32> to vector<512x4xf32>
    %c0_41 = arith.constant 0 : index
    %c2_42 = arith.constant 2 : index
    %c2_43 = arith.constant 2 : index
    %c0_44 = arith.constant 0 : index
    %20 = vector.load %arg13[%c0_41, %c2_42, %c2_43, %c0_44] : memref<2x18x18x4xf32, #tpu.memory_space<vmem>>, vector<2x16x16x4xf32>
    %21 = vector.shape_cast %20 : vector<2x16x16x4xf32> to vector<512x4xf32>
    %22 = tpu.concatenate %5, %7, %9, %11, %13, %15, %17, %19, %21 in 1 : vector<512x4xf32>, vector<512x4xf32>, vector<512x4xf32>, vector<512x4xf32>, vector<512x4xf32>, vector<512x4xf32>, vector<512x4xf32>, vector<512x4xf32>, vector<512x4xf32> -> vector<512x36xf32>
    %c0_45 = arith.constant 0 : index
    %c0_46 = arith.constant 0 : index
    %23 = vector.load %arg2[%c0_45, %c0_46] : memref<36x2xf32, #tpu.memory_space<vmem>>, vector<36x2xf32>
    %cst_47 = arith.constant dense<0.000000e+00> : vector<512x2xf32>
    %24 = tpu.matmul %22, %23, %cst_47 {dimension_numbers = #tpu.dot_dimension_numbers<[1], [0], [0], [1], [0, 0, 1, 1], [], []>} : vector<512x36xf32>, vector<36x2xf32>, vector<512x2xf32> -> vector<512x2xf32>
    %c0_48 = arith.constant 0 : index
    %c0_49 = arith.constant 0 : index
    %25 = vector.load %arg3[%c0_48, %c0_49] : memref<1x2xf32, #tpu.memory_space<vmem>>, vector<1x2xf32>
    %26 = vector.broadcast %25 : vector<1x2xf32> to vector<512x2xf32>
    %27 = arith.addf %24, %26 : vector<512x2xf32>
    %cst_50 = arith.constant 0.000000e+00 : f32
    %28 = vector.broadcast %cst_50 : f32 to vector<512x2xf32>
    %29 = arith.maximumf %27, %28 : vector<512x2xf32>
    %30 = vector.shape_cast %29 : vector<512x2xf32> to vector<256x2x2xf32>
    %cst_51 = arith.constant dense<0xFF800000> : vector<256x2xf32>
    %31 = vector.multi_reduction <maximumf>, %30, %cst_51 [1] : vector<256x2x2xf32> to vector<256x2xf32>
    %32 = vector.shape_cast %31 : vector<256x2xf32> to vector<16x2x8x2xf32>
    %33 = vector.extract_strided_slice %32 {offsets = [0, 0, 0, 0], sizes = [16, 1, 8, 2], strides = [1, 1, 1, 1]} : vector<16x2x8x2xf32> to vector<16x1x8x2xf32>
    %34 = vector.shape_cast %33 : vector<16x1x8x2xf32> to vector<16x8x2xf32>
    %35 = vector.extract_strided_slice %32 {offsets = [0, 1, 0, 0], sizes = [16, 1, 8, 2], strides = [1, 1, 1, 1]} : vector<16x2x8x2xf32> to vector<16x1x8x2xf32>
    %36 = vector.shape_cast %35 : vector<16x1x8x2xf32> to vector<16x8x2xf32>
    %37 = arith.maximumf %34, %36 : vector<16x8x2xf32>
    %38 = vector.shape_cast %37 : vector<16x8x2xf32> to vector<2x8x8x2xf32>
    %cst_52 = arith.constant 0.000000e+00 : f32
    %39 = vector.broadcast %cst_52 : f32 to vector<2x10x10x2xf32>
    %c0_53 = arith.constant 0 : index
    %c0_54 = arith.constant 0 : index
    %c0_55 = arith.constant 0 : index
    %c0_56 = arith.constant 0 : index
    %40 = vector.load %arg14[%c0_53, %c0_54, %c0_55, %c0_56] : memref<2x10x10x2xf32, #tpu.memory_space<vmem>>, vector<2x10x10x2xf32>
    tpu.vector_store %arg14[%c0_53, %c0_54, %c0_55, %c0_56], %39 {strides = array<i32>} : memref<2x10x10x2xf32, #tpu.memory_space<vmem>>, vector<2x10x10x2xf32>,
    %c0_57 = arith.constant 0 : index
    %c1_58 = arith.constant 1 : index
    %c1_59 = arith.constant 1 : index
    %c0_60 = arith.constant 0 : index
    %41 = vector.load %arg14[%c0_57, %c1_58, %c1_59, %c0_60] : memref<2x10x10x2xf32, #tpu.memory_space<vmem>>, vector<2x8x8x2xf32>
    tpu.vector_store %arg14[%c0_57, %c1_58, %c1_59, %c0_60], %38 {strides = array<i32>} : memref<2x10x10x2xf32, #tpu.memory_space<vmem>>, vector<2x8x8x2xf32>,
    %c0_61 = arith.constant 0 : index
    %c0_62 = arith.constant 0 : index
    %c0_63 = arith.constant 0 : index
    %c0_64 = arith.constant 0 : index
    %42 = vector.load %arg14[%c0_61, %c0_62, %c0_63, %c0_64] : memref<2x10x10x2xf32, #tpu.memory_space<vmem>>, vector<2x8x8x2xf32>
    %43 = vector.shape_cast %42 : vector<2x8x8x2xf32> to vector<128x2xf32>
    %c0_65 = arith.constant 0 : index
    %c0_66 = arith.constant 0 : index
    %c1_67 = arith.constant 1 : index
    %c0_68 = arith.constant 0 : index
    %44 = vector.load %arg14[%c0_65, %c0_66, %c1_67, %c0_68] : memref<2x10x10x2xf32, #tpu.memory_space<vmem>>, vector<2x8x8x2xf32>
    %45 = vector.shape_cast %44 : vector<2x8x8x2xf32> to vector<128x2xf32>
    %c0_69 = arith.constant 0 : index
    %c0_70 = arith.constant 0 : index
    %c2_71 = arith.constant 2 : index
    %c0_72 = arith.constant 0 : index
    %46 = vector.load %arg14[%c0_69, %c0_70, %c2_71, %c0_72] : memref<2x10x10x2xf32, #tpu.memory_space<vmem>>, vector<2x8x8x2xf32>
    %47 = vector.shape_cast %46 : vector<2x8x8x2xf32> to vector<128x2xf32>
    %c0_73 = arith.constant 0 : index
    %c1_74 = arith.constant 1 : index
    %c0_75 = arith.constant 0 : index
    %c0_76 = arith.constant 0 : index
    %48 = vector.load %arg14[%c0_73, %c1_74, %c0_75, %c0_76] : memref<2x10x10x2xf32, #tpu.memory_space<vmem>>, vector<2x8x8x2xf32>
    %49 = vector.shape_cast %48 : vector<2x8x8x2xf32> to vector<128x2xf32>
    %c0_77 = arith.constant 0 : index
    %c1_78 = arith.constant 1 : index
    %c1_79 = arith.constant 1 : index
    %c0_80 = arith.constant 0 : index
    %50 = vector.load %arg14[%c0_77, %c1_78, %c1_79, %c0_80] : memref<2x10x10x2xf32, #tpu.memory_space<vmem>>, vector<2x8x8x2xf32>
    %51 = vector.shape_cast %50 : vector<2x8x8x2xf32> to vector<128x2xf32>
    %c0_81 = arith.constant 0 : index
    %c1_82 = arith.constant 1 : index
    %c2_83 = arith.constant 2 : index
    %c0_84 = arith.constant 0 : index
    %52 = vector.load %arg14[%c0_81, %c1_82, %c2_83, %c0_84] : memref<2x10x10x2xf32, #tpu.memory_space<vmem>>, vector<2x8x8x2xf32>
    %53 = vector.shape_cast %52 : vector<2x8x8x2xf32> to vector<128x2xf32>
    %c0_85 = arith.constant 0 : index
    %c2_86 = arith.constant 2 : index
    %c0_87 = arith.constant 0 : index
    %c0_88 = arith.constant 0 : index
    %54 = vector.load %arg14[%c0_85, %c2_86, %c0_87, %c0_88] : memref<2x10x10x2xf32, #tpu.memory_space<vmem>>, vector<2x8x8x2xf32>
    %55 = vector.shape_cast %54 : vector<2x8x8x2xf32> to vector<128x2xf32>
    %c0_89 = arith.constant 0 : index
    %c2_90 = arith.constant 2 : index
    %c1_91 = arith.constant 1 : index
    %c0_92 = arith.constant 0 : index
    %56 = vector.load %arg14[%c0_89, %c2_90, %c1_91, %c0_92] : memref<2x10x10x2xf32, #tpu.memory_space<vmem>>, vector<2x8x8x2xf32>
    %57 = vector.shape_cast %56 : vector<2x8x8x2xf32> to vector<128x2xf32>
    %c0_93 = arith.constant 0 : index
    %c2_94 = arith.constant 2 : index
    %c2_95 = arith.constant 2 : index
    %c0_96 = arith.constant 0 : index
    %58 = vector.load %arg14[%c0_93, %c2_94, %c2_95, %c0_96] : memref<2x10x10x2xf32, #tpu.memory_space<vmem>>, vector<2x8x8x2xf32>
    %59 = vector.shape_cast %58 : vector<2x8x8x2xf32> to vector<128x2xf32>
    %60 = tpu.concatenate %43, %45, %47, %49, %51, %53, %55, %57, %59 in 1 : vector<128x2xf32>, vector<128x2xf32>, vector<128x2xf32>, vector<128x2xf32>, vector<128x2xf32>, vector<128x2xf32>, vector<128x2xf32>, vector<128x2xf32>, vector<128x2xf32> -> vector<128x18xf32>
    %c0_97 = arith.constant 0 : index
    %c0_98 = arith.constant 0 : index
    %61 = vector.load %arg4[%c0_97, %c0_98] : memref<18x4xf32, #tpu.memory_space<vmem>>, vector<18x4xf32>
    %cst_99 = arith.constant dense<0.000000e+00> : vector<128x4xf32>
    %62 = tpu.matmul %60, %61, %cst_99 {dimension_numbers = #tpu.dot_dimension_numbers<[1], [0], [0], [1], [0, 0, 1, 1], [], []>} : vector<128x18xf32>, vector<18x4xf32>, vector<128x4xf32> -> vector<128x4xf32>
    %c0_100 = arith.constant 0 : index
    %c0_101 = arith.constant 0 : index
    %63 = vector.load %arg5[%c0_100, %c0_101] : memref<1x4xf32, #tpu.memory_space<vmem>>, vector<1x4xf32>
    %64 = vector.broadcast %63 : vector<1x4xf32> to vector<128x4xf32>
    %65 = arith.addf %62, %64 : vector<128x4xf32>
    %cst_102 = arith.constant 0.000000e+00 : f32
    %66 = vector.broadcast %cst_102 : f32 to vector<128x4xf32>
    %67 = arith.maximumf %65, %66 : vector<128x4xf32>
    %68 = vector.shape_cast %67 : vector<128x4xf32> to vector<64x2x4xf32>
    %cst_103 = arith.constant dense<0xFF800000> : vector<64x4xf32>
    %69 = vector.multi_reduction <maximumf>, %68, %cst_103 [1] : vector<64x2x4xf32> to vector<64x4xf32>
    %70 = vector.shape_cast %69 : vector<64x4xf32> to vector<8x2x4x4xf32>
    %71 = vector.extract_strided_slice %70 {offsets = [0, 0, 0, 0], sizes = [8, 1, 4, 4], strides = [1, 1, 1, 1]} : vector<8x2x4x4xf32> to vector<8x1x4x4xf32>
    %72 = vector.shape_cast %71 : vector<8x1x4x4xf32> to vector<8x4x4xf32>
    %73 = vector.extract_strided_slice %70 {offsets = [0, 1, 0, 0], sizes = [8, 1, 4, 4], strides = [1, 1, 1, 1]} : vector<8x2x4x4xf32> to vector<8x1x4x4xf32>
    %74 = vector.shape_cast %73 : vector<8x1x4x4xf32> to vector<8x4x4xf32>
    %75 = arith.maximumf %72, %74 : vector<8x4x4xf32>
    %76 = vector.shape_cast %75 : vector<8x4x4xf32> to vector<2x4x4x4xf32>
    %cst_104 = arith.constant 0.000000e+00 : f32
    %77 = vector.broadcast %cst_104 : f32 to vector<2x6x6x4xf32>
    %c0_105 = arith.constant 0 : index
    %c0_106 = arith.constant 0 : index
    %c0_107 = arith.constant 0 : index
    %c0_108 = arith.constant 0 : index
    %78 = vector.load %arg15[%c0_105, %c0_106, %c0_107, %c0_108] : memref<2x6x6x4xf32, #tpu.memory_space<vmem>>, vector<2x6x6x4xf32>
    tpu.vector_store %arg15[%c0_105, %c0_106, %c0_107, %c0_108], %77 {strides = array<i32>} : memref<2x6x6x4xf32, #tpu.memory_space<vmem>>, vector<2x6x6x4xf32>,
    %c0_109 = arith.constant 0 : index
    %c1_110 = arith.constant 1 : index
    %c1_111 = arith.constant 1 : index
    %c0_112 = arith.constant 0 : index
    %79 = vector.load %arg15[%c0_109, %c1_110, %c1_111, %c0_112] : memref<2x6x6x4xf32, #tpu.memory_space<vmem>>, vector<2x4x4x4xf32>
    tpu.vector_store %arg15[%c0_109, %c1_110, %c1_111, %c0_112], %76 {strides = array<i32>} : memref<2x6x6x4xf32, #tpu.memory_space<vmem>>, vector<2x4x4x4xf32>,
    %c0_113 = arith.constant 0 : index
    %c0_114 = arith.constant 0 : index
    %c0_115 = arith.constant 0 : index
    %c0_116 = arith.constant 0 : index
    %80 = vector.load %arg15[%c0_113, %c0_114, %c0_115, %c0_116] : memref<2x6x6x4xf32, #tpu.memory_space<vmem>>, vector<2x4x4x4xf32>
    %81 = vector.shape_cast %80 : vector<2x4x4x4xf32> to vector<32x4xf32>
    %c0_117 = arith.constant 0 : index
    %c0_118 = arith.constant 0 : index
    %c1_119 = arith.constant 1 : index
    %c0_120 = arith.constant 0 : index
    %82 = vector.load %arg15[%c0_117, %c0_118, %c1_119, %c0_120] : memref<2x6x6x4xf32, #tpu.memory_space<vmem>>, vector<2x4x4x4xf32>
    %83 = vector.shape_cast %82 : vector<2x4x4x4xf32> to vector<32x4xf32>
    %c0_121 = arith.constant 0 : index
    %c0_122 = arith.constant 0 : index
    %c2_123 = arith.constant 2 : index
    %c0_124 = arith.constant 0 : index
    %84 = vector.load %arg15[%c0_121, %c0_122, %c2_123, %c0_124] : memref<2x6x6x4xf32, #tpu.memory_space<vmem>>, vector<2x4x4x4xf32>
    %85 = vector.shape_cast %84 : vector<2x4x4x4xf32> to vector<32x4xf32>
    %c0_125 = arith.constant 0 : index
    %c1_126 = arith.constant 1 : index
    %c0_127 = arith.constant 0 : index
    %c0_128 = arith.constant 0 : index
    %86 = vector.load %arg15[%c0_125, %c1_126, %c0_127, %c0_128] : memref<2x6x6x4xf32, #tpu.memory_space<vmem>>, vector<2x4x4x4xf32>
    %87 = vector.shape_cast %86 : vector<2x4x4x4xf32> to vector<32x4xf32>
    %c0_129 = arith.constant 0 : index
    %c1_130 = arith.constant 1 : index
    %c1_131 = arith.constant 1 : index
    %c0_132 = arith.constant 0 : index
    %88 = vector.load %arg15[%c0_129, %c1_130, %c1_131, %c0_132] : memref<2x6x6x4xf32, #tpu.memory_space<vmem>>, vector<2x4x4x4xf32>
    %89 = vector.shape_cast %88 : vector<2x4x4x4xf32> to vector<32x4xf32>
    %c0_133 = arith.constant 0 : index
    %c1_134 = arith.constant 1 : index
    %c2_135 = arith.constant 2 : index
    %c0_136 = arith.constant 0 : index
    %90 = vector.load %arg15[%c0_133, %c1_134, %c2_135, %c0_136] : memref<2x6x6x4xf32, #tpu.memory_space<vmem>>, vector<2x4x4x4xf32>
    %91 = vector.shape_cast %90 : vector<2x4x4x4xf32> to vector<32x4xf32>
    %c0_137 = arith.constant 0 : index
    %c2_138 = arith.constant 2 : index
    %c0_139 = arith.constant 0 : index
    %c0_140 = arith.constant 0 : index
    %92 = vector.load %arg15[%c0_137, %c2_138, %c0_139, %c0_140] : memref<2x6x6x4xf32, #tpu.memory_space<vmem>>, vector<2x4x4x4xf32>
    %93 = vector.shape_cast %92 : vector<2x4x4x4xf32> to vector<32x4xf32>
    %c0_141 = arith.constant 0 : index
    %c2_142 = arith.constant 2 : index
    %c1_143 = arith.constant 1 : index
    %c0_144 = arith.constant 0 : index
    %94 = vector.load %arg15[%c0_141, %c2_142, %c1_143, %c0_144] : memref<2x6x6x4xf32, #tpu.memory_space<vmem>>, vector<2x4x4x4xf32>
    %95 = vector.shape_cast %94 : vector<2x4x4x4xf32> to vector<32x4xf32>
    %c0_145 = arith.constant 0 : index
    %c2_146 = arith.constant 2 : index
    %c2_147 = arith.constant 2 : index
    %c0_148 = arith.constant 0 : index
    %96 = vector.load %arg15[%c0_145, %c2_146, %c2_147, %c0_148] : memref<2x6x6x4xf32, #tpu.memory_space<vmem>>, vector<2x4x4x4xf32>
    %97 = vector.shape_cast %96 : vector<2x4x4x4xf32> to vector<32x4xf32>
    %98 = tpu.concatenate %81, %83, %85, %87, %89, %91, %93, %95, %97 in 1 : vector<32x4xf32>, vector<32x4xf32>, vector<32x4xf32>, vector<32x4xf32>, vector<32x4xf32>, vector<32x4xf32>, vector<32x4xf32>, vector<32x4xf32>, vector<32x4xf32> -> vector<32x36xf32>
    %c0_149 = arith.constant 0 : index
    %c0_150 = arith.constant 0 : index
    %99 = vector.load %arg6[%c0_149, %c0_150] : memref<36x8xf32, #tpu.memory_space<vmem>>, vector<36x8xf32>
    %cst_151 = arith.constant dense<0.000000e+00> : vector<32x8xf32>
    %100 = tpu.matmul %98, %99, %cst_151 {dimension_numbers = #tpu.dot_dimension_numbers<[1], [0], [0], [1], [0, 0, 1, 1], [], []>} : vector<32x36xf32>, vector<36x8xf32>, vector<32x8xf32> -> vector<32x8xf32>
    %c0_152 = arith.constant 0 : index
    %c0_153 = arith.constant 0 : index
    %101 = vector.load %arg7[%c0_152, %c0_153] : memref<1x8xf32, #tpu.memory_space<vmem>>, vector<1x8xf32>
    %102 = vector.broadcast %101 : vector<1x8xf32> to vector<32x8xf32>
    %103 = arith.addf %100, %102 : vector<32x8xf32>
    %cst_154 = arith.constant 0.000000e+00 : f32
    %104 = vector.broadcast %cst_154 : f32 to vector<32x8xf32>
    %105 = arith.maximumf %103, %104 : vector<32x8xf32>
    %106 = vector.shape_cast %105 : vector<32x8xf32> to vector<2x16x8xf32>
    %cst_155 = arith.constant dense<0.000000e+00> : vector<2x8xf32>
    %107 = vector.multi_reduction <add>, %106, %cst_155 [1] : vector<2x16x8xf32> to vector<2x8xf32>
    %cst_156 = arith.constant 1.600000e+01 : f32
    %108 = vector.broadcast %cst_156 : f32 to vector<2x8xf32>
    %109 = arith.divf %107, %108 : vector<2x8xf32>
    %cst_157 = arith.constant 0.000000e+00 : f32
    %110 = vector.broadcast %cst_157 : f32 to vector<2x8xf32>
    %111 = arith.maximumf %109, %110 : vector<2x8xf32>
    %c0_158 = arith.constant 0 : index
    %c0_159 = arith.constant 0 : index
    %112 = vector.load %arg8[%c0_158, %c0_159] : memref<8x10xf32, #tpu.memory_space<vmem>>, vector<8x10xf32>
    %cst_160 = arith.constant dense<0.000000e+00> : vector<2x10xf32>
    %113 = tpu.matmul %111, %112, %cst_160 {dimension_numbers = #tpu.dot_dimension_numbers<[1], [0], [0], [1], [0, 0, 1, 1], [], []>} : vector<2x8xf32>, vector<8x10xf32>, vector<2x10xf32> -> vector<2x10xf32>
    %c0_161 = arith.constant 0 : index
    %c0_162 = arith.constant 0 : index
    %114 = vector.load %arg9[%c0_161, %c0_162] : memref<1x10xf32, #tpu.memory_space<vmem>>, vector<1x10xf32>
    %115 = vector.broadcast %114 : vector<1x10xf32> to vector<2x10xf32>
    %116 = arith.addf %113, %115 : vector<2x10xf32>
    %cst_163 = arith.constant dense<0xFF800000> : vector<2xf32>
    %117 = vector.multi_reduction <maximumf>, %116, %cst_163 [1] : vector<2x10xf32> to vector<2xf32>
    %118 = vector.shape_cast %117 : vector<2xf32> to vector<2x1xf32>
    %119 = vector.broadcast %118 : vector<2x1xf32> to vector<2x10xf32>
    %120 = arith.subf %116, %119 : vector<2x10xf32>
    %121 = math.exp %120 : vector<2x10xf32>
    %cst_164 = arith.constant dense<0.000000e+00> : vector<2xf32>
    %122 = vector.multi_reduction <add>, %121, %cst_164 [1] : vector<2x10xf32> to vector<2xf32>
    %123 = vector.shape_cast %122 : vector<2xf32> to vector<2x1xf32>
    %124 = math.log %123 : vector<2x1xf32>
    %125 = arith.addf %118, %124 : vector<2x1xf32>
    %126 = vector.broadcast %125 : vector<2x1xf32> to vector<2x10xf32>
    %127 = arith.subf %116, %126 : vector<2x10xf32>
    %c0_165 = arith.constant 0 : index
    %c0_166 = arith.constant 0 : index
    %128 = vector.load %arg10[%c0_165, %c0_166] : memref<8x32xf32, #tpu.memory_space<vmem>>, vector<8x32xf32>
    %cst_167 = arith.constant dense<0.000000e+00> : vector<2x32xf32>
    %129 = tpu.matmul %111, %128, %cst_167 {dimension_numbers = #tpu.dot_dimension_numbers<[1], [0], [0], [1], [0, 0, 1, 1], [], []>} : vector<2x8xf32>, vector<8x32xf32>, vector<2x32xf32> -> vector<2x32xf32>
    %c0_168 = arith.constant 0 : index
    %c0_169 = arith.constant 0 : index
    %130 = vector.load %arg11[%c0_168, %c0_169] : memref<1x32xf32, #tpu.memory_space<vmem>>, vector<1x32xf32>
    %131 = vector.broadcast %130 : vector<1x32xf32> to vector<2x32xf32>
    %132 = arith.addf %129, %131 : vector<2x32xf32>
    %cst_170 = arith.constant 0.000000e+00 : f32
    %133 = vector.broadcast %cst_170 : f32 to vector<2x78xf32>
    %134 = tpu.concatenate %127, %111, %132, %133 in 1 : vector<2x10xf32>, vector<2x8xf32>, vector<2x32xf32>, vector<2x78xf32> -> vector<2x128xf32>
    %c0_171 = arith.constant 0 : index
    %c0_172 = arith.constant 0 : index
    %135 = vector.load %arg12[%c0_171, %c0_172] : memref<2x128xf32, #tpu.memory_space<vmem>>, vector<2x128xf32>
    tpu.vector_store %arg12[%c0_171, %c0_172], %134 {strides = array<i32>} : memref<2x128xf32, #tpu.memory_space<vmem>>, vector<2x128xf32>,
    return
  }
  func.func @transform_0(%arg0: i32) -> (i32, i32, i32, i32) {
    %c0_i32 = arith.constant 0 : i32
    %c0_i32_0 = arith.constant 0 : i32
    %c0_i32_1 = arith.constant 0 : i32
    %c0_i32_2 = arith.constant 0 : i32
    %c0_i32_3 = arith.constant 0 : i32
    return %c0_i32, %c0_i32_0, %c0_i32_1, %c0_i32_2 : i32, i32, i32, i32
  }
  func.func @transform_1(%arg0: i32) -> (i32, i32) {
    %c0_i32 = arith.constant 0 : i32
    %c0_i32_0 = arith.constant 0 : i32
    %c0_i32_1 = arith.constant 0 : i32
    return %c0_i32, %c0_i32_0 : i32, i32
  }
  func.func @transform_2(%arg0: i32) -> (i32, i32) {
    %c0_i32 = arith.constant 0 : i32
    %c0_i32_0 = arith.constant 0 : i32
    %c0_i32_1 = arith.constant 0 : i32
    return %c0_i32, %c0_i32_0 : i32, i32
  }
  func.func @transform_3(%arg0: i32) -> (i32, i32) {
    %c0_i32 = arith.constant 0 : i32
    %c0_i32_0 = arith.constant 0 : i32
    %c0_i32_1 = arith.constant 0 : i32
    return %c0_i32, %c0_i32_0 : i32, i32
  }
  func.func @transform_4(%arg0: i32) -> (i32, i32) {
    %c0_i32 = arith.constant 0 : i32
    %c0_i32_0 = arith.constant 0 : i32
    %c0_i32_1 = arith.constant 0 : i32
    return %c0_i32, %c0_i32_0 : i32, i32
  }
  func.func @transform_5(%arg0: i32) -> (i32, i32) {
    %c0_i32 = arith.constant 0 : i32
    %c0_i32_0 = arith.constant 0 : i32
    %c0_i32_1 = arith.constant 0 : i32
    return %c0_i32, %c0_i32_0 : i32, i32
  }
  func.func @transform_6(%arg0: i32) -> (i32, i32) {
    %c0_i32 = arith.constant 0 : i32
    %c0_i32_0 = arith.constant 0 : i32
    %c0_i32_1 = arith.constant 0 : i32
    return %c0_i32, %c0_i32_0 : i32, i32
  }
  func.func @transform_7(%arg0: i32) -> (i32, i32) {
    %c0_i32 = arith.constant 0 : i32
    %c0_i32_0 = arith.constant 0 : i32
    %c0_i32_1 = arith.constant 0 : i32
    return %c0_i32, %c0_i32_0 : i32, i32
  }
  func.func @transform_8(%arg0: i32) -> (i32, i32) {
    %c0_i32 = arith.constant 0 : i32
    %c0_i32_0 = arith.constant 0 : i32
    %c0_i32_1 = arith.constant 0 : i32
    return %c0_i32, %c0_i32_0 : i32, i32
  }
  func.func @transform_9(%arg0: i32) -> (i32, i32) {
    %c0_i32 = arith.constant 0 : i32
    %c0_i32_0 = arith.constant 0 : i32
    %c0_i32_1 = arith.constant 0 : i32
    return %c0_i32, %c0_i32_0 : i32, i32
  }
  func.func @transform_10(%arg0: i32) -> (i32, i32) {
    %c0_i32 = arith.constant 0 : i32
    %c0_i32_0 = arith.constant 0 : i32
    %c0_i32_1 = arith.constant 0 : i32
    return %c0_i32, %c0_i32_0 : i32, i32
  }
  func.func @transform_11(%arg0: i32) -> (i32, i32) {
    %c0_i32 = arith.constant 0 : i32
    %c0_i32_0 = arith.constant 0 : i32
    %c0_i32_1 = arith.constant 0 : i32
    return %c0_i32, %c0_i32_0 : i32, i32
  }
}

</mosaic_0001>

<llo_original>
// kernel: asif_forward.1
$region0: #{asif_forward.1}
  #allocation0 [shape = 'u32[]', space=smem, size = 0x4, offset = 0x4, fixed_abs, tag = 'smem constant byte address 0x4 - core index']
  #allocation1 [shape = 'u32[144,128]{1,0:T(1,128)}', space=vmem, size = 0x12000, scoped, tag = 'internal scratch']
  #allocation2 [shape = 'f32[2,18,18,4]{3,2,1,0:T(8,128)}', space=vmem, size = 0x6c000, scoped, tag = 'scratch operand']
  #allocation3 [shape = 'f32[2,10,10,2]{3,2,1,0:T(8,128)}', space=vmem, size = 0x28000, scoped, tag = 'scratch operand']
  #allocation4 [shape = 'f32[2,6,6,4]{3,2,1,0:T(8,128)}', space=vmem, size = 0xc000, scoped, tag = 'scratch operand']
  %s0 = inlined_call_operand.vmem [shape: f32[2,16,16,4], index: 0, kind: input, shape index: {}]
  %s1 = inlined_call_operand.vmem [shape: f32[36,2], index: 1, kind: input, shape index: {}]
  %s2 = inlined_call_operand.vmem [shape: f32[1,2], index: 2, kind: input, shape index: {}]
  %s3 = inlined_call_operand.vmem [shape: f32[18,4], index: 3, kind: input, shape index: {}]
  %s4 = inlined_call_operand.vmem [shape: f32[1,4], index: 4, kind: input, shape index: {}]
  %s5 = inlined_call_operand.vmem [shape: f32[36,8], index: 5, kind: input, shape index: {}]
  %s6 = inlined_call_operand.vmem [shape: f32[1,8], index: 6, kind: input, shape index: {}]
  %s7 = inlined_call_operand.vmem [shape: f32[8,10], index: 7, kind: input, shape index: {}]
  %s8 = inlined_call_operand.vmem [shape: f32[1,10], index: 8, kind: input, shape index: {}]
  %s9 = inlined_call_operand.vmem [shape: f32[8,32], index: 9, kind: input, shape index: {}]
  %s10 = inlined_call_operand.vmem [shape: f32[1,32], index: 10, kind: input, shape index: {}]
  %s11 = inlined_call_operand.vmem [shape: f32[2,128], index: 11, kind: output, shape index: {}]
  %s12 = sld [smem:[#allocation0]]
  $region54: #{asif_forward.1} parent=0
    _
  %s14 = ssub.s32 1, %s12
  %s15 = scalar_select 0, %s14, %s12
  // Predicated region
  $region2: #{asif_forward.1} parent=0 // pred_check
    _
  $region3: #{asif_forward.1} parent=0 // pred_check_branch
    %17 = sbr.rel (0) target = $region5
  $region4: #{asif_forward.1} parent=0 // pred_region
    _
  $region5: #{asif_forward.1} parent=0 // pred_fallthru
    _
  // Predicated region
  $region6: #{asif_forward.1} parent=0 // pred_check
    _
  $region7: #{asif_forward.1} parent=0 // pred_check_branch
    %19 = sbr.rel (0) target = $region9
  $region8: #{asif_forward.1} parent=0 // pred_region
    _
  $region9: #{asif_forward.1} parent=0 // pred_fallthru
    _
  // Predicated region
  $region10: #{asif_forward.1} parent=0 // pred_check
    _
  $region11: #{asif_forward.1} parent=0 // pred_check_branch
    %21 = sbr.rel (0) target = $region13
  $region12: #{asif_forward.1} parent=0 // pred_region
    _
  $region13: #{asif_forward.1} parent=0 // pred_fallthru
    _
  // Predicated region
  $region14: #{asif_forward.1} parent=0 // pred_check
    _
  $region15: #{asif_forward.1} parent=0 // pred_check_branch
    %23 = sbr.rel (0) target = $region17
  $region16: #{asif_forward.1} parent=0 // pred_region
    _
  $region17: #{asif_forward.1} parent=0 // pred_fallthru
    _
  // Predicated region
  $region18: #{asif_forward.1} parent=0 // pred_check
    _
  $region19: #{asif_forward.1} parent=0 // pred_check_branch
    %25 = sbr.rel (0) target = $region21
  $region20: #{asif_forward.1} parent=0 // pred_region
    _
  $region21: #{asif_forward.1} parent=0 // pred_fallthru
    _
  // Predicated region
  $region22: #{asif_forward.1} parent=0 // pred_check
    _
  $region23: #{asif_forward.1} parent=0 // pred_check_branch
    %27 = sbr.rel (0) target = $region25
  $region24: #{asif_forward.1} parent=0 // pred_region
    _
  $region25: #{asif_forward.1} parent=0 // pred_fallthru
    _
  // Predicated region
  $region26: #{asif_forward.1} parent=0 // pred_check
    _
  $region27: #{asif_forward.1} parent=0 // pred_check_branch
    %29 = sbr.rel (0) target = $region29
  $region28: #{asif_forward.1} parent=0 // pred_region
    _
  $region29: #{asif_forward.1} parent=0 // pred_fallthru
    _
  // Predicated region
  $region30: #{asif_forward.1} parent=0 // pred_check
    _
  $region31: #{asif_forward.1} parent=0 // pred_check_branch
    %31 = sbr.rel (0) target = $region33
  $region32: #{asif_forward.1} parent=0 // pred_region
    _
  $region33: #{asif_forward.1} parent=0 // pred_fallthru
    _
  // Predicated region
  $region34: #{asif_forward.1} parent=0 // pred_check
    _
  $region35: #{asif_forward.1} parent=0 // pred_check_branch
    %33 = sbr.rel (0) target = $region37
  $region36: #{asif_forward.1} parent=0 // pred_region
    _
  $region37: #{asif_forward.1} parent=0 // pred_fallthru
    _
  // Predicated region
  $region38: #{asif_forward.1} parent=0 // pred_check
    _
  $region39: #{asif_forward.1} parent=0 // pred_check_branch
    %35 = sbr.rel (0) target = $region41
  $region40: #{asif_forward.1} parent=0 // pred_region
    _
  $region41: #{asif_forward.1} parent=0 // pred_fallthru
    _
  // Predicated region
  $region42: #{asif_forward.1} parent=0 // pred_check
    _
  $region43: #{asif_forward.1} parent=0 // pred_check_branch
    %37 = sbr.rel (0) target = $region45
  $region44: #{asif_forward.1} parent=0 // pred_region
    _
  $region45: #{asif_forward.1} parent=0 // pred_fallthru
    _
  %vm38 = vcmask 31744
  %39 = vst.msk [vmem:[#allocation2] sm:$0xff] %vm38, 0.0
  %40 = vst.msk [vmem:[#allocation2 + $0x8] sm:$0xff] %vm38, 0.0
  %vm41 = vcmask 25600
  %42 = vst.msk [vmem:[#allocation2 + $0x10] sm:$0x3] %vm41, 0.0
  %43 = vst.msk [vmem:[#allocation2 + $0x18] sm:$0xff] %vm38, 0.0
  %44 = vst.msk [vmem:[#allocation2 + $0x20] sm:$0xff] %vm38, 0.0
  %45 = vst.msk [vmem:[#allocation2 + $0x28] sm:$0x3] %vm41, 0.0
  %46 = vst.msk [vmem:[#allocation2 + $0x30] sm:$0xff] %vm38, 0.0
  %47 = vst.msk [vmem:[#allocation2 + $0x38] sm:$0xff] %vm38, 0.0
  %48 = vst.msk [vmem:[#allocation2 + $0x40] sm:$0x3] %vm41, 0.0
  %49 = vst.msk [vmem:[#allocation2 + $0x48] sm:$0xff] %vm38, 0.0
  %50 = vst.msk [vmem:[#allocation2 + $0x50] sm:$0xff] %vm38, 0.0
  %51 = vst.msk [vmem:[#allocation2 + $0x58] sm:$0x3] %vm41, 0.0
  %52 = vst.msk [vmem:[#allocation2 + $0x60] sm:$0xff] %vm38, 0.0
  %53 = vst.msk [vmem:[#allocation2 + $0x68] sm:$0xff] %vm38, 0.0
  %54 = vst.msk [vmem:[#allocation2 + $0x70] sm:$0x3] %vm41, 0.0
  %55 = vst.msk [vmem:[#allocation2 + $0x78] sm:$0xff] %vm38, 0.0
  %56 = vst.msk [vmem:[#allocation2 + $0x80] sm:$0xff] %vm38, 0.0
  %57 = vst.msk [vmem:[#allocation2 + $0x88] sm:$0x3] %vm41, 0.0
  %58 = vst.msk [vmem:[#allocation2 + $0x90] sm:$0xff] %vm38, 0.0
  %59 = vst.msk [vmem:[#allocation2 + $0x98] sm:$0xff] %vm38, 0.0
  %60 = vst.msk [vmem:[#allocation2 + $0xa0] sm:$0x3] %vm41, 0.0
  %61 = vst.msk [vmem:[#allocation2 + $0xa8] sm:$0xff] %vm38, 0.0
  %62 = vst.msk [vmem:[#allocation2 + $0xb0] sm:$0xff] %vm38, 0.0
  %63 = vst.msk [vmem:[#allocation2 + $0xb8] sm:$0x3] %vm41, 0.0
  %64 = vst.msk [vmem:[#allocation2 + $0xc0] sm:$0xff] %vm38, 0.0
  %65 = vst.msk [vmem:[#allocation2 + $0xc8] sm:$0xff] %vm38, 0.0
  %66 = vst.msk [vmem:[#allocation2 + $0xd0] sm:$0x3] %vm41, 0.0
  %67 = vst.msk [vmem:[#allocation2 + $0xd8] sm:$0xff] %vm38, 0.0
  %68 = vst.msk [vmem:[#allocation2 + $0xe0] sm:$0xff] %vm38, 0.0
  %69 = vst.msk [vmem:[#allocation2 + $0xe8] sm:$0x3] %vm41, 0.0
  %70 = vst.msk [vmem:[#allocation2 + $0xf0] sm:$0xff] %vm38, 0.0
  %71 = vst.msk [vmem:[#allocation2 + $0xf8] sm:$0xff] %vm38, 0.0
  %72 = vst.msk [vmem:[#allocation2 + $0x100] sm:$0x3] %vm41, 0.0
  %73 = vst.msk [vmem:[#allocation2 + $0x108] sm:$0xff] %vm38, 0.0
  %74 = vst.msk [vmem:[#allocation2 + $0x110] sm:$0xff] %vm38, 0.0
  %75 = vst.msk [vmem:[#allocation2 + $0x118] sm:$0x3] %vm41, 0.0
  %76 = vst.msk [vmem:[#allocation2 + $0x120] sm:$0xff] %vm38, 0.0
  %77 = vst.msk [vmem:[#allocation2 + $0x128] sm:$0xff] %vm38, 0.0
  %78 = vst.msk [vmem:[#allocation2 + $0x130] sm:$0x3] %vm41, 0.0
  %79 = vst.msk [vmem:[#allocation2 + $0x138] sm:$0xff] %vm38, 0.0
  %80 = vst.msk [vmem:[#allocation2 + $0x140] sm:$0xff] %vm38, 0.0
  %81 = vst.msk [vmem:[#allocation2 + $0x148] sm:$0x3] %vm41, 0.0
  %82 = vst.msk [vmem:[#allocation2 + $0x150] sm:$0xff] %vm38, 0.0
  %83 = vst.msk [vmem:[#allocation2 + $0x158] sm:$0xff] %vm38, 0.0
  %84 = vst.msk [vmem:[#allocation2 + $0x160] sm:$0x3] %vm41, 0.0
  %85 = vst.msk [vmem:[#allocation2 + $0x168] sm:$0xff] %vm38, 0.0
  %86 = vst.msk [vmem:[#allocation2 + $0x170] sm:$0xff] %vm38, 0.0
  %87 = vst.msk [vmem:[#allocation2 + $0x178] sm:$0x3] %vm41, 0.0
  %88 = vst.msk [vmem:[#allocation2 + $0x180] sm:$0xff] %vm38, 0.0
  %89 = vst.msk [vmem:[#allocation2 + $0x188] sm:$0xff] %vm38, 0.0
  %90 = vst.msk [vmem:[#allocation2 + $0x190] sm:$0x3] %vm41, 0.0
  %91 = vst.msk [vmem:[#allocation2 + $0x198] sm:$0xff] %vm38, 0.0
  %92 = vst.msk [vmem:[#allocation2 + $0x1a0] sm:$0xff] %vm38, 0.0
  %93 = vst.msk [vmem:[#allocation2 + $0x1a8] sm:$0x3] %vm41, 0.0
  %94 = vst.msk [vmem:[#allocation2 + $0x1b0] sm:$0xff] %vm38, 0.0
  %95 = vst.msk [vmem:[#allocation2 + $0x1b8] sm:$0xff] %vm38, 0.0
  %96 = vst.msk [vmem:[#allocation2 + $0x1c0] sm:$0x3] %vm41, 0.0
  %97 = vst.msk [vmem:[#allocation2 + $0x1c8] sm:$0xff] %vm38, 0.0
  %98 = vst.msk [vmem:[#allocation2 + $0x1d0] sm:$0xff] %vm38, 0.0
  %99 = vst.msk [vmem:[#allocation2 + $0x1d8] sm:$0x3] %vm41, 0.0
  %100 = vst.msk [vmem:[#allocation2 + $0x1e0] sm:$0xff] %vm38, 0.0
  %101 = vst.msk [vmem:[#allocation2 + $0x1e8] sm:$0xff] %vm38, 0.0
  %102 = vst.msk [vmem:[#allocation2 + $0x1f0] sm:$0x3] %vm41, 0.0
  %103 = vst.msk [vmem:[#allocation2 + $0x1f8] sm:$0xff] %vm38, 0.0
  %104 = vst.msk [vmem:[#allocation2 + $0x200] sm:$0xff] %vm38, 0.0
  %105 = vst.msk [vmem:[#allocation2 + $0x208] sm:$0x3] %vm41, 0.0
  %106 = vst.msk [vmem:[#allocation2 + $0x210] sm:$0xff] %vm38, 0.0
  %107 = vst.msk [vmem:[#allocation2 + $0x218] sm:$0xff] %vm38, 0.0
  %108 = vst.msk [vmem:[#allocation2 + $0x220] sm:$0x3] %vm41, 0.0
  %109 = vst.msk [vmem:[#allocation2 + $0x228] sm:$0xff] %vm38, 0.0
  %110 = vst.msk [vmem:[#allocation2 + $0x230] sm:$0xff] %vm38, 0.0
  %111 = vst.msk [vmem:[#allocation2 + $0x238] sm:$0x3] %vm41, 0.0
  %112 = vst.msk [vmem:[#allocation2 + $0x240] sm:$0xff] %vm38, 0.0
  %113 = vst.msk [vmem:[#allocation2 + $0x248] sm:$0xff] %vm38, 0.0
  %114 = vst.msk [vmem:[#allocation2 + $0x250] sm:$0x3] %vm41, 0.0
  %115 = vst.msk [vmem:[#allocation2 + $0x258] sm:$0xff] %vm38, 0.0
  %116 = vst.msk [vmem:[#allocation2 + $0x260] sm:$0xff] %vm38, 0.0
  %117 = vst.msk [vmem:[#allocation2 + $0x268] sm:$0x3] %vm41, 0.0
  %118 = vst.msk [vmem:[#allocation2 + $0x270] sm:$0xff] %vm38, 0.0
  %119 = vst.msk [vmem:[#allocation2 + $0x278] sm:$0xff] %vm38, 0.0
  %120 = vst.msk [vmem:[#allocation2 + $0x280] sm:$0x3] %vm41, 0.0
  %121 = vst.msk [vmem:[#allocation2 + $0x288] sm:$0xff] %vm38, 0.0
  %122 = vst.msk [vmem:[#allocation2 + $0x290] sm:$0xff] %vm38, 0.0
  %123 = vst.msk [vmem:[#allocation2 + $0x298] sm:$0x3] %vm41, 0.0
  %124 = vst.msk [vmem:[#allocation2 + $0x2a0] sm:$0xff] %vm38, 0.0
  %125 = vst.msk [vmem:[#allocation2 + $0x2a8] sm:$0xff] %vm38, 0.0
  %126 = vst.msk [vmem:[#allocation2 + $0x2b0] sm:$0x3] %vm41, 0.0
  %127 = vst.msk [vmem:[#allocation2 + $0x2b8] sm:$0xff] %vm38, 0.0
  %128 = vst.msk [vmem:[#allocation2 + $0x2c0] sm:$0xff] %vm38, 0.0
  %129 = vst.msk [vmem:[#allocation2 + $0x2c8] sm:$0x3] %vm41, 0.0
  %130 = vst.msk [vmem:[#allocation2 + $0x2d0] sm:$0xff] %vm38, 0.0
  %131 = vst.msk [vmem:[#allocation2 + $0x2d8] sm:$0xff] %vm38, 0.0
  %132 = vst.msk [vmem:[#allocation2 + $0x2e0] sm:$0x3] %vm41, 0.0
  %133 = vst.msk [vmem:[#allocation2 + $0x2e8] sm:$0xff] %vm38, 0.0
  %134 = vst.msk [vmem:[#allocation2 + $0x2f0] sm:$0xff] %vm38, 0.0
  %135 = vst.msk [vmem:[#allocation2 + $0x2f8] sm:$0x3] %vm41, 0.0
  %136 = vst.msk [vmem:[#allocation2 + $0x300] sm:$0xff] %vm38, 0.0
  %137 = vst.msk [vmem:[#allocation2 + $0x308] sm:$0xff] %vm38, 0.0
  %138 = vst.msk [vmem:[#allocation2 + $0x310] sm:$0x3] %vm41, 0.0
  %139 = vst.msk [vmem:[#allocation2 + $0x318] sm:$0xff] %vm38, 0.0
  %140 = vst.msk [vmem:[#allocation2 + $0x320] sm:$0xff] %vm38, 0.0
  %141 = vst.msk [vmem:[#allocation2 + $0x328] sm:$0x3] %vm41, 0.0
  %142 = vst.msk [vmem:[#allocation2 + $0x330] sm:$0xff] %vm38, 0.0
  %143 = vst.msk [vmem:[#allocation2 + $0x338] sm:$0xff] %vm38, 0.0
  %144 = vst.msk [vmem:[#allocation2 + $0x340] sm:$0x3] %vm41, 0.0
  %145 = vst.msk [vmem:[#allocation2 + $0x348] sm:$0xff] %vm38, 0.0
  %146 = vst.msk [vmem:[#allocation2 + $0x350] sm:$0xff] %vm38, 0.0
  %147 = vst.msk [vmem:[#allocation2 + $0x358] sm:$0x3] %vm41, 0.0
  %v148 = vld [vmem:[%s0] sm:$0xff]
  %v149 = vld [vmem:[%s0 + $0x8] sm:$0xff]
  %v150 = vld [vmem:[%s0 + $0x10] sm:$0xff]
  %v151 = vld [vmem:[%s0 + $0x18] sm:$0xff]
  %v152 = vld [vmem:[%s0 + $0x20] sm:$0xff]
  %v153 = vld [vmem:[%s0 + $0x28] sm:$0xff]
  %v154 = vld [vmem:[%s0 + $0x30] sm:$0xff]
  %v155 = vld [vmem:[%s0 + $0x38] sm:$0xff]
  %v156 = vld [vmem:[%s0 + $0x40] sm:$0xff]
  %v157 = vld [vmem:[%s0 + $0x48] sm:$0xff]
  %v158 = vld [vmem:[%s0 + $0x50] sm:$0xff]
  %v159 = vld [vmem:[%s0 + $0x58] sm:$0xff]
  %v160 = vld [vmem:[%s0 + $0x60] sm:$0xff]
  %v161 = vld [vmem:[%s0 + $0x68] sm:$0xff]
  %v162 = vld [vmem:[%s0 + $0x70] sm:$0xff]
  %v163 = vld [vmem:[%s0 + $0x78] sm:$0xff]
  %v164 = vld [vmem:[%s0 + $0x80] sm:$0xff]
  %v165 = vld [vmem:[%s0 + $0x88] sm:$0xff]
  %v166 = vld [vmem:[%s0 + $0x90] sm:$0xff]
  %v167 = vld [vmem:[%s0 + $0x98] sm:$0xff]
  %v168 = vld [vmem:[%s0 + $0xa0] sm:$0xff]
  %v169 = vld [vmem:[%s0 + $0xa8] sm:$0xff]
  %v170 = vld [vmem:[%s0 + $0xb0] sm:$0xff]
  %v171 = vld [vmem:[%s0 + $0xb8] sm:$0xff]
  %v172 = vld [vmem:[%s0 + $0xc0] sm:$0xff]
  %v173 = vld [vmem:[%s0 + $0xc8] sm:$0xff]
  %v174 = vld [vmem:[%s0 + $0xd0] sm:$0xff]
  %v175 = vld [vmem:[%s0 + $0xd8] sm:$0xff]
  %v176 = vld [vmem:[%s0 + $0xe0] sm:$0xff]
  %v177 = vld [vmem:[%s0 + $0xe8] sm:$0xff]
  %v178 = vld [vmem:[%s0 + $0xf0] sm:$0xff]
  %v179 = vld [vmem:[%s0 + $0xf8] sm:$0xff]
  %v180 = vld [vmem:[%s0 + $0x100] sm:$0xff]
  %v181 = vld [vmem:[%s0 + $0x108] sm:$0xff]
  %v182 = vld [vmem:[%s0 + $0x110] sm:$0xff]
  %v183 = vld [vmem:[%s0 + $0x118] sm:$0xff]
  %v184 = vld [vmem:[%s0 + $0x120] sm:$0xff]
  %v185 = vld [vmem:[%s0 + $0x128] sm:$0xff]
  %v186 = vld [vmem:[%s0 + $0x130] sm:$0xff]
  %v187 = vld [vmem:[%s0 + $0x138] sm:$0xff]
  %v188 = vld [vmem:[%s0 + $0x140] sm:$0xff]
  %v189 = vld [vmem:[%s0 + $0x148] sm:$0xff]
  %v190 = vld [vmem:[%s0 + $0x150] sm:$0xff]
  %v191 = vld [vmem:[%s0 + $0x158] sm:$0xff]
  %v192 = vld [vmem:[%s0 + $0x160] sm:$0xff]
  %v193 = vld [vmem:[%s0 + $0x168] sm:$0xff]
  %v194 = vld [vmem:[%s0 + $0x170] sm:$0xff]
  %v195 = vld [vmem:[%s0 + $0x178] sm:$0xff]
  %v196 = vld [vmem:[%s0 + $0x180] sm:$0xff]
  %v197 = vld [vmem:[%s0 + $0x188] sm:$0xff]
  %v198 = vld [vmem:[%s0 + $0x190] sm:$0xff]
  %v199 = vld [vmem:[%s0 + $0x198] sm:$0xff]
  %v200 = vld [vmem:[%s0 + $0x1a0] sm:$0xff]
  %v201 = vld [vmem:[%s0 + $0x1a8] sm:$0xff]
  %v202 = vld [vmem:[%s0 + $0x1b0] sm:$0xff]
  %v203 = vld [vmem:[%s0 + $0x1b8] sm:$0xff]
  %v204 = vld [vmem:[%s0 + $0x1c0] sm:$0xff]
  %v205 = vld [vmem:[%s0 + $0x1c8] sm:$0xff]
  %v206 = vld [vmem:[%s0 + $0x1d0] sm:$0xff]
  %v207 = vld [vmem:[%s0 + $0x1d8] sm:$0xff]
  %v208 = vld [vmem:[%s0 + $0x1e0] sm:$0xff]
  %v209 = vld [vmem:[%s0 + $0x1e8] sm:$0xff]
  %v210 = vld [vmem:[%s0 + $0x1f0] sm:$0xff]
  %v211 = vld [vmem:[%s0 + $0x1f8] sm:$0xff]
  %s212 = scalar_lea.vmem [#allocation2], 24
  %213 = vst.msk [vmem:[%s212 + $0x1] sm:$0xff] %vm38, %v148
  %214 = vst.msk [vmem:[%s212 + $0x9] sm:$0xff] %vm38, %v149
  %215 = vst.msk [vmem:[%s212 + $0x19] sm:$0xff] %vm38, %v150
  %216 = vst.msk [vmem:[%s212 + $0x21] sm:$0xff] %vm38, %v151
  %217 = vst.msk [vmem:[%s212 + $0x31] sm:$0xff] %vm38, %v152
  %218 = vst.msk [vmem:[%s212 + $0x39] sm:$0xff] %vm38, %v153
  %219 = vst.msk [vmem:[%s212 + $0x49] sm:$0xff] %vm38, %v154
  %220 = vst.msk [vmem:[%s212 + $0x51] sm:$0xff] %vm38, %v155
  %221 = vst.msk [vmem:[%s212 + $0x61] sm:$0xff] %vm38, %v156
  %222 = vst.msk [vmem:[%s212 + $0x69] sm:$0xff] %vm38, %v157
  %223 = vst.msk [vmem:[%s212 + $0x79] sm:$0xff] %vm38, %v158
  %224 = vst.msk [vmem:[%s212 + $0x81] sm:$0xff] %vm38, %v159
  %225 = vst.msk [vmem:[%s212 + $0x91] sm:$0xff] %vm38, %v160
  %226 = vst.msk [vmem:[%s212 + $0x99] sm:$0xff] %vm38, %v161
  %227 = vst.msk [vmem:[%s212 + $0xa9] sm:$0xff] %vm38, %v162
  %228 = vst.msk [vmem:[%s212 + $0xb1] sm:$0xff] %vm38, %v163
  %229 = vst.msk [vmem:[%s212 + $0xc1] sm:$0xff] %vm38, %v164
  %230 = vst.msk [vmem:[%s212 + $0xc9] sm:$0xff] %vm38, %v165
  %231 = vst.msk [vmem:[%s212 + $0xd9] sm:$0xff] %vm38, %v166
  %232 = vst.msk [vmem:[%s212 + $0xe1] sm:$0xff] %vm38, %v167
  %233 = vst.msk [vmem:[%s212 + $0xf1] sm:$0xff] %vm38, %v168
  %234 = vst.msk [vmem:[%s212 + $0xf9] sm:$0xff] %vm38, %v169
  %235 = vst.msk [vmem:[%s212 + $0x109] sm:$0xff] %vm38, %v170
  %236 = vst.msk [vmem:[%s212 + $0x111] sm:$0xff] %vm38, %v171
  %237 = vst.msk [vmem:[%s212 + $0x121] sm:$0xff] %vm38, %v172
  %238 = vst.msk [vmem:[%s212 + $0x129] sm:$0xff] %vm38, %v173
  %239 = vst.msk [vmem:[%s212 + $0x139] sm:$0xff] %vm38, %v174
  %240 = vst.msk [vmem:[%s212 + $0x141] sm:$0xff] %vm38, %v175
  %241 = vst.msk [vmem:[%s212 + $0x151] sm:$0xff] %vm38, %v176
  %242 = vst.msk [vmem:[%s212 + $0x159] sm:$0xff] %vm38, %v177
  %243 = vst.msk [vmem:[%s212 + $0x169] sm:$0xff] %vm38, %v178
  %244 = vst.msk [vmem:[%s212 + $0x171] sm:$0xff] %vm38, %v179
  %245 = vst.msk [vmem:[%s212 + $0x1b1] sm:$0xff] %vm38, %v180
  %246 = vst.msk [vmem:[%s212 + $0x1b9] sm:$0xff] %vm38, %v181
  %247 = vst.msk [vmem:[%s212 + $0x1c9] sm:$0xff] %vm38, %v182
  %248 = vst.msk [vmem:[%s212 + $0x1d1] sm:$0xff] %vm38, %v183
  %249 = vst.msk [vmem:[%s212 + $0x1e1] sm:$0xff] %vm38, %v184
  %250 = vst.msk [vmem:[%s212 + $0x1e9] sm:$0xff] %vm38, %v185
  %251 = vst.msk [vmem:[%s212 + $0x1f9] sm:$0xff] %vm38, %v186
  %252 = vst.msk [vmem:[%s212 + $0x201] sm:$0xff] %vm38, %v187
  %253 = vst.msk [vmem:[%s212 + $0x211] sm:$0xff] %vm38, %v188
  %254 = vst.msk [vmem:[%s212 + $0x219] sm:$0xff] %vm38, %v189
  %255 = vst.msk [vmem:[%s212 + $0x229] sm:$0xff] %vm38, %v190
  %256 = vst.msk [vmem:[%s212 + $0x231] sm:$0xff] %vm38, %v191
  %257 = vst.msk [vmem:[%s212 + $0x241] sm:$0xff] %vm38, %v192
  %258 = vst.msk [vmem:[%s212 + $0x249] sm:$0xff] %vm38, %v193
  %259 = vst.msk [vmem:[%s212 + $0x259] sm:$0xff] %vm38, %v194
  %260 = vst.msk [vmem:[%s212 + $0x261] sm:$0xff] %vm38, %v195
  %261 = vst.msk [vmem:[%s212 + $0x271] sm:$0xff] %vm38, %v196
  %262 = vst.msk [vmem:[%s212 + $0x279] sm:$0xff] %vm38, %v197
  %263 = vst.msk [vmem:[%s212 + $0x289] sm:$0xff] %vm38, %v198
  %264 = vst.msk [vmem:[%s212 + $0x291] sm:$0xff] %vm38, %v199
  %265 = vst.msk [vmem:[%s212 + $0x2a1] sm:$0xff] %vm38, %v200
  %266 = vst.msk [vmem:[%s212 + $0x2a9] sm:$0xff] %vm38, %v201
  %267 = vst.msk [vmem:[%s212 + $0x2b9] sm:$0xff] %vm38, %v202
  %268 = vst.msk [vmem:[%s212 + $0x2c1] sm:$0xff] %vm38, %v203
  %269 = vst.msk [vmem:[%s212 + $0x2d1] sm:$0xff] %vm38, %v204
  %270 = vst.msk [vmem:[%s212 + $0x2d9] sm:$0xff] %vm38, %v205
  %271 = vst.msk [vmem:[%s212 + $0x2e9] sm:$0xff] %vm38, %v206
  %272 = vst.msk [vmem:[%s212 + $0x2f1] sm:$0xff] %vm38, %v207
  %273 = vst.msk [vmem:[%s212 + $0x301] sm:$0xff] %vm38, %v208
  %274 = vst.msk [vmem:[%s212 + $0x309] sm:$0xff] %vm38, %v209
  %275 = vst.msk [vmem:[%s212 + $0x319] sm:$0xff] %vm38, %v210
  %276 = vst.msk [vmem:[%s212 + $0x321] sm:$0xff] %vm38, %v211
  %v277 = vld [vmem:[#allocation2] sm:$0xff]
  %v278 = vld [vmem:[#allocation2 + $0x8] sm:$0xff]
  %v279 = vld [vmem:[#allocation2 + $0x18] sm:$0xff]
  %v280 = vld [vmem:[#allocation2 + $0x20] sm:$0xff]
  %v281 = vld [vmem:[#allocation2 + $0x30] sm:$0xff]
  %v282 = vld [vmem:[#allocation2 + $0x38] sm:$0xff]
  %v283 = vld [vmem:[#allocation2 + $0x48] sm:$0xff]
  %v284 = vld [vmem:[#allocation2 + $0x50] sm:$0xff]
  %v285 = vld [vmem:[#allocation2 + $0x60] sm:$0xff]
  %v286 = vld [vmem:[#allocation2 + $0x68] sm:$0xff]
  %v287 = vld [vmem:[#allocation2 + $0x78] sm:$0xff]
  %v288 = vld [vmem:[#allocation2 + $0x80] sm:$0xff]
  %v289 = vld [vmem:[#allocation2 + $0x90] sm:$0xff]
  %v290 = vld [vmem:[#allocation2 + $0x98] sm:$0xff]
  %v291 = vld [vmem:[#allocation2 + $0xa8] sm:$0xff]
  %v292 = vld [vmem:[#allocation2 + $0xb0] sm:$0xff]
  %v293 = vld [vmem:[#allocation2 + $0xc0] sm:$0xff]
  %v294 = vld [vmem:[#allocation2 + $0xc8] sm:$0xff]
  %v295 = vld [vmem:[#allocation2 + $0xd8] sm:$0xff]
  %v296 = vld [vmem:[#allocation2 + $0xe0] sm:$0xff]
  %v297 = vld [vmem:[#allocation2 + $0xf0] sm:$0xff]
  %v298 = vld [vmem:[#allocation2 + $0xf8] sm:$0xff]
  %v299 = vld [vmem:[#allocation2 + $0x108] sm:$0xff]
  %v300 = vld [vmem:[#allocation2 + $0x110] sm:$0xff]
  %v301 = vld [vmem:[#allocation2 + $0x120] sm:$0xff]
  %v302 = vld [vmem:[#allocation2 + $0x128] sm:$0xff]
  %v303 = vld [vmem:[#allocation2 + $0x138] sm:$0xff]
  %v304 = vld [vmem:[#allocation2 + $0x140] sm:$0xff]
  %v305 = vld [vmem:[#allocation2 + $0x150] sm:$0xff]
  %v306 = vld [vmem:[#allocation2 + $0x158] sm:$0xff]
  %v307 = vld [vmem:[#allocation2 + $0x168] sm:$0xff]
  %v308 = vld [vmem:[#allocation2 + $0x170] sm:$0xff]
  %v309 = vld [vmem:[#allocation2 + $0x1b0] sm:$0xff]
  %v310 = vld [vmem:[#allocation2 + $0x1b8] sm:$0xff]
  %v311 = vld [vmem:[#allocation2 + $0x1c8] sm:$0xff]
  %v312 = vld [vmem:[#allocation2 + $0x1d0] sm:$0xff]
  %v313 = vld [vmem:[#allocation2 + $0x1e0] sm:$0xff]
  %v314 = vld [vmem:[#allocation2 + $0x1e8] sm:$0xff]
  %v315 = vld [vmem:[#allocation2 + $0x1f8] sm:$0xff]
  %v316 = vld [vmem:[#allocation2 + $0x200] sm:$0xff]
  %v317 = vld [vmem:[#allocation2 + $0x210] sm:$0xff]
  %v318 = vld [vmem:[#allocation2 + $0x218] sm:$0xff]
  %v319 = vld [vmem:[#allocation2 + $0x228] sm:$0xff]
  %v320 = vld [vmem:[#allocation2 + $0x230] sm:$0xff]
  %v321 = vld [vmem:[#allocation2 + $0x240] sm:$0xff]
  %v322 = vld [vmem:[#allocation2 + $0x248] sm:$0xff]
  %v323 = vld [vmem:[#allocation2 + $0x258] sm:$0xff]
  %v324 = vld [vmem:[#allocation2 + $0x260] sm:$0xff]
  %v325 = vld [vmem:[#allocation2 + $0x270] sm:$0xff]
  %v326 = vld [vmem:[#allocation2 + $0x278] sm:$0xff]
  %v327 = vld [vmem:[#allocation2 + $0x288] sm:$0xff]
  %v328 = vld [vmem:[#allocation2 + $0x290] sm:$0xff]
  %v329 = vld [vmem:[#allocation2 + $0x2a0] sm:$0xff]
  %v330 = vld [vmem:[#allocation2 + $0x2a8] sm:$0xff]
  %v331 = vld [vmem:[#allocation2 + $0x2b8] sm:$0xff]
  %v332 = vld [vmem:[#allocation2 + $0x2c0] sm:$0xff]
  %v333 = vld [vmem:[#allocation2 + $0x2d0] sm:$0xff]
  %v334 = vld [vmem:[#allocation2 + $0x2d8] sm:$0xff]
  %v335 = vld [vmem:[#allocation2 + $0x2e8] sm:$0xff]
  %v336 = vld [vmem:[#allocation2 + $0x2f0] sm:$0xff]
  %v337 = vld [vmem:[#allocation2 + $0x300] sm:$0xff]
  %v338 = vld [vmem:[#allocation2 + $0x308] sm:$0xff]
  %v339 = vld [vmem:[#allocation2 + $0x318] sm:$0xff]
  %v340 = vld [vmem:[#allocation2 + $0x320] sm:$0xff]
  %v341 = vld [vmem:[#allocation2 + $0x1] sm:$0xff]
  %v342 = vld [vmem:[#allocation2 + $0x9] sm:$0xff]
  %v343 = vld [vmem:[#allocation2 + $0x19] sm:$0xff]
  %v344 = vld [vmem:[#allocation2 + $0x21] sm:$0xff]
  %v345 = vld [vmem:[#allocation2 + $0x31] sm:$0xff]
  %v346 = vld [vmem:[#allocation2 + $0x39] sm:$0xff]
  %v347 = vld [vmem:[#allocation2 + $0x49] sm:$0xff]
  %v348 = vld [vmem:[#allocation2 + $0x51] sm:$0xff]
  %v349 = vld [vmem:[#allocation2 + $0x61] sm:$0xff]
  %v350 = vld [vmem:[#allocation2 + $0x69] sm:$0xff]
  %v351 = vld [vmem:[#allocation2 + $0x79] sm:$0xff]
  %v352 = vld [vmem:[#allocation2 + $0x81] sm:$0xff]
  %v353 = vld [vmem:[#allocation2 + $0x91] sm:$0xff]
  %v354 = vld [vmem:[#allocation2 + $0x99] sm:$0xff]
  %v355 = vld [vmem:[#allocation2 + $0xa9] sm:$0xff]
  %v356 = vld [vmem:[#allocation2 + $0xb1] sm:$0xff]
  %v357 = vld [vmem:[#allocation2 + $0xc1] sm:$0xff]
  %v358 = vld [vmem:[#allocation2 + $0xc9] sm:$0xff]
  %v359 = vld [vmem:[#allocation2 + $0xd9] sm:$0xff]
  %v360 = vld [vmem:[#allocation2 + $0xe1] sm:$0xff]
  %v361 = vld [vmem:[#allocation2 + $0xf1] sm:$0xff]
  %v362 = vld [vmem:[#allocation2 + $0xf9] sm:$0xff]
  %v363 = vld [vmem:[#allocation2 + $0x109] sm:$0xff]
  %v364 = vld [vmem:[#allocation2 + $0x111] sm:$0xff]
  %v365 = vld [vmem:[#allocation2 + $0x121] sm:$0xff]
  %v366 = vld [vmem:[#allocation2 + $0x129] sm:$0xff]
  %v367 = vld [vmem:[#allocation2 + $0x139] sm:$0xff]
  %v368 = vld [vmem:[#allocation2 + $0x141] sm:$0xff]
  %v369 = vld [vmem:[#allocation2 + $0x151] sm:$0xff]
  %v370 = vld [vmem:[#allocation2 + $0x159] sm:$0xff]
  %v371 = vld [vmem:[#allocation2 + $0x169] sm:$0xff]
  %v372 = vld [vmem:[#allocation2 + $0x171] sm:$0xff]
  %v373 = vld [vmem:[#allocation2 + $0x1b1] sm:$0xff]
  %v374 = vld [vmem:[#allocation2 + $0x1b9] sm:$0xff]
  %v375 = vld [vmem:[#allocation2 + $0x1c9] sm:$0xff]
  %v376 = vld [vmem:[#allocation2 + $0x1d1] sm:$0xff]
  %v377 = vld [vmem:[#allocation2 + $0x1e1] sm:$0xff]
  %v378 = vld [vmem:[#allocation2 + $0x1e9] sm:$0xff]
  %v379 = vld [vmem:[#allocation2 + $0x1f9] sm:$0xff]
  %v380 = vld [vmem:[#allocation2 + $0x201] sm:$0xff]
  %v381 = vld [vmem:[#allocation2 + $0x211] sm:$0xff]
  %v382 = vld [vmem:[#allocation2 + $0x219] sm:$0xff]
  %v383 = vld [vmem:[#allocation2 + $0x229] sm:$0xff]
  %v384 = vld [vmem:[#allocation2 + $0x231] sm:$0xff]
  %v385 = vld [vmem:[#allocation2 + $0x241] sm:$0xff]
  %v386 = vld [vmem:[#allocation2 + $0x249] sm:$0xff]
  %v387 = vld [vmem:[#allocation2 + $0x259] sm:$0xff]
  %v388 = vld [vmem:[#allocation2 + $0x261] sm:$0xff]
  %v389 = vld [vmem:[#allocation2 + $0x271] sm:$0xff]
  %v390 = vld [vmem:[#allocation2 + $0x279] sm:$0xff]
  %v391 = vld [vmem:[#allocation2 + $0x289] sm:$0xff]
  %v392 = vld [vmem:[#allocation2 + $0x291] sm:$0xff]
  %v393 = vld [vmem:[#allocation2 + $0x2a1] sm:$0xff]
  %v394 = vld [vmem:[#allocation2 + $0x2a9] sm:$0xff]
  %v395 = vld [vmem:[#allocation2 + $0x2b9] sm:$0xff]
  %v396 = vld [vmem:[#allocation2 + $0x2c1] sm:$0xff]
  %v397 = vld [vmem:[#allocation2 + $0x2d1] sm:$0xff]
  %v398 = vld [vmem:[#allocation2 + $0x2d9] sm:$0xff]
  %v399 = vld [vmem:[#allocation2 + $0x2e9] sm:$0xff]
  %v400 = vld [vmem:[#allocation2 + $0x2f1] sm:$0xff]
  %v401 = vld [vmem:[#allocation2 + $0x301] sm:$0xff]
  %v402 = vld [vmem:[#allocation2 + $0x309] sm:$0xff]
  %v403 = vld [vmem:[#allocation2 + $0x319] sm:$0xff]
  %v404 = vld [vmem:[#allocation2 + $0x321] sm:$0xff]
  %v405 = vld [vmem:[#allocation2 + $0x2] sm:$0xff]
  %v406 = vld [vmem:[#allocation2 + $0xa] sm:$0xff]
  %v407 = vld [vmem:[#allocation2 + $0x1a] sm:$0xff]
  %v408 = vld [vmem:[#allocation2 + $0x22] sm:$0xff]
  %v409 = vld [vmem:[#allocation2 + $0x32] sm:$0xff]
  %v410 = vld [vmem:[#allocation2 + $0x3a] sm:$0xff]
  %v411 = vld [vmem:[#allocation2 + $0x4a] sm:$0xff]
  %v412 = vld [vmem:[#allocation2 + $0x52] sm:$0xff]
  %v413 = vld [vmem:[#allocation2 + $0x62] sm:$0xff]
  %v414 = vld [vmem:[#allocation2 + $0x6a] sm:$0xff]
  %v415 = vld [vmem:[#allocation2 + $0x7a] sm:$0xff]
  %v416 = vld [vmem:[#allocation2 + $0x82] sm:$0xff]
  %v417 = vld [vmem:[#allocation2 + $0x92] sm:$0xff]
  %v418 = vld [vmem:[#allocation2 + $0x9a] sm:$0xff]
  %v419 = vld [vmem:[#allocation2 + $0xaa] sm:$0xff]
  %v420 = vld [vmem:[#allocation2 + $0xb2] sm:$0xff]
  %v421 = vld [vmem:[#allocation2 + $0xc2] sm:$0xff]
  %v422 = vld [vmem:[#allocation2 + $0xca] sm:$0xff]
  %v423 = vld [vmem:[#allocation2 + $0xda] sm:$0xff]
  %v424 = vld [vmem:[#allocation2 + $0xe2] sm:$0xff]
  %v425 = vld [vmem:[#allocation2 + $0xf2] sm:$0xff]
  %v426 = vld [vmem:[#allocation2 + $0xfa] sm:$0xff]
  %v427 = vld [vmem:[#allocation2 + $0x10a] sm:$0xff]
  %v428 = vld [vmem:[#allocation2 + $0x112] sm:$0xff]
  %v429 = vld [vmem:[#allocation2 + $0x122] sm:$0xff]
  %v430 = vld [vmem:[#allocation2 + $0x12a] sm:$0xff]
  %v431 = vld [vmem:[#allocation2 + $0x13a] sm:$0xff]
  %v432 = vld [vmem:[#allocation2 + $0x142] sm:$0xff]
  %v433 = vld [vmem:[#allocation2 + $0x152] sm:$0xff]
  %v434 = vld [vmem:[#allocation2 + $0x15a] sm:$0xff]
  %v435 = vld [vmem:[#allocation2 + $0x16a] sm:$0xff]
  %v436 = vld [vmem:[#allocation2 + $0x172] sm:$0xff]
  %v437 = vld [vmem:[#allocation2 + $0x1b2] sm:$0xff]
  %v438 = vld [vmem:[#allocation2 + $0x1ba] sm:$0xff]
  %v439 = vld [vmem:[#allocation2 + $0x1ca] sm:$0xff]
  %v440 = vld [vmem:[#allocation2 + $0x1d2] sm:$0xff]
  %v441 = vld [vmem:[#allocation2 + $0x1e2] sm:$0xff]
  %v442 = vld [vmem:[#allocation2 + $0x1ea] sm:$0xff]
  %v443 = vld [vmem:[#allocation2 + $0x1fa] sm:$0xff]
  %v444 = vld [vmem:[#allocation2 + $0x202] sm:$0xff]
  %v445 = vld [vmem:[#allocation2 + $0x212] sm:$0xff]
  %v446 = vld [vmem:[#allocation2 + $0x21a] sm:$0xff]
  %v447 = vld [vmem:[#allocation2 + $0x22a] sm:$0xff]
  %v448 = vld [vmem:[#allocation2 + $0x232] sm:$0xff]
  %v449 = vld [vmem:[#allocation2 + $0x242] sm:$0xff]
  %v450 = vld [vmem:[#allocation2 + $0x24a] sm:$0xff]
  %v451 = vld [vmem:[#allocation2 + $0x25a] sm:$0xff]
  %v452 = vld [vmem:[#allocation2 + $0x262] sm:$0xff]
  %v453 = vld [vmem:[#allocation2 + $0x272] sm:$0xff]
  %v454 = vld [vmem:[#allocation2 + $0x27a] sm:$0xff]
  %v455 = vld [vmem:[#allocation2 + $0x28a] sm:$0xff]
  %v456 = vld [vmem:[#allocation2 + $0x292] sm:$0xff]
  %v457 = vld [vmem:[#allocation2 + $0x2a2] sm:$0xff]
  %v458 = vld [vmem:[#allocation2 + $0x2aa] sm:$0xff]
  %v459 = vld [vmem:[#allocation2 + $0x2ba] sm:$0xff]
  %v460 = vld [vmem:[#allocation2 + $0x2c2] sm:$0xff]
  %v461 = vld [vmem:[#allocation2 + $0x2d2] sm:$0xff]
  %v462 = vld [vmem:[#allocation2 + $0x2da] sm:$0xff]
  %v463 = vld [vmem:[#allocation2 + $0x2ea] sm:$0xff]
  %v464 = vld [vmem:[#allocation2 + $0x2f2] sm:$0xff]
  %v465 = vld [vmem:[#allocation2 + $0x302] sm:$0xff]
  %v466 = vld [vmem:[#allocation2 + $0x30a] sm:$0xff]
  %v467 = vld [vmem:[#allocation2 + $0x31a] sm:$0xff]
  %v468 = vld [vmem:[#allocation2 + $0x322] sm:$0xff]
  %v469 = vld [vmem:[%s212] sm:$0xff]
  %v470 = vld [vmem:[%s212 + $0x8] sm:$0xff]
  %v471 = vld [vmem:[%s212 + $0x18] sm:$0xff]
  %v472 = vld [vmem:[%s212 + $0x20] sm:$0xff]
  %v473 = vld [vmem:[%s212 + $0x30] sm:$0xff]
  %v474 = vld [vmem:[%s212 + $0x38] sm:$0xff]
  %v475 = vld [vmem:[%s212 + $0x48] sm:$0xff]
  %v476 = vld [vmem:[%s212 + $0x50] sm:$0xff]
  %v477 = vld [vmem:[%s212 + $0x60] sm:$0xff]
  %v478 = vld [vmem:[%s212 + $0x68] sm:$0xff]
  %v479 = vld [vmem:[%s212 + $0x78] sm:$0xff]
  %v480 = vld [vmem:[%s212 + $0x80] sm:$0xff]
  %v481 = vld [vmem:[%s212 + $0x90] sm:$0xff]
  %v482 = vld [vmem:[%s212 + $0x98] sm:$0xff]
  %v483 = vld [vmem:[%s212 + $0xa8] sm:$0xff]
  %v484 = vld [vmem:[%s212 + $0xb0] sm:$0xff]
  %v485 = vld [vmem:[%s212 + $0xc0] sm:$0xff]
  %v486 = vld [vmem:[%s212 + $0xc8] sm:$0xff]
  %v487 = vld [vmem:[%s212 + $0xd8] sm:$0xff]
  %v488 = vld [vmem:[%s212 + $0xe0] sm:$0xff]
  %v489 = vld [vmem:[%s212 + $0xf0] sm:$0xff]
  %v490 = vld [vmem:[%s212 + $0xf8] sm:$0xff]
  %v491 = vld [vmem:[%s212 + $0x108] sm:$0xff]
  %v492 = vld [vmem:[%s212 + $0x110] sm:$0xff]
  %v493 = vld [vmem:[%s212 + $0x120] sm:$0xff]
  %v494 = vld [vmem:[%s212 + $0x128] sm:$0xff]
  %v495 = vld [vmem:[%s212 + $0x138] sm:$0xff]
  %v496 = vld [vmem:[%s212 + $0x140] sm:$0xff]
  %v497 = vld [vmem:[%s212 + $0x150] sm:$0xff]
  %v498 = vld [vmem:[%s212 + $0x158] sm:$0xff]
  %v499 = vld [vmem:[%s212 + $0x168] sm:$0xff]
  %v500 = vld [vmem:[%s212 + $0x170] sm:$0xff]
  %v501 = vld [vmem:[%s212 + $0x1b0] sm:$0xff]
  %v502 = vld [vmem:[%s212 + $0x1b8] sm:$0xff]
  %v503 = vld [vmem:[%s212 + $0x1c8] sm:$0xff]
  %v504 = vld [vmem:[%s212 + $0x1d0] sm:$0xff]
  %v505 = vld [vmem:[%s212 + $0x1e0] sm:$0xff]
  %v506 = vld [vmem:[%s212 + $0x1e8] sm:$0xff]
  %v507 = vld [vmem:[%s212 + $0x1f8] sm:$0xff]
  %v508 = vld [vmem:[%s212 + $0x200] sm:$0xff]
  %v509 = vld [vmem:[%s212 + $0x210] sm:$0xff]
  %v510 = vld [vmem:[%s212 + $0x218] sm:$0xff]
  %v511 = vld [vmem:[%s212 + $0x228] sm:$0xff]
  %v512 = vld [vmem:[%s212 + $0x230] sm:$0xff]
  %v513 = vld [vmem:[%s212 + $0x240] sm:$0xff]
  %v514 = vld [vmem:[%s212 + $0x248] sm:$0xff]
  %v515 = vld [vmem:[%s212 + $0x258] sm:$0xff]
  %v516 = vld [vmem:[%s212 + $0x260] sm:$0xff]
  %v517 = vld [vmem:[%s212 + $0x270] sm:$0xff]
  %v518 = vld [vmem:[%s212 + $0x278] sm:$0xff]
  %v519 = vld [vmem:[%s212 + $0x288] sm:$0xff]
  %v520 = vld [vmem:[%s212 + $0x290] sm:$0xff]
  %v521 = vld [vmem:[%s212 + $0x2a0] sm:$0xff]
  %v522 = vld [vmem:[%s212 + $0x2a8] sm:$0xff]
  %v523 = vld [vmem:[%s212 + $0x2b8] sm:$0xff]
  %v524 = vld [vmem:[%s212 + $0x2c0] sm:$0xff]
  %v525 = vld [vmem:[%s212 + $0x2d0] sm:$0xff]
  %v526 = vld [vmem:[%s212 + $0x2d8] sm:$0xff]
  %v527 = vld [vmem:[%s212 + $0x2e8] sm:$0xff]
  %v528 = vld [vmem:[%s212 + $0x2f0] sm:$0xff]
  %v529 = vld [vmem:[%s212 + $0x300] sm:$0xff]
  %v530 = vld [vmem:[%s212 + $0x308] sm:$0xff]
  %v531 = vld [vmem:[%s212 + $0x318] sm:$0xff]
  %v532 = vld [vmem:[%s212 + $0x320] sm:$0xff]
  %v533 = vld [vmem:[%s212 + $0x1] sm:$0xff]
  %v534 = vld [vmem:[%s212 + $0x9] sm:$0xff]
  %v535 = vld [vmem:[%s212 + $0x19] sm:$0xff]
  %v536 = vld [vmem:[%s212 + $0x21] sm:$0xff]
  %v537 = vld [vmem:[%s212 + $0x31] sm:$0xff]
  %v538 = vld [vmem:[%s212 + $0x39] sm:$0xff]
  %v539 = vld [vmem:[%s212 + $0x49] sm:$0xff]
  %v540 = vld [vmem:[%s212 + $0x51] sm:$0xff]
  %v541 = vld [vmem:[%s212 + $0x61] sm:$0xff]
  %v542 = vld [vmem:[%s212 + $0x69] sm:$0xff]
  %v543 = vld [vmem:[%s212 + $0x79] sm:$0xff]
  %v544 = vld [vmem:[%s212 + $0x81] sm:$0xff]
  %v545 = vld [vmem:[%s212 + $0x91] sm:$0xff]
  %v546 = vld [vmem:[%s212 + $0x99] sm:$0xff]
  %v547 = vld [vmem:[%s212 + $0xa9] sm:$0xff]
  %v548 = vld [vmem:[%s212 + $0xb1] sm:$0xff]
  %v549 = vld [vmem:[%s212 + $0xc1] sm:$0xff]
  %v550 = vld [vmem:[%s212 + $0xc9] sm:$0xff]
  %v551 = vld [vmem:[%s212 + $0xd9] sm:$0xff]
  %v552 = vld [vmem:[%s212 + $0xe1] sm:$0xff]
  %v553 = vld [vmem:[%s212 + $0xf1] sm:$0xff]
  %v554 = vld [vmem:[%s212 + $0xf9] sm:$0xff]
  %v555 = vld [vmem:[%s212 + $0x109] sm:$0xff]
  %v556 = vld [vmem:[%s212 + $0x111] sm:$0xff]
  %v557 = vld [vmem:[%s212 + $0x121] sm:$0xff]
  %v558 = vld [vmem:[%s212 + $0x129] sm:$0xff]
  %v559 = vld [vmem:[%s212 + $0x139] sm:$0xff]
  %v560 = vld [vmem:[%s212 + $0x141] sm:$0xff]
  %v561 = vld [vmem:[%s212 + $0x151] sm:$0xff]
  %v562 = vld [vmem:[%s212 + $0x159] sm:$0xff]
  %v563 = vld [vmem:[%s212 + $0x169] sm:$0xff]
  %v564 = vld [vmem:[%s212 + $0x171] sm:$0xff]
  %v565 = vld [vmem:[%s212 + $0x1b1] sm:$0xff]
  %v566 = vld [vmem:[%s212 + $0x1b9] sm:$0xff]
  %v567 = vld [vmem:[%s212 + $0x1c9] sm:$0xff]
  %v568 = vld [vmem:[%s212 + $0x1d1] sm:$0xff]
  %v569 = vld [vmem:[%s212 + $0x1e1] sm:$0xff]
  %v570 = vld [vmem:[%s212 + $0x1e9] sm:$0xff]
  %v571 = vld [vmem:[%s212 + $0x1f9] sm:$0xff]
  %v572 = vld [vmem:[%s212 + $0x201] sm:$0xff]
  %v573 = vld [vmem:[%s212 + $0x211] sm:$0xff]
  %v574 = vld [vmem:[%s212 + $0x219] sm:$0xff]
  %v575 = vld [vmem:[%s212 + $0x229] sm:$0xff]
  %v576 = vld [vmem:[%s212 + $0x231] sm:$0xff]
  %v577 = vld [vmem:[%s212 + $0x241] sm:$0xff]
  %v578 = vld [vmem:[%s212 + $0x249] sm:$0xff]
  %v579 = vld [vmem:[%s212 + $0x259] sm:$0xff]
  %v580 = vld [vmem:[%s212 + $0x261] sm:$0xff]
  %v581 = vld [vmem:[%s212 + $0x271] sm:$0xff]
  %v582 = vld [vmem:[%s212 + $0x279] sm:$0xff]
  %v583 = vld [vmem:[%s212 + $0x289] sm:$0xff]
  %v584 = vld [vmem:[%s212 + $0x291] sm:$0xff]
  %v585 = vld [vmem:[%s212 + $0x2a1] sm:$0xff]
  %v586 = vld [vmem:[%s212 + $0x2a9] sm:$0xff]
  %v587 = vld [vmem:[%s212 + $0x2b9] sm:$0xff]
  %v588 = vld [vmem:[%s212 + $0x2c1] sm:$0xff]
  %v589 = vld [vmem:[%s212 + $0x2d1] sm:$0xff]
  %v590 = vld [vmem:[%s212 + $0x2d9] sm:$0xff]
  %v591 = vld [vmem:[%s212 + $0x2e9] sm:$0xff]
  %v592 = vld [vmem:[%s212 + $0x2f1] sm:$0xff]
  %v593 = vld [vmem:[%s212 + $0x301] sm:$0xff]
  %v594 = vld [vmem:[%s212 + $0x309] sm:$0xff]
  %v595 = vld [vmem:[%s212 + $0x319] sm:$0xff]
  %v596 = vld [vmem:[%s212 + $0x321] sm:$0xff]
  %v597 = vld [vmem:[%s212 + $0x2] sm:$0xff]
  %v598 = vld [vmem:[%s212 + $0xa] sm:$0xff]
  %v599 = vld [vmem:[%s212 + $0x1a] sm:$0xff]
  %v600 = vld [vmem:[%s212 + $0x22] sm:$0xff]
  %v601 = vld [vmem:[%s212 + $0x32] sm:$0xff]
  %v602 = vld [vmem:[%s212 + $0x3a] sm:$0xff]
  %v603 = vld [vmem:[%s212 + $0x4a] sm:$0xff]
  %v604 = vld [vmem:[%s212 + $0x52] sm:$0xff]
  %v605 = vld [vmem:[%s212 + $0x62] sm:$0xff]
  %v606 = vld [vmem:[%s212 + $0x6a] sm:$0xff]
  %v607 = vld [vmem:[%s212 + $0x7a] sm:$0xff]
  %v608 = vld [vmem:[%s212 + $0x82] sm:$0xff]
  %v609 = vld [vmem:[%s212 + $0x92] sm:$0xff]
  %v610 = vld [vmem:[%s212 + $0x9a] sm:$0xff]
  %v611 = vld [vmem:[%s212 + $0xaa] sm:$0xff]
  %v612 = vld [vmem:[%s212 + $0xb2] sm:$0xff]
  %v613 = vld [vmem:[%s212 + $0xc2] sm:$0xff]
  %v614 = vld [vmem:[%s212 + $0xca] sm:$0xff]
  %v615 = vld [vmem:[%s212 + $0xda] sm:$0xff]
  %v616 = vld [vmem:[%s212 + $0xe2] sm:$0xff]
  %v617 = vld [vmem:[%s212 + $0xf2] sm:$0xff]
  %v618 = vld [vmem:[%s212 + $0xfa] sm:$0xff]
  %v619 = vld [vmem:[%s212 + $0x10a] sm:$0xff]
  %v620 = vld [vmem:[%s212 + $0x112] sm:$0xff]
  %v621 = vld [vmem:[%s212 + $0x122] sm:$0xff]
  %v622 = vld [vmem:[%s212 + $0x12a] sm:$0xff]
  %v623 = vld [vmem:[%s212 + $0x13a] sm:$0xff]
  %v624 = vld [vmem:[%s212 + $0x142] sm:$0xff]
  %v625 = vld [vmem:[%s212 + $0x152] sm:$0xff]
  %v626 = vld [vmem:[%s212 + $0x15a] sm:$0xff]
  %v627 = vld [vmem:[%s212 + $0x16a] sm:$0xff]
  %v628 = vld [vmem:[%s212 + $0x172] sm:$0xff]
  %v629 = vld [vmem:[%s212 + $0x1b2] sm:$0xff]
  %v630 = vld [vmem:[%s212 + $0x1ba] sm:$0xff]
  %v631 = vld [vmem:[%s212 + $0x1ca] sm:$0xff]
  %v632 = vld [vmem:[%s212 + $0x1d2] sm:$0xff]
  %v633 = vld [vmem:[%s212 + $0x1e2] sm:$0xff]
  %v634 = vld [vmem:[%s212 + $0x1ea] sm:$0xff]
  %v635 = vld [vmem:[%s212 + $0x1fa] sm:$0xff]
  %v636 = vld [vmem:[%s212 + $0x202] sm:$0xff]
  %v637 = vld [vmem:[%s212 + $0x212] sm:$0xff]
  %v638 = vld [vmem:[%s212 + $0x21a] sm:$0xff]
  %v639 = vld [vmem:[%s212 + $0x22a] sm:$0xff]
  %v640 = vld [vmem:[%s212 + $0x232] sm:$0xff]
  %v641 = vld [vmem:[%s212 + $0x242] sm:$0xff]
  %v642 = vld [vmem:[%s212 + $0x24a] sm:$0xff]
  %v643 = vld [vmem:[%s212 + $0x25a] sm:$0xff]
  %v644 = vld [vmem:[%s212 + $0x262] sm:$0xff]
  %v645 = vld [vmem:[%s212 + $0x272] sm:$0xff]
  %v646 = vld [vmem:[%s212 + $0x27a] sm:$0xff]
  %v647 = vld [vmem:[%s212 + $0x28a] sm:$0xff]
  %v648 = vld [vmem:[%s212 + $0x292] sm:$0xff]
  %v649 = vld [vmem:[%s212 + $0x2a2] sm:$0xff]
  %v650 = vld [vmem:[%s212 + $0x2aa] sm:$0xff]
  %v651 = vld [vmem:[%s212 + $0x2ba] sm:$0xff]
  %v652 = vld [vmem:[%s212 + $0x2c2] sm:$0xff]
  %v653 = vld [vmem:[%s212 + $0x2d2] sm:$0xff]
  %v654 = vld [vmem:[%s212 + $0x2da] sm:$0xff]
  %v655 = vld [vmem:[%s212 + $0x2ea] sm:$0xff]
  %v656 = vld [vmem:[%s212 + $0x2f2] sm:$0xff]
  %v657 = vld [vmem:[%s212 + $0x302] sm:$0xff]
  %v658 = vld [vmem:[%s212 + $0x30a] sm:$0xff]
  %v659 = vld [vmem:[%s212 + $0x31a] sm:$0xff]
  %v660 = vld [vmem:[%s212 + $0x322] sm:$0xff]
  %s661 = scalar_lea.vmem [#allocation2], 48
  %v662 = vld [vmem:[%s661] sm:$0xff]
  %v663 = vld [vmem:[%s661 + $0x8] sm:$0xff]
  %v664 = vld [vmem:[%s661 + $0x18] sm:$0xff]
  %v665 = vld [vmem:[%s661 + $0x20] sm:$0xff]
  %v666 = vld [vmem:[%s661 + $0x30] sm:$0xff]
  %v667 = vld [vmem:[%s661 + $0x38] sm:$0xff]
  %v668 = vld [vmem:[%s661 + $0x48] sm:$0xff]
  %v669 = vld [vmem:[%s661 + $0x50] sm:$0xff]
  %v670 = vld [vmem:[%s661 + $0x60] sm:$0xff]
  %v671 = vld [vmem:[%s661 + $0x68] sm:$0xff]
  %v672 = vld [vmem:[%s661 + $0x78] sm:$0xff]
  %v673 = vld [vmem:[%s661 + $0x80] sm:$0xff]
  %v674 = vld [vmem:[%s661 + $0x90] sm:$0xff]
  %v675 = vld [vmem:[%s661 + $0x98] sm:$0xff]
  %v676 = vld [vmem:[%s661 + $0xa8] sm:$0xff]
  %v677 = vld [vmem:[%s661 + $0xb0] sm:$0xff]
  %v678 = vld [vmem:[%s661 + $0xc0] sm:$0xff]
  %v679 = vld [vmem:[%s661 + $0xc8] sm:$0xff]
  %v680 = vld [vmem:[%s661 + $0xd8] sm:$0xff]
  %v681 = vld [vmem:[%s661 + $0xe0] sm:$0xff]
  %v682 = vld [vmem:[%s661 + $0xf0] sm:$0xff]
  %v683 = vld [vmem:[%s661 + $0xf8] sm:$0xff]
  %v684 = vld [vmem:[%s661 + $0x108] sm:$0xff]
  %v685 = vld [vmem:[%s661 + $0x110] sm:$0xff]
  %v686 = vld [vmem:[%s661 + $0x120] sm:$0xff]
  %v687 = vld [vmem:[%s661 + $0x128] sm:$0xff]
  %v688 = vld [vmem:[%s661 + $0x138] sm:$0xff]
  %v689 = vld [vmem:[%s661 + $0x140] sm:$0xff]
  %v690 = vld [vmem:[%s661 + $0x150] sm:$0xff]
  %v691 = vld [vmem:[%s661 + $0x158] sm:$0xff]
  %v692 = vld [vmem:[%s661 + $0x168] sm:$0xff]
  %v693 = vld [vmem:[%s661 + $0x170] sm:$0xff]
  %v694 = vld [vmem:[%s661 + $0x1b0] sm:$0xff]
  %v695 = vld [vmem:[%s661 + $0x1b8] sm:$0xff]
  %v696 = vld [vmem:[%s661 + $0x1c8] sm:$0xff]
  %v697 = vld [vmem:[%s661 + $0x1d0] sm:$0xff]
  %v698 = vld [vmem:[%s661 + $0x1e0] sm:$0xff]
  %v699 = vld [vmem:[%s661 + $0x1e8] sm:$0xff]
  %v700 = vld [vmem:[%s661 + $0x1f8] sm:$0xff]
  %v701 = vld [vmem:[%s661 + $0x200] sm:$0xff]
  %v702 = vld [vmem:[%s661 + $0x210] sm:$0xff]
  %v703 = vld [vmem:[%s661 + $0x218] sm:$0xff]
  %v704 = vld [vmem:[%s661 + $0x228] sm:$0xff]
  %v705 = vld [vmem:[%s661 + $0x230] sm:$0xff]
  %v706 = vld [vmem:[%s661 + $0x240] sm:$0xff]
  %v707 = vld [vmem:[%s661 + $0x248] sm:$0xff]
  %v708 = vld [vmem:[%s661 + $0x258] sm:$0xff]
  %v709 = vld [vmem:[%s661 + $0x260] sm:$0xff]
  %v710 = vld [vmem:[%s661 + $0x270] sm:$0xff]
  %v711 = vld [vmem:[%s661 + $0x278] sm:$0xff]
  %v712 = vld [vmem:[%s661 + $0x288] sm:$0xff]
  %v713 = vld [vmem:[%s661 + $0x290] sm:$0xff]
  %v714 = vld [vmem:[%s661 + $0x2a0] sm:$0xff]
  %v715 = vld [vmem:[%s661 + $0x2a8] sm:$0xff]
  %v716 = vld [vmem:[%s661 + $0x2b8] sm:$0xff]
  %v717 = vld [vmem:[%s661 + $0x2c0] sm:$0xff]
  %v718 = vld [vmem:[%s661 + $0x2d0] sm:$0xff]
  %v719 = vld [vmem:[%s661 + $0x2d8] sm:$0xff]
  %v720 = vld [vmem:[%s661 + $0x2e8] sm:$0xff]
  %v721 = vld [vmem:[%s661 + $0x2f0] sm:$0xff]
  %v722 = vld [vmem:[%s661 + $0x300] sm:$0xff]
  %v723 = vld [vmem:[%s661 + $0x308] sm:$0xff]
  %v724 = vld [vmem:[%s661 + $0x318] sm:$0xff]
  %v725 = vld [vmem:[%s661 + $0x320] sm:$0xff]
  %v726 = vld [vmem:[%s661 + $0x1] sm:$0xff]
  %v727 = vld [vmem:[%s661 + $0x9] sm:$0xff]
  %v728 = vld [vmem:[%s661 + $0x19] sm:$0xff]
  %v729 = vld [vmem:[%s661 + $0x21] sm:$0xff]
  %v730 = vld [vmem:[%s661 + $0x31] sm:$0xff]
  %v731 = vld [vmem:[%s661 + $0x39] sm:$0xff]
  %v732 = vld [vmem:[%s661 + $0x49] sm:$0xff]
  %v733 = vld [vmem:[%s661 + $0x51] sm:$0xff]
  %v734 = vld [vmem:[%s661 + $0x61] sm:$0xff]
  %v735 = vld [vmem:[%s661 + $0x69] sm:$0xff]
  %v736 = vld [vmem:[%s661 + $0x79] sm:$0xff]
  %v737 = vld [vmem:[%s661 + $0x81] sm:$0xff]
  %v738 = vld [vmem:[%s661 + $0x91] sm:$0xff]
  %v739 = vld [vmem:[%s661 + $0x99] sm:$0xff]
  %v740 = vld [vmem:[%s661 + $0xa9] sm:$0xff]
  %v741 = vld [vmem:[%s661 + $0xb1] sm:$0xff]
  %v742 = vld [vmem:[%s661 + $0xc1] sm:$0xff]
  %v743 = vld [vmem:[%s661 + $0xc9] sm:$0xff]
  %v744 = vld [vmem:[%s661 + $0xd9] sm:$0xff]
  %v745 = vld [vmem:[%s661 + $0xe1] sm:$0xff]
  %v746 = vld [vmem:[%s661 + $0xf1] sm:$0xff]
  %v747 = vld [vmem:[%s661 + $0xf9] sm:$0xff]
  %v748 = vld [vmem:[%s661 + $0x109] sm:$0xff]
  %v749 = vld [vmem:[%s661 + $0x111] sm:$0xff]
  %v750 = vld [vmem:[%s661 + $0x121] sm:$0xff]
  %v751 = vld [vmem:[%s661 + $0x129] sm:$0xff]
  %v752 = vld [vmem:[%s661 + $0x139] sm:$0xff]
  %v753 = vld [vmem:[%s661 + $0x141] sm:$0xff]
  %v754 = vld [vmem:[%s661 + $0x151] sm:$0xff]
  %v755 = vld [vmem:[%s661 + $0x159] sm:$0xff]
  %v756 = vld [vmem:[%s661 + $0x169] sm:$0xff]
  %v757 = vld [vmem:[%s661 + $0x171] sm:$0xff]
  %v758 = vld [vmem:[%s661 + $0x1b1] sm:$0xff]
  %v759 = vld [vmem:[%s661 + $0x1b9] sm:$0xff]
  %v760 = vld [vmem:[%s661 + $0x1c9] sm:$0xff]
  %v761 = vld [vmem:[%s661 + $0x1d1] sm:$0xff]
  %v762 = vld [vmem:[%s661 + $0x1e1] sm:$0xff]
  %v763 = vld [vmem:[%s661 + $0x1e9] sm:$0xff]
  %v764 = vld [vmem:[%s661 + $0x1f9] sm:$0xff]
  %v765 = vld [vmem:[%s661 + $0x201] sm:$0xff]
  %v766 = vld [vmem:[%s661 + $0x211] sm:$0xff]
  %v767 = vld [vmem:[%s661 + $0x219] sm:$0xff]
  %v768 = vld [vmem:[%s661 + $0x229] sm:$0xff]
  %v769 = vld [vmem:[%s661 + $0x231] sm:$0xff]
  %v770 = vld [vmem:[%s661 + $0x241] sm:$0xff]
  %v771 = vld [vmem:[%s661 + $0x249] sm:$0xff]
  %v772 = vld [vmem:[%s661 + $0x259] sm:$0xff]
  %v773 = vld [vmem:[%s661 + $0x261] sm:$0xff]
  %v774 = vld [vmem:[%s661 + $0x271] sm:$0xff]
  %v775 = vld [vmem:[%s661 + $0x279] sm:$0xff]
  %v776 = vld [vmem:[%s661 + $0x289] sm:$0xff]
  %v777 = vld [vmem:[%s661 + $0x291] sm:$0xff]
  %v778 = vld [vmem:[%s661 + $0x2a1] sm:$0xff]
  %v779 = vld [vmem:[%s661 + $0x2a9] sm:$0xff]
  %v780 = vld [vmem:[%s661 + $0x2b9] sm:$0xff]
  %v781 = vld [vmem:[%s661 + $0x2c1] sm:$0xff]
  %v782 = vld [vmem:[%s661 + $0x2d1] sm:$0xff]
  %v783 = vld [vmem:[%s661 + $0x2d9] sm:$0xff]
  %v784 = vld [vmem:[%s661 + $0x2e9] sm:$0xff]
  %v785 = vld [vmem:[%s661 + $0x2f1] sm:$0xff]
  %v786 = vld [vmem:[%s661 + $0x301] sm:$0xff]
  %v787 = vld [vmem:[%s661 + $0x309] sm:$0xff]
  %v788 = vld [vmem:[%s661 + $0x319] sm:$0xff]
  %v789 = vld [vmem:[%s661 + $0x321] sm:$0xff]
  %v790 = vld [vmem:[%s661 + $0x2] sm:$0xff]
  %v791 = vld [vmem:[%s661 + $0xa] sm:$0xff]
  %v792 = vld [vmem:[%s661 + $0x1a] sm:$0xff]
  %v793 = vld [vmem:[%s661 + $0x22] sm:$0xff]
  %v794 = vld [vmem:[%s661 + $0x32] sm:$0xff]
  %v795 = vld [vmem:[%s661 + $0x3a] sm:$0xff]
  %v796 = vld [vmem:[%s661 + $0x4a] sm:$0xff]
  %v797 = vld [vmem:[%s661 + $0x52] sm:$0xff]
  %v798 = vld [vmem:[%s661 + $0x62] sm:$0xff]
  %v799 = vld [vmem:[%s661 + $0x6a] sm:$0xff]
  %v800 = vld [vmem:[%s661 + $0x7a] sm:$0xff]
  %v801 = vld [vmem:[%s661 + $0x82] sm:$0xff]
  %v802 = vld [vmem:[%s661 + $0x92] sm:$0xff]
  %v803 = vld [vmem:[%s661 + $0x9a] sm:$0xff]
  %v804 = vld [vmem:[%s661 + $0xaa] sm:$0xff]
  %v805 = vld [vmem:[%s661 + $0xb2] sm:$0xff]
  %v806 = vld [vmem:[%s661 + $0xc2] sm:$0xff]
  %v807 = vld [vmem:[%s661 + $0xca] sm:$0xff]
  %v808 = vld [vmem:[%s661 + $0xda] sm:$0xff]
  %v809 = vld [vmem:[%s661 + $0xe2] sm:$0xff]
  %v810 = vld [vmem:[%s661 + $0xf2] sm:$0xff]
  %v811 = vld [vmem:[%s661 + $0xfa] sm:$0xff]
  %v812 = vld [vmem:[%s661 + $0x10a] sm:$0xff]
  %v813 = vld [vmem:[%s661 + $0x112] sm:$0xff]
  %v814 = vld [vmem:[%s661 + $0x122] sm:$0xff]
  %v815 = vld [vmem:[%s661 + $0x12a] sm:$0xff]
  %v816 = vld [vmem:[%s661 + $0x13a] sm:$0xff]
  %v817 = vld [vmem:[%s661 + $0x142] sm:$0xff]
  %v818 = vld [vmem:[%s661 + $0x152] sm:$0xff]
  %v819 = vld [vmem:[%s661 + $0x15a] sm:$0xff]
  %v820 = vld [vmem:[%s661 + $0x16a] sm:$0xff]
  %v821 = vld [vmem:[%s661 + $0x172] sm:$0xff]
  %v822 = vld [vmem:[%s661 + $0x1b2] sm:$0xff]
  %v823 = vld [vmem:[%s661 + $0x1ba] sm:$0xff]
  %v824 = vld [vmem:[%s661 + $0x1ca] sm:$0xff]
  %v825 = vld [vmem:[%s661 + $0x1d2] sm:$0xff]
  %v826 = vld [vmem:[%s661 + $0x1e2] sm:$0xff]
  %v827 = vld [vmem:[%s661 + $0x1ea] sm:$0xff]
  %v828 = vld [vmem:[%s661 + $0x1fa] sm:$0xff]
  %v829 = vld [vmem:[%s661 + $0x202] sm:$0xff]
  %v830 = vld [vmem:[%s661 + $0x212] sm:$0xff]
  %v831 = vld [vmem:[%s661 + $0x21a] sm:$0xff]
  %v832 = vld [vmem:[%s661 + $0x22a] sm:$0xff]
  %v833 = vld [vmem:[%s661 + $0x232] sm:$0xff]
  %v834 = vld [vmem:[%s661 + $0x242] sm:$0xff]
  %v835 = vld [vmem:[%s661 + $0x24a] sm:$0xff]
  %v836 = vld [vmem:[%s661 + $0x25a] sm:$0xff]
  %v837 = vld [vmem:[%s661 + $0x262] sm:$0xff]
  %v838 = vld [vmem:[%s661 + $0x272] sm:$0xff]
  %v839 = vld [vmem:[%s661 + $0x27a] sm:$0xff]
  %v840 = vld [vmem:[%s661 + $0x28a] sm:$0xff]
  %v841 = vld [vmem:[%s661 + $0x292] sm:$0xff]
  %v842 = vld [vmem:[%s661 + $0x2a2] sm:$0xff]
  %v843 = vld [vmem:[%s661 + $0x2aa] sm:$0xff]
  %v844 = vld [vmem:[%s661 + $0x2ba] sm:$0xff]
  %v845 = vld [vmem:[%s661 + $0x2c2] sm:$0xff]
  %v846 = vld [vmem:[%s661 + $0x2d2] sm:$0xff]
  %v847 = vld [vmem:[%s661 + $0x2da] sm:$0xff]
  %v848 = vld [vmem:[%s661 + $0x2ea] sm:$0xff]
  %v849 = vld [vmem:[%s661 + $0x2f2] sm:$0xff]
  %v850 = vld [vmem:[%s661 + $0x302] sm:$0xff]
  %v851 = vld [vmem:[%s661 + $0x30a] sm:$0xff]
  %v852 = vld [vmem:[%s661 + $0x31a] sm:$0xff]
  %v853 = vld [vmem:[%s661 + $0x322] sm:$0xff]
  %918 = vrot.lane.b32.xlu0 %v341, 4
  %v919 = vpop.permute.xlu0 %918
  %920 = vrot.lane.b32.xlu0 %v342, 4
  %v921 = vpop.permute.xlu0 %920
  %922 = vrot.lane.b32.xlu0 %v343, 4
  %v923 = vpop.permute.xlu0 %922
  %924 = vrot.lane.b32.xlu0 %v344, 4
  %v925 = vpop.permute.xlu0 %924
  %926 = vrot.lane.b32.xlu0 %v345, 4
  %v927 = vpop.permute.xlu0 %926
  %928 = vrot.lane.b32.xlu0 %v346, 4
  %v929 = vpop.permute.xlu0 %928
  %930 = vrot.lane.b32.xlu0 %v347, 4
  %v931 = vpop.permute.xlu0 %930
  %932 = vrot.lane.b32.xlu0 %v348, 4
  %v933 = vpop.permute.xlu0 %932
  %934 = vrot.lane.b32.xlu0 %v349, 4
  %v935 = vpop.permute.xlu0 %934
  %936 = vrot.lane.b32.xlu0 %v350, 4
  %v937 = vpop.permute.xlu0 %936
  %938 = vrot.lane.b32.xlu0 %v351, 4
  %v939 = vpop.permute.xlu0 %938
  %940 = vrot.lane.b32.xlu0 %v352, 4
  %v941 = vpop.permute.xlu0 %940
  %942 = vrot.lane.b32.xlu0 %v353, 4
  %v943 = vpop.permute.xlu0 %942
  %944 = vrot.lane.b32.xlu0 %v354, 4
  %v945 = vpop.permute.xlu0 %944
  %946 = vrot.lane.b32.xlu0 %v355, 4
  %v947 = vpop.permute.xlu0 %946
  %948 = vrot.lane.b32.xlu0 %v356, 4
  %v949 = vpop.permute.xlu0 %948
  %950 = vrot.lane.b32.xlu0 %v357, 4
  %v951 = vpop.permute.xlu0 %950
  %952 = vrot.lane.b32.xlu0 %v358, 4
  %v953 = vpop.permute.xlu0 %952
  %954 = vrot.lane.b32.xlu0 %v359, 4
  %v955 = vpop.permute.xlu0 %954
  %956 = vrot.lane.b32.xlu0 %v360, 4
  %v957 = vpop.permute.xlu0 %956
  %958 = vrot.lane.b32.xlu0 %v361, 4
  %v959 = vpop.permute.xlu0 %958
  %960 = vrot.lane.b32.xlu0 %v362, 4
  %v961 = vpop.permute.xlu0 %960
  %962 = vrot.lane.b32.xlu0 %v363, 4
  %v963 = vpop.permute.xlu0 %962
  %964 = vrot.lane.b32.xlu0 %v364, 4
  %v965 = vpop.permute.xlu0 %964
  %966 = vrot.lane.b32.xlu0 %v365, 4
  %v967 = vpop.permute.xlu0 %966
  %968 = vrot.lane.b32.xlu0 %v366, 4
  %v969 = vpop.permute.xlu0 %968
  %970 = vrot.lane.b32.xlu0 %v367, 4
  %v971 = vpop.permute.xlu0 %970
  %972 = vrot.lane.b32.xlu0 %v368, 4
  %v973 = vpop.permute.xlu0 %972
  %974 = vrot.lane.b32.xlu0 %v369, 4
  %v975 = vpop.permute.xlu0 %974
  %976 = vrot.lane.b32.xlu0 %v370, 4
  %v977 = vpop.permute.xlu0 %976
  %978 = vrot.lane.b32.xlu0 %v371, 4
  %v979 = vpop.permute.xlu0 %978
  %980 = vrot.lane.b32.xlu0 %v372, 4
  %v981 = vpop.permute.xlu0 %980
  %982 = vrot.lane.b32.xlu0 %v373, 4
  %v983 = vpop.permute.xlu0 %982
  %984 = vrot.lane.b32.xlu0 %v374, 4
  %v985 = vpop.permute.xlu0 %984
  %986 = vrot.lane.b32.xlu0 %v375, 4
  %v987 = vpop.permute.xlu0 %986
  %988 = vrot.lane.b32.xlu0 %v376, 4
  %v989 = vpop.permute.xlu0 %988
  %990 = vrot.lane.b32.xlu0 %v377, 4
  %v991 = vpop.permute.xlu0 %990
  %992 = vrot.lane.b32.xlu0 %v378, 4
  %v993 = vpop.permute.xlu0 %992
  %994 = vrot.lane.b32.xlu0 %v379, 4
  %v995 = vpop.permute.xlu0 %994
  %996 = vrot.lane.b32.xlu0 %v380, 4
  %v997 = vpop.permute.xlu0 %996
  %998 = vrot.lane.b32.xlu0 %v381, 4
  %v999 = vpop.permute.xlu0 %998
  %1000 = vrot.lane.b32.xlu0 %v382, 4
  %v1001 = vpop.permute.xlu0 %1000
  %1002 = vrot.lane.b32.xlu0 %v383, 4
  %v1003 = vpop.permute.xlu0 %1002
  %1004 = vrot.lane.b32.xlu0 %v384, 4
  %v1005 = vpop.permute.xlu0 %1004
  %1006 = vrot.lane.b32.xlu0 %v385, 4
  %v1007 = vpop.permute.xlu0 %1006
  %1008 = vrot.lane.b32.xlu0 %v386, 4
  %v1009 = vpop.permute.xlu0 %1008
  %1010 = vrot.lane.b32.xlu0 %v387, 4
  %v1011 = vpop.permute.xlu0 %1010
  %1012 = vrot.lane.b32.xlu0 %v388, 4
  %v1013 = vpop.permute.xlu0 %1012
  %1014 = vrot.lane.b32.xlu0 %v389, 4
  %v1015 = vpop.permute.xlu0 %1014
  %1016 = vrot.lane.b32.xlu0 %v390, 4
  %v1017 = vpop.permute.xlu0 %1016
  %1018 = vrot.lane.b32.xlu0 %v391, 4
  %v1019 = vpop.permute.xlu0 %1018
  %1020 = vrot.lane.b32.xlu0 %v392, 4
  %v1021 = vpop.permute.xlu0 %1020
  %1022 = vrot.lane.b32.xlu0 %v393, 4
  %v1023 = vpop.permute.xlu0 %1022
  %1024 = vrot.lane.b32.xlu0 %v394, 4
  %v1025 = vpop.permute.xlu0 %1024
  %1026 = vrot.lane.b32.xlu0 %v395, 4
  %v1027 = vpop.permute.xlu0 %1026
  %1028 = vrot.lane.b32.xlu0 %v396, 4
  %v1029 = vpop.permute.xlu0 %1028
  %1030 = vrot.lane.b32.xlu0 %v397, 4
  %v1031 = vpop.permute.xlu0 %1030
  %1032 = vrot.lane.b32.xlu0 %v398, 4
  %v1033 = vpop.permute.xlu0 %1032
  %1034 = vrot.lane.b32.xlu0 %v399, 4
  %v1035 = vpop.permute.xlu0 %1034
  %1036 = vrot.lane.b32.xlu0 %v400, 4
  %v1037 = vpop.permute.xlu0 %1036
  %1038 = vrot.lane.b32.xlu0 %v401, 4
  %v1039 = vpop.permute.xlu0 %1038
  %1040 = vrot.lane.b32.xlu0 %v402, 4
  %v1041 = vpop.permute.xlu0 %1040
  %1042 = vrot.lane.b32.xlu0 %v403, 4
  %v1043 = vpop.permute.xlu0 %1042
  %1044 = vrot.lane.b32.xlu0 %v404, 4
  %v1045 = vpop.permute.xlu0 %1044
  %1174 = vrot.lane.b32.xlu0 %v405, 8
  %v1175 = vpop.permute.xlu0 %1174
  %1176 = vrot.lane.b32.xlu0 %v406, 8
  %v1177 = vpop.permute.xlu0 %1176
  %1178 = vrot.lane.b32.xlu0 %v407, 8
  %v1179 = vpop.permute.xlu0 %1178
  %1180 = vrot.lane.b32.xlu0 %v408, 8
  %v1181 = vpop.permute.xlu0 %1180
  %1182 = vrot.lane.b32.xlu0 %v409, 8
  %v1183 = vpop.permute.xlu0 %1182
  %1184 = vrot.lane.b32.xlu0 %v410, 8
  %v1185 = vpop.permute.xlu0 %1184
  %1186 = vrot.lane.b32.xlu0 %v411, 8
  %v1187 = vpop.permute.xlu0 %1186
  %1188 = vrot.lane.b32.xlu0 %v412, 8
  %v1189 = vpop.permute.xlu0 %1188
  %1190 = vrot.lane.b32.xlu0 %v413, 8
  %v1191 = vpop.permute.xlu0 %1190
  %1192 = vrot.lane.b32.xlu0 %v414, 8
  %v1193 = vpop.permute.xlu0 %1192
  %1194 = vrot.lane.b32.xlu0 %v415, 8
  %v1195 = vpop.permute.xlu0 %1194
  %1196 = vrot.lane.b32.xlu0 %v416, 8
  %v1197 = vpop.permute.xlu0 %1196
  %1198 = vrot.lane.b32.xlu0 %v417, 8
  %v1199 = vpop.permute.xlu0 %1198
  %1200 = vrot.lane.b32.xlu0 %v418, 8
  %v1201 = vpop.permute.xlu0 %1200
  %1202 = vrot.lane.b32.xlu0 %v419, 8
  %v1203 = vpop.permute.xlu0 %1202
  %1204 = vrot.lane.b32.xlu0 %v420, 8
  %v1205 = vpop.permute.xlu0 %1204
  %1206 = vrot.lane.b32.xlu0 %v421, 8
  %v1207 = vpop.permute.xlu0 %1206
  %1208 = vrot.lane.b32.xlu0 %v422, 8
  %v1209 = vpop.permute.xlu0 %1208
  %1210 = vrot.lane.b32.xlu0 %v423, 8
  %v1211 = vpop.permute.xlu0 %1210
  %1212 = vrot.lane.b32.xlu0 %v424, 8
  %v1213 = vpop.permute.xlu0 %1212
  %1214 = vrot.lane.b32.xlu0 %v425, 8
  %v1215 = vpop.permute.xlu0 %1214
  %1216 = vrot.lane.b32.xlu0 %v426, 8
  %v1217 = vpop.permute.xlu0 %1216
  %1218 = vrot.lane.b32.xlu0 %v427, 8
  %v1219 = vpop.permute.xlu0 %1218
  %1220 = vrot.lane.b32.xlu0 %v428, 8
  %v1221 = vpop.permute.xlu0 %1220
  %1222 = vrot.lane.b32.xlu0 %v429, 8
  %v1223 = vpop.permute.xlu0 %1222
  %1224 = vrot.lane.b32.xlu0 %v430, 8
  %v1225 = vpop.permute.xlu0 %1224
  %1226 = vrot.lane.b32.xlu0 %v431, 8
  %v1227 = vpop.permute.xlu0 %1226
  %1228 = vrot.lane.b32.xlu0 %v432, 8
  %v1229 = vpop.permute.xlu0 %1228
  %1230 = vrot.lane.b32.xlu0 %v433, 8
  %v1231 = vpop.permute.xlu0 %1230
  %1232 = vrot.lane.b32.xlu0 %v434, 8
  %v1233 = vpop.permute.xlu0 %1232
  %1234 = vrot.lane.b32.xlu0 %v435, 8
  %v1235 = vpop.permute.xlu0 %1234
  %1236 = vrot.lane.b32.xlu0 %v436, 8
  %v1237 = vpop.permute.xlu0 %1236
  %1238 = vrot.lane.b32.xlu0 %v437, 8
  %v1239 = vpop.permute.xlu0 %1238
  %1240 = vrot.lane.b32.xlu0 %v438, 8
  %v1241 = vpop.permute.xlu0 %1240
  %1242 = vrot.lane.b32.xlu0 %v439, 8
  %v1243 = vpop.permute.xlu0 %1242
  %1244 = vrot.lane.b32.xlu0 %v440, 8
  %v1245 = vpop.permute.xlu0 %1244
  %1246 = vrot.lane.b32.xlu0 %v441, 8
  %v1247 = vpop.permute.xlu0 %1246
  %1248 = vrot.lane.b32.xlu0 %v442, 8
  %v1249 = vpop.permute.xlu0 %1248
  %1250 = vrot.lane.b32.xlu0 %v443, 8
  %v1251 = vpop.permute.xlu0 %1250
  %1252 = vrot.lane.b32.xlu0 %v444, 8
  %v1253 = vpop.permute.xlu0 %1252
  %1254 = vrot.lane.b32.xlu0 %v445, 8
  %v1255 = vpop.permute.xlu0 %1254
  %1256 = vrot.lane.b32.xlu0 %v446, 8
  %v1257 = vpop.permute.xlu0 %1256
  %1258 = vrot.lane.b32.xlu0 %v447, 8
  %v1259 = vpop.permute.xlu0 %1258
  %1260 = vrot.lane.b32.xlu0 %v448, 8
  %v1261 = vpop.permute.xlu0 %1260
  %1262 = vrot.lane.b32.xlu0 %v449, 8
  %v1263 = vpop.permute.xlu0 %1262
  %1264 = vrot.lane.b32.xlu0 %v450, 8
  %v1265 = vpop.permute.xlu0 %1264
  %1266 = vrot.lane.b32.xlu0 %v451, 8
  %v1267 = vpop.permute.xlu0 %1266
  %1268 = vrot.lane.b32.xlu0 %v452, 8
  %v1269 = vpop.permute.xlu0 %1268
  %1270 = vrot.lane.b32.xlu0 %v453, 8
  %v1271 = vpop.permute.xlu0 %1270
  %1272 = vrot.lane.b32.xlu0 %v454, 8
  %v1273 = vpop.permute.xlu0 %1272
  %1274 = vrot.lane.b32.xlu0 %v455, 8
  %v1275 = vpop.permute.xlu0 %1274
  %1276 = vrot.lane.b32.xlu0 %v456, 8
  %v1277 = vpop.permute.xlu0 %1276
  %1278 = vrot.lane.b32.xlu0 %v457, 8
  %v1279 = vpop.permute.xlu0 %1278
  %1280 = vrot.lane.b32.xlu0 %v458, 8
  %v1281 = vpop.permute.xlu0 %1280
  %1282 = vrot.lane.b32.xlu0 %v459, 8
  %v1283 = vpop.permute.xlu0 %1282
  %1284 = vrot.lane.b32.xlu0 %v460, 8
  %v1285 = vpop.permute.xlu0 %1284
  %1286 = vrot.lane.b32.xlu0 %v461, 8
  %v1287 = vpop.permute.xlu0 %1286
  %1288 = vrot.lane.b32.xlu0 %v462, 8
  %v1289 = vpop.permute.xlu0 %1288
  %1290 = vrot.lane.b32.xlu0 %v463, 8
  %v1291 = vpop.permute.xlu0 %1290
  %1292 = vrot.lane.b32.xlu0 %v464, 8
  %v1293 = vpop.permute.xlu0 %1292
  %1294 = vrot.lane.b32.xlu0 %v465, 8
  %v1295 = vpop.permute.xlu0 %1294
  %1296 = vrot.lane.b32.xlu0 %v466, 8
  %v1297 = vpop.permute.xlu0 %1296
  %1298 = vrot.lane.b32.xlu0 %v467, 8
  %v1299 = vpop.permute.xlu0 %1298
  %1300 = vrot.lane.b32.xlu0 %v468, 8
  %v1301 = vpop.permute.xlu0 %1300
  %1430 = vrot.lane.b32.xlu0 %v469, 12
  %v1431 = vpop.permute.xlu0 %1430
  %1432 = vrot.lane.b32.xlu0 %v470, 12
  %v1433 = vpop.permute.xlu0 %1432
  %1434 = vrot.lane.b32.xlu0 %v471, 12
  %v1435 = vpop.permute.xlu0 %1434
  %1436 = vrot.lane.b32.xlu0 %v472, 12
  %v1437 = vpop.permute.xlu0 %1436
  %1438 = vrot.lane.b32.xlu0 %v473, 12
  %v1439 = vpop.permute.xlu0 %1438
  %1440 = vrot.lane.b32.xlu0 %v474, 12
  %v1441 = vpop.permute.xlu0 %1440
  %1442 = vrot.lane.b32.xlu0 %v475, 12
  %v1443 = vpop.permute.xlu0 %1442
  %1444 = vrot.lane.b32.xlu0 %v476, 12
  %v1445 = vpop.permute.xlu0 %1444
  %1446 = vrot.lane.b32.xlu0 %v477, 12
  %v1447 = vpop.permute.xlu0 %1446
  %1448 = vrot.lane.b32.xlu0 %v478, 12
  %v1449 = vpop.permute.xlu0 %1448
  %1450 = vrot.lane.b32.xlu0 %v479, 12
  %v1451 = vpop.permute.xlu0 %1450
  %1452 = vrot.lane.b32.xlu0 %v480, 12
  %v1453 = vpop.permute.xlu0 %1452
  %1454 = vrot.lane.b32.xlu0 %v481, 12
  %v1455 = vpop.permute.xlu0 %1454
  %1456 = vrot.lane.b32.xlu0 %v482, 12
  %v1457 = vpop.permute.xlu0 %1456
  %1458 = vrot.lane.b32.xlu0 %v483, 12
  %v1459 = vpop.permute.xlu0 %1458
  %1460 = vrot.lane.b32.xlu0 %v484, 12
  %v1461 = vpop.permute.xlu0 %1460
  %1462 = vrot.lane.b32.xlu0 %v485, 12
  %v1463 = vpop.permute.xlu0 %1462
  %1464 = vrot.lane.b32.xlu0 %v486, 12
  %v1465 = vpop.permute.xlu0 %1464
  %1466 = vrot.lane.b32.xlu0 %v487, 12
  %v1467 = vpop.permute.xlu0 %1466
  %1468 = vrot.lane.b32.xlu0 %v488, 12
  %v1469 = vpop.permute.xlu0 %1468
  %1470 = vrot.lane.b32.xlu0 %v489, 12
  %v1471 = vpop.permute.xlu0 %1470
  %1472 = vrot.lane.b32.xlu0 %v490, 12
  %v1473 = vpop.permute.xlu0 %1472
  %1474 = vrot.lane.b32.xlu0 %v491, 12
  %v1475 = vpop.permute.xlu0 %1474
  %1476 = vrot.lane.b32.xlu0 %v492, 12
  %v1477 = vpop.permute.xlu0 %1476
  %1478 = vrot.lane.b32.xlu0 %v493, 12
  %v1479 = vpop.permute.xlu0 %1478
  %1480 = vrot.lane.b32.xlu0 %v494, 12
  %v1481 = vpop.permute.xlu0 %1480
  %1482 = vrot.lane.b32.xlu0 %v495, 12
  %v1483 = vpop.permute.xlu0 %1482
  %1484 = vrot.lane.b32.xlu0 %v496, 12
  %v1485 = vpop.permute.xlu0 %1484
  %1486 = vrot.lane.b32.xlu0 %v497, 12
  %v1487 = vpop.permute.xlu0 %1486
  %1488 = vrot.lane.b32.xlu0 %v498, 12
  %v1489 = vpop.permute.xlu0 %1488
  %1490 = vrot.lane.b32.xlu0 %v499, 12
  %v1491 = vpop.permute.xlu0 %1490
  %1492 = vrot.lane.b32.xlu0 %v500, 12
  %v1493 = vpop.permute.xlu0 %1492
  %1494 = vrot.lane.b32.xlu0 %v501, 12
  %v1495 = vpop.permute.xlu0 %1494
  %1496 = vrot.lane.b32.xlu0 %v502, 12
  %v1497 = vpop.permute.xlu0 %1496
  %1498 = vrot.lane.b32.xlu0 %v503, 12
  %v1499 = vpop.permute.xlu0 %1498
  %1500 = vrot.lane.b32.xlu0 %v504, 12
  %v1501 = vpop.permute.xlu0 %1500
  %1502 = vrot.lane.b32.xlu0 %v505, 12
  %v1503 = vpop.permute.xlu0 %1502
  %1504 = vrot.lane.b32.xlu0 %v506, 12
  %v1505 = vpop.permute.xlu0 %1504
  %1506 = vrot.lane.b32.xlu0 %v507, 12
  %v1507 = vpop.permute.xlu0 %1506
  %1508 = vrot.lane.b32.xlu0 %v508, 12
  %v1509 = vpop.permute.xlu0 %1508
  %1510 = vrot.lane.b32.xlu0 %v509, 12
  %v1511 = vpop.permute.xlu0 %1510
  %1512 = vrot.lane.b32.xlu0 %v510, 12
  %v1513 = vpop.permute.xlu0 %1512
  %1514 = vrot.lane.b32.xlu0 %v511, 12
  %v1515 = vpop.permute.xlu0 %1514
  %1516 = vrot.lane.b32.xlu0 %v512, 12
  %v1517 = vpop.permute.xlu0 %1516
  %1518 = vrot.lane.b32.xlu0 %v513, 12
  %v1519 = vpop.permute.xlu0 %1518
  %1520 = vrot.lane.b32.xlu0 %v514, 12
  %v1521 = vpop.permute.xlu0 %1520
  %1522 = vrot.lane.b32.xlu0 %v515, 12
  %v1523 = vpop.permute.xlu0 %1522
  %1524 = vrot.lane.b32.xlu0 %v516, 12
  %v1525 = vpop.permute.xlu0 %1524
  %1526 = vrot.lane.b32.xlu0 %v517, 12
  %v1527 = vpop.permute.xlu0 %1526
  %1528 = vrot.lane.b32.xlu0 %v518, 12
  %v1529 = vpop.permute.xlu0 %1528
  %1530 = vrot.lane.b32.xlu0 %v519, 12
  %v1531 = vpop.permute.xlu0 %1530
  %1532 = vrot.lane.b32.xlu0 %v520, 12
  %v1533 = vpop.permute.xlu0 %1532
  %1534 = vrot.lane.b32.xlu0 %v521, 12
  %v1535 = vpop.permute.xlu0 %1534
  %1536 = vrot.lane.b32.xlu0 %v522, 12
  %v1537 = vpop.permute.xlu0 %1536
  %1538 = vrot.lane.b32.xlu0 %v523, 12
  %v1539 = vpop.permute.xlu0 %1538
  %1540 = vrot.lane.b32.xlu0 %v524, 12
  %v1541 = vpop.permute.xlu0 %1540
  %1542 = vrot.lane.b32.xlu0 %v525, 12
  %v1543 = vpop.permute.xlu0 %1542
  %1544 = vrot.lane.b32.xlu0 %v526, 12
  %v1545 = vpop.permute.xlu0 %1544
  %1546 = vrot.lane.b32.xlu0 %v527, 12
  %v1547 = vpop.permute.xlu0 %1546
  %1548 = vrot.lane.b32.xlu0 %v528, 12
  %v1549 = vpop.permute.xlu0 %1548
  %1550 = vrot.lane.b32.xlu0 %v529, 12
  %v1551 = vpop.permute.xlu0 %1550
  %1552 = vrot.lane.b32.xlu0 %v530, 12
  %v1553 = vpop.permute.xlu0 %1552
  %1554 = vrot.lane.b32.xlu0 %v531, 12
  %v1555 = vpop.permute.xlu0 %1554
  %1556 = vrot.lane.b32.xlu0 %v532, 12
  %v1557 = vpop.permute.xlu0 %1556
  %1686 = vrot.lane.b32.xlu0 %v533, 16
  %v1687 = vpop.permute.xlu0 %1686
  %1688 = vrot.lane.b32.xlu0 %v534, 16
  %v1689 = vpop.permute.xlu0 %1688
  %1690 = vrot.lane.b32.xlu0 %v535, 16
  %v1691 = vpop.permute.xlu0 %1690
  %1692 = vrot.lane.b32.xlu0 %v536, 16
  %v1693 = vpop.permute.xlu0 %1692
  %1694 = vrot.lane.b32.xlu0 %v537, 16
  %v1695 = vpop.permute.xlu0 %1694
  %1696 = vrot.lane.b32.xlu0 %v538, 16
  %v1697 = vpop.permute.xlu0 %1696
  %1698 = vrot.lane.b32.xlu0 %v539, 16
  %v1699 = vpop.permute.xlu0 %1698
  %1700 = vrot.lane.b32.xlu0 %v540, 16
  %v1701 = vpop.permute.xlu0 %1700
  %1702 = vrot.lane.b32.xlu0 %v541, 16
  %v1703 = vpop.permute.xlu0 %1702
  %1704 = vrot.lane.b32.xlu0 %v542, 16
  %v1705 = vpop.permute.xlu0 %1704
  %1706 = vrot.lane.b32.xlu0 %v543, 16
  %v1707 = vpop.permute.xlu0 %1706
  %1708 = vrot.lane.b32.xlu0 %v544, 16
  %v1709 = vpop.permute.xlu0 %1708
  %1710 = vrot.lane.b32.xlu0 %v545, 16
  %v1711 = vpop.permute.xlu0 %1710
  %1712 = vrot.lane.b32.xlu0 %v546, 16
  %v1713 = vpop.permute.xlu0 %1712
  %1714 = vrot.lane.b32.xlu0 %v547, 16
  %v1715 = vpop.permute.xlu0 %1714
  %1716 = vrot.lane.b32.xlu0 %v548, 16
  %v1717 = vpop.permute.xlu0 %1716
  %1718 = vrot.lane.b32.xlu0 %v549, 16
  %v1719 = vpop.permute.xlu0 %1718
  %1720 = vrot.lane.b32.xlu0 %v550, 16
  %v1721 = vpop.permute.xlu0 %1720
  %1722 = vrot.lane.b32.xlu0 %v551, 16
  %v1723 = vpop.permute.xlu0 %1722
  %1724 = vrot.lane.b32.xlu0 %v552, 16
  %v1725 = vpop.permute.xlu0 %1724
  %1726 = vrot.lane.b32.xlu0 %v553, 16
  %v1727 = vpop.permute.xlu0 %1726
  %1728 = vrot.lane.b32.xlu0 %v554, 16
  %v1729 = vpop.permute.xlu0 %1728
  %1730 = vrot.lane.b32.xlu0 %v555, 16
  %v1731 = vpop.permute.xlu0 %1730
  %1732 = vrot.lane.b32.xlu0 %v556, 16
  %v1733 = vpop.permute.xlu0 %1732
  %1734 = vrot.lane.b32.xlu0 %v557, 16
  %v1735 = vpop.permute.xlu0 %1734
  %1736 = vrot.lane.b32.xlu0 %v558, 16
  %v1737 = vpop.permute.xlu0 %1736
  %1738 = vrot.lane.b32.xlu0 %v559, 16
  %v1739 = vpop.permute.xlu0 %1738
  %1740 = vrot.lane.b32.xlu0 %v560, 16
  %v1741 = vpop.permute.xlu0 %1740
  %1742 = vrot.lane.b32.xlu0 %v561, 16
  %v1743 = vpop.permute.xlu0 %1742
  %1744 = vrot.lane.b32.xlu0 %v562, 16
  %v1745 = vpop.permute.xlu0 %1744
  %1746 = vrot.lane.b32.xlu0 %v563, 16
  %v1747 = vpop.permute.xlu0 %1746
  %1748 = vrot.lane.b32.xlu0 %v564, 16
  %v1749 = vpop.permute.xlu0 %1748
  %1750 = vrot.lane.b32.xlu0 %v565, 16
  %v1751 = vpop.permute.xlu0 %1750
  %1752 = vrot.lane.b32.xlu0 %v566, 16
  %v1753 = vpop.permute.xlu0 %1752
  %1754 = vrot.lane.b32.xlu0 %v567, 16
  %v1755 = vpop.permute.xlu0 %1754
  %1756 = vrot.lane.b32.xlu0 %v568, 16
  %v1757 = vpop.permute.xlu0 %1756
  %1758 = vrot.lane.b32.xlu0 %v569, 16
  %v1759 = vpop.permute.xlu0 %1758
  %1760 = vrot.lane.b32.xlu0 %v570, 16
  %v1761 = vpop.permute.xlu0 %1760
  %1762 = vrot.lane.b32.xlu0 %v571, 16
  %v1763 = vpop.permute.xlu0 %1762
  %1764 = vrot.lane.b32.xlu0 %v572, 16
  %v1765 = vpop.permute.xlu0 %1764
  %1766 = vrot.lane.b32.xlu0 %v573, 16
  %v1767 = vpop.permute.xlu0 %1766
  %1768 = vrot.lane.b32.xlu0 %v574, 16
  %v1769 = vpop.permute.xlu0 %1768
  %1770 = vrot.lane.b32.xlu0 %v575, 16
  %v1771 = vpop.permute.xlu0 %1770
  %1772 = vrot.lane.b32.xlu0 %v576, 16
  %v1773 = vpop.permute.xlu0 %1772
  %1774 = vrot.lane.b32.xlu0 %v577, 16
  %v1775 = vpop.permute.xlu0 %1774
  %1776 = vrot.lane.b32.xlu0 %v578, 16
  %v1777 = vpop.permute.xlu0 %1776
  %1778 = vrot.lane.b32.xlu0 %v579, 16
  %v1779 = vpop.permute.xlu0 %1778
  %1780 = vrot.lane.b32.xlu0 %v580, 16
  %v1781 = vpop.permute.xlu0 %1780
  %1782 = vrot.lane.b32.xlu0 %v581, 16
  %v1783 = vpop.permute.xlu0 %1782
  %1784 = vrot.lane.b32.xlu0 %v582, 16
  %v1785 = vpop.permute.xlu0 %1784
  %1786 = vrot.lane.b32.xlu0 %v583, 16
  %v1787 = vpop.permute.xlu0 %1786
  %1788 = vrot.lane.b32.xlu0 %v584, 16
  %v1789 = vpop.permute.xlu0 %1788
  %1790 = vrot.lane.b32.xlu0 %v585, 16
  %v1791 = vpop.permute.xlu0 %1790
  %1792 = vrot.lane.b32.xlu0 %v586, 16
  %v1793 = vpop.permute.xlu0 %1792
  %1794 = vrot.lane.b32.xlu0 %v587, 16
  %v1795 = vpop.permute.xlu0 %1794
  %1796 = vrot.lane.b32.xlu0 %v588, 16
  %v1797 = vpop.permute.xlu0 %1796
  %1798 = vrot.lane.b32.xlu0 %v589, 16
  %v1799 = vpop.permute.xlu0 %1798
  %1800 = vrot.lane.b32.xlu0 %v590, 16
  %v1801 = vpop.permute.xlu0 %1800
  %1802 = vrot.lane.b32.xlu0 %v591, 16
  %v1803 = vpop.permute.xlu0 %1802
  %1804 = vrot.lane.b32.xlu0 %v592, 16
  %v1805 = vpop.permute.xlu0 %1804
  %1806 = vrot.lane.b32.xlu0 %v593, 16
  %v1807 = vpop.permute.xlu0 %1806
  %1808 = vrot.lane.b32.xlu0 %v594, 16
  %v1809 = vpop.permute.xlu0 %1808
  %1810 = vrot.lane.b32.xlu0 %v595, 16
  %v1811 = vpop.permute.xlu0 %1810
  %1812 = vrot.lane.b32.xlu0 %v596, 16
  %v1813 = vpop.permute.xlu0 %1812
  %1942 = vrot.lane.b32.xlu0 %v597, 20
  %v1943 = vpop.permute.xlu0 %1942
  %1944 = vrot.lane.b32.xlu0 %v598, 20
  %v1945 = vpop.permute.xlu0 %1944
  %1946 = vrot.lane.b32.xlu0 %v599, 20
  %v1947 = vpop.permute.xlu0 %1946
  %1948 = vrot.lane.b32.xlu0 %v600, 20
  %v1949 = vpop.permute.xlu0 %1948
  %1950 = vrot.lane.b32.xlu0 %v601, 20
  %v1951 = vpop.permute.xlu0 %1950
  %1952 = vrot.lane.b32.xlu0 %v602, 20
  %v1953 = vpop.permute.xlu0 %1952
  %1954 = vrot.lane.b32.xlu0 %v603, 20
  %v1955 = vpop.permute.xlu0 %1954
  %1956 = vrot.lane.b32.xlu0 %v604, 20
  %v1957 = vpop.permute.xlu0 %1956
  %1958 = vrot.lane.b32.xlu0 %v605, 20
  %v1959 = vpop.permute.xlu0 %1958
  %1960 = vrot.lane.b32.xlu0 %v606, 20
  %v1961 = vpop.permute.xlu0 %1960
  %1962 = vrot.lane.b32.xlu0 %v607, 20
  %v1963 = vpop.permute.xlu0 %1962
  %1964 = vrot.lane.b32.xlu0 %v608, 20
  %v1965 = vpop.permute.xlu0 %1964
  %1966 = vrot.lane.b32.xlu0 %v609, 20
  %v1967 = vpop.permute.xlu0 %1966
  %1968 = vrot.lane.b32.xlu0 %v610, 20
  %v1969 = vpop.permute.xlu0 %1968
  %1970 = vrot.lane.b32.xlu0 %v611, 20
  %v1971 = vpop.permute.xlu0 %1970
  %1972 = vrot.lane.b32.xlu0 %v612, 20
  %v1973 = vpop.permute.xlu0 %1972
  %1974 = vrot.lane.b32.xlu0 %v613, 20
  %v1975 = vpop.permute.xlu0 %1974
  %1976 = vrot.lane.b32.xlu0 %v614, 20
  %v1977 = vpop.permute.xlu0 %1976
  %1978 = vrot.lane.b32.xlu0 %v615, 20
  %v1979 = vpop.permute.xlu0 %1978
  %1980 = vrot.lane.b32.xlu0 %v616, 20
  %v1981 = vpop.permute.xlu0 %1980
  %1982 = vrot.lane.b32.xlu0 %v617, 20
  %v1983 = vpop.permute.xlu0 %1982
  %1984 = vrot.lane.b32.xlu0 %v618, 20
  %v1985 = vpop.permute.xlu0 %1984
  %1986 = vrot.lane.b32.xlu0 %v619, 20
  %v1987 = vpop.permute.xlu0 %1986
  %1988 = vrot.lane.b32.xlu0 %v620, 20
  %v1989 = vpop.permute.xlu0 %1988
  %1990 = vrot.lane.b32.xlu0 %v621, 20
  %v1991 = vpop.permute.xlu0 %1990
  %1992 = vrot.lane.b32.xlu0 %v622, 20
  %v1993 = vpop.permute.xlu0 %1992
  %1994 = vrot.lane.b32.xlu0 %v623, 20
  %v1995 = vpop.permute.xlu0 %1994
  %1996 = vrot.lane.b32.xlu0 %v624, 20
  %v1997 = vpop.permute.xlu0 %1996
  %1998 = vrot.lane.b32.xlu0 %v625, 20
  %v1999 = vpop.permute.xlu0 %1998
  %2000 = vrot.lane.b32.xlu0 %v626, 20
  %v2001 = vpop.permute.xlu0 %2000
  %2002 = vrot.lane.b32.xlu0 %v627, 20
  %v2003 = vpop.permute.xlu0 %2002
  %2004 = vrot.lane.b32.xlu0 %v628, 20
  %v2005 = vpop.permute.xlu0 %2004
  %2006 = vrot.lane.b32.xlu0 %v629, 20
  %v2007 = vpop.permute.xlu0 %2006
  %2008 = vrot.lane.b32.xlu0 %v630, 20
  %v2009 = vpop.permute.xlu0 %2008
  %2010 = vrot.lane.b32.xlu0 %v631, 20
  %v2011 = vpop.permute.xlu0 %2010
  %2012 = vrot.lane.b32.xlu0 %v632, 20
  %v2013 = vpop.permute.xlu0 %2012
  %2014 = vrot.lane.b32.xlu0 %v633, 20
  %v2015 = vpop.permute.xlu0 %2014
  %2016 = vrot.lane.b32.xlu0 %v634, 20
  %v2017 = vpop.permute.xlu0 %2016
  %2018 = vrot.lane.b32.xlu0 %v635, 20
  %v2019 = vpop.permute.xlu0 %2018
  %2020 = vrot.lane.b32.xlu0 %v636, 20
  %v2021 = vpop.permute.xlu0 %2020
  %2022 = vrot.lane.b32.xlu0 %v637, 20
  %v2023 = vpop.permute.xlu0 %2022
  %2024 = vrot.lane.b32.xlu0 %v638, 20
  %v2025 = vpop.permute.xlu0 %2024
  %2026 = vrot.lane.b32.xlu0 %v639, 20
  %v2027 = vpop.permute.xlu0 %2026
  %2028 = vrot.lane.b32.xlu0 %v640, 20
  %v2029 = vpop.permute.xlu0 %2028
  %2030 = vrot.lane.b32.xlu0 %v641, 20
  %v2031 = vpop.permute.xlu0 %2030
  %2032 = vrot.lane.b32.xlu0 %v642, 20
  %v2033 = vpop.permute.xlu0 %2032
  %2034 = vrot.lane.b32.xlu0 %v643, 20
  %v2035 = vpop.permute.xlu0 %2034
  %2036 = vrot.lane.b32.xlu0 %v644, 20
  %v2037 = vpop.permute.xlu0 %2036
  %2038 = vrot.lane.b32.xlu0 %v645, 20
  %v2039 = vpop.permute.xlu0 %2038
  %2040 = vrot.lane.b32.xlu0 %v646, 20
  %v2041 = vpop.permute.xlu0 %2040
  %2042 = vrot.lane.b32.xlu0 %v647, 20
  %v2043 = vpop.permute.xlu0 %2042
  %2044 = vrot.lane.b32.xlu0 %v648, 20
  %v2045 = vpop.permute.xlu0 %2044
  %2046 = vrot.lane.b32.xlu0 %v649, 20
  %v2047 = vpop.permute.xlu0 %2046
  %2048 = vrot.lane.b32.xlu0 %v650, 20
  %v2049 = vpop.permute.xlu0 %2048
  %2050 = vrot.lane.b32.xlu0 %v651, 20
  %v2051 = vpop.permute.xlu0 %2050
  %2052 = vrot.lane.b32.xlu0 %v652, 20
  %v2053 = vpop.permute.xlu0 %2052
  %2054 = vrot.lane.b32.xlu0 %v653, 20
  %v2055 = vpop.permute.xlu0 %2054
  %2056 = vrot.lane.b32.xlu0 %v654, 20
  %v2057 = vpop.permute.xlu0 %2056
  %2058 = vrot.lane.b32.xlu0 %v655, 20
  %v2059 = vpop.permute.xlu0 %2058
  %2060 = vrot.lane.b32.xlu0 %v656, 20
  %v2061 = vpop.permute.xlu0 %2060
  %2062 = vrot.lane.b32.xlu0 %v657, 20
  %v2063 = vpop.permute.xlu0 %2062
  %2064 = vrot.lane.b32.xlu0 %v658, 20
  %v2065 = vpop.permute.xlu0 %2064
  %2066 = vrot.lane.b32.xlu0 %v659, 20
  %v2067 = vpop.permute.xlu0 %2066
  %2068 = vrot.lane.b32.xlu0 %v660, 20
  %v2069 = vpop.permute.xlu0 %2068
  %2198 = vrot.lane.b32.xlu0 %v662, 24
  %v2199 = vpop.permute.xlu0 %2198
  %2200 = vrot.lane.b32.xlu0 %v663, 24
  %v2201 = vpop.permute.xlu0 %2200
  %2202 = vrot.lane.b32.xlu0 %v664, 24
  %v2203 = vpop.permute.xlu0 %2202
  %2204 = vrot.lane.b32.xlu0 %v665, 24
  %v2205 = vpop.permute.xlu0 %2204
  %2206 = vrot.lane.b32.xlu0 %v666, 24
  %v2207 = vpop.permute.xlu0 %2206
  %2208 = vrot.lane.b32.xlu0 %v667, 24
  %v2209 = vpop.permute.xlu0 %2208
  %2210 = vrot.lane.b32.xlu0 %v668, 24
  %v2211 = vpop.permute.xlu0 %2210
  %2212 = vrot.lane.b32.xlu0 %v669, 24
  %v2213 = vpop.permute.xlu0 %2212
  %2214 = vrot.lane.b32.xlu0 %v670, 24
  %v2215 = vpop.permute.xlu0 %2214
  %2216 = vrot.lane.b32.xlu0 %v671, 24
  %v2217 = vpop.permute.xlu0 %2216
  %2218 = vrot.lane.b32.xlu0 %v672, 24
  %v2219 = vpop.permute.xlu0 %2218
  %2220 = vrot.lane.b32.xlu0 %v673, 24
  %v2221 = vpop.permute.xlu0 %2220
  %2222 = vrot.lane.b32.xlu0 %v674, 24
  %v2223 = vpop.permute.xlu0 %2222
  %2224 = vrot.lane.b32.xlu0 %v675, 24
  %v2225 = vpop.permute.xlu0 %2224
  %2226 = vrot.lane.b32.xlu0 %v676, 24
  %v2227 = vpop.permute.xlu0 %2226
  %2228 = vrot.lane.b32.xlu0 %v677, 24
  %v2229 = vpop.permute.xlu0 %2228
  %2230 = vrot.lane.b32.xlu0 %v678, 24
  %v2231 = vpop.permute.xlu0 %2230
  %2232 = vrot.lane.b32.xlu0 %v679, 24
  %v2233 = vpop.permute.xlu0 %2232
  %2234 = vrot.lane.b32.xlu0 %v680, 24
  %v2235 = vpop.permute.xlu0 %2234
  %2236 = vrot.lane.b32.xlu0 %v681, 24
  %v2237 = vpop.permute.xlu0 %2236
  %2238 = vrot.lane.b32.xlu0 %v682, 24
  %v2239 = vpop.permute.xlu0 %2238
  %2240 = vrot.lane.b32.xlu0 %v683, 24
  %v2241 = vpop.permute.xlu0 %2240
  %2242 = vrot.lane.b32.xlu0 %v684, 24
  %v2243 = vpop.permute.xlu0 %2242
  %2244 = vrot.lane.b32.xlu0 %v685, 24
  %v2245 = vpop.permute.xlu0 %2244
  %2246 = vrot.lane.b32.xlu0 %v686, 24
  %v2247 = vpop.permute.xlu0 %2246
  %2248 = vrot.lane.b32.xlu0 %v687, 24
  %v2249 = vpop.permute.xlu0 %2248
  %2250 = vrot.lane.b32.xlu0 %v688, 24
  %v2251 = vpop.permute.xlu0 %2250
  %2252 = vrot.lane.b32.xlu0 %v689, 24
  %v2253 = vpop.permute.xlu0 %2252
  %2254 = vrot.lane.b32.xlu0 %v690, 24
  %v2255 = vpop.permute.xlu0 %2254
  %2256 = vrot.lane.b32.xlu0 %v691, 24
  %v2257 = vpop.permute.xlu0 %2256
  %2258 = vrot.lane.b32.xlu0 %v692, 24
  %v2259 = vpop.permute.xlu0 %2258
  %2260 = vrot.lane.b32.xlu0 %v693, 24
  %v2261 = vpop.permute.xlu0 %2260
  %2262 = vrot.lane.b32.xlu0 %v694, 24
  %v2263 = vpop.permute.xlu0 %2262
  %2264 = vrot.lane.b32.xlu0 %v695, 24
  %v2265 = vpop.permute.xlu0 %2264
  %2266 = vrot.lane.b32.xlu0 %v696, 24
  %v2267 = vpop.permute.xlu0 %2266
  %2268 = vrot.lane.b32.xlu0 %v697, 24
  %v2269 = vpop.permute.xlu0 %2268
  %2270 = vrot.lane.b32.xlu0 %v698, 24
  %v2271 = vpop.permute.xlu0 %2270
  %2272 = vrot.lane.b32.xlu0 %v699, 24
  %v2273 = vpop.permute.xlu0 %2272
  %2274 = vrot.lane.b32.xlu0 %v700, 24
  %v2275 = vpop.permute.xlu0 %2274
  %2276 = vrot.lane.b32.xlu0 %v701, 24
  %v2277 = vpop.permute.xlu0 %2276
  %2278 = vrot.lane.b32.xlu0 %v702, 24
  %v2279 = vpop.permute.xlu0 %2278
  %2280 = vrot.lane.b32.xlu0 %v703, 24
  %v2281 = vpop.permute.xlu0 %2280
  %2282 = vrot.lane.b32.xlu0 %v704, 24
  %v2283 = vpop.permute.xlu0 %2282
  %2284 = vrot.lane.b32.xlu0 %v705, 24
  %v2285 = vpop.permute.xlu0 %2284
  %2286 = vrot.lane.b32.xlu0 %v706, 24
  %v2287 = vpop.permute.xlu0 %2286
  %2288 = vrot.lane.b32.xlu0 %v707, 24
  %v2289 = vpop.permute.xlu0 %2288
  %2290 = vrot.lane.b32.xlu0 %v708, 24
  %v2291 = vpop.permute.xlu0 %2290
  %2292 = vrot.lane.b32.xlu0 %v709, 24
  %v2293 = vpop.permute.xlu0 %2292
  %2294 = vrot.lane.b32.xlu0 %v710, 24
  %v2295 = vpop.permute.xlu0 %2294
  %2296 = vrot.lane.b32.xlu0 %v711, 24
  %v2297 = vpop.permute.xlu0 %2296
  %2298 = vrot.lane.b32.xlu0 %v712, 24
  %v2299 = vpop.permute.xlu0 %2298
  %2300 = vrot.lane.b32.xlu0 %v713, 24
  %v2301 = vpop.permute.xlu0 %2300
  %2302 = vrot.lane.b32.xlu0 %v714, 24
  %v2303 = vpop.permute.xlu0 %2302
  %2304 = vrot.lane.b32.xlu0 %v715, 24
  %v2305 = vpop.permute.xlu0 %2304
  %2306 = vrot.lane.b32.xlu0 %v716, 24
  %v2307 = vpop.permute.xlu0 %2306
  %2308 = vrot.lane.b32.xlu0 %v717, 24
  %v2309 = vpop.permute.xlu0 %2308
  %2310 = vrot.lane.b32.xlu0 %v718, 24
  %v2311 = vpop.permute.xlu0 %2310
  %2312 = vrot.lane.b32.xlu0 %v719, 24
  %v2313 = vpop.permute.xlu0 %2312
  %2314 = vrot.lane.b32.xlu0 %v720, 24
  %v2315 = vpop.permute.xlu0 %2314
  %2316 = vrot.lane.b32.xlu0 %v721, 24
  %v2317 = vpop.permute.xlu0 %2316
  %2318 = vrot.lane.b32.xlu0 %v722, 24
  %v2319 = vpop.permute.xlu0 %2318
  %2320 = vrot.lane.b32.xlu0 %v723, 24
  %v2321 = vpop.permute.xlu0 %2320
  %2322 = vrot.lane.b32.xlu0 %v724, 24
  %v2323 = vpop.permute.xlu0 %2322
  %2324 = vrot.lane.b32.xlu0 %v725, 24
  %v2325 = vpop.permute.xlu0 %2324
  %2454 = vrot.lane.b32.xlu0 %v726, 28
  %v2455 = vpop.permute.xlu0 %2454
  %2456 = vrot.lane.b32.xlu0 %v727, 28
  %v2457 = vpop.permute.xlu0 %2456
  %2458 = vrot.lane.b32.xlu0 %v728, 28
  %v2459 = vpop.permute.xlu0 %2458
  %2460 = vrot.lane.b32.xlu0 %v729, 28
  %v2461 = vpop.permute.xlu0 %2460
  %2462 = vrot.lane.b32.xlu0 %v730, 28
  %v2463 = vpop.permute.xlu0 %2462
  %2464 = vrot.lane.b32.xlu0 %v731, 28
  %v2465 = vpop.permute.xlu0 %2464
  %2466 = vrot.lane.b32.xlu0 %v732, 28
  %v2467 = vpop.permute.xlu0 %2466
  %2468 = vrot.lane.b32.xlu0 %v733, 28
  %v2469 = vpop.permute.xlu0 %2468
  %2470 = vrot.lane.b32.xlu0 %v734, 28
  %v2471 = vpop.permute.xlu0 %2470
  %2472 = vrot.lane.b32.xlu0 %v735, 28
  %v2473 = vpop.permute.xlu0 %2472
  %2474 = vrot.lane.b32.xlu0 %v736, 28
  %v2475 = vpop.permute.xlu0 %2474
  %2476 = vrot.lane.b32.xlu0 %v737, 28
  %v2477 = vpop.permute.xlu0 %2476
  %2478 = vrot.lane.b32.xlu0 %v738, 28
  %v2479 = vpop.permute.xlu0 %2478
  %2480 = vrot.lane.b32.xlu0 %v739, 28
  %v2481 = vpop.permute.xlu0 %2480
  %2482 = vrot.lane.b32.xlu0 %v740, 28
  %v2483 = vpop.permute.xlu0 %2482
  %2484 = vrot.lane.b32.xlu0 %v741, 28
  %v2485 = vpop.permute.xlu0 %2484
  %2486 = vrot.lane.b32.xlu0 %v742, 28
  %v2487 = vpop.permute.xlu0 %2486
  %2488 = vrot.lane.b32.xlu0 %v743, 28
  %v2489 = vpop.permute.xlu0 %2488
  %2490 = vrot.lane.b32.xlu0 %v744, 28
  %v2491 = vpop.permute.xlu0 %2490
  %2492 = vrot.lane.b32.xlu0 %v745, 28
  %v2493 = vpop.permute.xlu0 %2492
  %2494 = vrot.lane.b32.xlu0 %v746, 28
  %v2495 = vpop.permute.xlu0 %2494
  %2496 = vrot.lane.b32.xlu0 %v747, 28
  %v2497 = vpop.permute.xlu0 %2496
  %2498 = vrot.lane.b32.xlu0 %v748, 28
  %v2499 = vpop.permute.xlu0 %2498
  %2500 = vrot.lane.b32.xlu0 %v749, 28
  %v2501 = vpop.permute.xlu0 %2500
  %2502 = vrot.lane.b32.xlu0 %v750, 28
  %v2503 = vpop.permute.xlu0 %2502
  %2504 = vrot.lane.b32.xlu0 %v751, 28
  %v2505 = vpop.permute.xlu0 %2504
  %2506 = vrot.lane.b32.xlu0 %v752, 28
  %v2507 = vpop.permute.xlu0 %2506
  %2508 = vrot.lane.b32.xlu0 %v753, 28
  %v2509 = vpop.permute.xlu0 %2508
  %2510 = vrot.lane.b32.xlu0 %v754, 28
  %v2511 = vpop.permute.xlu0 %2510
  %2512 = vrot.lane.b32.xlu0 %v755, 28
  %v2513 = vpop.permute.xlu0 %2512
  %2514 = vrot.lane.b32.xlu0 %v756, 28
  %v2515 = vpop.permute.xlu0 %2514
  %2516 = vrot.lane.b32.xlu0 %v757, 28
  %v2517 = vpop.permute.xlu0 %2516
  %2518 = vrot.lane.b32.xlu0 %v758, 28
  %v2519 = vpop.permute.xlu0 %2518
  %2520 = vrot.lane.b32.xlu0 %v759, 28
  %v2521 = vpop.permute.xlu0 %2520
  %2522 = vrot.lane.b32.xlu0 %v760, 28
  %v2523 = vpop.permute.xlu0 %2522
  %2524 = vrot.lane.b32.xlu0 %v761, 28
  %v2525 = vpop.permute.xlu0 %2524
  %2526 = vrot.lane.b32.xlu0 %v762, 28
  %v2527 = vpop.permute.xlu0 %2526
  %2528 = vrot.lane.b32.xlu0 %v763, 28
  %v2529 = vpop.permute.xlu0 %2528
  %2530 = vrot.lane.b32.xlu0 %v764, 28
  %v2531 = vpop.permute.xlu0 %2530
  %2532 = vrot.lane.b32.xlu0 %v765, 28
  %v2533 = vpop.permute.xlu0 %2532
  %2534 = vrot.lane.b32.xlu0 %v766, 28
  %v2535 = vpop.permute.xlu0 %2534
  %2536 = vrot.lane.b32.xlu0 %v767, 28
  %v2537 = vpop.permute.xlu0 %2536
  %2538 = vrot.lane.b32.xlu0 %v768, 28
  %v2539 = vpop.permute.xlu0 %2538
  %2540 = vrot.lane.b32.xlu0 %v769, 28
  %v2541 = vpop.permute.xlu0 %2540
  %2542 = vrot.lane.b32.xlu0 %v770, 28
  %v2543 = vpop.permute.xlu0 %2542
  %2544 = vrot.lane.b32.xlu0 %v771, 28
  %v2545 = vpop.permute.xlu0 %2544
  %2546 = vrot.lane.b32.xlu0 %v772, 28
  %v2547 = vpop.permute.xlu0 %2546
  %2548 = vrot.lane.b32.xlu0 %v773, 28
  %v2549 = vpop.permute.xlu0 %2548
  %2550 = vrot.lane.b32.xlu0 %v774, 28
  %v2551 = vpop.permute.xlu0 %2550
  %2552 = vrot.lane.b32.xlu0 %v775, 28
  %v2553 = vpop.permute.xlu0 %2552
  %2554 = vrot.lane.b32.xlu0 %v776, 28
  %v2555 = vpop.permute.xlu0 %2554
  %2556 = vrot.lane.b32.xlu0 %v777, 28
  %v2557 = vpop.permute.xlu0 %2556
  %2558 = vrot.lane.b32.xlu0 %v778, 28
  %v2559 = vpop.permute.xlu0 %2558
  %2560 = vrot.lane.b32.xlu0 %v779, 28
  %v2561 = vpop.permute.xlu0 %2560
  %2562 = vrot.lane.b32.xlu0 %v780, 28
  %v2563 = vpop.permute.xlu0 %2562
  %2564 = vrot.lane.b32.xlu0 %v781, 28
  %v2565 = vpop.permute.xlu0 %2564
  %2566 = vrot.lane.b32.xlu0 %v782, 28
  %v2567 = vpop.permute.xlu0 %2566
  %2568 = vrot.lane.b32.xlu0 %v783, 28
  %v2569 = vpop.permute.xlu0 %2568
  %2570 = vrot.lane.b32.xlu0 %v784, 28
  %v2571 = vpop.permute.xlu0 %2570
  %2572 = vrot.lane.b32.xlu0 %v785, 28
  %v2573 = vpop.permute.xlu0 %2572
  %2574 = vrot.lane.b32.xlu0 %v786, 28
  %v2575 = vpop.permute.xlu0 %2574
  %2576 = vrot.lane.b32.xlu0 %v787, 28
  %v2577 = vpop.permute.xlu0 %2576
  %2578 = vrot.lane.b32.xlu0 %v788, 28
  %v2579 = vpop.permute.xlu0 %2578
  %2580 = vrot.lane.b32.xlu0 %v789, 28
  %v2581 = vpop.permute.xlu0 %2580
  %2710 = vrot.lane.b32.xlu0 %v790, 32
  %v2711 = vpop.permute.xlu0 %2710
  %2712 = vrot.lane.b32.xlu0 %v791, 32
  %v2713 = vpop.permute.xlu0 %2712
  %2714 = vrot.lane.b32.xlu0 %v792, 32
  %v2715 = vpop.permute.xlu0 %2714
  %2716 = vrot.lane.b32.xlu0 %v793, 32
  %v2717 = vpop.permute.xlu0 %2716
  %2718 = vrot.lane.b32.xlu0 %v794, 32
  %v2719 = vpop.permute.xlu0 %2718
  %2720 = vrot.lane.b32.xlu0 %v795, 32
  %v2721 = vpop.permute.xlu0 %2720
  %2722 = vrot.lane.b32.xlu0 %v796, 32
  %v2723 = vpop.permute.xlu0 %2722
  %2724 = vrot.lane.b32.xlu0 %v797, 32
  %v2725 = vpop.permute.xlu0 %2724
  %2726 = vrot.lane.b32.xlu0 %v798, 32
  %v2727 = vpop.permute.xlu0 %2726
  %2728 = vrot.lane.b32.xlu0 %v799, 32
  %v2729 = vpop.permute.xlu0 %2728
  %2730 = vrot.lane.b32.xlu0 %v800, 32
  %v2731 = vpop.permute.xlu0 %2730
  %2732 = vrot.lane.b32.xlu0 %v801, 32
  %v2733 = vpop.permute.xlu0 %2732
  %2734 = vrot.lane.b32.xlu0 %v802, 32
  %v2735 = vpop.permute.xlu0 %2734
  %2736 = vrot.lane.b32.xlu0 %v803, 32
  %v2737 = vpop.permute.xlu0 %2736
  %2738 = vrot.lane.b32.xlu0 %v804, 32
  %v2739 = vpop.permute.xlu0 %2738
  %2740 = vrot.lane.b32.xlu0 %v805, 32
  %v2741 = vpop.permute.xlu0 %2740
  %2742 = vrot.lane.b32.xlu0 %v806, 32
  %v2743 = vpop.permute.xlu0 %2742
  %2744 = vrot.lane.b32.xlu0 %v807, 32
  %v2745 = vpop.permute.xlu0 %2744
  %2746 = vrot.lane.b32.xlu0 %v808, 32
  %v2747 = vpop.permute.xlu0 %2746
  %2748 = vrot.lane.b32.xlu0 %v809, 32
  %v2749 = vpop.permute.xlu0 %2748
  %2750 = vrot.lane.b32.xlu0 %v810, 32
  %v2751 = vpop.permute.xlu0 %2750
  %2752 = vrot.lane.b32.xlu0 %v811, 32
  %v2753 = vpop.permute.xlu0 %2752
  %2754 = vrot.lane.b32.xlu0 %v812, 32
  %v2755 = vpop.permute.xlu0 %2754
  %2756 = vrot.lane.b32.xlu0 %v813, 32
  %v2757 = vpop.permute.xlu0 %2756
  %2758 = vrot.lane.b32.xlu0 %v814, 32
  %v2759 = vpop.permute.xlu0 %2758
  %2760 = vrot.lane.b32.xlu0 %v815, 32
  %v2761 = vpop.permute.xlu0 %2760
  %2762 = vrot.lane.b32.xlu0 %v816, 32
  %v2763 = vpop.permute.xlu0 %2762
  %2764 = vrot.lane.b32.xlu0 %v817, 32
  %v2765 = vpop.permute.xlu0 %2764
  %2766 = vrot.lane.b32.xlu0 %v818, 32
  %v2767 = vpop.permute.xlu0 %2766
  %2768 = vrot.lane.b32.xlu0 %v819, 32
  %v2769 = vpop.permute.xlu0 %2768
  %2770 = vrot.lane.b32.xlu0 %v820, 32
  %v2771 = vpop.permute.xlu0 %2770
  %2772 = vrot.lane.b32.xlu0 %v821, 32
  %v2773 = vpop.permute.xlu0 %2772
  %2774 = vrot.lane.b32.xlu0 %v822, 32
  %v2775 = vpop.permute.xlu0 %2774
  %2776 = vrot.lane.b32.xlu0 %v823, 32
  %v2777 = vpop.permute.xlu0 %2776
  %2778 = vrot.lane.b32.xlu0 %v824, 32
  %v2779 = vpop.permute.xlu0 %2778
  %2780 = vrot.lane.b32.xlu0 %v825, 32
  %v2781 = vpop.permute.xlu0 %2780
  %2782 = vrot.lane.b32.xlu0 %v826, 32
  %v2783 = vpop.permute.xlu0 %2782
  %2784 = vrot.lane.b32.xlu0 %v827, 32
  %v2785 = vpop.permute.xlu0 %2784
  %2786 = vrot.lane.b32.xlu0 %v828, 32
  %v2787 = vpop.permute.xlu0 %2786
  %2788 = vrot.lane.b32.xlu0 %v829, 32
  %v2789 = vpop.permute.xlu0 %2788
  %2790 = vrot.lane.b32.xlu0 %v830, 32
  %v2791 = vpop.permute.xlu0 %2790
  %2792 = vrot.lane.b32.xlu0 %v831, 32
  %v2793 = vpop.permute.xlu0 %2792
  %2794 = vrot.lane.b32.xlu0 %v832, 32
  %v2795 = vpop.permute.xlu0 %2794
  %2796 = vrot.lane.b32.xlu0 %v833, 32
  %v2797 = vpop.permute.xlu0 %2796
  %2798 = vrot.lane.b32.xlu0 %v834, 32
  %v2799 = vpop.permute.xlu0 %2798
  %2800 = vrot.lane.b32.xlu0 %v835, 32
  %v2801 = vpop.permute.xlu0 %2800
  %2802 = vrot.lane.b32.xlu0 %v836, 32
  %v2803 = vpop.permute.xlu0 %2802
  %2804 = vrot.lane.b32.xlu0 %v837, 32
  %v2805 = vpop.permute.xlu0 %2804
  %2806 = vrot.lane.b32.xlu0 %v838, 32
  %v2807 = vpop.permute.xlu0 %2806
  %2808 = vrot.lane.b32.xlu0 %v839, 32
  %v2809 = vpop.permute.xlu0 %2808
  %2810 = vrot.lane.b32.xlu0 %v840, 32
  %v2811 = vpop.permute.xlu0 %2810
  %2812 = vrot.lane.b32.xlu0 %v841, 32
  %v2813 = vpop.permute.xlu0 %2812
  %2814 = vrot.lane.b32.xlu0 %v842, 32
  %v2815 = vpop.permute.xlu0 %2814
  %2816 = vrot.lane.b32.xlu0 %v843, 32
  %v2817 = vpop.permute.xlu0 %2816
  %2818 = vrot.lane.b32.xlu0 %v844, 32
  %v2819 = vpop.permute.xlu0 %2818
  %2820 = vrot.lane.b32.xlu0 %v845, 32
  %v2821 = vpop.permute.xlu0 %2820
  %2822 = vrot.lane.b32.xlu0 %v846, 32
  %v2823 = vpop.permute.xlu0 %2822
  %2824 = vrot.lane.b32.xlu0 %v847, 32
  %v2825 = vpop.permute.xlu0 %2824
  %2826 = vrot.lane.b32.xlu0 %v848, 32
  %v2827 = vpop.permute.xlu0 %2826
  %2828 = vrot.lane.b32.xlu0 %v849, 32
  %v2829 = vpop.permute.xlu0 %2828
  %2830 = vrot.lane.b32.xlu0 %v850, 32
  %v2831 = vpop.permute.xlu0 %2830
  %2832 = vrot.lane.b32.xlu0 %v851, 32
  %v2833 = vpop.permute.xlu0 %2832
  %2834 = vrot.lane.b32.xlu0 %v852, 32
  %v2835 = vpop.permute.xlu0 %2834
  %2836 = vrot.lane.b32.xlu0 %v853, 32
  %v2837 = vpop.permute.xlu0 %2836
  %v2902 = vsel %vm38, %v277, %v919
  %v2903 = vsel %vm38, %v278, %v921
  %v2904 = vsel %vm38, %v279, %v923
  %v2905 = vsel %vm38, %v280, %v925
  %v2906 = vsel %vm38, %v281, %v927
  %v2907 = vsel %vm38, %v282, %v929
  %v2908 = vsel %vm38, %v283, %v931
  %v2909 = vsel %vm38, %v284, %v933
  %v2910 = vsel %vm38, %v285, %v935
  %v2911 = vsel %vm38, %v286, %v937
  %v2912 = vsel %vm38, %v287, %v939
  %v2913 = vsel %vm38, %v288, %v941
  %v2914 = vsel %vm38, %v289, %v943
  %v2915 = vsel %vm38, %v290, %v945
  %v2916 = vsel %vm38, %v291, %v947
  %v2917 = vsel %vm38, %v292, %v949
  %v2918 = vsel %vm38, %v293, %v951
  %v2919 = vsel %vm38, %v294, %v953
  %v2920 = vsel %vm38, %v295, %v955
  %v2921 = vsel %vm38, %v296, %v957
  %v2922 = vsel %vm38, %v297, %v959
  %v2923 = vsel %vm38, %v298, %v961
  %v2924 = vsel %vm38, %v299, %v963
  %v2925 = vsel %vm38, %v300, %v965
  %v2926 = vsel %vm38, %v301, %v967
  %v2927 = vsel %vm38, %v302, %v969
  %v2928 = vsel %vm38, %v303, %v971
  %v2929 = vsel %vm38, %v304, %v973
  %v2930 = vsel %vm38, %v305, %v975
  %v2931 = vsel %vm38, %v306, %v977
  %v2932 = vsel %vm38, %v307, %v979
  %v2933 = vsel %vm38, %v308, %v981
  %v2934 = vsel %vm38, %v309, %v983
  %v2935 = vsel %vm38, %v310, %v985
  %v2936 = vsel %vm38, %v311, %v987
  %v2937 = vsel %vm38, %v312, %v989
  %v2938 = vsel %vm38, %v313, %v991
  %v2939 = vsel %vm38, %v314, %v993
  %v2940 = vsel %vm38, %v315, %v995
  %v2941 = vsel %vm38, %v316, %v997
  %v2942 = vsel %vm38, %v317, %v999
  %v2943 = vsel %vm38, %v318, %v1001
  %v2944 = vsel %vm38, %v319, %v1003
  %v2945 = vsel %vm38, %v320, %v1005
  %v2946 = vsel %vm38, %v321, %v1007
  %v2947 = vsel %vm38, %v322, %v1009
  %v2948 = vsel %vm38, %v323, %v1011
  %v2949 = vsel %vm38, %v324, %v1013
  %v2950 = vsel %vm38, %v325, %v1015
  %v2951 = vsel %vm38, %v326, %v1017
  %v2952 = vsel %vm38, %v327, %v1019
  %v2953 = vsel %vm38, %v328, %v1021
  %v2954 = vsel %vm38, %v329, %v1023
  %v2955 = vsel %vm38, %v330, %v1025
  %v2956 = vsel %vm38, %v331, %v1027
  %v2957 = vsel %vm38, %v332, %v1029
  %v2958 = vsel %vm38, %v333, %v1031
  %v2959 = vsel %vm38, %v334, %v1033
  %v2960 = vsel %vm38, %v335, %v1035
  %v2961 = vsel %vm38, %v336, %v1037
  %v2962 = vsel %vm38, %v337, %v1039
  %v2963 = vsel %vm38, %v338, %v1041
  %v2964 = vsel %vm38, %v339, %v1043
  %v2965 = vsel %vm38, %v340, %v1045
  %vm2966 = vcmask 64512
  %v2967 = vsel %vm2966, %v2902, %v1175
  %v2968 = vsel %vm2966, %v2903, %v1177
  %v2969 = vsel %vm2966, %v2904, %v1179
  %v2970 = vsel %vm2966, %v2905, %v1181
  %v2971 = vsel %vm2966, %v2906, %v1183
  %v2972 = vsel %vm2966, %v2907, %v1185
  %v2973 = vsel %vm2966, %v2908, %v1187
  %v2974 = vsel %vm2966, %v2909, %v1189
  %v2975 = vsel %vm2966, %v2910, %v1191
  %v2976 = vsel %vm2966, %v2911, %v1193
  %v2977 = vsel %vm2966, %v2912, %v1195
  %v2978 = vsel %vm2966, %v2913, %v1197
  %v2979 = vsel %vm2966, %v2914, %v1199
  %v2980 = vsel %vm2966, %v2915, %v1201
  %v2981 = vsel %vm2966, %v2916, %v1203
  %v2982 = vsel %vm2966, %v2917, %v1205
  %v2983 = vsel %vm2966, %v2918, %v1207
  %v2984 = vsel %vm2966, %v2919, %v1209
  %v2985 = vsel %vm2966, %v2920, %v1211
  %v2986 = vsel %vm2966, %v2921, %v1213
  %v2987 = vsel %vm2966, %v2922, %v1215
  %v2988 = vsel %vm2966, %v2923, %v1217
  %v2989 = vsel %vm2966, %v2924, %v1219
  %v2990 = vsel %vm2966, %v2925, %v1221
  %v2991 = vsel %vm2966, %v2926, %v1223
  %v2992 = vsel %vm2966, %v2927, %v1225
  %v2993 = vsel %vm2966, %v2928, %v1227
  %v2994 = vsel %vm2966, %v2929, %v1229
  %v2995 = vsel %vm2966, %v2930, %v1231
  %v2996 = vsel %vm2966, %v2931, %v1233
  %v2997 = vsel %vm2966, %v2932, %v1235
  %v2998 = vsel %vm2966, %v2933, %v1237
  %v2999 = vsel %vm2966, %v2934, %v1239
  %v3000 = vsel %vm2966, %v2935, %v1241
  %v3001 = vsel %vm2966, %v2936, %v1243
  %v3002 = vsel %vm2966, %v2937, %v1245
  %v3003 = vsel %vm2966, %v2938, %v1247
  %v3004 = vsel %vm2966, %v2939, %v1249
  %v3005 = vsel %vm2966, %v2940, %v1251
  %v3006 = vsel %vm2966, %v2941, %v1253
  %v3007 = vsel %vm2966, %v2942, %v1255
  %v3008 = vsel %vm2966, %v2943, %v1257
  %v3009 = vsel %vm2966, %v2944, %v1259
  %v3010 = vsel %vm2966, %v2945, %v1261
  %v3011 = vsel %vm2966, %v2946, %v1263
  %v3012 = vsel %vm2966, %v2947, %v1265
  %v3013 = vsel %vm2966, %v2948, %v1267
  %v3014 = vsel %vm2966, %v2949, %v1269
  %v3015 = vsel %vm2966, %v2950, %v1271
  %v3016 = vsel %vm2966, %v2951, %v1273
  %v3017 = vsel %vm2966, %v2952, %v1275
  %v3018 = vsel %vm2966, %v2953, %v1277
  %v3019 = vsel %vm2966, %v2954, %v1279
  %v3020 = vsel %vm2966, %v2955, %v1281
  %v3021 = vsel %vm2966, %v2956, %v1283
  %v3022 = vsel %vm2966, %v2957, %v1285
  %v3023 = vsel %vm2966, %v2958, %v1287
  %v3024 = vsel %vm2966, %v2959, %v1289
  %v3025 = vsel %vm2966, %v2960, %v1291
  %v3026 = vsel %vm2966, %v2961, %v1293
  %v3027 = vsel %vm2966, %v2962, %v1295
  %v3028 = vsel %vm2966, %v2963, %v1297
  %v3029 = vsel %vm2966, %v2964, %v1299
  %v3030 = vsel %vm2966, %v2965, %v1301
  %vm3031 = vcmask 97280
  %v3032 = vsel %vm3031, %v2967, %v1431
  %v3033 = vsel %vm3031, %v2968, %v1433
  %v3034 = vsel %vm3031, %v2969, %v1435
  %v3035 = vsel %vm3031, %v2970, %v1437
  %v3036 = vsel %vm3031, %v2971, %v1439
  %v3037 = vsel %vm3031, %v2972, %v1441
  %v3038 = vsel %vm3031, %v2973, %v1443
  %v3039 = vsel %vm3031, %v2974, %v1445
  %v3040 = vsel %vm3031, %v2975, %v1447
  %v3041 = vsel %vm3031, %v2976, %v1449
  %v3042 = vsel %vm3031, %v2977, %v1451
  %v3043 = vsel %vm3031, %v2978, %v1453
  %v3044 = vsel %vm3031, %v2979, %v1455
  %v3045 = vsel %vm3031, %v2980, %v1457
  %v3046 = vsel %vm3031, %v2981, %v1459
  %v3047 = vsel %vm3031, %v2982, %v1461
  %v3048 = vsel %vm3031, %v2983, %v1463
  %v3049 = vsel %vm3031, %v2984, %v1465
  %v3050 = vsel %vm3031, %v2985, %v1467
  %v3051 = vsel %vm3031, %v2986, %v1469
  %v3052 = vsel %vm3031, %v2987, %v1471
  %v3053 = vsel %vm3031, %v2988, %v1473
  %v3054 = vsel %vm3031, %v2989, %v1475
  %v3055 = vsel %vm3031, %v2990, %v1477
  %v3056 = vsel %vm3031, %v2991, %v1479
  %v3057 = vsel %vm3031, %v2992, %v1481
  %v3058 = vsel %vm3031, %v2993, %v1483
  %v3059 = vsel %vm3031, %v2994, %v1485
  %v3060 = vsel %vm3031, %v2995, %v1487
  %v3061 = vsel %vm3031, %v2996, %v1489
  %v3062 = vsel %vm3031, %v2997, %v1491
  %v3063 = vsel %vm3031, %v2998, %v1493
  %v3064 = vsel %vm3031, %v2999, %v1495
  %v3065 = vsel %vm3031, %v3000, %v1497
  %v3066 = vsel %vm3031, %v3001, %v1499
  %v3067 = vsel %vm3031, %v3002, %v1501
  %v3068 = vsel %vm3031, %v3003, %v1503
  %v3069 = vsel %vm3031, %v3004, %v1505
  %v3070 = vsel %vm3031, %v3005, %v1507
  %v3071 = vsel %vm3031, %v3006, %v1509
  %v3072 = vsel %vm3031, %v3007, %v1511
  %v3073 = vsel %vm3031, %v3008, %v1513
  %v3074 = vsel %vm3031, %v3009, %v1515
  %v3075 = vsel %vm3031, %v3010, %v1517
  %v3076 = vsel %vm3031, %v3011, %v1519
  %v3077 = vsel %vm3031, %v3012, %v1521
  %v3078 = vsel %vm3031, %v3013, %v1523
  %v3079 = vsel %vm3031, %v3014, %v1525
  %v3080 = vsel %vm3031, %v3015, %v1527
  %v3081 = vsel %vm3031, %v3016, %v1529
  %v3082 = vsel %vm3031, %v3017, %v1531
  %v3083 = vsel %vm3031, %v3018, %v1533
  %v3084 = vsel %vm3031, %v3019, %v1535
  %v3085 = vsel %vm3031, %v3020, %v1537
  %v3086 = vsel %vm3031, %v3021, %v1539
  %v3087 = vsel %vm3031, %v3022, %v1541
  %v3088 = vsel %vm3031, %v3023, %v1543
  %v3089 = vsel %vm3031, %v3024, %v1545
  %v3090 = vsel %vm3031, %v3025, %v1547
  %v3091 = vsel %vm3031, %v3026, %v1549
  %v3092 = vsel %vm3031, %v3027, %v1551
  %v3093 = vsel %vm3031, %v3028, %v1553
  %v3094 = vsel %vm3031, %v3029, %v1555
  %v3095 = vsel %vm3031, %v3030, %v1557
  %vm3096 = vcmask 130048
  %v3097 = vsel %vm3096, %v3032, %v1687
  %v3098 = vsel %vm3096, %v3033, %v1689
  %v3099 = vsel %vm3096, %v3034, %v1691
  %v3100 = vsel %vm3096, %v3035, %v1693
  %v3101 = vsel %vm3096, %v3036, %v1695
  %v3102 = vsel %vm3096, %v3037, %v1697
  %v3103 = vsel %vm3096, %v3038, %v1699
  %v3104 = vsel %vm3096, %v3039, %v1701
  %v3105 = vsel %vm3096, %v3040, %v1703
  %v3106 = vsel %vm3096, %v3041, %v1705
  %v3107 = vsel %vm3096, %v3042, %v1707
  %v3108 = vsel %vm3096, %v3043, %v1709
  %v3109 = vsel %vm3096, %v3044, %v1711
  %v3110 = vsel %vm3096, %v3045, %v1713
  %v3111 = vsel %vm3096, %v3046, %v1715
  %v3112 = vsel %vm3096, %v3047, %v1717
  %v3113 = vsel %vm3096, %v3048, %v1719
  %v3114 = vsel %vm3096, %v3049, %v1721
  %v3115 = vsel %vm3096, %v3050, %v1723
  %v3116 = vsel %vm3096, %v3051, %v1725
  %v3117 = vsel %vm3096, %v3052, %v1727
  %v3118 = vsel %vm3096, %v3053, %v1729
  %v3119 = vsel %vm3096, %v3054, %v1731
  %v3120 = vsel %vm3096, %v3055, %v1733
  %v3121 = vsel %vm3096, %v3056, %v1735
  %v3122 = vsel %vm3096, %v3057, %v1737
  %v3123 = vsel %vm3096, %v3058, %v1739
  %v3124 = vsel %vm3096, %v3059, %v1741
  %v3125 = vsel %vm3096, %v3060, %v1743
  %v3126 = vsel %vm3096, %v3061, %v1745
  %v3127 = vsel %vm3096, %v3062, %v1747
  %v3128 = vsel %vm3096, %v3063, %v1749
  %v3129 = vsel %vm3096, %v3064, %v1751
  %v3130 = vsel %vm3096, %v3065, %v1753
  %v3131 = vsel %vm3096, %v3066, %v1755
  %v3132 = vsel %vm3096, %v3067, %v1757
  %v3133 = vsel %vm3096, %v3068, %v1759
  %v3134 = vsel %vm3096, %v3069, %v1761
  %v3135 = vsel %vm3096, %v3070, %v1763
  %v3136 = vsel %vm3096, %v3071, %v1765
  %v3137 = vsel %vm3096, %v3072, %v1767
  %v3138 = vsel %vm3096, %v3073, %v1769
  %v3139 = vsel %vm3096, %v3074, %v1771
  %v3140 = vsel %vm3096, %v3075, %v1773
  %v3141 = vsel %vm3096, %v3076, %v1775
  %v3142 = vsel %vm3096, %v3077, %v1777
  %v3143 = vsel %vm3096, %v3078, %v1779
  %v3144 = vsel %vm3096, %v3079, %v1781
  %v3145 = vsel %vm3096, %v3080, %v1783
  %v3146 = vsel %vm3096, %v3081, %v1785
  %v3147 = vsel %vm3096, %v3082, %v1787
  %v3148 = vsel %vm3096, %v3083, %v1789
  %v3149 = vsel %vm3096, %v3084, %v1791
  %v3150 = vsel %vm3096, %v3085, %v1793
  %v3151 = vsel %vm3096, %v3086, %v1795
  %v3152 = vsel %vm3096, %v3087, %v1797
  %v3153 = vsel %vm3096, %v3088, %v1799
  %v3154 = vsel %vm3096, %v3089, %v1801
  %v3155 = vsel %vm3096, %v3090, %v1803
  %v3156 = vsel %vm3096, %v3091, %v1805
  %v3157 = vsel %vm3096, %v3092, %v1807
  %v3158 = vsel %vm3096, %v3093, %v1809
  %v3159 = vsel %vm3096, %v3094, %v1811
  %v3160 = vsel %vm3096, %v3095, %v1813
  %vm3161 = vcmask 162816
  %v3162 = vsel %vm3161, %v3097, %v1943
  %v3163 = vsel %vm3161, %v3098, %v1945
  %v3164 = vsel %vm3161, %v3099, %v1947
  %v3165 = vsel %vm3161, %v3100, %v1949
  %v3166 = vsel %vm3161, %v3101, %v1951
  %v3167 = vsel %vm3161, %v3102, %v1953
  %v3168 = vsel %vm3161, %v3103, %v1955
  %v3169 = vsel %vm3161, %v3104, %v1957
  %v3170 = vsel %vm3161, %v3105, %v1959
  %v3171 = vsel %vm3161, %v3106, %v1961
  %v3172 = vsel %vm3161, %v3107, %v1963
  %v3173 = vsel %vm3161, %v3108, %v1965
  %v3174 = vsel %vm3161, %v3109, %v1967
  %v3175 = vsel %vm3161, %v3110, %v1969
  %v3176 = vsel %vm3161, %v3111, %v1971
  %v3177 = vsel %vm3161, %v3112, %v1973
  %v3178 = vsel %vm3161, %v3113, %v1975
  %v3179 = vsel %vm3161, %v3114, %v1977
  %v3180 = vsel %vm3161, %v3115, %v1979
  %v3181 = vsel %vm3161, %v3116, %v1981
  %v3182 = vsel %vm3161, %v3117, %v1983
  %v3183 = vsel %vm3161, %v3118, %v1985
  %v3184 = vsel %vm3161, %v3119, %v1987
  %v3185 = vsel %vm3161, %v3120, %v1989
  %v3186 = vsel %vm3161, %v3121, %v1991
  %v3187 = vsel %vm3161, %v3122, %v1993
  %v3188 = vsel %vm3161, %v3123, %v1995
  %v3189 = vsel %vm3161, %v3124, %v1997
  %v3190 = vsel %vm3161, %v3125, %v1999
  %v3191 = vsel %vm3161, %v3126, %v2001
  %v3192 = vsel %vm3161, %v3127, %v2003
  %v3193 = vsel %vm3161, %v3128, %v2005
  %v3194 = vsel %vm3161, %v3129, %v2007
  %v3195 = vsel %vm3161, %v3130, %v2009
  %v3196 = vsel %vm3161, %v3131, %v2011
  %v3197 = vsel %vm3161, %v3132, %v2013
  %v3198 = vsel %vm3161, %v3133, %v2015
  %v3199 = vsel %vm3161, %v3134, %v2017
  %v3200 = vsel %vm3161, %v3135, %v2019
  %v3201 = vsel %vm3161, %v3136, %v2021
  %v3202 = vsel %vm3161, %v3137, %v2023
  %v3203 = vsel %vm3161, %v3138, %v2025
  %v3204 = vsel %vm3161, %v3139, %v2027
  %v3205 = vsel %vm3161, %v3140, %v2029
  %v3206 = vsel %vm3161, %v3141, %v2031
  %v3207 = vsel %vm3161, %v3142, %v2033
  %v3208 = vsel %vm3161, %v3143, %v2035
  %v3209 = vsel %vm3161, %v3144, %v2037
  %v3210 = vsel %vm3161, %v3145, %v2039
  %v3211 = vsel %vm3161, %v3146, %v2041
  %v3212 = vsel %vm3161, %v3147, %v2043
  %v3213 = vsel %vm3161, %v3148, %v2045
  %v3214 = vsel %vm3161, %v3149, %v2047
  %v3215 = vsel %vm3161, %v3150, %v2049
  %v3216 = vsel %vm3161, %v3151, %v2051
  %v3217 = vsel %vm3161, %v3152, %v2053
  %v3218 = vsel %vm3161, %v3153, %v2055
  %v3219 = vsel %vm3161, %v3154, %v2057
  %v3220 = vsel %vm3161, %v3155, %v2059
  %v3221 = vsel %vm3161, %v3156, %v2061
  %v3222 = vsel %vm3161, %v3157, %v2063
  %v3223 = vsel %vm3161, %v3158, %v2065
  %v3224 = vsel %vm3161, %v3159, %v2067
  %v3225 = vsel %vm3161, %v3160, %v2069
  %vm3226 = vcmask 195584
  %v3227 = vsel %vm3226, %v3162, %v2199
  %v3228 = vsel %vm3226, %v3163, %v2201
  %v3229 = vsel %vm3226, %v3164, %v2203
  %v3230 = vsel %vm3226, %v3165, %v2205
  %v3231 = vsel %vm3226, %v3166, %v2207
  %v3232 = vsel %vm3226, %v3167, %v2209
  %v3233 = vsel %vm3226, %v3168, %v2211
  %v3234 = vsel %vm3226, %v3169, %v2213
  %v3235 = vsel %vm3226, %v3170, %v2215
  %v3236 = vsel %vm3226, %v3171, %v2217
  %v3237 = vsel %vm3226, %v3172, %v2219
  %v3238 = vsel %vm3226, %v3173, %v2221
  %v3239 = vsel %vm3226, %v3174, %v2223
  %v3240 = vsel %vm3226, %v3175, %v2225
  %v3241 = vsel %vm3226, %v3176, %v2227
  %v3242 = vsel %vm3226, %v3177, %v2229
  %v3243 = vsel %vm3226, %v3178, %v2231
  %v3244 = vsel %vm3226, %v3179, %v2233
  %v3245 = vsel %vm3226, %v3180, %v2235
  %v3246 = vsel %vm3226, %v3181, %v2237
  %v3247 = vsel %vm3226, %v3182, %v2239
  %v3248 = vsel %vm3226, %v3183, %v2241
  %v3249 = vsel %vm3226, %v3184, %v2243
  %v3250 = vsel %vm3226, %v3185, %v2245
  %v3251 = vsel %vm3226, %v3186, %v2247
  %v3252 = vsel %vm3226, %v3187, %v2249
  %v3253 = vsel %vm3226, %v3188, %v2251
  %v3254 = vsel %vm3226, %v3189, %v2253
  %v3255 = vsel %vm3226, %v3190, %v2255
  %v3256 = vsel %vm3226, %v3191, %v2257
  %v3257 = vsel %vm3226, %v3192, %v2259
  %v3258 = vsel %vm3226, %v3193, %v2261
  %v3259 = vsel %vm3226, %v3194, %v2263
  %v3260 = vsel %vm3226, %v3195, %v2265
  %v3261 = vsel %vm3226, %v3196, %v2267
  %v3262 = vsel %vm3226, %v3197, %v2269
  %v3263 = vsel %vm3226, %v3198, %v2271
  %v3264 = vsel %vm3226, %v3199, %v2273
  %v3265 = vsel %vm3226, %v3200, %v2275
  %v3266 = vsel %vm3226, %v3201, %v2277
  %v3267 = vsel %vm3226, %v3202, %v2279
  %v3268 = vsel %vm3226, %v3203, %v2281
  %v3269 = vsel %vm3226, %v3204, %v2283
  %v3270 = vsel %vm3226, %v3205, %v2285
  %v3271 = vsel %vm3226, %v3206, %v2287
  %v3272 = vsel %vm3226, %v3207, %v2289
  %v3273 = vsel %vm3226, %v3208, %v2291
  %v3274 = vsel %vm3226, %v3209, %v2293
  %v3275 = vsel %vm3226, %v3210, %v2295
  %v3276 = vsel %vm3226, %v3211, %v2297
  %v3277 = vsel %vm3226, %v3212, %v2299
  %v3278 = vsel %vm3226, %v3213, %v2301
  %v3279 = vsel %vm3226, %v3214, %v2303
  %v3280 = vsel %vm3226, %v3215, %v2305
  %v3281 = vsel %vm3226, %v3216, %v2307
  %v3282 = vsel %vm3226, %v3217, %v2309
  %v3283 = vsel %vm3226, %v3218, %v2311
  %v3284 = vsel %vm3226, %v3219, %v2313
  %v3285 = vsel %vm3226, %v3220, %v2315
  %v3286 = vsel %vm3226, %v3221, %v2317
  %v3287 = vsel %vm3226, %v3222, %v2319
  %v3288 = vsel %vm3226, %v3223, %v2321
  %v3289 = vsel %vm3226, %v3224, %v2323
  %v3290 = vsel %vm3226, %v3225, %v2325
  %vm3291 = vcmask 228352
  %v3292 = vsel %vm3291, %v3227, %v2455
  %v3293 = vsel %vm3291, %v3228, %v2457
  %v3294 = vsel %vm3291, %v3229, %v2459
  %v3295 = vsel %vm3291, %v3230, %v2461
  %v3296 = vsel %vm3291, %v3231, %v2463
  %v3297 = vsel %vm3291, %v3232, %v2465
  %v3298 = vsel %vm3291, %v3233, %v2467
  %v3299 = vsel %vm3291, %v3234, %v2469
  %v3300 = vsel %vm3291, %v3235, %v2471
  %v3301 = vsel %vm3291, %v3236, %v2473
  %v3302 = vsel %vm3291, %v3237, %v2475
  %v3303 = vsel %vm3291, %v3238, %v2477
  %v3304 = vsel %vm3291, %v3239, %v2479
  %v3305 = vsel %vm3291, %v3240, %v2481
  %v3306 = vsel %vm3291, %v3241, %v2483
  %v3307 = vsel %vm3291, %v3242, %v2485
  %v3308 = vsel %vm3291, %v3243, %v2487
  %v3309 = vsel %vm3291, %v3244, %v2489
  %v3310 = vsel %vm3291, %v3245, %v2491
  %v3311 = vsel %vm3291, %v3246, %v2493
  %v3312 = vsel %vm3291, %v3247, %v2495
  %v3313 = vsel %vm3291, %v3248, %v2497
  %v3314 = vsel %vm3291, %v3249, %v2499
  %v3315 = vsel %vm3291, %v3250, %v2501
  %v3316 = vsel %vm3291, %v3251, %v2503
  %v3317 = vsel %vm3291, %v3252, %v2505
  %v3318 = vsel %vm3291, %v3253, %v2507
  %v3319 = vsel %vm3291, %v3254, %v2509
  %v3320 = vsel %vm3291, %v3255, %v2511
  %v3321 = vsel %vm3291, %v3256, %v2513
  %v3322 = vsel %vm3291, %v3257, %v2515
  %v3323 = vsel %vm3291, %v3258, %v2517
  %v3324 = vsel %vm3291, %v3259, %v2519
  %v3325 = vsel %vm3291, %v3260, %v2521
  %v3326 = vsel %vm3291, %v3261, %v2523
  %v3327 = vsel %vm3291, %v3262, %v2525
  %v3328 = vsel %vm3291, %v3263, %v2527
  %v3329 = vsel %vm3291, %v3264, %v2529
  %v3330 = vsel %vm3291, %v3265, %v2531
  %v3331 = vsel %vm3291, %v3266, %v2533
  %v3332 = vsel %vm3291, %v3267, %v2535
  %v3333 = vsel %vm3291, %v3268, %v2537
  %v3334 = vsel %vm3291, %v3269, %v2539
  %v3335 = vsel %vm3291, %v3270, %v2541
  %v3336 = vsel %vm3291, %v3271, %v2543
  %v3337 = vsel %vm3291, %v3272, %v2545
  %v3338 = vsel %vm3291, %v3273, %v2547
  %v3339 = vsel %vm3291, %v3274, %v2549
  %v3340 = vsel %vm3291, %v3275, %v2551
  %v3341 = vsel %vm3291, %v3276, %v2553
  %v3342 = vsel %vm3291, %v3277, %v2555
  %v3343 = vsel %vm3291, %v3278, %v2557
  %v3344 = vsel %vm3291, %v3279, %v2559
  %v3345 = vsel %vm3291, %v3280, %v2561
  %v3346 = vsel %vm3291, %v3281, %v2563
  %v3347 = vsel %vm3291, %v3282, %v2565
  %v3348 = vsel %vm3291, %v3283, %v2567
  %v3349 = vsel %vm3291, %v3284, %v2569
  %v3350 = vsel %vm3291, %v3285, %v2571
  %v3351 = vsel %vm3291, %v3286, %v2573
  %v3352 = vsel %vm3291, %v3287, %v2575
  %v3353 = vsel %vm3291, %v3288, %v2577
  %v3354 = vsel %vm3291, %v3289, %v2579
  %v3355 = vsel %vm3291, %v3290, %v2581
  %vm3356 = vcmask 261120
  %v3357 = vsel %vm3356, %v3292, %v2711
  %v3358 = vsel %vm3356, %v3293, %v2713
  %v3359 = vsel %vm3356, %v3294, %v2715
  %v3360 = vsel %vm3356, %v3295, %v2717
  %v3361 = vsel %vm3356, %v3296, %v2719
  %v3362 = vsel %vm3356, %v3297, %v2721
  %v3363 = vsel %vm3356, %v3298, %v2723
  %v3364 = vsel %vm3356, %v3299, %v2725
  %v3365 = vsel %vm3356, %v3300, %v2727
  %v3366 = vsel %vm3356, %v3301, %v2729
  %v3367 = vsel %vm3356, %v3302, %v2731
  %v3368 = vsel %vm3356, %v3303, %v2733
  %v3369 = vsel %vm3356, %v3304, %v2735
  %v3370 = vsel %vm3356, %v3305, %v2737
  %v3371 = vsel %vm3356, %v3306, %v2739
  %v3372 = vsel %vm3356, %v3307, %v2741
  %v3373 = vsel %vm3356, %v3308, %v2743
  %v3374 = vsel %vm3356, %v3309, %v2745
  %v3375 = vsel %vm3356, %v3310, %v2747
  %v3376 = vsel %vm3356, %v3311, %v2749
  %v3377 = vsel %vm3356, %v3312, %v2751
  %v3378 = vsel %vm3356, %v3313, %v2753
  %v3379 = vsel %vm3356, %v3314, %v2755
  %v3380 = vsel %vm3356, %v3315, %v2757
  %v3381 = vsel %vm3356, %v3316, %v2759
  %v3382 = vsel %vm3356, %v3317, %v2761
  %v3383 = vsel %vm3356, %v3318, %v2763
  %v3384 = vsel %vm3356, %v3319, %v2765
  %v3385 = vsel %vm3356, %v3320, %v2767
  %v3386 = vsel %vm3356, %v3321, %v2769
  %v3387 = vsel %vm3356, %v3322, %v2771
  %v3388 = vsel %vm3356, %v3323, %v2773
  %v3389 = vsel %vm3356, %v3324, %v2775
  %v3390 = vsel %vm3356, %v3325, %v2777
  %v3391 = vsel %vm3356, %v3326, %v2779
  %v3392 = vsel %vm3356, %v3327, %v2781
  %v3393 = vsel %vm3356, %v3328, %v2783
  %v3394 = vsel %vm3356, %v3329, %v2785
  %v3395 = vsel %vm3356, %v3330, %v2787
  %v3396 = vsel %vm3356, %v3331, %v2789
  %v3397 = vsel %vm3356, %v3332, %v2791
  %v3398 = vsel %vm3356, %v3333, %v2793
  %v3399 = vsel %vm3356, %v3334, %v2795
  %v3400 = vsel %vm3356, %v3335, %v2797
  %v3401 = vsel %vm3356, %v3336, %v2799
  %v3402 = vsel %vm3356, %v3337, %v2801
  %v3403 = vsel %vm3356, %v3338, %v2803
  %v3404 = vsel %vm3356, %v3339, %v2805
  %v3405 = vsel %vm3356, %v3340, %v2807
  %v3406 = vsel %vm3356, %v3341, %v2809
  %v3407 = vsel %vm3356, %v3342, %v2811
  %v3408 = vsel %vm3356, %v3343, %v2813
  %v3409 = vsel %vm3356, %v3344, %v2815
  %v3410 = vsel %vm3356, %v3345, %v2817
  %v3411 = vsel %vm3356, %v3346, %v2819
  %v3412 = vsel %vm3356, %v3347, %v2821
  %v3413 = vsel %vm3356, %v3348, %v2823
  %v3414 = vsel %vm3356, %v3349, %v2825
  %v3415 = vsel %vm3356, %v3350, %v2827
  %v3416 = vsel %vm3356, %v3351, %v2829
  %v3417 = vsel %vm3356, %v3352, %v2831
  %v3418 = vsel %vm3356, %v3353, %v2833
  %v3419 = vsel %vm3356, %v3354, %v2835
  %v3420 = vsel %vm3356, %v3355, %v2837
  %v3421 = vld [vmem:[%s1] sm:$0xff]
  %v3422 = vld [vmem:[%s1 + $0x8] sm:$0xff]
  %v3423 = vld [vmem:[%s1 + $0x10] sm:$0xff]
  %v3424 = vld [vmem:[%s1 + $0x18] sm:$0xff]
  %v3425 = vld [vmem:[%s1 + $0x20] sm:$0xf]
  %v3426 = vld [vmem:[%s2] sm:$0x1]
  %v3428 = vlaneseq
  %v3429 = vshrl.u32 %v3428, 7
  %v3430 = vsub.s32 0, %v3429
  %v3431 = vrot.slane %v3426, %v3430
  %vm3433 = vcmask 293888
  %v3435 = vsel %vm3433, %v3357, 0
  %v3438 = vsel %vm3433, %v3358, 0
  %v3441 = vsel %vm3433, %v3359, 0
  %v3444 = vsel %vm3433, %v3360, 0
  %v3447 = vsel %vm3433, %v3361, 0
  %v3450 = vsel %vm3433, %v3362, 0
  %v3453 = vsel %vm3433, %v3363, 0
  %v3456 = vsel %vm3433, %v3364, 0
  %v3459 = vsel %vm3433, %v3365, 0
  %v3462 = vsel %vm3433, %v3366, 0
  %v3465 = vsel %vm3433, %v3367, 0
  %v3468 = vsel %vm3433, %v3368, 0
  %v3471 = vsel %vm3433, %v3369, 0
  %v3474 = vsel %vm3433, %v3370, 0
  %v3477 = vsel %vm3433, %v3371, 0
  %v3480 = vsel %vm3433, %v3372, 0
  %v3483 = vsel %vm3433, %v3373, 0
  %v3486 = vsel %vm3433, %v3374, 0
  %v3489 = vsel %vm3433, %v3375, 0
  %v3492 = vsel %vm3433, %v3376, 0
  %v3495 = vsel %vm3433, %v3377, 0
  %v3498 = vsel %vm3433, %v3378, 0
  %v3501 = vsel %vm3433, %v3379, 0
  %v3504 = vsel %vm3433, %v3380, 0
  %v3507 = vsel %vm3433, %v3381, 0
  %v3510 = vsel %vm3433, %v3382, 0
  %v3513 = vsel %vm3433, %v3383, 0
  %v3516 = vsel %vm3433, %v3384, 0
  %v3519 = vsel %vm3433, %v3385, 0
  %v3522 = vsel %vm3433, %v3386, 0
  %v3525 = vsel %vm3433, %v3387, 0
  %v3528 = vsel %vm3433, %v3388, 0
  %v3531 = vsel %vm3433, %v3389, 0
  %v3534 = vsel %vm3433, %v3390, 0
  %v3537 = vsel %vm3433, %v3391, 0
  %v3540 = vsel %vm3433, %v3392, 0
  %v3543 = vsel %vm3433, %v3393, 0
  %v3546 = vsel %vm3433, %v3394, 0
  %v3549 = vsel %vm3433, %v3395, 0
  %v3552 = vsel %vm3433, %v3396, 0
  %v3555 = vsel %vm3433, %v3397, 0
  %v3558 = vsel %vm3433, %v3398, 0
  %v3561 = vsel %vm3433, %v3399, 0
  %v3564 = vsel %vm3433, %v3400, 0
  %v3567 = vsel %vm3433, %v3401, 0
  %v3570 = vsel %vm3433, %v3402, 0
  %v3573 = vsel %vm3433, %v3403, 0
  %v3576 = vsel %vm3433, %v3404, 0
  %v3579 = vsel %vm3433, %v3405, 0
  %v3582 = vsel %vm3433, %v3406, 0
  %v3585 = vsel %vm3433, %v3407, 0
  %v3588 = vsel %vm3433, %v3408, 0
  %v3591 = vsel %vm3433, %v3409, 0
  %v3594 = vsel %vm3433, %v3410, 0
  %v3597 = vsel %vm3433, %v3411, 0
  %v3600 = vsel %vm3433, %v3412, 0
  %v3603 = vsel %vm3433, %v3413, 0
  %v3606 = vsel %vm3433, %v3414, 0
  %v3609 = vsel %vm3433, %v3415, 0
  %v3612 = vsel %vm3433, %v3416, 0
  %v3615 = vsel %vm3433, %v3417, 0
  %v3618 = vsel %vm3433, %v3418, 0
  %v3621 = vsel %vm3433, %v3419, 0
  %v3624 = vsel %vm3433, %v3420, 0
  %vm3626 = vcmask 1043456
  %v3628 = vsel %vm3626, %v3425, 0
  %3630 = vmatprep.subr.mxu0 0.0
  %3631 = vmatpush1.msra.mxu0 %v3421
  %3632 = vmatprep.subr.mxu0 0.0
  %3633 = vmatpush1.msra.mxu0 %v3422
  %3634 = vmatprep.subr.mxu0 0.0
  %3635 = vmatpush1.msra.mxu0 %v3423
  %3636 = vmatprep.subr.mxu0 0.0
  %3637 = vmatpush1.msra.mxu0 %v3424
  %3638 = vmatprep.subr.mxu0 0.0
  %3639 = vmatpush1.msra.mxu0 %v3628
  %3640 = vmatprep.subr.mxu0 0.0
  %3641 = vmatpush1.msra.mxu0 0.0
  %3642 = vmatprep.subr.mxu0 0.0
  %3643 = vmatpush1.msra.mxu0 0.0
  %3644 = vmatprep.subr.mxu0 0.0
  %3645 = vmatpush1.msra.mxu0 0.0
  %3646 = vmatprep.subr.mxu0 0.0
  %3647 = vmatpush1.msra.mxu0 0.0
  %3648 = vmatprep.subr.mxu0 0.0
  %3649 = vmatpush1.msra.mxu0 0.0
  %3650 = vmatprep.subr.mxu0 0.0
  %3651 = vmatpush1.msra.mxu0 0.0
  %3652 = vmatprep.subr.mxu0 0.0
  %3653 = vmatpush1.msra.mxu0 0.0
  %3654 = vmatprep.subr.mxu0 0.0
  %3655 = vmatpush1.msra.mxu0 0.0
  %3656 = vmatprep.subr.mxu0 0.0
  %3657 = vmatpush1.msra.mxu0 0.0
  %3658 = vmatprep.subr.mxu0 0.0
  %3659 = vmatpush1.msra.mxu0 0.0
  %3660 = vmatprep.subr.mxu0 0.0
  %3661 = vmatpush1.msra.mxu0 0.0
  %3662 = vmatprep.subr.mxu0 0.0
  %3663 = vmatpush1.msra.mxu0 0.0
  %3664 = vmatprep.subr.mxu0 0.0
  %3665 = vmatpush1.msra.mxu0 0.0
  %3666 = vmatprep.subr.mxu0 0.0
  %3667 = vmatpush1.msra.mxu0 0.0
  %3668 = vmatprep.subr.mxu0 0.0
  %3669 = vmatpush1.msra.mxu0 0.0
  %3670 = vmatprep.subr.mxu0 0.0
  %3671 = vmatpush1.msra.mxu0 0.0
  %3672 = vmatprep.subr.mxu0 0.0
  %3673 = vmatpush1.msra.mxu0 0.0
  %3674 = vmatprep.subr.mxu0 0.0
  %3675 = vmatpush1.msra.mxu0 0.0
  %3676 = vmatprep.subr.mxu0 0.0
  %3677 = vmatpush1.msra.mxu0 0.0
  %3678 = vmatprep.subr.mxu0 0.0
  %3679 = vmatpush1.msra.mxu0 0.0
  %3680 = vmatprep.subr.mxu0 0.0
  %3681 = vmatpush1.msra.mxu0 0.0
  %3682 = vmatprep.subr.mxu0 0.0
  %3683 = vmatpush1.msra.mxu0 0.0
  %3684 = vmatprep.subr.mxu0 0.0
  %3685 = vmatpush1.msra.mxu0 0.0
  %3686 = vmatprep.subr.mxu0 0.0
  %3687 = vmatpush1.msra.mxu0 0.0
  %3688 = vmatprep.subr.mxu0 0.0
  %3689 = vmatpush1.msra.mxu0 0.0
  %3690 = vmatprep.subr.mxu0 0.0
  %3691 = vmatpush1.msra.mxu0 0.0
  %3692 = vmatprep.subr.mxu0 0.0
  %3693 = vmatpush1.msra.mxu0 0.0
  %3694 = vmatprep.mubr.f32.mxu0 0.0
  %3695 = vmatmul.mubr.f32.gmra.mrb[0].mxu0 %v3435
  %v3696 = vpop.f32.mrb[0].mxu0
  %v3697 = vadd.f32 %v3431, %v3696
  %v3698 = vpop.f32.mrb[0].mxu0
  %3699 = vmatprep.mubr.f32.mxu0 0.0
  %3700 = vmatmul.mubr.f32.gmra.mrb[0].mxu0 %v3438
  %v3701 = vpop.f32.mrb[0].mxu0
  %v3702 = vadd.f32 %v3431, %v3701
  %v3703 = vpop.f32.mrb[0].mxu0
  %3704 = vmatprep.mubr.f32.mxu0 0.0
  %3705 = vmatmul.mubr.f32.gmra.mrb[0].mxu0 %v3441
  %v3706 = vpop.f32.mrb[0].mxu0
  %v3707 = vadd.f32 %v3431, %v3706
  %v3708 = vpop.f32.mrb[0].mxu0
  %3709 = vmatprep.mubr.f32.mxu0 0.0
  %3710 = vmatmul.mubr.f32.gmra.mrb[0].mxu0 %v3444
  %v3711 = vpop.f32.mrb[0].mxu0
  %v3712 = vadd.f32 %v3431, %v3711
  %v3713 = vpop.f32.mrb[0].mxu0
  %3714 = vmatprep.mubr.f32.mxu0 0.0
  %3715 = vmatmul.mubr.f32.gmra.mrb[0].mxu0 %v3447
  %v3716 = vpop.f32.mrb[0].mxu0
  %v3717 = vadd.f32 %v3431, %v3716
  %v3718 = vpop.f32.mrb[0].mxu0
  %3719 = vmatprep.mubr.f32.mxu0 0.0
  %3720 = vmatmul.mubr.f32.gmra.mrb[0].mxu0 %v3450
  %v3721 = vpop.f32.mrb[0].mxu0
  %v3722 = vadd.f32 %v3431, %v3721
  %v3723 = vpop.f32.mrb[0].mxu0
  %3724 = vmatprep.mubr.f32.mxu0 0.0
  %3725 = vmatmul.mubr.f32.gmra.mrb[0].mxu0 %v3453
  %v3726 = vpop.f32.mrb[0].mxu0
  %v3727 = vadd.f32 %v3431, %v3726
  %v3728 = vpop.f32.mrb[0].mxu0
  %3729 = vmatprep.mubr.f32.mxu0 0.0
  %3730 = vmatmul.mubr.f32.gmra.mrb[0].mxu0 %v3456
  %v3731 = vpop.f32.mrb[0].mxu0
  %v3732 = vadd.f32 %v3431, %v3731
  %v3733 = vpop.f32.mrb[0].mxu0
  %3734 = vmatprep.mubr.f32.mxu0 0.0
  %3735 = vmatmul.mubr.f32.gmra.mrb[0].mxu0 %v3459
  %v3736 = vpop.f32.mrb[0].mxu0
  %v3737 = vadd.f32 %v3431, %v3736
  %v3738 = vpop.f32.mrb[0].mxu0
  %3739 = vmatprep.mubr.f32.mxu0 0.0
  %3740 = vmatmul.mubr.f32.gmra.mrb[0].mxu0 %v3462
  %v3741 = vpop.f32.mrb[0].mxu0
  %v3742 = vadd.f32 %v3431, %v3741
  %v3743 = vpop.f32.mrb[0].mxu0
  %3744 = vmatprep.mubr.f32.mxu0 0.0
  %3745 = vmatmul.mubr.f32.gmra.mrb[0].mxu0 %v3465
  %v3746 = vpop.f32.mrb[0].mxu0
  %v3747 = vadd.f32 %v3431, %v3746
  %v3748 = vpop.f32.mrb[0].mxu0
  %3749 = vmatprep.mubr.f32.mxu0 0.0
  %3750 = vmatmul.mubr.f32.gmra.mrb[0].mxu0 %v3468
  %v3751 = vpop.f32.mrb[0].mxu0
  %v3752 = vadd.f32 %v3431, %v3751
  %v3753 = vpop.f32.mrb[0].mxu0
  %3754 = vmatprep.mubr.f32.mxu0 0.0
  %3755 = vmatmul.mubr.f32.gmra.mrb[0].mxu0 %v3471
  %v3756 = vpop.f32.mrb[0].mxu0
  %v3757 = vadd.f32 %v3431, %v3756
  %v3758 = vpop.f32.mrb[0].mxu0
  %3759 = vmatprep.mubr.f32.mxu0 0.0
  %3760 = vmatmul.mubr.f32.gmra.mrb[0].mxu0 %v3474
  %v3761 = vpop.f32.mrb[0].mxu0
  %v3762 = vadd.f32 %v3431, %v3761
  %v3763 = vpop.f32.mrb[0].mxu0
  %3764 = vmatprep.mubr.f32.mxu0 0.0
  %3765 = vmatmul.mubr.f32.gmra.mrb[0].mxu0 %v3477
  %v3766 = vpop.f32.mrb[0].mxu0
  %v3767 = vadd.f32 %v3431, %v3766
  %v3768 = vpop.f32.mrb[0].mxu0
  %3769 = vmatprep.mubr.f32.mxu0 0.0
  %3770 = vmatmul.mubr.f32.gmra.mrb[0].mxu0 %v3480
  %v3771 = vpop.f32.mrb[0].mxu0
  %v3772 = vadd.f32 %v3431, %v3771
  %v3773 = vpop.f32.mrb[0].mxu0
  %3774 = vmatprep.mubr.f32.mxu0 0.0
  %3775 = vmatmul.mubr.f32.gmra.mrb[0].mxu0 %v3483
  %v3776 = vpop.f32.mrb[0].mxu0
  %v3777 = vadd.f32 %v3431, %v3776
  %v3778 = vpop.f32.mrb[0].mxu0
  %3779 = vmatprep.mubr.f32.mxu0 0.0
  %3780 = vmatmul.mubr.f32.gmra.mrb[0].mxu0 %v3486
  %v3781 = vpop.f32.mrb[0].mxu0
  %v3782 = vadd.f32 %v3431, %v3781
  %v3783 = vpop.f32.mrb[0].mxu0
  %3784 = vmatprep.mubr.f32.mxu0 0.0
  %3785 = vmatmul.mubr.f32.gmra.mrb[0].mxu0 %v3489
  %v3786 = vpop.f32.mrb[0].mxu0
  %v3787 = vadd.f32 %v3431, %v3786
  %v3788 = vpop.f32.mrb[0].mxu0
  %3789 = vmatprep.mubr.f32.mxu0 0.0
  %3790 = vmatmul.mubr.f32.gmra.mrb[0].mxu0 %v3492
  %v3791 = vpop.f32.mrb[0].mxu0
  %v3792 = vadd.f32 %v3431, %v3791
  %v3793 = vpop.f32.mrb[0].mxu0
  %3794 = vmatprep.mubr.f32.mxu0 0.0
  %3795 = vmatmul.mubr.f32.gmra.mrb[0].mxu0 %v3495
  %v3796 = vpop.f32.mrb[0].mxu0
  %v3797 = vadd.f32 %v3431, %v3796
  %v3798 = vpop.f32.mrb[0].mxu0
  %3799 = vmatprep.mubr.f32.mxu0 0.0
  %3800 = vmatmul.mubr.f32.gmra.mrb[0].mxu0 %v3498
  %v3801 = vpop.f32.mrb[0].mxu0
  %v3802 = vadd.f32 %v3431, %v3801
  %v3803 = vpop.f32.mrb[0].mxu0
  %3804 = vmatprep.mubr.f32.mxu0 0.0
  %3805 = vmatmul.mubr.f32.gmra.mrb[0].mxu0 %v3501
  %v3806 = vpop.f32.mrb[0].mxu0
  %v3807 = vadd.f32 %v3431, %v3806
  %v3808 = vpop.f32.mrb[0].mxu0
  %3809 = vmatprep.mubr.f32.mxu0 0.0
  %3810 = vmatmul.mubr.f32.gmra.mrb[0].mxu0 %v3504
  %v3811 = vpop.f32.mrb[0].mxu0
  %v3812 = vadd.f32 %v3431, %v3811
  %v3813 = vpop.f32.mrb[0].mxu0
  %3814 = vmatprep.mubr.f32.mxu0 0.0
  %3815 = vmatmul.mubr.f32.gmra.mrb[0].mxu0 %v3507
  %v3816 = vpop.f32.mrb[0].mxu0
  %v3817 = vadd.f32 %v3431, %v3816
  %v3818 = vpop.f32.mrb[0].mxu0
  %3819 = vmatprep.mubr.f32.mxu0 0.0
  %3820 = vmatmul.mubr.f32.gmra.mrb[0].mxu0 %v3510
  %v3821 = vpop.f32.mrb[0].mxu0
  %v3822 = vadd.f32 %v3431, %v3821
  %v3823 = vpop.f32.mrb[0].mxu0
  %3824 = vmatprep.mubr.f32.mxu0 0.0
  %3825 = vmatmul.mubr.f32.gmra.mrb[0].mxu0 %v3513
  %v3826 = vpop.f32.mrb[0].mxu0
  %v3827 = vadd.f32 %v3431, %v3826
  %v3828 = vpop.f32.mrb[0].mxu0
  %3829 = vmatprep.mubr.f32.mxu0 0.0
  %3830 = vmatmul.mubr.f32.gmra.mrb[0].mxu0 %v3516
  %v3831 = vpop.f32.mrb[0].mxu0
  %v3832 = vadd.f32 %v3431, %v3831
  %v3833 = vpop.f32.mrb[0].mxu0
  %3834 = vmatprep.mubr.f32.mxu0 0.0
  %3835 = vmatmul.mubr.f32.gmra.mrb[0].mxu0 %v3519
  %v3836 = vpop.f32.mrb[0].mxu0
  %v3837 = vadd.f32 %v3431, %v3836
  %v3838 = vpop.f32.mrb[0].mxu0
  %3839 = vmatprep.mubr.f32.mxu0 0.0
  %3840 = vmatmul.mubr.f32.gmra.mrb[0].mxu0 %v3522
  %v3841 = vpop.f32.mrb[0].mxu0
  %v3842 = vadd.f32 %v3431, %v3841
  %v3843 = vpop.f32.mrb[0].mxu0
  %3844 = vmatprep.mubr.f32.mxu0 0.0
  %3845 = vmatmul.mubr.f32.gmra.mrb[0].mxu0 %v3525
  %v3846 = vpop.f32.mrb[0].mxu0
  %v3847 = vadd.f32 %v3431, %v3846
  %v3848 = vpop.f32.mrb[0].mxu0
  %3849 = vmatprep.mubr.f32.mxu0 0.0
  %3850 = vmatmul.mubr.f32.gmra.mrb[0].mxu0 %v3528
  %v3851 = vpop.f32.mrb[0].mxu0
  %v3852 = vadd.f32 %v3431, %v3851
  %v3853 = vpop.f32.mrb[0].mxu0
  %3854 = vmatprep.mubr.f32.mxu0 0.0
  %3855 = vmatmul.mubr.f32.gmra.mrb[0].mxu0 %v3531
  %v3856 = vpop.f32.mrb[0].mxu0
  %v3857 = vadd.f32 %v3431, %v3856
  %v3858 = vpop.f32.mrb[0].mxu0
  %3859 = vmatprep.mubr.f32.mxu0 0.0
  %3860 = vmatmul.mubr.f32.gmra.mrb[0].mxu0 %v3534
  %v3861 = vpop.f32.mrb[0].mxu0
  %v3862 = vadd.f32 %v3431, %v3861
  %v3863 = vpop.f32.mrb[0].mxu0
  %3864 = vmatprep.mubr.f32.mxu0 0.0
  %3865 = vmatmul.mubr.f32.gmra.mrb[0].mxu0 %v3537
  %v3866 = vpop.f32.mrb[0].mxu0
  %v3867 = vadd.f32 %v3431, %v3866
  %v3868 = vpop.f32.mrb[0].mxu0
  %3869 = vmatprep.mubr.f32.mxu0 0.0
  %3870 = vmatmul.mubr.f32.gmra.mrb[0].mxu0 %v3540
  %v3871 = vpop.f32.mrb[0].mxu0
  %v3872 = vadd.f32 %v3431, %v3871
  %v3873 = vpop.f32.mrb[0].mxu0
  %3874 = vmatprep.mubr.f32.mxu0 0.0
  %3875 = vmatmul.mubr.f32.gmra.mrb[0].mxu0 %v3543
  %v3876 = vpop.f32.mrb[0].mxu0
  %v3877 = vadd.f32 %v3431, %v3876
  %v3878 = vpop.f32.mrb[0].mxu0
  %3879 = vmatprep.mubr.f32.mxu0 0.0
  %3880 = vmatmul.mubr.f32.gmra.mrb[0].mxu0 %v3546
  %v3881 = vpop.f32.mrb[0].mxu0
  %v3882 = vadd.f32 %v3431, %v3881
  %v3883 = vpop.f32.mrb[0].mxu0
  %3884 = vmatprep.mubr.f32.mxu0 0.0
  %3885 = vmatmul.mubr.f32.gmra.mrb[0].mxu0 %v3549
  %v3886 = vpop.f32.mrb[0].mxu0
  %v3887 = vadd.f32 %v3431, %v3886
  %v3888 = vpop.f32.mrb[0].mxu0
  %3889 = vmatprep.mubr.f32.mxu0 0.0
  %3890 = vmatmul.mubr.f32.gmra.mrb[0].mxu0 %v3552
  %v3891 = vpop.f32.mrb[0].mxu0
  %v3892 = vadd.f32 %v3431, %v3891
  %v3893 = vpop.f32.mrb[0].mxu0
  %3894 = vmatprep.mubr.f32.mxu0 0.0
  %3895 = vmatmul.mubr.f32.gmra.mrb[0].mxu0 %v3555
  %v3896 = vpop.f32.mrb[0].mxu0
  %v3897 = vadd.f32 %v3431, %v3896
  %v3898 = vpop.f32.mrb[0].mxu0
  %3899 = vmatprep.mubr.f32.mxu0 0.0
  %3900 = vmatmul.mubr.f32.gmra.mrb[0].mxu0 %v3558
  %v3901 = vpop.f32.mrb[0].mxu0
  %v3902 = vadd.f32 %v3431, %v3901
  %v3903 = vpop.f32.mrb[0].mxu0
  %3904 = vmatprep.mubr.f32.mxu0 0.0
  %3905 = vmatmul.mubr.f32.gmra.mrb[0].mxu0 %v3561
  %v3906 = vpop.f32.mrb[0].mxu0
  %v3907 = vadd.f32 %v3431, %v3906
  %v3908 = vpop.f32.mrb[0].mxu0
  %3909 = vmatprep.mubr.f32.mxu0 0.0
  %3910 = vmatmul.mubr.f32.gmra.mrb[0].mxu0 %v3564
  %v3911 = vpop.f32.mrb[0].mxu0
  %v3912 = vadd.f32 %v3431, %v3911
  %v3913 = vpop.f32.mrb[0].mxu0
  %3914 = vmatprep.mubr.f32.mxu0 0.0
  %3915 = vmatmul.mubr.f32.gmra.mrb[0].mxu0 %v3567
  %v3916 = vpop.f32.mrb[0].mxu0
  %v3917 = vadd.f32 %v3431, %v3916
  %v3918 = vpop.f32.mrb[0].mxu0
  %3919 = vmatprep.mubr.f32.mxu0 0.0
  %3920 = vmatmul.mubr.f32.gmra.mrb[0].mxu0 %v3570
  %v3921 = vpop.f32.mrb[0].mxu0
  %v3922 = vadd.f32 %v3431, %v3921
  %v3923 = vpop.f32.mrb[0].mxu0
  %3924 = vmatprep.mubr.f32.mxu0 0.0
  %3925 = vmatmul.mubr.f32.gmra.mrb[0].mxu0 %v3573
  %v3926 = vpop.f32.mrb[0].mxu0
  %v3927 = vadd.f32 %v3431, %v3926
  %v3928 = vpop.f32.mrb[0].mxu0
  %3929 = vmatprep.mubr.f32.mxu0 0.0
  %3930 = vmatmul.mubr.f32.gmra.mrb[0].mxu0 %v3576
  %v3931 = vpop.f32.mrb[0].mxu0
  %v3932 = vadd.f32 %v3431, %v3931
  %v3933 = vpop.f32.mrb[0].mxu0
  %3934 = vmatprep.mubr.f32.mxu0 0.0
  %3935 = vmatmul.mubr.f32.gmra.mrb[0].mxu0 %v3579
  %v3936 = vpop.f32.mrb[0].mxu0
  %v3937 = vadd.f32 %v3431, %v3936
  %v3938 = vpop.f32.mrb[0].mxu0
  %3939 = vmatprep.mubr.f32.mxu0 0.0
  %3940 = vmatmul.mubr.f32.gmra.mrb[0].mxu0 %v3582
  %v3941 = vpop.f32.mrb[0].mxu0
  %v3942 = vadd.f32 %v3431, %v3941
  %v3943 = vpop.f32.mrb[0].mxu0
  %3944 = vmatprep.mubr.f32.mxu0 0.0
  %3945 = vmatmul.mubr.f32.gmra.mrb[0].mxu0 %v3585
  %v3946 = vpop.f32.mrb[0].mxu0
  %v3947 = vadd.f32 %v3431, %v3946
  %v3948 = vpop.f32.mrb[0].mxu0
  %3949 = vmatprep.mubr.f32.mxu0 0.0
  %3950 = vmatmul.mubr.f32.gmra.mrb[0].mxu0 %v3588
  %v3951 = vpop.f32.mrb[0].mxu0
  %v3952 = vadd.f32 %v3431, %v3951
  %v3953 = vpop.f32.mrb[0].mxu0
  %3954 = vmatprep.mubr.f32.mxu0 0.0
  %3955 = vmatmul.mubr.f32.gmra.mrb[0].mxu0 %v3591
  %v3956 = vpop.f32.mrb[0].mxu0
  %v3957 = vadd.f32 %v3431, %v3956
  %v3958 = vpop.f32.mrb[0].mxu0
  %3959 = vmatprep.mubr.f32.mxu0 0.0
  %3960 = vmatmul.mubr.f32.gmra.mrb[0].mxu0 %v3594
  %v3961 = vpop.f32.mrb[0].mxu0
  %v3962 = vadd.f32 %v3431, %v3961
  %v3963 = vpop.f32.mrb[0].mxu0
  %3964 = vmatprep.mubr.f32.mxu0 0.0
  %3965 = vmatmul.mubr.f32.gmra.mrb[0].mxu0 %v3597
  %v3966 = vpop.f32.mrb[0].mxu0
  %v3967 = vadd.f32 %v3431, %v3966
  %v3968 = vpop.f32.mrb[0].mxu0
  %3969 = vmatprep.mubr.f32.mxu0 0.0
  %3970 = vmatmul.mubr.f32.gmra.mrb[0].mxu0 %v3600
  %v3971 = vpop.f32.mrb[0].mxu0
  %v3972 = vadd.f32 %v3431, %v3971
  %v3973 = vpop.f32.mrb[0].mxu0
  %3974 = vmatprep.mubr.f32.mxu0 0.0
  %3975 = vmatmul.mubr.f32.gmra.mrb[0].mxu0 %v3603
  %v3976 = vpop.f32.mrb[0].mxu0
  %v3977 = vadd.f32 %v3431, %v3976
  %v3978 = vpop.f32.mrb[0].mxu0
  %3979 = vmatprep.mubr.f32.mxu0 0.0
  %3980 = vmatmul.mubr.f32.gmra.mrb[0].mxu0 %v3606
  %v3981 = vpop.f32.mrb[0].mxu0
  %v3982 = vadd.f32 %v3431, %v3981
  %v3983 = vpop.f32.mrb[0].mxu0
  %3984 = vmatprep.mubr.f32.mxu0 0.0
  %3985 = vmatmul.mubr.f32.gmra.mrb[0].mxu0 %v3609
  %v3986 = vpop.f32.mrb[0].mxu0
  %v3987 = vadd.f32 %v3431, %v3986
  %v3988 = vpop.f32.mrb[0].mxu0
  %3989 = vmatprep.mubr.f32.mxu0 0.0
  %3990 = vmatmul.mubr.f32.gmra.mrb[0].mxu0 %v3612
  %v3991 = vpop.f32.mrb[0].mxu0
  %v3992 = vadd.f32 %v3431, %v3991
  %v3993 = vpop.f32.mrb[0].mxu0
  %3994 = vmatprep.mubr.f32.mxu0 0.0
  %3995 = vmatmul.mubr.f32.gmra.mrb[0].mxu0 %v3615
  %v3996 = vpop.f32.mrb[0].mxu0
  %v3997 = vadd.f32 %v3431, %v3996
  %v3998 = vpop.f32.mrb[0].mxu0
  %3999 = vmatprep.mubr.f32.mxu0 0.0
  %4000 = vmatmul.mubr.f32.gmra.mrb[0].mxu0 %v3618
  %v4001 = vpop.f32.mrb[0].mxu0
  %v4002 = vadd.f32 %v3431, %v4001
  %v4003 = vpop.f32.mrb[0].mxu0
  %4004 = vmatprep.mubr.f32.mxu0 0.0
  %4005 = vmatmul.mubr.f32.gmra.mrb[0].mxu0 %v3621
  %v4006 = vpop.f32.mrb[0].mxu0
  %v4007 = vadd.f32 %v3431, %v4006
  %v4008 = vpop.f32.mrb[0].mxu0
  %4009 = vmatprep.mubr.f32.mxu0 0.0
  %4010 = vmatmul.mubr.f32.gmra.mrb[0].mxu0 %v3624
  %v4011 = vpop.f32.mrb[0].mxu0
  %v4012 = vadd.f32 %v3431, %v4011
  %v4013 = vpop.f32.mrb[0].mxu0
  %4014 = vdwg.mxu0
  %v4015 = vmax.f32 %v3697, 0.0
  %v4016 = vmax.f32 %v3702, 0.0
  %v4017 = vmax.f32 %v3707, 0.0
  %v4018 = vmax.f32 %v3712, 0.0
  %v4019 = vmax.f32 %v3717, 0.0
  %v4020 = vmax.f32 %v3722, 0.0
  %v4021 = vmax.f32 %v3727, 0.0
  %v4022 = vmax.f32 %v3732, 0.0
  %v4023 = vmax.f32 %v3737, 0.0
  %v4024 = vmax.f32 %v3742, 0.0
  %v4025 = vmax.f32 %v3747, 0.0
  %v4026 = vmax.f32 %v3752, 0.0
  %v4027 = vmax.f32 %v3757, 0.0
  %v4028 = vmax.f32 %v3762, 0.0
  %v4029 = vmax.f32 %v3767, 0.0
  %v4030 = vmax.f32 %v3772, 0.0
  %v4031 = vmax.f32 %v3777, 0.0
  %v4032 = vmax.f32 %v3782, 0.0
  %v4033 = vmax.f32 %v3787, 0.0
  %v4034 = vmax.f32 %v3792, 0.0
  %v4035 = vmax.f32 %v3797, 0.0
  %v4036 = vmax.f32 %v3802, 0.0
  %v4037 = vmax.f32 %v3807, 0.0
  %v4038 = vmax.f32 %v3812, 0.0
  %v4039 = vmax.f32 %v3817, 0.0
  %v4040 = vmax.f32 %v3822, 0.0
  %v4041 = vmax.f32 %v3827, 0.0
  %v4042 = vmax.f32 %v3832, 0.0
  %v4043 = vmax.f32 %v3837, 0.0
  %v4044 = vmax.f32 %v3842, 0.0
  %v4045 = vmax.f32 %v3847, 0.0
  %v4046 = vmax.f32 %v3852, 0.0
  %v4047 = vmax.f32 %v3857, 0.0
  %v4048 = vmax.f32 %v3862, 0.0
  %v4049 = vmax.f32 %v3867, 0.0
  %v4050 = vmax.f32 %v3872, 0.0
  %v4051 = vmax.f32 %v3877, 0.0
  %v4052 = vmax.f32 %v3882, 0.0
  %v4053 = vmax.f32 %v3887, 0.0
  %v4054 = vmax.f32 %v3892, 0.0
  %v4055 = vmax.f32 %v3897, 0.0
  %v4056 = vmax.f32 %v3902, 0.0
  %v4057 = vmax.f32 %v3907, 0.0
  %v4058 = vmax.f32 %v3912, 0.0
  %v4059 = vmax.f32 %v3917, 0.0
  %v4060 = vmax.f32 %v3922, 0.0
  %v4061 = vmax.f32 %v3927, 0.0
  %v4062 = vmax.f32 %v3932, 0.0
  %v4063 = vmax.f32 %v3937, 0.0
  %v4064 = vmax.f32 %v3942, 0.0
  %v4065 = vmax.f32 %v3947, 0.0
  %v4066 = vmax.f32 %v3952, 0.0
  %v4067 = vmax.f32 %v3957, 0.0
  %v4068 = vmax.f32 %v3962, 0.0
  %v4069 = vmax.f32 %v3967, 0.0
  %v4070 = vmax.f32 %v3972, 0.0
  %v4071 = vmax.f32 %v3977, 0.0
  %v4072 = vmax.f32 %v3982, 0.0
  %v4073 = vmax.f32 %v3987, 0.0
  %v4074 = vmax.f32 %v3992, 0.0
  %v4075 = vmax.f32 %v3997, 0.0
  %v4076 = vmax.f32 %v4002, 0.0
  %v4077 = vmax.f32 %v4007, 0.0
  %v4078 = vmax.f32 %v4012, 0.0
  %v4143 = vcombine.high %v4015, %v4015
  %v4145 = vunpack.c.l.s4 1983009808
  %v4146 = vunpack.c.0.s8 %v4145
  %v4147 = vlaneseq
  %v4148 = vshrl.u32 %v4147, 7
  %v4149 = vsub.s32 %v4146, %v4148
  %v4150 = vrot.slane %v4015, %v4149
  %v4152 = vunpack.c.l.s4 1983009808
  %v4153 = vunpack.c.0.s8 %v4152
  %v4154 = vlaneseq
  %v4155 = vshrl.u32 %v4154, 7
  %v4156 = vsub.s32 %v4153, %v4155
  %v4157 = vrot.slane %v4143, %v4156
  %v4158 = vcombine.high %v4150, %v4150
  %v4159 = vcombine.high %v4157, %v4157
  %v4160 = vcombine.high %v4016, %v4016
  %v4162 = vunpack.c.l.s4 1983009808
  %v4163 = vunpack.c.0.s8 %v4162
  %v4164 = vlaneseq
  %v4165 = vshrl.u32 %v4164, 7
  %v4166 = vsub.s32 %v4163, %v4165
  %v4167 = vrot.slane %v4016, %v4166
  %v4169 = vunpack.c.l.s4 1983009808
  %v4170 = vunpack.c.0.s8 %v4169
  %v4171 = vlaneseq
  %v4172 = vshrl.u32 %v4171, 7
  %v4173 = vsub.s32 %v4170, %v4172
  %v4174 = vrot.slane %v4160, %v4173
  %v4175 = vcombine.high %v4167, %v4167
  %v4176 = vcombine.high %v4174, %v4174
  %v4177 = vcombine.high %v4017, %v4017
  %v4179 = vunpack.c.l.s4 1983009808
  %v4180 = vunpack.c.0.s8 %v4179
  %v4181 = vlaneseq
  %v4182 = vshrl.u32 %v4181, 7
  %v4183 = vsub.s32 %v4180, %v4182
  %v4184 = vrot.slane %v4017, %v4183
  %v4186 = vunpack.c.l.s4 1983009808
  %v4187 = vunpack.c.0.s8 %v4186
  %v4188 = vlaneseq
  %v4189 = vshrl.u32 %v4188, 7
  %v4190 = vsub.s32 %v4187, %v4189
  %v4191 = vrot.slane %v4177, %v4190
  %v4192 = vcombine.high %v4184, %v4184
  %v4193 = vcombine.high %v4191, %v4191
  %v4194 = vcombine.high %v4018, %v4018
  %v4196 = vunpack.c.l.s4 1983009808
  %v4197 = vunpack.c.0.s8 %v4196
  %v4198 = vlaneseq
  %v4199 = vshrl.u32 %v4198, 7
  %v4200 = vsub.s32 %v4197, %v4199
  %v4201 = vrot.slane %v4018, %v4200
  %v4203 = vunpack.c.l.s4 1983009808
  %v4204 = vunpack.c.0.s8 %v4203
  %v4205 = vlaneseq
  %v4206 = vshrl.u32 %v4205, 7
  %v4207 = vsub.s32 %v4204, %v4206
  %v4208 = vrot.slane %v4194, %v4207
  %v4209 = vcombine.high %v4201, %v4201
  %v4210 = vcombine.high %v4208, %v4208
  %v4211 = vcombine.high %v4019, %v4019
  %v4213 = vunpack.c.l.s4 1983009808
  %v4214 = vunpack.c.0.s8 %v4213
  %v4215 = vlaneseq
  %v4216 = vshrl.u32 %v4215, 7
  %v4217 = vsub.s32 %v4214, %v4216
  %v4218 = vrot.slane %v4019, %v4217
  %v4220 = vunpack.c.l.s4 1983009808
  %v4221 = vunpack.c.0.s8 %v4220
  %v4222 = vlaneseq
  %v4223 = vshrl.u32 %v4222, 7
  %v4224 = vsub.s32 %v4221, %v4223
  %v4225 = vrot.slane %v4211, %v4224
  %v4226 = vcombine.high %v4218, %v4218
  %v4227 = vcombine.high %v4225, %v4225
  %v4228 = vcombine.high %v4020, %v4020
  %v4230 = vunpack.c.l.s4 1983009808
  %v4231 = vunpack.c.0.s8 %v4230
  %v4232 = vlaneseq
  %v4233 = vshrl.u32 %v4232, 7
  %v4234 = vsub.s32 %v4231, %v4233
  %v4235 = vrot.slane %v4020, %v4234
  %v4237 = vunpack.c.l.s4 1983009808
  %v4238 = vunpack.c.0.s8 %v4237
  %v4239 = vlaneseq
  %v4240 = vshrl.u32 %v4239, 7
  %v4241 = vsub.s32 %v4238, %v4240
  %v4242 = vrot.slane %v4228, %v4241
  %v4243 = vcombine.high %v4235, %v4235
  %v4244 = vcombine.high %v4242, %v4242
  %v4245 = vcombine.high %v4021, %v4021
  %v4247 = vunpack.c.l.s4 1983009808
  %v4248 = vunpack.c.0.s8 %v4247
  %v4249 = vlaneseq
  %v4250 = vshrl.u32 %v4249, 7
  %v4251 = vsub.s32 %v4248, %v4250
  %v4252 = vrot.slane %v4021, %v4251
  %v4254 = vunpack.c.l.s4 1983009808
  %v4255 = vunpack.c.0.s8 %v4254
  %v4256 = vlaneseq
  %v4257 = vshrl.u32 %v4256, 7
  %v4258 = vsub.s32 %v4255, %v4257
  %v4259 = vrot.slane %v4245, %v4258
  %v4260 = vcombine.high %v4252, %v4252
  %v4261 = vcombine.high %v4259, %v4259
  %v4262 = vcombine.high %v4022, %v4022
  %v4264 = vunpack.c.l.s4 1983009808
  %v4265 = vunpack.c.0.s8 %v4264
  %v4266 = vlaneseq
  %v4267 = vshrl.u32 %v4266, 7
  %v4268 = vsub.s32 %v4265, %v4267
  %v4269 = vrot.slane %v4022, %v4268
  %v4271 = vunpack.c.l.s4 1983009808
  %v4272 = vunpack.c.0.s8 %v4271
  %v4273 = vlaneseq
  %v4274 = vshrl.u32 %v4273, 7
  %v4275 = vsub.s32 %v4272, %v4274
  %v4276 = vrot.slane %v4262, %v4275
  %v4277 = vcombine.high %v4269, %v4269
  %v4278 = vcombine.high %v4276, %v4276
  %v4279 = vcombine.high %v4023, %v4023
  %v4281 = vunpack.c.l.s4 1983009808
  %v4282 = vunpack.c.0.s8 %v4281
  %v4283 = vlaneseq
  %v4284 = vshrl.u32 %v4283, 7
  %v4285 = vsub.s32 %v4282, %v4284
  %v4286 = vrot.slane %v4023, %v4285
  %v4288 = vunpack.c.l.s4 1983009808
  %v4289 = vunpack.c.0.s8 %v4288
  %v4290 = vlaneseq
  %v4291 = vshrl.u32 %v4290, 7
  %v4292 = vsub.s32 %v4289, %v4291
  %v4293 = vrot.slane %v4279, %v4292
  %v4294 = vcombine.high %v4286, %v4286
  %v4295 = vcombine.high %v4293, %v4293
  %v4296 = vcombine.high %v4024, %v4024
  %v4298 = vunpack.c.l.s4 1983009808
  %v4299 = vunpack.c.0.s8 %v4298
  %v4300 = vlaneseq
  %v4301 = vshrl.u32 %v4300, 7
  %v4302 = vsub.s32 %v4299, %v4301
  %v4303 = vrot.slane %v4024, %v4302
  %v4305 = vunpack.c.l.s4 1983009808
  %v4306 = vunpack.c.0.s8 %v4305
  %v4307 = vlaneseq
  %v4308 = vshrl.u32 %v4307, 7
  %v4309 = vsub.s32 %v4306, %v4308
  %v4310 = vrot.slane %v4296, %v4309
  %v4311 = vcombine.high %v4303, %v4303
  %v4312 = vcombine.high %v4310, %v4310
  %v4313 = vcombine.high %v4025, %v4025
  %v4315 = vunpack.c.l.s4 1983009808
  %v4316 = vunpack.c.0.s8 %v4315
  %v4317 = vlaneseq
  %v4318 = vshrl.u32 %v4317, 7
  %v4319 = vsub.s32 %v4316, %v4318
  %v4320 = vrot.slane %v4025, %v4319
  %v4322 = vunpack.c.l.s4 1983009808
  %v4323 = vunpack.c.0.s8 %v4322
  %v4324 = vlaneseq
  %v4325 = vshrl.u32 %v4324, 7
  %v4326 = vsub.s32 %v4323, %v4325
  %v4327 = vrot.slane %v4313, %v4326
  %v4328 = vcombine.high %v4320, %v4320
  %v4329 = vcombine.high %v4327, %v4327
  %v4330 = vcombine.high %v4026, %v4026
  %v4332 = vunpack.c.l.s4 1983009808
  %v4333 = vunpack.c.0.s8 %v4332
  %v4334 = vlaneseq
  %v4335 = vshrl.u32 %v4334, 7
  %v4336 = vsub.s32 %v4333, %v4335
  %v4337 = vrot.slane %v4026, %v4336
  %v4339 = vunpack.c.l.s4 1983009808
  %v4340 = vunpack.c.0.s8 %v4339
  %v4341 = vlaneseq
  %v4342 = vshrl.u32 %v4341, 7
  %v4343 = vsub.s32 %v4340, %v4342
  %v4344 = vrot.slane %v4330, %v4343
  %v4345 = vcombine.high %v4337, %v4337
  %v4346 = vcombine.high %v4344, %v4344
  %v4347 = vcombine.high %v4027, %v4027
  %v4349 = vunpack.c.l.s4 1983009808
  %v4350 = vunpack.c.0.s8 %v4349
  %v4351 = vlaneseq
  %v4352 = vshrl.u32 %v4351, 7
  %v4353 = vsub.s32 %v4350, %v4352
  %v4354 = vrot.slane %v4027, %v4353
  %v4356 = vunpack.c.l.s4 1983009808
  %v4357 = vunpack.c.0.s8 %v4356
  %v4358 = vlaneseq
  %v4359 = vshrl.u32 %v4358, 7
  %v4360 = vsub.s32 %v4357, %v4359
  %v4361 = vrot.slane %v4347, %v4360
  %v4362 = vcombine.high %v4354, %v4354
  %v4363 = vcombine.high %v4361, %v4361
  %v4364 = vcombine.high %v4028, %v4028
  %v4366 = vunpack.c.l.s4 1983009808
  %v4367 = vunpack.c.0.s8 %v4366
  %v4368 = vlaneseq
  %v4369 = vshrl.u32 %v4368, 7
  %v4370 = vsub.s32 %v4367, %v4369
  %v4371 = vrot.slane %v4028, %v4370
  %v4373 = vunpack.c.l.s4 1983009808
  %v4374 = vunpack.c.0.s8 %v4373
  %v4375 = vlaneseq
  %v4376 = vshrl.u32 %v4375, 7
  %v4377 = vsub.s32 %v4374, %v4376
  %v4378 = vrot.slane %v4364, %v4377
  %v4379 = vcombine.high %v4371, %v4371
  %v4380 = vcombine.high %v4378, %v4378
  %v4381 = vcombine.high %v4029, %v4029
  %v4383 = vunpack.c.l.s4 1983009808
  %v4384 = vunpack.c.0.s8 %v4383
  %v4385 = vlaneseq
  %v4386 = vshrl.u32 %v4385, 7
  %v4387 = vsub.s32 %v4384, %v4386
  %v4388 = vrot.slane %v4029, %v4387
  %v4390 = vunpack.c.l.s4 1983009808
  %v4391 = vunpack.c.0.s8 %v4390
  %v4392 = vlaneseq
  %v4393 = vshrl.u32 %v4392, 7
  %v4394 = vsub.s32 %v4391, %v4393
  %v4395 = vrot.slane %v4381, %v4394
  %v4396 = vcombine.high %v4388, %v4388
  %v4397 = vcombine.high %v4395, %v4395
  %v4398 = vcombine.high %v4030, %v4030
  %v4400 = vunpack.c.l.s4 1983009808
  %v4401 = vunpack.c.0.s8 %v4400
  %v4402 = vlaneseq
  %v4403 = vshrl.u32 %v4402, 7
  %v4404 = vsub.s32 %v4401, %v4403
  %v4405 = vrot.slane %v4030, %v4404
  %v4407 = vunpack.c.l.s4 1983009808
  %v4408 = vunpack.c.0.s8 %v4407
  %v4409 = vlaneseq
  %v4410 = vshrl.u32 %v4409, 7
  %v4411 = vsub.s32 %v4408, %v4410
  %v4412 = vrot.slane %v4398, %v4411
  %v4413 = vcombine.high %v4405, %v4405
  %v4414 = vcombine.high %v4412, %v4412
  %v4415 = vcombine.high %v4031, %v4031
  %v4417 = vunpack.c.l.s4 1983009808
  %v4418 = vunpack.c.0.s8 %v4417
  %v4419 = vlaneseq
  %v4420 = vshrl.u32 %v4419, 7
  %v4421 = vsub.s32 %v4418, %v4420
  %v4422 = vrot.slane %v4031, %v4421
  %v4424 = vunpack.c.l.s4 1983009808
  %v4425 = vunpack.c.0.s8 %v4424
  %v4426 = vlaneseq
  %v4427 = vshrl.u32 %v4426, 7
  %v4428 = vsub.s32 %v4425, %v4427
  %v4429 = vrot.slane %v4415, %v4428
  %v4430 = vcombine.high %v4422, %v4422
  %v4431 = vcombine.high %v4429, %v4429
  %v4432 = vcombine.high %v4032, %v4032
  %v4434 = vunpack.c.l.s4 1983009808
  %v4435 = vunpack.c.0.s8 %v4434
  %v4436 = vlaneseq
  %v4437 = vshrl.u32 %v4436, 7
  %v4438 = vsub.s32 %v4435, %v4437
  %v4439 = vrot.slane %v4032, %v4438
  %v4441 = vunpack.c.l.s4 1983009808
  %v4442 = vunpack.c.0.s8 %v4441
  %v4443 = vlaneseq
  %v4444 = vshrl.u32 %v4443, 7
  %v4445 = vsub.s32 %v4442, %v4444
  %v4446 = vrot.slane %v4432, %v4445
  %v4447 = vcombine.high %v4439, %v4439
  %v4448 = vcombine.high %v4446, %v4446
  %v4449 = vcombine.high %v4033, %v4033
  %v4451 = vunpack.c.l.s4 1983009808
  %v4452 = vunpack.c.0.s8 %v4451
  %v4453 = vlaneseq
  %v4454 = vshrl.u32 %v4453, 7
  %v4455 = vsub.s32 %v4452, %v4454
  %v4456 = vrot.slane %v4033, %v4455
  %v4458 = vunpack.c.l.s4 1983009808
  %v4459 = vunpack.c.0.s8 %v4458
  %v4460 = vlaneseq
  %v4461 = vshrl.u32 %v4460, 7
  %v4462 = vsub.s32 %v4459, %v4461
  %v4463 = vrot.slane %v4449, %v4462
  %v4464 = vcombine.high %v4456, %v4456
  %v4465 = vcombine.high %v4463, %v4463
  %v4466 = vcombine.high %v4034, %v4034
  %v4468 = vunpack.c.l.s4 1983009808
  %v4469 = vunpack.c.0.s8 %v4468
  %v4470 = vlaneseq
  %v4471 = vshrl.u32 %v4470, 7
  %v4472 = vsub.s32 %v4469, %v4471
  %v4473 = vrot.slane %v4034, %v4472
  %v4475 = vunpack.c.l.s4 1983009808
  %v4476 = vunpack.c.0.s8 %v4475
  %v4477 = vlaneseq
  %v4478 = vshrl.u32 %v4477, 7
  %v4479 = vsub.s32 %v4476, %v4478
  %v4480 = vrot.slane %v4466, %v4479
  %v4481 = vcombine.high %v4473, %v4473
  %v4482 = vcombine.high %v4480, %v4480
  %v4483 = vcombine.high %v4035, %v4035
  %v4485 = vunpack.c.l.s4 1983009808
  %v4486 = vunpack.c.0.s8 %v4485
  %v4487 = vlaneseq
  %v4488 = vshrl.u32 %v4487, 7
  %v4489 = vsub.s32 %v4486, %v4488
  %v4490 = vrot.slane %v4035, %v4489
  %v4492 = vunpack.c.l.s4 1983009808
  %v4493 = vunpack.c.0.s8 %v4492
  %v4494 = vlaneseq
  %v4495 = vshrl.u32 %v4494, 7
  %v4496 = vsub.s32 %v4493, %v4495
  %v4497 = vrot.slane %v4483, %v4496
  %v4498 = vcombine.high %v4490, %v4490
  %v4499 = vcombine.high %v4497, %v4497
  %v4500 = vcombine.high %v4036, %v4036
  %v4502 = vunpack.c.l.s4 1983009808
  %v4503 = vunpack.c.0.s8 %v4502
  %v4504 = vlaneseq
  %v4505 = vshrl.u32 %v4504, 7
  %v4506 = vsub.s32 %v4503, %v4505
  %v4507 = vrot.slane %v4036, %v4506
  %v4509 = vunpack.c.l.s4 1983009808
  %v4510 = vunpack.c.0.s8 %v4509
  %v4511 = vlaneseq
  %v4512 = vshrl.u32 %v4511, 7
  %v4513 = vsub.s32 %v4510, %v4512
  %v4514 = vrot.slane %v4500, %v4513
  %v4515 = vcombine.high %v4507, %v4507
  %v4516 = vcombine.high %v4514, %v4514
  %v4517 = vcombine.high %v4037, %v4037
  %v4519 = vunpack.c.l.s4 1983009808
  %v4520 = vunpack.c.0.s8 %v4519
  %v4521 = vlaneseq
  %v4522 = vshrl.u32 %v4521, 7
  %v4523 = vsub.s32 %v4520, %v4522
  %v4524 = vrot.slane %v4037, %v4523
  %v4526 = vunpack.c.l.s4 1983009808
  %v4527 = vunpack.c.0.s8 %v4526
  %v4528 = vlaneseq
  %v4529 = vshrl.u32 %v4528, 7
  %v4530 = vsub.s32 %v4527, %v4529
  %v4531 = vrot.slane %v4517, %v4530
  %v4532 = vcombine.high %v4524, %v4524
  %v4533 = vcombine.high %v4531, %v4531
  %v4534 = vcombine.high %v4038, %v4038
  %v4536 = vunpack.c.l.s4 1983009808
  %v4537 = vunpack.c.0.s8 %v4536
  %v4538 = vlaneseq
  %v4539 = vshrl.u32 %v4538, 7
  %v4540 = vsub.s32 %v4537, %v4539
  %v4541 = vrot.slane %v4038, %v4540
  %v4543 = vunpack.c.l.s4 1983009808
  %v4544 = vunpack.c.0.s8 %v4543
  %v4545 = vlaneseq
  %v4546 = vshrl.u32 %v4545, 7
  %v4547 = vsub.s32 %v4544, %v4546
  %v4548 = vrot.slane %v4534, %v4547
  %v4549 = vcombine.high %v4541, %v4541
  %v4550 = vcombine.high %v4548, %v4548
  %v4551 = vcombine.high %v4039, %v4039
  %v4553 = vunpack.c.l.s4 1983009808
  %v4554 = vunpack.c.0.s8 %v4553
  %v4555 = vlaneseq
  %v4556 = vshrl.u32 %v4555, 7
  %v4557 = vsub.s32 %v4554, %v4556
  %v4558 = vrot.slane %v4039, %v4557
  %v4560 = vunpack.c.l.s4 1983009808
  %v4561 = vunpack.c.0.s8 %v4560
  %v4562 = vlaneseq
  %v4563 = vshrl.u32 %v4562, 7
  %v4564 = vsub.s32 %v4561, %v4563
  %v4565 = vrot.slane %v4551, %v4564
  %v4566 = vcombine.high %v4558, %v4558
  %v4567 = vcombine.high %v4565, %v4565
  %v4568 = vcombine.high %v4040, %v4040
  %v4570 = vunpack.c.l.s4 1983009808
  %v4571 = vunpack.c.0.s8 %v4570
  %v4572 = vlaneseq
  %v4573 = vshrl.u32 %v4572, 7
  %v4574 = vsub.s32 %v4571, %v4573
  %v4575 = vrot.slane %v4040, %v4574
  %v4577 = vunpack.c.l.s4 1983009808
  %v4578 = vunpack.c.0.s8 %v4577
  %v4579 = vlaneseq
  %v4580 = vshrl.u32 %v4579, 7
  %v4581 = vsub.s32 %v4578, %v4580
  %v4582 = vrot.slane %v4568, %v4581
  %v4583 = vcombine.high %v4575, %v4575
  %v4584 = vcombine.high %v4582, %v4582
  %v4585 = vcombine.high %v4041, %v4041
  %v4587 = vunpack.c.l.s4 1983009808
  %v4588 = vunpack.c.0.s8 %v4587
  %v4589 = vlaneseq
  %v4590 = vshrl.u32 %v4589, 7
  %v4591 = vsub.s32 %v4588, %v4590
  %v4592 = vrot.slane %v4041, %v4591
  %v4594 = vunpack.c.l.s4 1983009808
  %v4595 = vunpack.c.0.s8 %v4594
  %v4596 = vlaneseq
  %v4597 = vshrl.u32 %v4596, 7
  %v4598 = vsub.s32 %v4595, %v4597
  %v4599 = vrot.slane %v4585, %v4598
  %v4600 = vcombine.high %v4592, %v4592
  %v4601 = vcombine.high %v4599, %v4599
  %v4602 = vcombine.high %v4042, %v4042
  %v4604 = vunpack.c.l.s4 1983009808
  %v4605 = vunpack.c.0.s8 %v4604
  %v4606 = vlaneseq
  %v4607 = vshrl.u32 %v4606, 7
  %v4608 = vsub.s32 %v4605, %v4607
  %v4609 = vrot.slane %v4042, %v4608
  %v4611 = vunpack.c.l.s4 1983009808
  %v4612 = vunpack.c.0.s8 %v4611
  %v4613 = vlaneseq
  %v4614 = vshrl.u32 %v4613, 7
  %v4615 = vsub.s32 %v4612, %v4614
  %v4616 = vrot.slane %v4602, %v4615
  %v4617 = vcombine.high %v4609, %v4609
  %v4618 = vcombine.high %v4616, %v4616
  %v4619 = vcombine.high %v4043, %v4043
  %v4621 = vunpack.c.l.s4 1983009808
  %v4622 = vunpack.c.0.s8 %v4621
  %v4623 = vlaneseq
  %v4624 = vshrl.u32 %v4623, 7
  %v4625 = vsub.s32 %v4622, %v4624
  %v4626 = vrot.slane %v4043, %v4625
  %v4628 = vunpack.c.l.s4 1983009808
  %v4629 = vunpack.c.0.s8 %v4628
  %v4630 = vlaneseq
  %v4631 = vshrl.u32 %v4630, 7
  %v4632 = vsub.s32 %v4629, %v4631
  %v4633 = vrot.slane %v4619, %v4632
  %v4634 = vcombine.high %v4626, %v4626
  %v4635 = vcombine.high %v4633, %v4633
  %v4636 = vcombine.high %v4044, %v4044
  %v4638 = vunpack.c.l.s4 1983009808
  %v4639 = vunpack.c.0.s8 %v4638
  %v4640 = vlaneseq
  %v4641 = vshrl.u32 %v4640, 7
  %v4642 = vsub.s32 %v4639, %v4641
  %v4643 = vrot.slane %v4044, %v4642
  %v4645 = vunpack.c.l.s4 1983009808
  %v4646 = vunpack.c.0.s8 %v4645
  %v4647 = vlaneseq
  %v4648 = vshrl.u32 %v4647, 7
  %v4649 = vsub.s32 %v4646, %v4648
  %v4650 = vrot.slane %v4636, %v4649
  %v4651 = vcombine.high %v4643, %v4643
  %v4652 = vcombine.high %v4650, %v4650
  %v4653 = vcombine.high %v4045, %v4045
  %v4655 = vunpack.c.l.s4 1983009808
  %v4656 = vunpack.c.0.s8 %v4655
  %v4657 = vlaneseq
  %v4658 = vshrl.u32 %v4657, 7
  %v4659 = vsub.s32 %v4656, %v4658
  %v4660 = vrot.slane %v4045, %v4659
  %v4662 = vunpack.c.l.s4 1983009808
  %v4663 = vunpack.c.0.s8 %v4662
  %v4664 = vlaneseq
  %v4665 = vshrl.u32 %v4664, 7
  %v4666 = vsub.s32 %v4663, %v4665
  %v4667 = vrot.slane %v4653, %v4666
  %v4668 = vcombine.high %v4660, %v4660
  %v4669 = vcombine.high %v4667, %v4667
  %v4670 = vcombine.high %v4046, %v4046
  %v4672 = vunpack.c.l.s4 1983009808
  %v4673 = vunpack.c.0.s8 %v4672
  %v4674 = vlaneseq
  %v4675 = vshrl.u32 %v4674, 7
  %v4676 = vsub.s32 %v4673, %v4675
  %v4677 = vrot.slane %v4046, %v4676
  %v4679 = vunpack.c.l.s4 1983009808
  %v4680 = vunpack.c.0.s8 %v4679
  %v4681 = vlaneseq
  %v4682 = vshrl.u32 %v4681, 7
  %v4683 = vsub.s32 %v4680, %v4682
  %v4684 = vrot.slane %v4670, %v4683
  %v4685 = vcombine.high %v4677, %v4677
  %v4686 = vcombine.high %v4684, %v4684
  %v4687 = vcombine.high %v4047, %v4047
  %v4689 = vunpack.c.l.s4 1983009808
  %v4690 = vunpack.c.0.s8 %v4689
  %v4691 = vlaneseq
  %v4692 = vshrl.u32 %v4691, 7
  %v4693 = vsub.s32 %v4690, %v4692
  %v4694 = vrot.slane %v4047, %v4693
  %v4696 = vunpack.c.l.s4 1983009808
  %v4697 = vunpack.c.0.s8 %v4696
  %v4698 = vlaneseq
  %v4699 = vshrl.u32 %v4698, 7
  %v4700 = vsub.s32 %v4697, %v4699
  %v4701 = vrot.slane %v4687, %v4700
  %v4702 = vcombine.high %v4694, %v4694
  %v4703 = vcombine.high %v4701, %v4701
  %v4704 = vcombine.high %v4048, %v4048
  %v4706 = vunpack.c.l.s4 1983009808
  %v4707 = vunpack.c.0.s8 %v4706
  %v4708 = vlaneseq
  %v4709 = vshrl.u32 %v4708, 7
  %v4710 = vsub.s32 %v4707, %v4709
  %v4711 = vrot.slane %v4048, %v4710
  %v4713 = vunpack.c.l.s4 1983009808
  %v4714 = vunpack.c.0.s8 %v4713
  %v4715 = vlaneseq
  %v4716 = vshrl.u32 %v4715, 7
  %v4717 = vsub.s32 %v4714, %v4716
  %v4718 = vrot.slane %v4704, %v4717
  %v4719 = vcombine.high %v4711, %v4711
  %v4720 = vcombine.high %v4718, %v4718
  %v4721 = vcombine.high %v4049, %v4049
  %v4723 = vunpack.c.l.s4 1983009808
  %v4724 = vunpack.c.0.s8 %v4723
  %v4725 = vlaneseq
  %v4726 = vshrl.u32 %v4725, 7
  %v4727 = vsub.s32 %v4724, %v4726
  %v4728 = vrot.slane %v4049, %v4727
  %v4730 = vunpack.c.l.s4 1983009808
  %v4731 = vunpack.c.0.s8 %v4730
  %v4732 = vlaneseq
  %v4733 = vshrl.u32 %v4732, 7
  %v4734 = vsub.s32 %v4731, %v4733
  %v4735 = vrot.slane %v4721, %v4734
  %v4736 = vcombine.high %v4728, %v4728
  %v4737 = vcombine.high %v4735, %v4735
  %v4738 = vcombine.high %v4050, %v4050
  %v4740 = vunpack.c.l.s4 1983009808
  %v4741 = vunpack.c.0.s8 %v4740
  %v4742 = vlaneseq
  %v4743 = vshrl.u32 %v4742, 7
  %v4744 = vsub.s32 %v4741, %v4743
  %v4745 = vrot.slane %v4050, %v4744
  %v4747 = vunpack.c.l.s4 1983009808
  %v4748 = vunpack.c.0.s8 %v4747
  %v4749 = vlaneseq
  %v4750 = vshrl.u32 %v4749, 7
  %v4751 = vsub.s32 %v4748, %v4750
  %v4752 = vrot.slane %v4738, %v4751
  %v4753 = vcombine.high %v4745, %v4745
  %v4754 = vcombine.high %v4752, %v4752
  %v4755 = vcombine.high %v4051, %v4051
  %v4757 = vunpack.c.l.s4 1983009808
  %v4758 = vunpack.c.0.s8 %v4757
  %v4759 = vlaneseq
  %v4760 = vshrl.u32 %v4759, 7
  %v4761 = vsub.s32 %v4758, %v4760
  %v4762 = vrot.slane %v4051, %v4761
  %v4764 = vunpack.c.l.s4 1983009808
  %v4765 = vunpack.c.0.s8 %v4764
  %v4766 = vlaneseq
  %v4767 = vshrl.u32 %v4766, 7
  %v4768 = vsub.s32 %v4765, %v4767
  %v4769 = vrot.slane %v4755, %v4768
  %v4770 = vcombine.high %v4762, %v4762
  %v4771 = vcombine.high %v4769, %v4769
  %v4772 = vcombine.high %v4052, %v4052
  %v4774 = vunpack.c.l.s4 1983009808
  %v4775 = vunpack.c.0.s8 %v4774
  %v4776 = vlaneseq
  %v4777 = vshrl.u32 %v4776, 7
  %v4778 = vsub.s32 %v4775, %v4777
  %v4779 = vrot.slane %v4052, %v4778
  %v4781 = vunpack.c.l.s4 1983009808
  %v4782 = vunpack.c.0.s8 %v4781
  %v4783 = vlaneseq
  %v4784 = vshrl.u32 %v4783, 7
  %v4785 = vsub.s32 %v4782, %v4784
  %v4786 = vrot.slane %v4772, %v4785
  %v4787 = vcombine.high %v4779, %v4779
  %v4788 = vcombine.high %v4786, %v4786
  %v4789 = vcombine.high %v4053, %v4053
  %v4791 = vunpack.c.l.s4 1983009808
  %v4792 = vunpack.c.0.s8 %v4791
  %v4793 = vlaneseq
  %v4794 = vshrl.u32 %v4793, 7
  %v4795 = vsub.s32 %v4792, %v4794
  %v4796 = vrot.slane %v4053, %v4795
  %v4798 = vunpack.c.l.s4 1983009808
  %v4799 = vunpack.c.0.s8 %v4798
  %v4800 = vlaneseq
  %v4801 = vshrl.u32 %v4800, 7
  %v4802 = vsub.s32 %v4799, %v4801
  %v4803 = vrot.slane %v4789, %v4802
  %v4804 = vcombine.high %v4796, %v4796
  %v4805 = vcombine.high %v4803, %v4803
  %v4806 = vcombine.high %v4054, %v4054
  %v4808 = vunpack.c.l.s4 1983009808
  %v4809 = vunpack.c.0.s8 %v4808
  %v4810 = vlaneseq
  %v4811 = vshrl.u32 %v4810, 7
  %v4812 = vsub.s32 %v4809, %v4811
  %v4813 = vrot.slane %v4054, %v4812
  %v4815 = vunpack.c.l.s4 1983009808
  %v4816 = vunpack.c.0.s8 %v4815
  %v4817 = vlaneseq
  %v4818 = vshrl.u32 %v4817, 7
  %v4819 = vsub.s32 %v4816, %v4818
  %v4820 = vrot.slane %v4806, %v4819
  %v4821 = vcombine.high %v4813, %v4813
  %v4822 = vcombine.high %v4820, %v4820
  %v4823 = vcombine.high %v4055, %v4055
  %v4825 = vunpack.c.l.s4 1983009808
  %v4826 = vunpack.c.0.s8 %v4825
  %v4827 = vlaneseq
  %v4828 = vshrl.u32 %v4827, 7
  %v4829 = vsub.s32 %v4826, %v4828
  %v4830 = vrot.slane %v4055, %v4829
  %v4832 = vunpack.c.l.s4 1983009808
  %v4833 = vunpack.c.0.s8 %v4832
  %v4834 = vlaneseq
  %v4835 = vshrl.u32 %v4834, 7
  %v4836 = vsub.s32 %v4833, %v4835
  %v4837 = vrot.slane %v4823, %v4836
  %v4838 = vcombine.high %v4830, %v4830
  %v4839 = vcombine.high %v4837, %v4837
  %v4840 = vcombine.high %v4056, %v4056
  %v4842 = vunpack.c.l.s4 1983009808
  %v4843 = vunpack.c.0.s8 %v4842
  %v4844 = vlaneseq
  %v4845 = vshrl.u32 %v4844, 7
  %v4846 = vsub.s32 %v4843, %v4845
  %v4847 = vrot.slane %v4056, %v4846
  %v4849 = vunpack.c.l.s4 1983009808
  %v4850 = vunpack.c.0.s8 %v4849
  %v4851 = vlaneseq
  %v4852 = vshrl.u32 %v4851, 7
  %v4853 = vsub.s32 %v4850, %v4852
  %v4854 = vrot.slane %v4840, %v4853
  %v4855 = vcombine.high %v4847, %v4847
  %v4856 = vcombine.high %v4854, %v4854
  %v4857 = vcombine.high %v4057, %v4057
  %v4859 = vunpack.c.l.s4 1983009808
  %v4860 = vunpack.c.0.s8 %v4859
  %v4861 = vlaneseq
  %v4862 = vshrl.u32 %v4861, 7
  %v4863 = vsub.s32 %v4860, %v4862
  %v4864 = vrot.slane %v4057, %v4863
  %v4866 = vunpack.c.l.s4 1983009808
  %v4867 = vunpack.c.0.s8 %v4866
  %v4868 = vlaneseq
  %v4869 = vshrl.u32 %v4868, 7
  %v4870 = vsub.s32 %v4867, %v4869
  %v4871 = vrot.slane %v4857, %v4870
  %v4872 = vcombine.high %v4864, %v4864
  %v4873 = vcombine.high %v4871, %v4871
  %v4874 = vcombine.high %v4058, %v4058
  %v4876 = vunpack.c.l.s4 1983009808
  %v4877 = vunpack.c.0.s8 %v4876
  %v4878 = vlaneseq
  %v4879 = vshrl.u32 %v4878, 7
  %v4880 = vsub.s32 %v4877, %v4879
  %v4881 = vrot.slane %v4058, %v4880
  %v4883 = vunpack.c.l.s4 1983009808
  %v4884 = vunpack.c.0.s8 %v4883
  %v4885 = vlaneseq
  %v4886 = vshrl.u32 %v4885, 7
  %v4887 = vsub.s32 %v4884, %v4886
  %v4888 = vrot.slane %v4874, %v4887
  %v4889 = vcombine.high %v4881, %v4881
  %v4890 = vcombine.high %v4888, %v4888
  %v4891 = vcombine.high %v4059, %v4059
  %v4893 = vunpack.c.l.s4 1983009808
  %v4894 = vunpack.c.0.s8 %v4893
  %v4895 = vlaneseq
  %v4896 = vshrl.u32 %v4895, 7
  %v4897 = vsub.s32 %v4894, %v4896
  %v4898 = vrot.slane %v4059, %v4897
  %v4900 = vunpack.c.l.s4 1983009808
  %v4901 = vunpack.c.0.s8 %v4900
  %v4902 = vlaneseq
  %v4903 = vshrl.u32 %v4902, 7
  %v4904 = vsub.s32 %v4901, %v4903
  %v4905 = vrot.slane %v4891, %v4904
  %v4906 = vcombine.high %v4898, %v4898
  %v4907 = vcombine.high %v4905, %v4905
  %v4908 = vcombine.high %v4060, %v4060
  %v4910 = vunpack.c.l.s4 1983009808
  %v4911 = vunpack.c.0.s8 %v4910
  %v4912 = vlaneseq
  %v4913 = vshrl.u32 %v4912, 7
  %v4914 = vsub.s32 %v4911, %v4913
  %v4915 = vrot.slane %v4060, %v4914
  %v4917 = vunpack.c.l.s4 1983009808
  %v4918 = vunpack.c.0.s8 %v4917
  %v4919 = vlaneseq
  %v4920 = vshrl.u32 %v4919, 7
  %v4921 = vsub.s32 %v4918, %v4920
  %v4922 = vrot.slane %v4908, %v4921
  %v4923 = vcombine.high %v4915, %v4915
  %v4924 = vcombine.high %v4922, %v4922
  %v4925 = vcombine.high %v4061, %v4061
  %v4927 = vunpack.c.l.s4 1983009808
  %v4928 = vunpack.c.0.s8 %v4927
  %v4929 = vlaneseq
  %v4930 = vshrl.u32 %v4929, 7
  %v4931 = vsub.s32 %v4928, %v4930
  %v4932 = vrot.slane %v4061, %v4931
  %v4934 = vunpack.c.l.s4 1983009808
  %v4935 = vunpack.c.0.s8 %v4934
  %v4936 = vlaneseq
  %v4937 = vshrl.u32 %v4936, 7
  %v4938 = vsub.s32 %v4935, %v4937
  %v4939 = vrot.slane %v4925, %v4938
  %v4940 = vcombine.high %v4932, %v4932
  %v4941 = vcombine.high %v4939, %v4939
  %v4942 = vcombine.high %v4062, %v4062
  %v4944 = vunpack.c.l.s4 1983009808
  %v4945 = vunpack.c.0.s8 %v4944
  %v4946 = vlaneseq
  %v4947 = vshrl.u32 %v4946, 7
  %v4948 = vsub.s32 %v4945, %v4947
  %v4949 = vrot.slane %v4062, %v4948
  %v4951 = vunpack.c.l.s4 1983009808
  %v4952 = vunpack.c.0.s8 %v4951
  %v4953 = vlaneseq
  %v4954 = vshrl.u32 %v4953, 7
  %v4955 = vsub.s32 %v4952, %v4954
  %v4956 = vrot.slane %v4942, %v4955
  %v4957 = vcombine.high %v4949, %v4949
  %v4958 = vcombine.high %v4956, %v4956
  %v4959 = vcombine.high %v4063, %v4063
  %v4961 = vunpack.c.l.s4 1983009808
  %v4962 = vunpack.c.0.s8 %v4961
  %v4963 = vlaneseq
  %v4964 = vshrl.u32 %v4963, 7
  %v4965 = vsub.s32 %v4962, %v4964
  %v4966 = vrot.slane %v4063, %v4965
  %v4968 = vunpack.c.l.s4 1983009808
  %v4969 = vunpack.c.0.s8 %v4968
  %v4970 = vlaneseq
  %v4971 = vshrl.u32 %v4970, 7
  %v4972 = vsub.s32 %v4969, %v4971
  %v4973 = vrot.slane %v4959, %v4972
  %v4974 = vcombine.high %v4966, %v4966
  %v4975 = vcombine.high %v4973, %v4973
  %v4976 = vcombine.high %v4064, %v4064
  %v4978 = vunpack.c.l.s4 1983009808
  %v4979 = vunpack.c.0.s8 %v4978
  %v4980 = vlaneseq
  %v4981 = vshrl.u32 %v4980, 7
  %v4982 = vsub.s32 %v4979, %v4981
  %v4983 = vrot.slane %v4064, %v4982
  %v4985 = vunpack.c.l.s4 1983009808
  %v4986 = vunpack.c.0.s8 %v4985
  %v4987 = vlaneseq
  %v4988 = vshrl.u32 %v4987, 7
  %v4989 = vsub.s32 %v4986, %v4988
  %v4990 = vrot.slane %v4976, %v4989
  %v4991 = vcombine.high %v4983, %v4983
  %v4992 = vcombine.high %v4990, %v4990
  %v4993 = vcombine.high %v4065, %v4065
  %v4995 = vunpack.c.l.s4 1983009808
  %v4996 = vunpack.c.0.s8 %v4995
  %v4997 = vlaneseq
  %v4998 = vshrl.u32 %v4997, 7
  %v4999 = vsub.s32 %v4996, %v4998
  %v5000 = vrot.slane %v4065, %v4999
  %v5002 = vunpack.c.l.s4 1983009808
  %v5003 = vunpack.c.0.s8 %v5002
  %v5004 = vlaneseq
  %v5005 = vshrl.u32 %v5004, 7
  %v5006 = vsub.s32 %v5003, %v5005
  %v5007 = vrot.slane %v4993, %v5006
  %v5008 = vcombine.high %v5000, %v5000
  %v5009 = vcombine.high %v5007, %v5007
  %v5010 = vcombine.high %v4066, %v4066
  %v5012 = vunpack.c.l.s4 1983009808
  %v5013 = vunpack.c.0.s8 %v5012
  %v5014 = vlaneseq
  %v5015 = vshrl.u32 %v5014, 7
  %v5016 = vsub.s32 %v5013, %v5015
  %v5017 = vrot.slane %v4066, %v5016
  %v5019 = vunpack.c.l.s4 1983009808
  %v5020 = vunpack.c.0.s8 %v5019
  %v5021 = vlaneseq
  %v5022 = vshrl.u32 %v5021, 7
  %v5023 = vsub.s32 %v5020, %v5022
  %v5024 = vrot.slane %v5010, %v5023
  %v5025 = vcombine.high %v5017, %v5017
  %v5026 = vcombine.high %v5024, %v5024
  %v5027 = vcombine.high %v4067, %v4067
  %v5029 = vunpack.c.l.s4 1983009808
  %v5030 = vunpack.c.0.s8 %v5029
  %v5031 = vlaneseq
  %v5032 = vshrl.u32 %v5031, 7
  %v5033 = vsub.s32 %v5030, %v5032
  %v5034 = vrot.slane %v4067, %v5033
  %v5036 = vunpack.c.l.s4 1983009808
  %v5037 = vunpack.c.0.s8 %v5036
  %v5038 = vlaneseq
  %v5039 = vshrl.u32 %v5038, 7
  %v5040 = vsub.s32 %v5037, %v5039
  %v5041 = vrot.slane %v5027, %v5040
  %v5042 = vcombine.high %v5034, %v5034
  %v5043 = vcombine.high %v5041, %v5041
  %v5044 = vcombine.high %v4068, %v4068
  %v5046 = vunpack.c.l.s4 1983009808
  %v5047 = vunpack.c.0.s8 %v5046
  %v5048 = vlaneseq
  %v5049 = vshrl.u32 %v5048, 7
  %v5050 = vsub.s32 %v5047, %v5049
  %v5051 = vrot.slane %v4068, %v5050
  %v5053 = vunpack.c.l.s4 1983009808
  %v5054 = vunpack.c.0.s8 %v5053
  %v5055 = vlaneseq
  %v5056 = vshrl.u32 %v5055, 7
  %v5057 = vsub.s32 %v5054, %v5056
  %v5058 = vrot.slane %v5044, %v5057
  %v5059 = vcombine.high %v5051, %v5051
  %v5060 = vcombine.high %v5058, %v5058
  %v5061 = vcombine.high %v4069, %v4069
  %v5063 = vunpack.c.l.s4 1983009808
  %v5064 = vunpack.c.0.s8 %v5063
  %v5065 = vlaneseq
  %v5066 = vshrl.u32 %v5065, 7
  %v5067 = vsub.s32 %v5064, %v5066
  %v5068 = vrot.slane %v4069, %v5067
  %v5070 = vunpack.c.l.s4 1983009808
  %v5071 = vunpack.c.0.s8 %v5070
  %v5072 = vlaneseq
  %v5073 = vshrl.u32 %v5072, 7
  %v5074 = vsub.s32 %v5071, %v5073
  %v5075 = vrot.slane %v5061, %v5074
  %v5076 = vcombine.high %v5068, %v5068
  %v5077 = vcombine.high %v5075, %v5075
  %v5078 = vcombine.high %v4070, %v4070
  %v5080 = vunpack.c.l.s4 1983009808
  %v5081 = vunpack.c.0.s8 %v5080
  %v5082 = vlaneseq
  %v5083 = vshrl.u32 %v5082, 7
  %v5084 = vsub.s32 %v5081, %v5083
  %v5085 = vrot.slane %v4070, %v5084
  %v5087 = vunpack.c.l.s4 1983009808
  %v5088 = vunpack.c.0.s8 %v5087
  %v5089 = vlaneseq
  %v5090 = vshrl.u32 %v5089, 7
  %v5091 = vsub.s32 %v5088, %v5090
  %v5092 = vrot.slane %v5078, %v5091
  %v5093 = vcombine.high %v5085, %v5085
  %v5094 = vcombine.high %v5092, %v5092
  %v5095 = vcombine.high %v4071, %v4071
  %v5097 = vunpack.c.l.s4 1983009808
  %v5098 = vunpack.c.0.s8 %v5097
  %v5099 = vlaneseq
  %v5100 = vshrl.u32 %v5099, 7
  %v5101 = vsub.s32 %v5098, %v5100
  %v5102 = vrot.slane %v4071, %v5101
  %v5104 = vunpack.c.l.s4 1983009808
  %v5105 = vunpack.c.0.s8 %v5104
  %v5106 = vlaneseq
  %v5107 = vshrl.u32 %v5106, 7
  %v5108 = vsub.s32 %v5105, %v5107
  %v5109 = vrot.slane %v5095, %v5108
  %v5110 = vcombine.high %v5102, %v5102
  %v5111 = vcombine.high %v5109, %v5109
  %v5112 = vcombine.high %v4072, %v4072
  %v5114 = vunpack.c.l.s4 1983009808
  %v5115 = vunpack.c.0.s8 %v5114
  %v5116 = vlaneseq
  %v5117 = vshrl.u32 %v5116, 7
  %v5118 = vsub.s32 %v5115, %v5117
  %v5119 = vrot.slane %v4072, %v5118
  %v5121 = vunpack.c.l.s4 1983009808
  %v5122 = vunpack.c.0.s8 %v5121
  %v5123 = vlaneseq
  %v5124 = vshrl.u32 %v5123, 7
  %v5125 = vsub.s32 %v5122, %v5124
  %v5126 = vrot.slane %v5112, %v5125
  %v5127 = vcombine.high %v5119, %v5119
  %v5128 = vcombine.high %v5126, %v5126
  %v5129 = vcombine.high %v4073, %v4073
  %v5131 = vunpack.c.l.s4 1983009808
  %v5132 = vunpack.c.0.s8 %v5131
  %v5133 = vlaneseq
  %v5134 = vshrl.u32 %v5133, 7
  %v5135 = vsub.s32 %v5132, %v5134
  %v5136 = vrot.slane %v4073, %v5135
  %v5138 = vunpack.c.l.s4 1983009808
  %v5139 = vunpack.c.0.s8 %v5138
  %v5140 = vlaneseq
  %v5141 = vshrl.u32 %v5140, 7
  %v5142 = vsub.s32 %v5139, %v5141
  %v5143 = vrot.slane %v5129, %v5142
  %v5144 = vcombine.high %v5136, %v5136
  %v5145 = vcombine.high %v5143, %v5143
  %v5146 = vcombine.high %v4074, %v4074
  %v5148 = vunpack.c.l.s4 1983009808
  %v5149 = vunpack.c.0.s8 %v5148
  %v5150 = vlaneseq
  %v5151 = vshrl.u32 %v5150, 7
  %v5152 = vsub.s32 %v5149, %v5151
  %v5153 = vrot.slane %v4074, %v5152
  %v5155 = vunpack.c.l.s4 1983009808
  %v5156 = vunpack.c.0.s8 %v5155
  %v5157 = vlaneseq
  %v5158 = vshrl.u32 %v5157, 7
  %v5159 = vsub.s32 %v5156, %v5158
  %v5160 = vrot.slane %v5146, %v5159
  %v5161 = vcombine.high %v5153, %v5153
  %v5162 = vcombine.high %v5160, %v5160
  %v5163 = vcombine.high %v4075, %v4075
  %v5165 = vunpack.c.l.s4 1983009808
  %v5166 = vunpack.c.0.s8 %v5165
  %v5167 = vlaneseq
  %v5168 = vshrl.u32 %v5167, 7
  %v5169 = vsub.s32 %v5166, %v5168
  %v5170 = vrot.slane %v4075, %v5169
  %v5172 = vunpack.c.l.s4 1983009808
  %v5173 = vunpack.c.0.s8 %v5172
  %v5174 = vlaneseq
  %v5175 = vshrl.u32 %v5174, 7
  %v5176 = vsub.s32 %v5173, %v5175
  %v5177 = vrot.slane %v5163, %v5176
  %v5178 = vcombine.high %v5170, %v5170
  %v5179 = vcombine.high %v5177, %v5177
  %v5180 = vcombine.high %v4076, %v4076
  %v5182 = vunpack.c.l.s4 1983009808
  %v5183 = vunpack.c.0.s8 %v5182
  %v5184 = vlaneseq
  %v5185 = vshrl.u32 %v5184, 7
  %v5186 = vsub.s32 %v5183, %v5185
  %v5187 = vrot.slane %v4076, %v5186
  %v5189 = vunpack.c.l.s4 1983009808
  %v5190 = vunpack.c.0.s8 %v5189
  %v5191 = vlaneseq
  %v5192 = vshrl.u32 %v5191, 7
  %v5193 = vsub.s32 %v5190, %v5192
  %v5194 = vrot.slane %v5180, %v5193
  %v5195 = vcombine.high %v5187, %v5187
  %v5196 = vcombine.high %v5194, %v5194
  %v5197 = vcombine.high %v4077, %v4077
  %v5199 = vunpack.c.l.s4 1983009808
  %v5200 = vunpack.c.0.s8 %v5199
  %v5201 = vlaneseq
  %v5202 = vshrl.u32 %v5201, 7
  %v5203 = vsub.s32 %v5200, %v5202
  %v5204 = vrot.slane %v4077, %v5203
  %v5206 = vunpack.c.l.s4 1983009808
  %v5207 = vunpack.c.0.s8 %v5206
  %v5208 = vlaneseq
  %v5209 = vshrl.u32 %v5208, 7
  %v5210 = vsub.s32 %v5207, %v5209
  %v5211 = vrot.slane %v5197, %v5210
  %v5212 = vcombine.high %v5204, %v5204
  %v5213 = vcombine.high %v5211, %v5211
  %v5214 = vcombine.high %v4078, %v4078
  %v5216 = vunpack.c.l.s4 1983009808
  %v5217 = vunpack.c.0.s8 %v5216
  %v5218 = vlaneseq
  %v5219 = vshrl.u32 %v5218, 7
  %v5220 = vsub.s32 %v5217, %v5219
  %v5221 = vrot.slane %v4078, %v5220
  %v5223 = vunpack.c.l.s4 1983009808
  %v5224 = vunpack.c.0.s8 %v5223
  %v5225 = vlaneseq
  %v5226 = vshrl.u32 %v5225, 7
  %v5227 = vsub.s32 %v5224, %v5226
  %v5228 = vrot.slane %v5214, %v5227
  %v5229 = vcombine.high %v5221, %v5221
  %v5230 = vcombine.high %v5228, %v5228
  %vm5487 = vcmask 9216
  %v5488 = vsel %vm5487, %v4150, -inf
  %v5489 = vrot.slane %v5488, 4
  %v5490 = vmax.f32 %v5488, %v5489
  %v5491 = vrot.slane %v5490, 2
  %v5492 = vmax.f32 %v5490, %v5491
  %v5493 = vrot.slane %v5492, 1
  %v5494 = vmax.f32 %v5492, %v5493
  %v5495 = vsel %vm5487, %v4158, -inf
  %v5496 = vrot.slane %v5495, 4
  %v5497 = vmax.f32 %v5495, %v5496
  %v5498 = vrot.slane %v5497, 2
  %v5499 = vmax.f32 %v5497, %v5498
  %v5500 = vrot.slane %v5499, 1
  %v5501 = vmax.f32 %v5499, %v5500
  %v5502 = vsel %vm5487, %v4157, -inf
  %v5503 = vrot.slane %v5502, 4
  %v5504 = vmax.f32 %v5502, %v5503
  %v5505 = vrot.slane %v5504, 2
  %v5506 = vmax.f32 %v5504, %v5505
  %v5507 = vrot.slane %v5506, 1
  %v5508 = vmax.f32 %v5506, %v5507
  %v5509 = vsel %vm5487, %v4159, -inf
  %v5510 = vrot.slane %v5509, 4
  %v5511 = vmax.f32 %v5509, %v5510
  %v5512 = vrot.slane %v5511, 2
  %v5513 = vmax.f32 %v5511, %v5512
  %v5514 = vrot.slane %v5513, 1
  %v5515 = vmax.f32 %v5513, %v5514
  %v5516 = vsel %vm5487, %v4167, -inf
  %v5517 = vrot.slane %v5516, 4
  %v5518 = vmax.f32 %v5516, %v5517
  %v5519 = vrot.slane %v5518, 2
  %v5520 = vmax.f32 %v5518, %v5519
  %v5521 = vrot.slane %v5520, 1
  %v5522 = vmax.f32 %v5520, %v5521
  %v5523 = vsel %vm5487, %v4175, -inf
  %v5524 = vrot.slane %v5523, 4
  %v5525 = vmax.f32 %v5523, %v5524
  %v5526 = vrot.slane %v5525, 2
  %v5527 = vmax.f32 %v5525, %v5526
  %v5528 = vrot.slane %v5527, 1
  %v5529 = vmax.f32 %v5527, %v5528
  %v5530 = vsel %vm5487, %v4174, -inf
  %v5531 = vrot.slane %v5530, 4
  %v5532 = vmax.f32 %v5530, %v5531
  %v5533 = vrot.slane %v5532, 2
  %v5534 = vmax.f32 %v5532, %v5533
  %v5535 = vrot.slane %v5534, 1
  %v5536 = vmax.f32 %v5534, %v5535
  %v5537 = vsel %vm5487, %v4176, -inf
  %v5538 = vrot.slane %v5537, 4
  %v5539 = vmax.f32 %v5537, %v5538
  %v5540 = vrot.slane %v5539, 2
  %v5541 = vmax.f32 %v5539, %v5540
  %v5542 = vrot.slane %v5541, 1
  %v5543 = vmax.f32 %v5541, %v5542
  %v5544 = vsel %vm5487, %v4184, -inf
  %v5545 = vrot.slane %v5544, 4
  %v5546 = vmax.f32 %v5544, %v5545
  %v5547 = vrot.slane %v5546, 2
  %v5548 = vmax.f32 %v5546, %v5547
  %v5549 = vrot.slane %v5548, 1
  %v5550 = vmax.f32 %v5548, %v5549
  %v5551 = vsel %vm5487, %v4192, -inf
  %v5552 = vrot.slane %v5551, 4
  %v5553 = vmax.f32 %v5551, %v5552
  %v5554 = vrot.slane %v5553, 2
  %v5555 = vmax.f32 %v5553, %v5554
  %v5556 = vrot.slane %v5555, 1
  %v5557 = vmax.f32 %v5555, %v5556
  %v5558 = vsel %vm5487, %v4191, -inf
  %v5559 = vrot.slane %v5558, 4
  %v5560 = vmax.f32 %v5558, %v5559
  %v5561 = vrot.slane %v5560, 2
  %v5562 = vmax.f32 %v5560, %v5561
  %v5563 = vrot.slane %v5562, 1
  %v5564 = vmax.f32 %v5562, %v5563
  %v5565 = vsel %vm5487, %v4193, -inf
  %v5566 = vrot.slane %v5565, 4
  %v5567 = vmax.f32 %v5565, %v5566
  %v5568 = vrot.slane %v5567, 2
  %v5569 = vmax.f32 %v5567, %v5568
  %v5570 = vrot.slane %v5569, 1
  %v5571 = vmax.f32 %v5569, %v5570
  %v5572 = vsel %vm5487, %v4201, -inf
  %v5573 = vrot.slane %v5572, 4
  %v5574 = vmax.f32 %v5572, %v5573
  %v5575 = vrot.slane %v5574, 2
  %v5576 = vmax.f32 %v5574, %v5575
  %v5577 = vrot.slane %v5576, 1
  %v5578 = vmax.f32 %v5576, %v5577
  %v5579 = vsel %vm5487, %v4209, -inf
  %v5580 = vrot.slane %v5579, 4
  %v5581 = vmax.f32 %v5579, %v5580
  %v5582 = vrot.slane %v5581, 2
  %v5583 = vmax.f32 %v5581, %v5582
  %v5584 = vrot.slane %v5583, 1
  %v5585 = vmax.f32 %v5583, %v5584
  %v5586 = vsel %vm5487, %v4208, -inf
  %v5587 = vrot.slane %v5586, 4
  %v5588 = vmax.f32 %v5586, %v5587
  %v5589 = vrot.slane %v5588, 2
  %v5590 = vmax.f32 %v5588, %v5589
  %v5591 = vrot.slane %v5590, 1
  %v5592 = vmax.f32 %v5590, %v5591
  %v5593 = vsel %vm5487, %v4210, -inf
  %v5594 = vrot.slane %v5593, 4
  %v5595 = vmax.f32 %v5593, %v5594
  %v5596 = vrot.slane %v5595, 2
  %v5597 = vmax.f32 %v5595, %v5596
  %v5598 = vrot.slane %v5597, 1
  %v5599 = vmax.f32 %v5597, %v5598
  %v5600 = vsel %vm5487, %v4218, -inf
  %v5601 = vrot.slane %v5600, 4
  %v5602 = vmax.f32 %v5600, %v5601
  %v5603 = vrot.slane %v5602, 2
  %v5604 = vmax.f32 %v5602, %v5603
  %v5605 = vrot.slane %v5604, 1
  %v5606 = vmax.f32 %v5604, %v5605
  %v5607 = vsel %vm5487, %v4226, -inf
  %v5608 = vrot.slane %v5607, 4
  %v5609 = vmax.f32 %v5607, %v5608
  %v5610 = vrot.slane %v5609, 2
  %v5611 = vmax.f32 %v5609, %v5610
  %v5612 = vrot.slane %v5611, 1
  %v5613 = vmax.f32 %v5611, %v5612
  %v5614 = vsel %vm5487, %v4225, -inf
  %v5615 = vrot.slane %v5614, 4
  %v5616 = vmax.f32 %v5614, %v5615
  %v5617 = vrot.slane %v5616, 2
  %v5618 = vmax.f32 %v5616, %v5617
  %v5619 = vrot.slane %v5618, 1
  %v5620 = vmax.f32 %v5618, %v5619
  %v5621 = vsel %vm5487, %v4227, -inf
  %v5622 = vrot.slane %v5621, 4
  %v5623 = vmax.f32 %v5621, %v5622
  %v5624 = vrot.slane %v5623, 2
  %v5625 = vmax.f32 %v5623, %v5624
  %v5626 = vrot.slane %v5625, 1
  %v5627 = vmax.f32 %v5625, %v5626
  %v5628 = vsel %vm5487, %v4235, -inf
  %v5629 = vrot.slane %v5628, 4
  %v5630 = vmax.f32 %v5628, %v5629
  %v5631 = vrot.slane %v5630, 2
  %v5632 = vmax.f32 %v5630, %v5631
  %v5633 = vrot.slane %v5632, 1
  %v5634 = vmax.f32 %v5632, %v5633
  %v5635 = vsel %vm5487, %v4243, -inf
  %v5636 = vrot.slane %v5635, 4
  %v5637 = vmax.f32 %v5635, %v5636
  %v5638 = vrot.slane %v5637, 2
  %v5639 = vmax.f32 %v5637, %v5638
  %v5640 = vrot.slane %v5639, 1
  %v5641 = vmax.f32 %v5639, %v5640
  %v5642 = vsel %vm5487, %v4242, -inf
  %v5643 = vrot.slane %v5642, 4
  %v5644 = vmax.f32 %v5642, %v5643
  %v5645 = vrot.slane %v5644, 2
  %v5646 = vmax.f32 %v5644, %v5645
  %v5647 = vrot.slane %v5646, 1
  %v5648 = vmax.f32 %v5646, %v5647
  %v5649 = vsel %vm5487, %v4244, -inf
  %v5650 = vrot.slane %v5649, 4
  %v5651 = vmax.f32 %v5649, %v5650
  %v5652 = vrot.slane %v5651, 2
  %v5653 = vmax.f32 %v5651, %v5652
  %v5654 = vrot.slane %v5653, 1
  %v5655 = vmax.f32 %v5653, %v5654
  %v5656 = vsel %vm5487, %v4252, -inf
  %v5657 = vrot.slane %v5656, 4
  %v5658 = vmax.f32 %v5656, %v5657
  %v5659 = vrot.slane %v5658, 2
  %v5660 = vmax.f32 %v5658, %v5659
  %v5661 = vrot.slane %v5660, 1
  %v5662 = vmax.f32 %v5660, %v5661
  %v5663 = vsel %vm5487, %v4260, -inf
  %v5664 = vrot.slane %v5663, 4
  %v5665 = vmax.f32 %v5663, %v5664
  %v5666 = vrot.slane %v5665, 2
  %v5667 = vmax.f32 %v5665, %v5666
  %v5668 = vrot.slane %v5667, 1
  %v5669 = vmax.f32 %v5667, %v5668
  %v5670 = vsel %vm5487, %v4259, -inf
  %v5671 = vrot.slane %v5670, 4
  %v5672 = vmax.f32 %v5670, %v5671
  %v5673 = vrot.slane %v5672, 2
  %v5674 = vmax.f32 %v5672, %v5673
  %v5675 = vrot.slane %v5674, 1
  %v5676 = vmax.f32 %v5674, %v5675
  %v5677 = vsel %vm5487, %v4261, -inf
  %v5678 = vrot.slane %v5677, 4
  %v5679 = vmax.f32 %v5677, %v5678
  %v5680 = vrot.slane %v5679, 2
  %v5681 = vmax.f32 %v5679, %v5680
  %v5682 = vrot.slane %v5681, 1
  %v5683 = vmax.f32 %v5681, %v5682
  %v5684 = vsel %vm5487, %v4269, -inf
  %v5685 = vrot.slane %v5684, 4
  %v5686 = vmax.f32 %v5684, %v5685
  %v5687 = vrot.slane %v5686, 2
  %v5688 = vmax.f32 %v5686, %v5687
  %v5689 = vrot.slane %v5688, 1
  %v5690 = vmax.f32 %v5688, %v5689
  %v5691 = vsel %vm5487, %v4277, -inf
  %v5692 = vrot.slane %v5691, 4
  %v5693 = vmax.f32 %v5691, %v5692
  %v5694 = vrot.slane %v5693, 2
  %v5695 = vmax.f32 %v5693, %v5694
  %v5696 = vrot.slane %v5695, 1
  %v5697 = vmax.f32 %v5695, %v5696
  %v5698 = vsel %vm5487, %v4276, -inf
  %v5699 = vrot.slane %v5698, 4
  %v5700 = vmax.f32 %v5698, %v5699
  %v5701 = vrot.slane %v5700, 2
  %v5702 = vmax.f32 %v5700, %v5701
  %v5703 = vrot.slane %v5702, 1
  %v5704 = vmax.f32 %v5702, %v5703
  %v5705 = vsel %vm5487, %v4278, -inf
  %v5706 = vrot.slane %v5705, 4
  %v5707 = vmax.f32 %v5705, %v5706
  %v5708 = vrot.slane %v5707, 2
  %v5709 = vmax.f32 %v5707, %v5708
  %v5710 = vrot.slane %v5709, 1
  %v5711 = vmax.f32 %v5709, %v5710
  %v5712 = vsel %vm5487, %v4286, -inf
  %v5713 = vrot.slane %v5712, 4
  %v5714 = vmax.f32 %v5712, %v5713
  %v5715 = vrot.slane %v5714, 2
  %v5716 = vmax.f32 %v5714, %v5715
  %v5717 = vrot.slane %v5716, 1
  %v5718 = vmax.f32 %v5716, %v5717
  %v5719 = vsel %vm5487, %v4294, -inf
  %v5720 = vrot.slane %v5719, 4
  %v5721 = vmax.f32 %v5719, %v5720
  %v5722 = vrot.slane %v5721, 2
  %v5723 = vmax.f32 %v5721, %v5722
  %v5724 = vrot.slane %v5723, 1
  %v5725 = vmax.f32 %v5723, %v5724
  %v5726 = vsel %vm5487, %v4293, -inf
  %v5727 = vrot.slane %v5726, 4
  %v5728 = vmax.f32 %v5726, %v5727
  %v5729 = vrot.slane %v5728, 2
  %v5730 = vmax.f32 %v5728, %v5729
  %v5731 = vrot.slane %v5730, 1
  %v5732 = vmax.f32 %v5730, %v5731
  %v5733 = vsel %vm5487, %v4295, -inf
  %v5734 = vrot.slane %v5733, 4
  %v5735 = vmax.f32 %v5733, %v5734
  %v5736 = vrot.slane %v5735, 2
  %v5737 = vmax.f32 %v5735, %v5736
  %v5738 = vrot.slane %v5737, 1
  %v5739 = vmax.f32 %v5737, %v5738
  %v5740 = vsel %vm5487, %v4303, -inf
  %v5741 = vrot.slane %v5740, 4
  %v5742 = vmax.f32 %v5740, %v5741
  %v5743 = vrot.slane %v5742, 2
  %v5744 = vmax.f32 %v5742, %v5743
  %v5745 = vrot.slane %v5744, 1
  %v5746 = vmax.f32 %v5744, %v5745
  %v5747 = vsel %vm5487, %v4311, -inf
  %v5748 = vrot.slane %v5747, 4
  %v5749 = vmax.f32 %v5747, %v5748
  %v5750 = vrot.slane %v5749, 2
  %v5751 = vmax.f32 %v5749, %v5750
  %v5752 = vrot.slane %v5751, 1
  %v5753 = vmax.f32 %v5751, %v5752
  %v5754 = vsel %vm5487, %v4310, -inf
  %v5755 = vrot.slane %v5754, 4
  %v5756 = vmax.f32 %v5754, %v5755
  %v5757 = vrot.slane %v5756, 2
  %v5758 = vmax.f32 %v5756, %v5757
  %v5759 = vrot.slane %v5758, 1
  %v5760 = vmax.f32 %v5758, %v5759
  %v5761 = vsel %vm5487, %v4312, -inf
  %v5762 = vrot.slane %v5761, 4
  %v5763 = vmax.f32 %v5761, %v5762
  %v5764 = vrot.slane %v5763, 2
  %v5765 = vmax.f32 %v5763, %v5764
  %v5766 = vrot.slane %v5765, 1
  %v5767 = vmax.f32 %v5765, %v5766
  %v5768 = vsel %vm5487, %v4320, -inf
  %v5769 = vrot.slane %v5768, 4
  %v5770 = vmax.f32 %v5768, %v5769
  %v5771 = vrot.slane %v5770, 2
  %v5772 = vmax.f32 %v5770, %v5771
  %v5773 = vrot.slane %v5772, 1
  %v5774 = vmax.f32 %v5772, %v5773
  %v5775 = vsel %vm5487, %v4328, -inf
  %v5776 = vrot.slane %v5775, 4
  %v5777 = vmax.f32 %v5775, %v5776
  %v5778 = vrot.slane %v5777, 2
  %v5779 = vmax.f32 %v5777, %v5778
  %v5780 = vrot.slane %v5779, 1
  %v5781 = vmax.f32 %v5779, %v5780
  %v5782 = vsel %vm5487, %v4327, -inf
  %v5783 = vrot.slane %v5782, 4
  %v5784 = vmax.f32 %v5782, %v5783
  %v5785 = vrot.slane %v5784, 2
  %v5786 = vmax.f32 %v5784, %v5785
  %v5787 = vrot.slane %v5786, 1
  %v5788 = vmax.f32 %v5786, %v5787
  %v5789 = vsel %vm5487, %v4329, -inf
  %v5790 = vrot.slane %v5789, 4
  %v5791 = vmax.f32 %v5789, %v5790
  %v5792 = vrot.slane %v5791, 2
  %v5793 = vmax.f32 %v5791, %v5792
  %v5794 = vrot.slane %v5793, 1
  %v5795 = vmax.f32 %v5793, %v5794
  %v5796 = vsel %vm5487, %v4337, -inf
  %v5797 = vrot.slane %v5796, 4
  %v5798 = vmax.f32 %v5796, %v5797
  %v5799 = vrot.slane %v5798, 2
  %v5800 = vmax.f32 %v5798, %v5799
  %v5801 = vrot.slane %v5800, 1
  %v5802 = vmax.f32 %v5800, %v5801
  %v5803 = vsel %vm5487, %v4345, -inf
  %v5804 = vrot.slane %v5803, 4
  %v5805 = vmax.f32 %v5803, %v5804
  %v5806 = vrot.slane %v5805, 2
  %v5807 = vmax.f32 %v5805, %v5806
  %v5808 = vrot.slane %v5807, 1
  %v5809 = vmax.f32 %v5807, %v5808
  %v5810 = vsel %vm5487, %v4344, -inf
  %v5811 = vrot.slane %v5810, 4
  %v5812 = vmax.f32 %v5810, %v5811
  %v5813 = vrot.slane %v5812, 2
  %v5814 = vmax.f32 %v5812, %v5813
  %v5815 = vrot.slane %v5814, 1
  %v5816 = vmax.f32 %v5814, %v5815
  %v5817 = vsel %vm5487, %v4346, -inf
  %v5818 = vrot.slane %v5817, 4
  %v5819 = vmax.f32 %v5817, %v5818
  %v5820 = vrot.slane %v5819, 2
  %v5821 = vmax.f32 %v5819, %v5820
  %v5822 = vrot.slane %v5821, 1
  %v5823 = vmax.f32 %v5821, %v5822
  %v5824 = vsel %vm5487, %v4354, -inf
  %v5825 = vrot.slane %v5824, 4
  %v5826 = vmax.f32 %v5824, %v5825
  %v5827 = vrot.slane %v5826, 2
  %v5828 = vmax.f32 %v5826, %v5827
  %v5829 = vrot.slane %v5828, 1
  %v5830 = vmax.f32 %v5828, %v5829
  %v5831 = vsel %vm5487, %v4362, -inf
  %v5832 = vrot.slane %v5831, 4
  %v5833 = vmax.f32 %v5831, %v5832
  %v5834 = vrot.slane %v5833, 2
  %v5835 = vmax.f32 %v5833, %v5834
  %v5836 = vrot.slane %v5835, 1
  %v5837 = vmax.f32 %v5835, %v5836
  %v5838 = vsel %vm5487, %v4361, -inf
  %v5839 = vrot.slane %v5838, 4
  %v5840 = vmax.f32 %v5838, %v5839
  %v5841 = vrot.slane %v5840, 2
  %v5842 = vmax.f32 %v5840, %v5841
  %v5843 = vrot.slane %v5842, 1
  %v5844 = vmax.f32 %v5842, %v5843
  %v5845 = vsel %vm5487, %v4363, -inf
  %v5846 = vrot.slane %v5845, 4
  %v5847 = vmax.f32 %v5845, %v5846
  %v5848 = vrot.slane %v5847, 2
  %v5849 = vmax.f32 %v5847, %v5848
  %v5850 = vrot.slane %v5849, 1
  %v5851 = vmax.f32 %v5849, %v5850
  %v5852 = vsel %vm5487, %v4371, -inf
  %v5853 = vrot.slane %v5852, 4
  %v5854 = vmax.f32 %v5852, %v5853
  %v5855 = vrot.slane %v5854, 2
  %v5856 = vmax.f32 %v5854, %v5855
  %v5857 = vrot.slane %v5856, 1
  %v5858 = vmax.f32 %v5856, %v5857
  %v5859 = vsel %vm5487, %v4379, -inf
  %v5860 = vrot.slane %v5859, 4
  %v5861 = vmax.f32 %v5859, %v5860
  %v5862 = vrot.slane %v5861, 2
  %v5863 = vmax.f32 %v5861, %v5862
  %v5864 = vrot.slane %v5863, 1
  %v5865 = vmax.f32 %v5863, %v5864
  %v5866 = vsel %vm5487, %v4378, -inf
  %v5867 = vrot.slane %v5866, 4
  %v5868 = vmax.f32 %v5866, %v5867
  %v5869 = vrot.slane %v5868, 2
  %v5870 = vmax.f32 %v5868, %v5869
  %v5871 = vrot.slane %v5870, 1
  %v5872 = vmax.f32 %v5870, %v5871
  %v5873 = vsel %vm5487, %v4380, -inf
  %v5874 = vrot.slane %v5873, 4
  %v5875 = vmax.f32 %v5873, %v5874
  %v5876 = vrot.slane %v5875, 2
  %v5877 = vmax.f32 %v5875, %v5876
  %v5878 = vrot.slane %v5877, 1
  %v5879 = vmax.f32 %v5877, %v5878
  %v5880 = vsel %vm5487, %v4388, -inf
  %v5881 = vrot.slane %v5880, 4
  %v5882 = vmax.f32 %v5880, %v5881
  %v5883 = vrot.slane %v5882, 2
  %v5884 = vmax.f32 %v5882, %v5883
  %v5885 = vrot.slane %v5884, 1
  %v5886 = vmax.f32 %v5884, %v5885
  %v5887 = vsel %vm5487, %v4396, -inf
  %v5888 = vrot.slane %v5887, 4
  %v5889 = vmax.f32 %v5887, %v5888
  %v5890 = vrot.slane %v5889, 2
  %v5891 = vmax.f32 %v5889, %v5890
  %v5892 = vrot.slane %v5891, 1
  %v5893 = vmax.f32 %v5891, %v5892
  %v5894 = vsel %vm5487, %v4395, -inf
  %v5895 = vrot.slane %v5894, 4
  %v5896 = vmax.f32 %v5894, %v5895
  %v5897 = vrot.slane %v5896, 2
  %v5898 = vmax.f32 %v5896, %v5897
  %v5899 = vrot.slane %v5898, 1
  %v5900 = vmax.f32 %v5898, %v5899
  %v5901 = vsel %vm5487, %v4397, -inf
  %v5902 = vrot.slane %v5901, 4
  %v5903 = vmax.f32 %v5901, %v5902
  %v5904 = vrot.slane %v5903, 2
  %v5905 = vmax.f32 %v5903, %v5904
  %v5906 = vrot.slane %v5905, 1
  %v5907 = vmax.f32 %v5905, %v5906
  %v5908 = vsel %vm5487, %v4405, -inf
  %v5909 = vrot.slane %v5908, 4
  %v5910 = vmax.f32 %v5908, %v5909
  %v5911 = vrot.slane %v5910, 2
  %v5912 = vmax.f32 %v5910, %v5911
  %v5913 = vrot.slane %v5912, 1
  %v5914 = vmax.f32 %v5912, %v5913
  %v5915 = vsel %vm5487, %v4413, -inf
  %v5916 = vrot.slane %v5915, 4
  %v5917 = vmax.f32 %v5915, %v5916
  %v5918 = vrot.slane %v5917, 2
  %v5919 = vmax.f32 %v5917, %v5918
  %v5920 = vrot.slane %v5919, 1
  %v5921 = vmax.f32 %v5919, %v5920
  %v5922 = vsel %vm5487, %v4412, -inf
  %v5923 = vrot.slane %v5922, 4
  %v5924 = vmax.f32 %v5922, %v5923
  %v5925 = vrot.slane %v5924, 2
  %v5926 = vmax.f32 %v5924, %v5925
  %v5927 = vrot.slane %v5926, 1
  %v5928 = vmax.f32 %v5926, %v5927
  %v5929 = vsel %vm5487, %v4414, -inf
  %v5930 = vrot.slane %v5929, 4
  %v5931 = vmax.f32 %v5929, %v5930
  %v5932 = vrot.slane %v5931, 2
  %v5933 = vmax.f32 %v5931, %v5932
  %v5934 = vrot.slane %v5933, 1
  %v5935 = vmax.f32 %v5933, %v5934
  %v5936 = vsel %vm5487, %v4422, -inf
  %v5937 = vrot.slane %v5936, 4
  %v5938 = vmax.f32 %v5936, %v5937
  %v5939 = vrot.slane %v5938, 2
  %v5940 = vmax.f32 %v5938, %v5939
  %v5941 = vrot.slane %v5940, 1
  %v5942 = vmax.f32 %v5940, %v5941
  %v5943 = vsel %vm5487, %v4430, -inf
  %v5944 = vrot.slane %v5943, 4
  %v5945 = vmax.f32 %v5943, %v5944
  %v5946 = vrot.slane %v5945, 2
  %v5947 = vmax.f32 %v5945, %v5946
  %v5948 = vrot.slane %v5947, 1
  %v5949 = vmax.f32 %v5947, %v5948
  %v5950 = vsel %vm5487, %v4429, -inf
  %v5951 = vrot.slane %v5950, 4
  %v5952 = vmax.f32 %v5950, %v5951
  %v5953 = vrot.slane %v5952, 2
  %v5954 = vmax.f32 %v5952, %v5953
  %v5955 = vrot.slane %v5954, 1
  %v5956 = vmax.f32 %v5954, %v5955
  %v5957 = vsel %vm5487, %v4431, -inf
  %v5958 = vrot.slane %v5957, 4
  %v5959 = vmax.f32 %v5957, %v5958
  %v5960 = vrot.slane %v5959, 2
  %v5961 = vmax.f32 %v5959, %v5960
  %v5962 = vrot.slane %v5961, 1
  %v5963 = vmax.f32 %v5961, %v5962
  %v5964 = vsel %vm5487, %v4439, -inf
  %v5965 = vrot.slane %v5964, 4
  %v5966 = vmax.f32 %v5964, %v5965
  %v5967 = vrot.slane %v5966, 2
  %v5968 = vmax.f32 %v5966, %v5967
  %v5969 = vrot.slane %v5968, 1
  %v5970 = vmax.f32 %v5968, %v5969
  %v5971 = vsel %vm5487, %v4447, -inf
  %v5972 = vrot.slane %v5971, 4
  %v5973 = vmax.f32 %v5971, %v5972
  %v5974 = vrot.slane %v5973, 2
  %v5975 = vmax.f32 %v5973, %v5974
  %v5976 = vrot.slane %v5975, 1
  %v5977 = vmax.f32 %v5975, %v5976
  %v5978 = vsel %vm5487, %v4446, -inf
  %v5979 = vrot.slane %v5978, 4
  %v5980 = vmax.f32 %v5978, %v5979
  %v5981 = vrot.slane %v5980, 2
  %v5982 = vmax.f32 %v5980, %v5981
  %v5983 = vrot.slane %v5982, 1
  %v5984 = vmax.f32 %v5982, %v5983
  %v5985 = vsel %vm5487, %v4448, -inf
  %v5986 = vrot.slane %v5985, 4
  %v5987 = vmax.f32 %v5985, %v5986
  %v5988 = vrot.slane %v5987, 2
  %v5989 = vmax.f32 %v5987, %v5988
  %v5990 = vrot.slane %v5989, 1
  %v5991 = vmax.f32 %v5989, %v5990
  %v5992 = vsel %vm5487, %v4456, -inf
  %v5993 = vrot.slane %v5992, 4
  %v5994 = vmax.f32 %v5992, %v5993
  %v5995 = vrot.slane %v5994, 2
  %v5996 = vmax.f32 %v5994, %v5995
  %v5997 = vrot.slane %v5996, 1
  %v5998 = vmax.f32 %v5996, %v5997
  %v5999 = vsel %vm5487, %v4464, -inf
  %v6000 = vrot.slane %v5999, 4
  %v6001 = vmax.f32 %v5999, %v6000
  %v6002 = vrot.slane %v6001, 2
  %v6003 = vmax.f32 %v6001, %v6002
  %v6004 = vrot.slane %v6003, 1
  %v6005 = vmax.f32 %v6003, %v6004
  %v6006 = vsel %vm5487, %v4463, -inf
  %v6007 = vrot.slane %v6006, 4
  %v6008 = vmax.f32 %v6006, %v6007
  %v6009 = vrot.slane %v6008, 2
  %v6010 = vmax.f32 %v6008, %v6009
  %v6011 = vrot.slane %v6010, 1
  %v6012 = vmax.f32 %v6010, %v6011
  %v6013 = vsel %vm5487, %v4465, -inf
  %v6014 = vrot.slane %v6013, 4
  %v6015 = vmax.f32 %v6013, %v6014
  %v6016 = vrot.slane %v6015, 2
  %v6017 = vmax.f32 %v6015, %v6016
  %v6018 = vrot.slane %v6017, 1
  %v6019 = vmax.f32 %v6017, %v6018
  %v6020 = vsel %vm5487, %v4473, -inf
  %v6021 = vrot.slane %v6020, 4
  %v6022 = vmax.f32 %v6020, %v6021
  %v6023 = vrot.slane %v6022, 2
  %v6024 = vmax.f32 %v6022, %v6023
  %v6025 = vrot.slane %v6024, 1
  %v6026 = vmax.f32 %v6024, %v6025
  %v6027 = vsel %vm5487, %v4481, -inf
  %v6028 = vrot.slane %v6027, 4
  %v6029 = vmax.f32 %v6027, %v6028
  %v6030 = vrot.slane %v6029, 2
  %v6031 = vmax.f32 %v6029, %v6030
  %v6032 = vrot.slane %v6031, 1
  %v6033 = vmax.f32 %v6031, %v6032
  %v6034 = vsel %vm5487, %v4480, -inf
  %v6035 = vrot.slane %v6034, 4
  %v6036 = vmax.f32 %v6034, %v6035
  %v6037 = vrot.slane %v6036, 2
  %v6038 = vmax.f32 %v6036, %v6037
  %v6039 = vrot.slane %v6038, 1
  %v6040 = vmax.f32 %v6038, %v6039
  %v6041 = vsel %vm5487, %v4482, -inf
  %v6042 = vrot.slane %v6041, 4
  %v6043 = vmax.f32 %v6041, %v6042
  %v6044 = vrot.slane %v6043, 2
  %v6045 = vmax.f32 %v6043, %v6044
  %v6046 = vrot.slane %v6045, 1
  %v6047 = vmax.f32 %v6045, %v6046
  %v6048 = vsel %vm5487, %v4490, -inf
  %v6049 = vrot.slane %v6048, 4
  %v6050 = vmax.f32 %v6048, %v6049
  %v6051 = vrot.slane %v6050, 2
  %v6052 = vmax.f32 %v6050, %v6051
  %v6053 = vrot.slane %v6052, 1
  %v6054 = vmax.f32 %v6052, %v6053
  %v6055 = vsel %vm5487, %v4498, -inf
  %v6056 = vrot.slane %v6055, 4
  %v6057 = vmax.f32 %v6055, %v6056
  %v6058 = vrot.slane %v6057, 2
  %v6059 = vmax.f32 %v6057, %v6058
  %v6060 = vrot.slane %v6059, 1
  %v6061 = vmax.f32 %v6059, %v6060
  %v6062 = vsel %vm5487, %v4497, -inf
  %v6063 = vrot.slane %v6062, 4
  %v6064 = vmax.f32 %v6062, %v6063
  %v6065 = vrot.slane %v6064, 2
  %v6066 = vmax.f32 %v6064, %v6065
  %v6067 = vrot.slane %v6066, 1
  %v6068 = vmax.f32 %v6066, %v6067
  %v6069 = vsel %vm5487, %v4499, -inf
  %v6070 = vrot.slane %v6069, 4
  %v6071 = vmax.f32 %v6069, %v6070
  %v6072 = vrot.slane %v6071, 2
  %v6073 = vmax.f32 %v6071, %v6072
  %v6074 = vrot.slane %v6073, 1
  %v6075 = vmax.f32 %v6073, %v6074
  %v6076 = vsel %vm5487, %v4507, -inf
  %v6077 = vrot.slane %v6076, 4
  %v6078 = vmax.f32 %v6076, %v6077
  %v6079 = vrot.slane %v6078, 2
  %v6080 = vmax.f32 %v6078, %v6079
  %v6081 = vrot.slane %v6080, 1
  %v6082 = vmax.f32 %v6080, %v6081
  %v6083 = vsel %vm5487, %v4515, -inf
  %v6084 = vrot.slane %v6083, 4
  %v6085 = vmax.f32 %v6083, %v6084
  %v6086 = vrot.slane %v6085, 2
  %v6087 = vmax.f32 %v6085, %v6086
  %v6088 = vrot.slane %v6087, 1
  %v6089 = vmax.f32 %v6087, %v6088
  %v6090 = vsel %vm5487, %v4514, -inf
  %v6091 = vrot.slane %v6090, 4
  %v6092 = vmax.f32 %v6090, %v6091
  %v6093 = vrot.slane %v6092, 2
  %v6094 = vmax.f32 %v6092, %v6093
  %v6095 = vrot.slane %v6094, 1
  %v6096 = vmax.f32 %v6094, %v6095
  %v6097 = vsel %vm5487, %v4516, -inf
  %v6098 = vrot.slane %v6097, 4
  %v6099 = vmax.f32 %v6097, %v6098
  %v6100 = vrot.slane %v6099, 2
  %v6101 = vmax.f32 %v6099, %v6100
  %v6102 = vrot.slane %v6101, 1
  %v6103 = vmax.f32 %v6101, %v6102
  %v6104 = vsel %vm5487, %v4524, -inf
  %v6105 = vrot.slane %v6104, 4
  %v6106 = vmax.f32 %v6104, %v6105
  %v6107 = vrot.slane %v6106, 2
  %v6108 = vmax.f32 %v6106, %v6107
  %v6109 = vrot.slane %v6108, 1
  %v6110 = vmax.f32 %v6108, %v6109
  %v6111 = vsel %vm5487, %v4532, -inf
  %v6112 = vrot.slane %v6111, 4
  %v6113 = vmax.f32 %v6111, %v6112
  %v6114 = vrot.slane %v6113, 2
  %v6115 = vmax.f32 %v6113, %v6114
  %v6116 = vrot.slane %v6115, 1
  %v6117 = vmax.f32 %v6115, %v6116
  %v6118 = vsel %vm5487, %v4531, -inf
  %v6119 = vrot.slane %v6118, 4
  %v6120 = vmax.f32 %v6118, %v6119
  %v6121 = vrot.slane %v6120, 2
  %v6122 = vmax.f32 %v6120, %v6121
  %v6123 = vrot.slane %v6122, 1
  %v6124 = vmax.f32 %v6122, %v6123
  %v6125 = vsel %vm5487, %v4533, -inf
  %v6126 = vrot.slane %v6125, 4
  %v6127 = vmax.f32 %v6125, %v6126
  %v6128 = vrot.slane %v6127, 2
  %v6129 = vmax.f32 %v6127, %v6128
  %v6130 = vrot.slane %v6129, 1
  %v6131 = vmax.f32 %v6129, %v6130
  %v6132 = vsel %vm5487, %v4541, -inf
  %v6133 = vrot.slane %v6132, 4
  %v6134 = vmax.f32 %v6132, %v6133
  %v6135 = vrot.slane %v6134, 2
  %v6136 = vmax.f32 %v6134, %v6135
  %v6137 = vrot.slane %v6136, 1
  %v6138 = vmax.f32 %v6136, %v6137
  %v6139 = vsel %vm5487, %v4549, -inf
  %v6140 = vrot.slane %v6139, 4
  %v6141 = vmax.f32 %v6139, %v6140
  %v6142 = vrot.slane %v6141, 2
  %v6143 = vmax.f32 %v6141, %v6142
  %v6144 = vrot.slane %v6143, 1
  %v6145 = vmax.f32 %v6143, %v6144
  %v6146 = vsel %vm5487, %v4548, -inf
  %v6147 = vrot.slane %v6146, 4
  %v6148 = vmax.f32 %v6146, %v6147
  %v6149 = vrot.slane %v6148, 2
  %v6150 = vmax.f32 %v6148, %v6149
  %v6151 = vrot.slane %v6150, 1
  %v6152 = vmax.f32 %v6150, %v6151
  %v6153 = vsel %vm5487, %v4550, -inf
  %v6154 = vrot.slane %v6153, 4
  %v6155 = vmax.f32 %v6153, %v6154
  %v6156 = vrot.slane %v6155, 2
  %v6157 = vmax.f32 %v6155, %v6156
  %v6158 = vrot.slane %v6157, 1
  %v6159 = vmax.f32 %v6157, %v6158
  %v6160 = vsel %vm5487, %v4558, -inf
  %v6161 = vrot.slane %v6160, 4
  %v6162 = vmax.f32 %v6160, %v6161
  %v6163 = vrot.slane %v6162, 2
  %v6164 = vmax.f32 %v6162, %v6163
  %v6165 = vrot.slane %v6164, 1
  %v6166 = vmax.f32 %v6164, %v6165
  %v6167 = vsel %vm5487, %v4566, -inf
  %v6168 = vrot.slane %v6167, 4
  %v6169 = vmax.f32 %v6167, %v6168
  %v6170 = vrot.slane %v6169, 2
  %v6171 = vmax.f32 %v6169, %v6170
  %v6172 = vrot.slane %v6171, 1
  %v6173 = vmax.f32 %v6171, %v6172
  %v6174 = vsel %vm5487, %v4565, -inf
  %v6175 = vrot.slane %v6174, 4
  %v6176 = vmax.f32 %v6174, %v6175
  %v6177 = vrot.slane %v6176, 2
  %v6178 = vmax.f32 %v6176, %v6177
  %v6179 = vrot.slane %v6178, 1
  %v6180 = vmax.f32 %v6178, %v6179
  %v6181 = vsel %vm5487, %v4567, -inf
  %v6182 = vrot.slane %v6181, 4
  %v6183 = vmax.f32 %v6181, %v6182
  %v6184 = vrot.slane %v6183, 2
  %v6185 = vmax.f32 %v6183, %v6184
  %v6186 = vrot.slane %v6185, 1
  %v6187 = vmax.f32 %v6185, %v6186
  %v6188 = vsel %vm5487, %v4575, -inf
  %v6189 = vrot.slane %v6188, 4
  %v6190 = vmax.f32 %v6188, %v6189
  %v6191 = vrot.slane %v6190, 2
  %v6192 = vmax.f32 %v6190, %v6191
  %v6193 = vrot.slane %v6192, 1
  %v6194 = vmax.f32 %v6192, %v6193
  %v6195 = vsel %vm5487, %v4583, -inf
  %v6196 = vrot.slane %v6195, 4
  %v6197 = vmax.f32 %v6195, %v6196
  %v6198 = vrot.slane %v6197, 2
  %v6199 = vmax.f32 %v6197, %v6198
  %v6200 = vrot.slane %v6199, 1
  %v6201 = vmax.f32 %v6199, %v6200
  %v6202 = vsel %vm5487, %v4582, -inf
  %v6203 = vrot.slane %v6202, 4
  %v6204 = vmax.f32 %v6202, %v6203
  %v6205 = vrot.slane %v6204, 2
  %v6206 = vmax.f32 %v6204, %v6205
  %v6207 = vrot.slane %v6206, 1
  %v6208 = vmax.f32 %v6206, %v6207
  %v6209 = vsel %vm5487, %v4584, -inf
  %v6210 = vrot.slane %v6209, 4
  %v6211 = vmax.f32 %v6209, %v6210
  %v6212 = vrot.slane %v6211, 2
  %v6213 = vmax.f32 %v6211, %v6212
  %v6214 = vrot.slane %v6213, 1
  %v6215 = vmax.f32 %v6213, %v6214
  %v6216 = vsel %vm5487, %v4592, -inf
  %v6217 = vrot.slane %v6216, 4
  %v6218 = vmax.f32 %v6216, %v6217
  %v6219 = vrot.slane %v6218, 2
  %v6220 = vmax.f32 %v6218, %v6219
  %v6221 = vrot.slane %v6220, 1
  %v6222 = vmax.f32 %v6220, %v6221
  %v6223 = vsel %vm5487, %v4600, -inf
  %v6224 = vrot.slane %v6223, 4
  %v6225 = vmax.f32 %v6223, %v6224
  %v6226 = vrot.slane %v6225, 2
  %v6227 = vmax.f32 %v6225, %v6226
  %v6228 = vrot.slane %v6227, 1
  %v6229 = vmax.f32 %v6227, %v6228
  %v6230 = vsel %vm5487, %v4599, -inf
  %v6231 = vrot.slane %v6230, 4
  %v6232 = vmax.f32 %v6230, %v6231
  %v6233 = vrot.slane %v6232, 2
  %v6234 = vmax.f32 %v6232, %v6233
  %v6235 = vrot.slane %v6234, 1
  %v6236 = vmax.f32 %v6234, %v6235
  %v6237 = vsel %vm5487, %v4601, -inf
  %v6238 = vrot.slane %v6237, 4
  %v6239 = vmax.f32 %v6237, %v6238
  %v6240 = vrot.slane %v6239, 2
  %v6241 = vmax.f32 %v6239, %v6240
  %v6242 = vrot.slane %v6241, 1
  %v6243 = vmax.f32 %v6241, %v6242
  %v6244 = vsel %vm5487, %v4609, -inf
  %v6245 = vrot.slane %v6244, 4
  %v6246 = vmax.f32 %v6244, %v6245
  %v6247 = vrot.slane %v6246, 2
  %v6248 = vmax.f32 %v6246, %v6247
  %v6249 = vrot.slane %v6248, 1
  %v6250 = vmax.f32 %v6248, %v6249
  %v6251 = vsel %vm5487, %v4617, -inf
  %v6252 = vrot.slane %v6251, 4
  %v6253 = vmax.f32 %v6251, %v6252
  %v6254 = vrot.slane %v6253, 2
  %v6255 = vmax.f32 %v6253, %v6254
  %v6256 = vrot.slane %v6255, 1
  %v6257 = vmax.f32 %v6255, %v6256
  %v6258 = vsel %vm5487, %v4616, -inf
  %v6259 = vrot.slane %v6258, 4
  %v6260 = vmax.f32 %v6258, %v6259
  %v6261 = vrot.slane %v6260, 2
  %v6262 = vmax.f32 %v6260, %v6261
  %v6263 = vrot.slane %v6262, 1
  %v6264 = vmax.f32 %v6262, %v6263
  %v6265 = vsel %vm5487, %v4618, -inf
  %v6266 = vrot.slane %v6265, 4
  %v6267 = vmax.f32 %v6265, %v6266
  %v6268 = vrot.slane %v6267, 2
  %v6269 = vmax.f32 %v6267, %v6268
  %v6270 = vrot.slane %v6269, 1
  %v6271 = vmax.f32 %v6269, %v6270
  %v6272 = vsel %vm5487, %v4626, -inf
  %v6273 = vrot.slane %v6272, 4
  %v6274 = vmax.f32 %v6272, %v6273
  %v6275 = vrot.slane %v6274, 2
  %v6276 = vmax.f32 %v6274, %v6275
  %v6277 = vrot.slane %v6276, 1
  %v6278 = vmax.f32 %v6276, %v6277
  %v6279 = vsel %vm5487, %v4634, -inf
  %v6280 = vrot.slane %v6279, 4
  %v6281 = vmax.f32 %v6279, %v6280
  %v6282 = vrot.slane %v6281, 2
  %v6283 = vmax.f32 %v6281, %v6282
  %v6284 = vrot.slane %v6283, 1
  %v6285 = vmax.f32 %v6283, %v6284
  %v6286 = vsel %vm5487, %v4633, -inf
  %v6287 = vrot.slane %v6286, 4
  %v6288 = vmax.f32 %v6286, %v6287
  %v6289 = vrot.slane %v6288, 2
  %v6290 = vmax.f32 %v6288, %v6289
  %v6291 = vrot.slane %v6290, 1
  %v6292 = vmax.f32 %v6290, %v6291
  %v6293 = vsel %vm5487, %v4635, -inf
  %v6294 = vrot.slane %v6293, 4
  %v6295 = vmax.f32 %v6293, %v6294
  %v6296 = vrot.slane %v6295, 2
  %v6297 = vmax.f32 %v6295, %v6296
  %v6298 = vrot.slane %v6297, 1
  %v6299 = vmax.f32 %v6297, %v6298
  %v6300 = vsel %vm5487, %v4643, -inf
  %v6301 = vrot.slane %v6300, 4
  %v6302 = vmax.f32 %v6300, %v6301
  %v6303 = vrot.slane %v6302, 2
  %v6304 = vmax.f32 %v6302, %v6303
  %v6305 = vrot.slane %v6304, 1
  %v6306 = vmax.f32 %v6304, %v6305
  %v6307 = vsel %vm5487, %v4651, -inf
  %v6308 = vrot.slane %v6307, 4
  %v6309 = vmax.f32 %v6307, %v6308
  %v6310 = vrot.slane %v6309, 2
  %v6311 = vmax.f32 %v6309, %v6310
  %v6312 = vrot.slane %v6311, 1
  %v6313 = vmax.f32 %v6311, %v6312
  %v6314 = vsel %vm5487, %v4650, -inf
  %v6315 = vrot.slane %v6314, 4
  %v6316 = vmax.f32 %v6314, %v6315
  %v6317 = vrot.slane %v6316, 2
  %v6318 = vmax.f32 %v6316, %v6317
  %v6319 = vrot.slane %v6318, 1
  %v6320 = vmax.f32 %v6318, %v6319
  %v6321 = vsel %vm5487, %v4652, -inf
  %v6322 = vrot.slane %v6321, 4
  %v6323 = vmax.f32 %v6321, %v6322
  %v6324 = vrot.slane %v6323, 2
  %v6325 = vmax.f32 %v6323, %v6324
  %v6326 = vrot.slane %v6325, 1
  %v6327 = vmax.f32 %v6325, %v6326
  %v6328 = vsel %vm5487, %v4660, -inf
  %v6329 = vrot.slane %v6328, 4
  %v6330 = vmax.f32 %v6328, %v6329
  %v6331 = vrot.slane %v6330, 2
  %v6332 = vmax.f32 %v6330, %v6331
  %v6333 = vrot.slane %v6332, 1
  %v6334 = vmax.f32 %v6332, %v6333
  %v6335 = vsel %vm5487, %v4668, -inf
  %v6336 = vrot.slane %v6335, 4
  %v6337 = vmax.f32 %v6335, %v6336
  %v6338 = vrot.slane %v6337, 2
  %v6339 = vmax.f32 %v6337, %v6338
  %v6340 = vrot.slane %v6339, 1
  %v6341 = vmax.f32 %v6339, %v6340
  %v6342 = vsel %vm5487, %v4667, -inf
  %v6343 = vrot.slane %v6342, 4
  %v6344 = vmax.f32 %v6342, %v6343
  %v6345 = vrot.slane %v6344, 2
  %v6346 = vmax.f32 %v6344, %v6345
  %v6347 = vrot.slane %v6346, 1
  %v6348 = vmax.f32 %v6346, %v6347
  %v6349 = vsel %vm5487, %v4669, -inf
  %v6350 = vrot.slane %v6349, 4
  %v6351 = vmax.f32 %v6349, %v6350
  %v6352 = vrot.slane %v6351, 2
  %v6353 = vmax.f32 %v6351, %v6352
  %v6354 = vrot.slane %v6353, 1
  %v6355 = vmax.f32 %v6353, %v6354
  %v6356 = vsel %vm5487, %v4677, -inf
  %v6357 = vrot.slane %v6356, 4
  %v6358 = vmax.f32 %v6356, %v6357
  %v6359 = vrot.slane %v6358, 2
  %v6360 = vmax.f32 %v6358, %v6359
  %v6361 = vrot.slane %v6360, 1
  %v6362 = vmax.f32 %v6360, %v6361
  %v6363 = vsel %vm5487, %v4685, -inf
  %v6364 = vrot.slane %v6363, 4
  %v6365 = vmax.f32 %v6363, %v6364
  %v6366 = vrot.slane %v6365, 2
  %v6367 = vmax.f32 %v6365, %v6366
  %v6368 = vrot.slane %v6367, 1
  %v6369 = vmax.f32 %v6367, %v6368
  %v6370 = vsel %vm5487, %v4684, -inf
  %v6371 = vrot.slane %v6370, 4
  %v6372 = vmax.f32 %v6370, %v6371
  %v6373 = vrot.slane %v6372, 2
  %v6374 = vmax.f32 %v6372, %v6373
  %v6375 = vrot.slane %v6374, 1
  %v6376 = vmax.f32 %v6374, %v6375
  %v6377 = vsel %vm5487, %v4686, -inf
  %v6378 = vrot.slane %v6377, 4
  %v6379 = vmax.f32 %v6377, %v6378
  %v6380 = vrot.slane %v6379, 2
  %v6381 = vmax.f32 %v6379, %v6380
  %v6382 = vrot.slane %v6381, 1
  %v6383 = vmax.f32 %v6381, %v6382
  %v6384 = vsel %vm5487, %v4694, -inf
  %v6385 = vrot.slane %v6384, 4
  %v6386 = vmax.f32 %v6384, %v6385
  %v6387 = vrot.slane %v6386, 2
  %v6388 = vmax.f32 %v6386, %v6387
  %v6389 = vrot.slane %v6388, 1
  %v6390 = vmax.f32 %v6388, %v6389
  %v6391 = vsel %vm5487, %v4702, -inf
  %v6392 = vrot.slane %v6391, 4
  %v6393 = vmax.f32 %v6391, %v6392
  %v6394 = vrot.slane %v6393, 2
  %v6395 = vmax.f32 %v6393, %v6394
  %v6396 = vrot.slane %v6395, 1
  %v6397 = vmax.f32 %v6395, %v6396
  %v6398 = vsel %vm5487, %v4701, -inf
  %v6399 = vrot.slane %v6398, 4
  %v6400 = vmax.f32 %v6398, %v6399
  %v6401 = vrot.slane %v6400, 2
  %v6402 = vmax.f32 %v6400, %v6401
  %v6403 = vrot.slane %v6402, 1
  %v6404 = vmax.f32 %v6402, %v6403
  %v6405 = vsel %vm5487, %v4703, -inf
  %v6406 = vrot.slane %v6405, 4
  %v6407 = vmax.f32 %v6405, %v6406
  %v6408 = vrot.slane %v6407, 2
  %v6409 = vmax.f32 %v6407, %v6408
  %v6410 = vrot.slane %v6409, 1
  %v6411 = vmax.f32 %v6409, %v6410
  %v6412 = vsel %vm5487, %v4711, -inf
  %v6413 = vrot.slane %v6412, 4
  %v6414 = vmax.f32 %v6412, %v6413
  %v6415 = vrot.slane %v6414, 2
  %v6416 = vmax.f32 %v6414, %v6415
  %v6417 = vrot.slane %v6416, 1
  %v6418 = vmax.f32 %v6416, %v6417
  %v6419 = vsel %vm5487, %v4719, -inf
  %v6420 = vrot.slane %v6419, 4
  %v6421 = vmax.f32 %v6419, %v6420
  %v6422 = vrot.slane %v6421, 2
  %v6423 = vmax.f32 %v6421, %v6422
  %v6424 = vrot.slane %v6423, 1
  %v6425 = vmax.f32 %v6423, %v6424
  %v6426 = vsel %vm5487, %v4718, -inf
  %v6427 = vrot.slane %v6426, 4
  %v6428 = vmax.f32 %v6426, %v6427
  %v6429 = vrot.slane %v6428, 2
  %v6430 = vmax.f32 %v6428, %v6429
  %v6431 = vrot.slane %v6430, 1
  %v6432 = vmax.f32 %v6430, %v6431
  %v6433 = vsel %vm5487, %v4720, -inf
  %v6434 = vrot.slane %v6433, 4
  %v6435 = vmax.f32 %v6433, %v6434
  %v6436 = vrot.slane %v6435, 2
  %v6437 = vmax.f32 %v6435, %v6436
  %v6438 = vrot.slane %v6437, 1
  %v6439 = vmax.f32 %v6437, %v6438
  %v6440 = vsel %vm5487, %v4728, -inf
  %v6441 = vrot.slane %v6440, 4
  %v6442 = vmax.f32 %v6440, %v6441
  %v6443 = vrot.slane %v6442, 2
  %v6444 = vmax.f32 %v6442, %v6443
  %v6445 = vrot.slane %v6444, 1
  %v6446 = vmax.f32 %v6444, %v6445
  %v6447 = vsel %vm5487, %v4736, -inf
  %v6448 = vrot.slane %v6447, 4
  %v6449 = vmax.f32 %v6447, %v6448
  %v6450 = vrot.slane %v6449, 2
  %v6451 = vmax.f32 %v6449, %v6450
  %v6452 = vrot.slane %v6451, 1
  %v6453 = vmax.f32 %v6451, %v6452
  %v6454 = vsel %vm5487, %v4735, -inf
  %v6455 = vrot.slane %v6454, 4
  %v6456 = vmax.f32 %v6454, %v6455
  %v6457 = vrot.slane %v6456, 2
  %v6458 = vmax.f32 %v6456, %v6457
  %v6459 = vrot.slane %v6458, 1
  %v6460 = vmax.f32 %v6458, %v6459
  %v6461 = vsel %vm5487, %v4737, -inf
  %v6462 = vrot.slane %v6461, 4
  %v6463 = vmax.f32 %v6461, %v6462
  %v6464 = vrot.slane %v6463, 2
  %v6465 = vmax.f32 %v6463, %v6464
  %v6466 = vrot.slane %v6465, 1
  %v6467 = vmax.f32 %v6465, %v6466
  %v6468 = vsel %vm5487, %v4745, -inf
  %v6469 = vrot.slane %v6468, 4
  %v6470 = vmax.f32 %v6468, %v6469
  %v6471 = vrot.slane %v6470, 2
  %v6472 = vmax.f32 %v6470, %v6471
  %v6473 = vrot.slane %v6472, 1
  %v6474 = vmax.f32 %v6472, %v6473
  %v6475 = vsel %vm5487, %v4753, -inf
  %v6476 = vrot.slane %v6475, 4
  %v6477 = vmax.f32 %v6475, %v6476
  %v6478 = vrot.slane %v6477, 2
  %v6479 = vmax.f32 %v6477, %v6478
  %v6480 = vrot.slane %v6479, 1
  %v6481 = vmax.f32 %v6479, %v6480
  %v6482 = vsel %vm5487, %v4752, -inf
  %v6483 = vrot.slane %v6482, 4
  %v6484 = vmax.f32 %v6482, %v6483
  %v6485 = vrot.slane %v6484, 2
  %v6486 = vmax.f32 %v6484, %v6485
  %v6487 = vrot.slane %v6486, 1
  %v6488 = vmax.f32 %v6486, %v6487
  %v6489 = vsel %vm5487, %v4754, -inf
  %v6490 = vrot.slane %v6489, 4
  %v6491 = vmax.f32 %v6489, %v6490
  %v6492 = vrot.slane %v6491, 2
  %v6493 = vmax.f32 %v6491, %v6492
  %v6494 = vrot.slane %v6493, 1
  %v6495 = vmax.f32 %v6493, %v6494
  %v6496 = vsel %vm5487, %v4762, -inf
  %v6497 = vrot.slane %v6496, 4
  %v6498 = vmax.f32 %v6496, %v6497
  %v6499 = vrot.slane %v6498, 2
  %v6500 = vmax.f32 %v6498, %v6499
  %v6501 = vrot.slane %v6500, 1
  %v6502 = vmax.f32 %v6500, %v6501
  %v6503 = vsel %vm5487, %v4770, -inf
  %v6504 = vrot.slane %v6503, 4
  %v6505 = vmax.f32 %v6503, %v6504
  %v6506 = vrot.slane %v6505, 2
  %v6507 = vmax.f32 %v6505, %v6506
  %v6508 = vrot.slane %v6507, 1
  %v6509 = vmax.f32 %v6507, %v6508
  %v6510 = vsel %vm5487, %v4769, -inf
  %v6511 = vrot.slane %v6510, 4
  %v6512 = vmax.f32 %v6510, %v6511
  %v6513 = vrot.slane %v6512, 2
  %v6514 = vmax.f32 %v6512, %v6513
  %v6515 = vrot.slane %v6514, 1
  %v6516 = vmax.f32 %v6514, %v6515
  %v6517 = vsel %vm5487, %v4771, -inf
  %v6518 = vrot.slane %v6517, 4
  %v6519 = vmax.f32 %v6517, %v6518
  %v6520 = vrot.slane %v6519, 2
  %v6521 = vmax.f32 %v6519, %v6520
  %v6522 = vrot.slane %v6521, 1
  %v6523 = vmax.f32 %v6521, %v6522
  %v6524 = vsel %vm5487, %v4779, -inf
  %v6525 = vrot.slane %v6524, 4
  %v6526 = vmax.f32 %v6524, %v6525
  %v6527 = vrot.slane %v6526, 2
  %v6528 = vmax.f32 %v6526, %v6527
  %v6529 = vrot.slane %v6528, 1
  %v6530 = vmax.f32 %v6528, %v6529
  %v6531 = vsel %vm5487, %v4787, -inf
  %v6532 = vrot.slane %v6531, 4
  %v6533 = vmax.f32 %v6531, %v6532
  %v6534 = vrot.slane %v6533, 2
  %v6535 = vmax.f32 %v6533, %v6534
  %v6536 = vrot.slane %v6535, 1
  %v6537 = vmax.f32 %v6535, %v6536
  %v6538 = vsel %vm5487, %v4786, -inf
  %v6539 = vrot.slane %v6538, 4
  %v6540 = vmax.f32 %v6538, %v6539
  %v6541 = vrot.slane %v6540, 2
  %v6542 = vmax.f32 %v6540, %v6541
  %v6543 = vrot.slane %v6542, 1
  %v6544 = vmax.f32 %v6542, %v6543
  %v6545 = vsel %vm5487, %v4788, -inf
  %v6546 = vrot.slane %v6545, 4
  %v6547 = vmax.f32 %v6545, %v6546
  %v6548 = vrot.slane %v6547, 2
  %v6549 = vmax.f32 %v6547, %v6548
  %v6550 = vrot.slane %v6549, 1
  %v6551 = vmax.f32 %v6549, %v6550
  %v6552 = vsel %vm5487, %v4796, -inf
  %v6553 = vrot.slane %v6552, 4
  %v6554 = vmax.f32 %v6552, %v6553
  %v6555 = vrot.slane %v6554, 2
  %v6556 = vmax.f32 %v6554, %v6555
  %v6557 = vrot.slane %v6556, 1
  %v6558 = vmax.f32 %v6556, %v6557
  %v6559 = vsel %vm5487, %v4804, -inf
  %v6560 = vrot.slane %v6559, 4
  %v6561 = vmax.f32 %v6559, %v6560
  %v6562 = vrot.slane %v6561, 2
  %v6563 = vmax.f32 %v6561, %v6562
  %v6564 = vrot.slane %v6563, 1
  %v6565 = vmax.f32 %v6563, %v6564
  %v6566 = vsel %vm5487, %v4803, -inf
  %v6567 = vrot.slane %v6566, 4
  %v6568 = vmax.f32 %v6566, %v6567
  %v6569 = vrot.slane %v6568, 2
  %v6570 = vmax.f32 %v6568, %v6569
  %v6571 = vrot.slane %v6570, 1
  %v6572 = vmax.f32 %v6570, %v6571
  %v6573 = vsel %vm5487, %v4805, -inf
  %v6574 = vrot.slane %v6573, 4
  %v6575 = vmax.f32 %v6573, %v6574
  %v6576 = vrot.slane %v6575, 2
  %v6577 = vmax.f32 %v6575, %v6576
  %v6578 = vrot.slane %v6577, 1
  %v6579 = vmax.f32 %v6577, %v6578
  %v6580 = vsel %vm5487, %v4813, -inf
  %v6581 = vrot.slane %v6580, 4
  %v6582 = vmax.f32 %v6580, %v6581
  %v6583 = vrot.slane %v6582, 2
  %v6584 = vmax.f32 %v6582, %v6583
  %v6585 = vrot.slane %v6584, 1
  %v6586 = vmax.f32 %v6584, %v6585
  %v6587 = vsel %vm5487, %v4821, -inf
  %v6588 = vrot.slane %v6587, 4
  %v6589 = vmax.f32 %v6587, %v6588
  %v6590 = vrot.slane %v6589, 2
  %v6591 = vmax.f32 %v6589, %v6590
  %v6592 = vrot.slane %v6591, 1
  %v6593 = vmax.f32 %v6591, %v6592
  %v6594 = vsel %vm5487, %v4820, -inf
  %v6595 = vrot.slane %v6594, 4
  %v6596 = vmax.f32 %v6594, %v6595
  %v6597 = vrot.slane %v6596, 2
  %v6598 = vmax.f32 %v6596, %v6597
  %v6599 = vrot.slane %v6598, 1
  %v6600 = vmax.f32 %v6598, %v6599
  %v6601 = vsel %vm5487, %v4822, -inf
  %v6602 = vrot.slane %v6601, 4
  %v6603 = vmax.f32 %v6601, %v6602
  %v6604 = vrot.slane %v6603, 2
  %v6605 = vmax.f32 %v6603, %v6604
  %v6606 = vrot.slane %v6605, 1
  %v6607 = vmax.f32 %v6605, %v6606
  %v6608 = vsel %vm5487, %v4830, -inf
  %v6609 = vrot.slane %v6608, 4
  %v6610 = vmax.f32 %v6608, %v6609
  %v6611 = vrot.slane %v6610, 2
  %v6612 = vmax.f32 %v6610, %v6611
  %v6613 = vrot.slane %v6612, 1
  %v6614 = vmax.f32 %v6612, %v6613
  %v6615 = vsel %vm5487, %v4838, -inf
  %v6616 = vrot.slane %v6615, 4
  %v6617 = vmax.f32 %v6615, %v6616
  %v6618 = vrot.slane %v6617, 2
  %v6619 = vmax.f32 %v6617, %v6618
  %v6620 = vrot.slane %v6619, 1
  %v6621 = vmax.f32 %v6619, %v6620
  %v6622 = vsel %vm5487, %v4837, -inf
  %v6623 = vrot.slane %v6622, 4
  %v6624 = vmax.f32 %v6622, %v6623
  %v6625 = vrot.slane %v6624, 2
  %v6626 = vmax.f32 %v6624, %v6625
  %v6627 = vrot.slane %v6626, 1
  %v6628 = vmax.f32 %v6626, %v6627
  %v6629 = vsel %vm5487, %v4839, -inf
  %v6630 = vrot.slane %v6629, 4
  %v6631 = vmax.f32 %v6629, %v6630
  %v6632 = vrot.slane %v6631, 2
  %v6633 = vmax.f32 %v6631, %v6632
  %v6634 = vrot.slane %v6633, 1
  %v6635 = vmax.f32 %v6633, %v6634
  %v6636 = vsel %vm5487, %v4847, -inf
  %v6637 = vrot.slane %v6636, 4
  %v6638 = vmax.f32 %v6636, %v6637
  %v6639 = vrot.slane %v6638, 2
  %v6640 = vmax.f32 %v6638, %v6639
  %v6641 = vrot.slane %v6640, 1
  %v6642 = vmax.f32 %v6640, %v6641
  %v6643 = vsel %vm5487, %v4855, -inf
  %v6644 = vrot.slane %v6643, 4
  %v6645 = vmax.f32 %v6643, %v6644
  %v6646 = vrot.slane %v6645, 2
  %v6647 = vmax.f32 %v6645, %v6646
  %v6648 = vrot.slane %v6647, 1
  %v6649 = vmax.f32 %v6647, %v6648
  %v6650 = vsel %vm5487, %v4854, -inf
  %v6651 = vrot.slane %v6650, 4
  %v6652 = vmax.f32 %v6650, %v6651
  %v6653 = vrot.slane %v6652, 2
  %v6654 = vmax.f32 %v6652, %v6653
  %v6655 = vrot.slane %v6654, 1
  %v6656 = vmax.f32 %v6654, %v6655
  %v6657 = vsel %vm5487, %v4856, -inf
  %v6658 = vrot.slane %v6657, 4
  %v6659 = vmax.f32 %v6657, %v6658
  %v6660 = vrot.slane %v6659, 2
  %v6661 = vmax.f32 %v6659, %v6660
  %v6662 = vrot.slane %v6661, 1
  %v6663 = vmax.f32 %v6661, %v6662
  %v6664 = vsel %vm5487, %v4864, -inf
  %v6665 = vrot.slane %v6664, 4
  %v6666 = vmax.f32 %v6664, %v6665
  %v6667 = vrot.slane %v6666, 2
  %v6668 = vmax.f32 %v6666, %v6667
  %v6669 = vrot.slane %v6668, 1
  %v6670 = vmax.f32 %v6668, %v6669
  %v6671 = vsel %vm5487, %v4872, -inf
  %v6672 = vrot.slane %v6671, 4
  %v6673 = vmax.f32 %v6671, %v6672
  %v6674 = vrot.slane %v6673, 2
  %v6675 = vmax.f32 %v6673, %v6674
  %v6676 = vrot.slane %v6675, 1
  %v6677 = vmax.f32 %v6675, %v6676
  %v6678 = vsel %vm5487, %v4871, -inf
  %v6679 = vrot.slane %v6678, 4
  %v6680 = vmax.f32 %v6678, %v6679
  %v6681 = vrot.slane %v6680, 2
  %v6682 = vmax.f32 %v6680, %v6681
  %v6683 = vrot.slane %v6682, 1
  %v6684 = vmax.f32 %v6682, %v6683
  %v6685 = vsel %vm5487, %v4873, -inf
  %v6686 = vrot.slane %v6685, 4
  %v6687 = vmax.f32 %v6685, %v6686
  %v6688 = vrot.slane %v6687, 2
  %v6689 = vmax.f32 %v6687, %v6688
  %v6690 = vrot.slane %v6689, 1
  %v6691 = vmax.f32 %v6689, %v6690
  %v6692 = vsel %vm5487, %v4881, -inf
  %v6693 = vrot.slane %v6692, 4
  %v6694 = vmax.f32 %v6692, %v6693
  %v6695 = vrot.slane %v6694, 2
  %v6696 = vmax.f32 %v6694, %v6695
  %v6697 = vrot.slane %v6696, 1
  %v6698 = vmax.f32 %v6696, %v6697
  %v6699 = vsel %vm5487, %v4889, -inf
  %v6700 = vrot.slane %v6699, 4
  %v6701 = vmax.f32 %v6699, %v6700
  %v6702 = vrot.slane %v6701, 2
  %v6703 = vmax.f32 %v6701, %v6702
  %v6704 = vrot.slane %v6703, 1
  %v6705 = vmax.f32 %v6703, %v6704
  %v6706 = vsel %vm5487, %v4888, -inf
  %v6707 = vrot.slane %v6706, 4
  %v6708 = vmax.f32 %v6706, %v6707
  %v6709 = vrot.slane %v6708, 2
  %v6710 = vmax.f32 %v6708, %v6709
  %v6711 = vrot.slane %v6710, 1
  %v6712 = vmax.f32 %v6710, %v6711
  %v6713 = vsel %vm5487, %v4890, -inf
  %v6714 = vrot.slane %v6713, 4
  %v6715 = vmax.f32 %v6713, %v6714
  %v6716 = vrot.slane %v6715, 2
  %v6717 = vmax.f32 %v6715, %v6716
  %v6718 = vrot.slane %v6717, 1
  %v6719 = vmax.f32 %v6717, %v6718
  %v6720 = vsel %vm5487, %v4898, -inf
  %v6721 = vrot.slane %v6720, 4
  %v6722 = vmax.f32 %v6720, %v6721
  %v6723 = vrot.slane %v6722, 2
  %v6724 = vmax.f32 %v6722, %v6723
  %v6725 = vrot.slane %v6724, 1
  %v6726 = vmax.f32 %v6724, %v6725
  %v6727 = vsel %vm5487, %v4906, -inf
  %v6728 = vrot.slane %v6727, 4
  %v6729 = vmax.f32 %v6727, %v6728
  %v6730 = vrot.slane %v6729, 2
  %v6731 = vmax.f32 %v6729, %v6730
  %v6732 = vrot.slane %v6731, 1
  %v6733 = vmax.f32 %v6731, %v6732
  %v6734 = vsel %vm5487, %v4905, -inf
  %v6735 = vrot.slane %v6734, 4
  %v6736 = vmax.f32 %v6734, %v6735
  %v6737 = vrot.slane %v6736, 2
  %v6738 = vmax.f32 %v6736, %v6737
  %v6739 = vrot.slane %v6738, 1
  %v6740 = vmax.f32 %v6738, %v6739
  %v6741 = vsel %vm5487, %v4907, -inf
  %v6742 = vrot.slane %v6741, 4
  %v6743 = vmax.f32 %v6741, %v6742
  %v6744 = vrot.slane %v6743, 2
  %v6745 = vmax.f32 %v6743, %v6744
  %v6746 = vrot.slane %v6745, 1
  %v6747 = vmax.f32 %v6745, %v6746
  %v6748 = vsel %vm5487, %v4915, -inf
  %v6749 = vrot.slane %v6748, 4
  %v6750 = vmax.f32 %v6748, %v6749
  %v6751 = vrot.slane %v6750, 2
  %v6752 = vmax.f32 %v6750, %v6751
  %v6753 = vrot.slane %v6752, 1
  %v6754 = vmax.f32 %v6752, %v6753
  %v6755 = vsel %vm5487, %v4923, -inf
  %v6756 = vrot.slane %v6755, 4
  %v6757 = vmax.f32 %v6755, %v6756
  %v6758 = vrot.slane %v6757, 2
  %v6759 = vmax.f32 %v6757, %v6758
  %v6760 = vrot.slane %v6759, 1
  %v6761 = vmax.f32 %v6759, %v6760
  %v6762 = vsel %vm5487, %v4922, -inf
  %v6763 = vrot.slane %v6762, 4
  %v6764 = vmax.f32 %v6762, %v6763
  %v6765 = vrot.slane %v6764, 2
  %v6766 = vmax.f32 %v6764, %v6765
  %v6767 = vrot.slane %v6766, 1
  %v6768 = vmax.f32 %v6766, %v6767
  %v6769 = vsel %vm5487, %v4924, -inf
  %v6770 = vrot.slane %v6769, 4
  %v6771 = vmax.f32 %v6769, %v6770
  %v6772 = vrot.slane %v6771, 2
  %v6773 = vmax.f32 %v6771, %v6772
  %v6774 = vrot.slane %v6773, 1
  %v6775 = vmax.f32 %v6773, %v6774
  %v6776 = vsel %vm5487, %v4932, -inf
  %v6777 = vrot.slane %v6776, 4
  %v6778 = vmax.f32 %v6776, %v6777
  %v6779 = vrot.slane %v6778, 2
  %v6780 = vmax.f32 %v6778, %v6779
  %v6781 = vrot.slane %v6780, 1
  %v6782 = vmax.f32 %v6780, %v6781
  %v6783 = vsel %vm5487, %v4940, -inf
  %v6784 = vrot.slane %v6783, 4
  %v6785 = vmax.f32 %v6783, %v6784
  %v6786 = vrot.slane %v6785, 2
  %v6787 = vmax.f32 %v6785, %v6786
  %v6788 = vrot.slane %v6787, 1
  %v6789 = vmax.f32 %v6787, %v6788
  %v6790 = vsel %vm5487, %v4939, -inf
  %v6791 = vrot.slane %v6790, 4
  %v6792 = vmax.f32 %v6790, %v6791
  %v6793 = vrot.slane %v6792, 2
  %v6794 = vmax.f32 %v6792, %v6793
  %v6795 = vrot.slane %v6794, 1
  %v6796 = vmax.f32 %v6794, %v6795
  %v6797 = vsel %vm5487, %v4941, -inf
  %v6798 = vrot.slane %v6797, 4
  %v6799 = vmax.f32 %v6797, %v6798
  %v6800 = vrot.slane %v6799, 2
  %v6801 = vmax.f32 %v6799, %v6800
  %v6802 = vrot.slane %v6801, 1
  %v6803 = vmax.f32 %v6801, %v6802
  %v6804 = vsel %vm5487, %v4949, -inf
  %v6805 = vrot.slane %v6804, 4
  %v6806 = vmax.f32 %v6804, %v6805
  %v6807 = vrot.slane %v6806, 2
  %v6808 = vmax.f32 %v6806, %v6807
  %v6809 = vrot.slane %v6808, 1
  %v6810 = vmax.f32 %v6808, %v6809
  %v6811 = vsel %vm5487, %v4957, -inf
  %v6812 = vrot.slane %v6811, 4
  %v6813 = vmax.f32 %v6811, %v6812
  %v6814 = vrot.slane %v6813, 2
  %v6815 = vmax.f32 %v6813, %v6814
  %v6816 = vrot.slane %v6815, 1
  %v6817 = vmax.f32 %v6815, %v6816
  %v6818 = vsel %vm5487, %v4956, -inf
  %v6819 = vrot.slane %v6818, 4
  %v6820 = vmax.f32 %v6818, %v6819
  %v6821 = vrot.slane %v6820, 2
  %v6822 = vmax.f32 %v6820, %v6821
  %v6823 = vrot.slane %v6822, 1
  %v6824 = vmax.f32 %v6822, %v6823
  %v6825 = vsel %vm5487, %v4958, -inf
  %v6826 = vrot.slane %v6825, 4
  %v6827 = vmax.f32 %v6825, %v6826
  %v6828 = vrot.slane %v6827, 2
  %v6829 = vmax.f32 %v6827, %v6828
  %v6830 = vrot.slane %v6829, 1
  %v6831 = vmax.f32 %v6829, %v6830
  %v6832 = vsel %vm5487, %v4966, -inf
  %v6833 = vrot.slane %v6832, 4
  %v6834 = vmax.f32 %v6832, %v6833
  %v6835 = vrot.slane %v6834, 2
  %v6836 = vmax.f32 %v6834, %v6835
  %v6837 = vrot.slane %v6836, 1
  %v6838 = vmax.f32 %v6836, %v6837
  %v6839 = vsel %vm5487, %v4974, -inf
  %v6840 = vrot.slane %v6839, 4
  %v6841 = vmax.f32 %v6839, %v6840
  %v6842 = vrot.slane %v6841, 2
  %v6843 = vmax.f32 %v6841, %v6842
  %v6844 = vrot.slane %v6843, 1
  %v6845 = vmax.f32 %v6843, %v6844
  %v6846 = vsel %vm5487, %v4973, -inf
  %v6847 = vrot.slane %v6846, 4
  %v6848 = vmax.f32 %v6846, %v6847
  %v6849 = vrot.slane %v6848, 2
  %v6850 = vmax.f32 %v6848, %v6849
  %v6851 = vrot.slane %v6850, 1
  %v6852 = vmax.f32 %v6850, %v6851
  %v6853 = vsel %vm5487, %v4975, -inf
  %v6854 = vrot.slane %v6853, 4
  %v6855 = vmax.f32 %v6853, %v6854
  %v6856 = vrot.slane %v6855, 2
  %v6857 = vmax.f32 %v6855, %v6856
  %v6858 = vrot.slane %v6857, 1
  %v6859 = vmax.f32 %v6857, %v6858
  %v6860 = vsel %vm5487, %v4983, -inf
  %v6861 = vrot.slane %v6860, 4
  %v6862 = vmax.f32 %v6860, %v6861
  %v6863 = vrot.slane %v6862, 2
  %v6864 = vmax.f32 %v6862, %v6863
  %v6865 = vrot.slane %v6864, 1
  %v6866 = vmax.f32 %v6864, %v6865
  %v6867 = vsel %vm5487, %v4991, -inf
  %v6868 = vrot.slane %v6867, 4
  %v6869 = vmax.f32 %v6867, %v6868
  %v6870 = vrot.slane %v6869, 2
  %v6871 = vmax.f32 %v6869, %v6870
  %v6872 = vrot.slane %v6871, 1
  %v6873 = vmax.f32 %v6871, %v6872
  %v6874 = vsel %vm5487, %v4990, -inf
  %v6875 = vrot.slane %v6874, 4
  %v6876 = vmax.f32 %v6874, %v6875
  %v6877 = vrot.slane %v6876, 2
  %v6878 = vmax.f32 %v6876, %v6877
  %v6879 = vrot.slane %v6878, 1
  %v6880 = vmax.f32 %v6878, %v6879
  %v6881 = vsel %vm5487, %v4992, -inf
  %v6882 = vrot.slane %v6881, 4
  %v6883 = vmax.f32 %v6881, %v6882
  %v6884 = vrot.slane %v6883, 2
  %v6885 = vmax.f32 %v6883, %v6884
  %v6886 = vrot.slane %v6885, 1
  %v6887 = vmax.f32 %v6885, %v6886
  %v6888 = vsel %vm5487, %v5000, -inf
  %v6889 = vrot.slane %v6888, 4
  %v6890 = vmax.f32 %v6888, %v6889
  %v6891 = vrot.slane %v6890, 2
  %v6892 = vmax.f32 %v6890, %v6891
  %v6893 = vrot.slane %v6892, 1
  %v6894 = vmax.f32 %v6892, %v6893
  %v6895 = vsel %vm5487, %v5008, -inf
  %v6896 = vrot.slane %v6895, 4
  %v6897 = vmax.f32 %v6895, %v6896
  %v6898 = vrot.slane %v6897, 2
  %v6899 = vmax.f32 %v6897, %v6898
  %v6900 = vrot.slane %v6899, 1
  %v6901 = vmax.f32 %v6899, %v6900
  %v6902 = vsel %vm5487, %v5007, -inf
  %v6903 = vrot.slane %v6902, 4
  %v6904 = vmax.f32 %v6902, %v6903
  %v6905 = vrot.slane %v6904, 2
  %v6906 = vmax.f32 %v6904, %v6905
  %v6907 = vrot.slane %v6906, 1
  %v6908 = vmax.f32 %v6906, %v6907
  %v6909 = vsel %vm5487, %v5009, -inf
  %v6910 = vrot.slane %v6909, 4
  %v6911 = vmax.f32 %v6909, %v6910
  %v6912 = vrot.slane %v6911, 2
  %v6913 = vmax.f32 %v6911, %v6912
  %v6914 = vrot.slane %v6913, 1
  %v6915 = vmax.f32 %v6913, %v6914
  %v6916 = vsel %vm5487, %v5017, -inf
  %v6917 = vrot.slane %v6916, 4
  %v6918 = vmax.f32 %v6916, %v6917
  %v6919 = vrot.slane %v6918, 2
  %v6920 = vmax.f32 %v6918, %v6919
  %v6921 = vrot.slane %v6920, 1
  %v6922 = vmax.f32 %v6920, %v6921
  %v6923 = vsel %vm5487, %v5025, -inf
  %v6924 = vrot.slane %v6923, 4
  %v6925 = vmax.f32 %v6923, %v6924
  %v6926 = vrot.slane %v6925, 2
  %v6927 = vmax.f32 %v6925, %v6926
  %v6928 = vrot.slane %v6927, 1
  %v6929 = vmax.f32 %v6927, %v6928
  %v6930 = vsel %vm5487, %v5024, -inf
  %v6931 = vrot.slane %v6930, 4
  %v6932 = vmax.f32 %v6930, %v6931
  %v6933 = vrot.slane %v6932, 2
  %v6934 = vmax.f32 %v6932, %v6933
  %v6935 = vrot.slane %v6934, 1
  %v6936 = vmax.f32 %v6934, %v6935
  %v6937 = vsel %vm5487, %v5026, -inf
  %v6938 = vrot.slane %v6937, 4
  %v6939 = vmax.f32 %v6937, %v6938
  %v6940 = vrot.slane %v6939, 2
  %v6941 = vmax.f32 %v6939, %v6940
  %v6942 = vrot.slane %v6941, 1
  %v6943 = vmax.f32 %v6941, %v6942
  %v6944 = vsel %vm5487, %v5034, -inf
  %v6945 = vrot.slane %v6944, 4
  %v6946 = vmax.f32 %v6944, %v6945
  %v6947 = vrot.slane %v6946, 2
  %v6948 = vmax.f32 %v6946, %v6947
  %v6949 = vrot.slane %v6948, 1
  %v6950 = vmax.f32 %v6948, %v6949
  %v6951 = vsel %vm5487, %v5042, -inf
  %v6952 = vrot.slane %v6951, 4
  %v6953 = vmax.f32 %v6951, %v6952
  %v6954 = vrot.slane %v6953, 2
  %v6955 = vmax.f32 %v6953, %v6954
  %v6956 = vrot.slane %v6955, 1
  %v6957 = vmax.f32 %v6955, %v6956
  %v6958 = vsel %vm5487, %v5041, -inf
  %v6959 = vrot.slane %v6958, 4
  %v6960 = vmax.f32 %v6958, %v6959
  %v6961 = vrot.slane %v6960, 2
  %v6962 = vmax.f32 %v6960, %v6961
  %v6963 = vrot.slane %v6962, 1
  %v6964 = vmax.f32 %v6962, %v6963
  %v6965 = vsel %vm5487, %v5043, -inf
  %v6966 = vrot.slane %v6965, 4
  %v6967 = vmax.f32 %v6965, %v6966
  %v6968 = vrot.slane %v6967, 2
  %v6969 = vmax.f32 %v6967, %v6968
  %v6970 = vrot.slane %v6969, 1
  %v6971 = vmax.f32 %v6969, %v6970
  %v6972 = vsel %vm5487, %v5051, -inf
  %v6973 = vrot.slane %v6972, 4
  %v6974 = vmax.f32 %v6972, %v6973
  %v6975 = vrot.slane %v6974, 2
  %v6976 = vmax.f32 %v6974, %v6975
  %v6977 = vrot.slane %v6976, 1
  %v6978 = vmax.f32 %v6976, %v6977
  %v6979 = vsel %vm5487, %v5059, -inf
  %v6980 = vrot.slane %v6979, 4
  %v6981 = vmax.f32 %v6979, %v6980
  %v6982 = vrot.slane %v6981, 2
  %v6983 = vmax.f32 %v6981, %v6982
  %v6984 = vrot.slane %v6983, 1
  %v6985 = vmax.f32 %v6983, %v6984
  %v6986 = vsel %vm5487, %v5058, -inf
  %v6987 = vrot.slane %v6986, 4
  %v6988 = vmax.f32 %v6986, %v6987
  %v6989 = vrot.slane %v6988, 2
  %v6990 = vmax.f32 %v6988, %v6989
  %v6991 = vrot.slane %v6990, 1
  %v6992 = vmax.f32 %v6990, %v6991
  %v6993 = vsel %vm5487, %v5060, -inf
  %v6994 = vrot.slane %v6993, 4
  %v6995 = vmax.f32 %v6993, %v6994
  %v6996 = vrot.slane %v6995, 2
  %v6997 = vmax.f32 %v6995, %v6996
  %v6998 = vrot.slane %v6997, 1
  %v6999 = vmax.f32 %v6997, %v6998
  %v7000 = vsel %vm5487, %v5068, -inf
  %v7001 = vrot.slane %v7000, 4
  %v7002 = vmax.f32 %v7000, %v7001
  %v7003 = vrot.slane %v7002, 2
  %v7004 = vmax.f32 %v7002, %v7003
  %v7005 = vrot.slane %v7004, 1
  %v7006 = vmax.f32 %v7004, %v7005
  %v7007 = vsel %vm5487, %v5076, -inf
  %v7008 = vrot.slane %v7007, 4
  %v7009 = vmax.f32 %v7007, %v7008
  %v7010 = vrot.slane %v7009, 2
  %v7011 = vmax.f32 %v7009, %v7010
  %v7012 = vrot.slane %v7011, 1
  %v7013 = vmax.f32 %v7011, %v7012
  %v7014 = vsel %vm5487, %v5075, -inf
  %v7015 = vrot.slane %v7014, 4
  %v7016 = vmax.f32 %v7014, %v7015
  %v7017 = vrot.slane %v7016, 2
  %v7018 = vmax.f32 %v7016, %v7017
  %v7019 = vrot.slane %v7018, 1
  %v7020 = vmax.f32 %v7018, %v7019
  %v7021 = vsel %vm5487, %v5077, -inf
  %v7022 = vrot.slane %v7021, 4
  %v7023 = vmax.f32 %v7021, %v7022
  %v7024 = vrot.slane %v7023, 2
  %v7025 = vmax.f32 %v7023, %v7024
  %v7026 = vrot.slane %v7025, 1
  %v7027 = vmax.f32 %v7025, %v7026
  %v7028 = vsel %vm5487, %v5085, -inf
  %v7029 = vrot.slane %v7028, 4
  %v7030 = vmax.f32 %v7028, %v7029
  %v7031 = vrot.slane %v7030, 2
  %v7032 = vmax.f32 %v7030, %v7031
  %v7033 = vrot.slane %v7032, 1
  %v7034 = vmax.f32 %v7032, %v7033
  %v7035 = vsel %vm5487, %v5093, -inf
  %v7036 = vrot.slane %v7035, 4
  %v7037 = vmax.f32 %v7035, %v7036
  %v7038 = vrot.slane %v7037, 2
  %v7039 = vmax.f32 %v7037, %v7038
  %v7040 = vrot.slane %v7039, 1
  %v7041 = vmax.f32 %v7039, %v7040
  %v7042 = vsel %vm5487, %v5092, -inf
  %v7043 = vrot.slane %v7042, 4
  %v7044 = vmax.f32 %v7042, %v7043
  %v7045 = vrot.slane %v7044, 2
  %v7046 = vmax.f32 %v7044, %v7045
  %v7047 = vrot.slane %v7046, 1
  %v7048 = vmax.f32 %v7046, %v7047
  %v7049 = vsel %vm5487, %v5094, -inf
  %v7050 = vrot.slane %v7049, 4
  %v7051 = vmax.f32 %v7049, %v7050
  %v7052 = vrot.slane %v7051, 2
  %v7053 = vmax.f32 %v7051, %v7052
  %v7054 = vrot.slane %v7053, 1
  %v7055 = vmax.f32 %v7053, %v7054
  %v7056 = vsel %vm5487, %v5102, -inf
  %v7057 = vrot.slane %v7056, 4
  %v7058 = vmax.f32 %v7056, %v7057
  %v7059 = vrot.slane %v7058, 2
  %v7060 = vmax.f32 %v7058, %v7059
  %v7061 = vrot.slane %v7060, 1
  %v7062 = vmax.f32 %v7060, %v7061
  %v7063 = vsel %vm5487, %v5110, -inf
  %v7064 = vrot.slane %v7063, 4
  %v7065 = vmax.f32 %v7063, %v7064
  %v7066 = vrot.slane %v7065, 2
  %v7067 = vmax.f32 %v7065, %v7066
  %v7068 = vrot.slane %v7067, 1
  %v7069 = vmax.f32 %v7067, %v7068
  %v7070 = vsel %vm5487, %v5109, -inf
  %v7071 = vrot.slane %v7070, 4
  %v7072 = vmax.f32 %v7070, %v7071
  %v7073 = vrot.slane %v7072, 2
  %v7074 = vmax.f32 %v7072, %v7073
  %v7075 = vrot.slane %v7074, 1
  %v7076 = vmax.f32 %v7074, %v7075
  %v7077 = vsel %vm5487, %v5111, -inf
  %v7078 = vrot.slane %v7077, 4
  %v7079 = vmax.f32 %v7077, %v7078
  %v7080 = vrot.slane %v7079, 2
  %v7081 = vmax.f32 %v7079, %v7080
  %v7082 = vrot.slane %v7081, 1
  %v7083 = vmax.f32 %v7081, %v7082
  %v7084 = vsel %vm5487, %v5119, -inf
  %v7085 = vrot.slane %v7084, 4
  %v7086 = vmax.f32 %v7084, %v7085
  %v7087 = vrot.slane %v7086, 2
  %v7088 = vmax.f32 %v7086, %v7087
  %v7089 = vrot.slane %v7088, 1
  %v7090 = vmax.f32 %v7088, %v7089
  %v7091 = vsel %vm5487, %v5127, -inf
  %v7092 = vrot.slane %v7091, 4
  %v7093 = vmax.f32 %v7091, %v7092
  %v7094 = vrot.slane %v7093, 2
  %v7095 = vmax.f32 %v7093, %v7094
  %v7096 = vrot.slane %v7095, 1
  %v7097 = vmax.f32 %v7095, %v7096
  %v7098 = vsel %vm5487, %v5126, -inf
  %v7099 = vrot.slane %v7098, 4
  %v7100 = vmax.f32 %v7098, %v7099
  %v7101 = vrot.slane %v7100, 2
  %v7102 = vmax.f32 %v7100, %v7101
  %v7103 = vrot.slane %v7102, 1
  %v7104 = vmax.f32 %v7102, %v7103
  %v7105 = vsel %vm5487, %v5128, -inf
  %v7106 = vrot.slane %v7105, 4
  %v7107 = vmax.f32 %v7105, %v7106
  %v7108 = vrot.slane %v7107, 2
  %v7109 = vmax.f32 %v7107, %v7108
  %v7110 = vrot.slane %v7109, 1
  %v7111 = vmax.f32 %v7109, %v7110
  %v7112 = vsel %vm5487, %v5136, -inf
  %v7113 = vrot.slane %v7112, 4
  %v7114 = vmax.f32 %v7112, %v7113
  %v7115 = vrot.slane %v7114, 2
  %v7116 = vmax.f32 %v7114, %v7115
  %v7117 = vrot.slane %v7116, 1
  %v7118 = vmax.f32 %v7116, %v7117
  %v7119 = vsel %vm5487, %v5144, -inf
  %v7120 = vrot.slane %v7119, 4
  %v7121 = vmax.f32 %v7119, %v7120
  %v7122 = vrot.slane %v7121, 2
  %v7123 = vmax.f32 %v7121, %v7122
  %v7124 = vrot.slane %v7123, 1
  %v7125 = vmax.f32 %v7123, %v7124
  %v7126 = vsel %vm5487, %v5143, -inf
  %v7127 = vrot.slane %v7126, 4
  %v7128 = vmax.f32 %v7126, %v7127
  %v7129 = vrot.slane %v7128, 2
  %v7130 = vmax.f32 %v7128, %v7129
  %v7131 = vrot.slane %v7130, 1
  %v7132 = vmax.f32 %v7130, %v7131
  %v7133 = vsel %vm5487, %v5145, -inf
  %v7134 = vrot.slane %v7133, 4
  %v7135 = vmax.f32 %v7133, %v7134
  %v7136 = vrot.slane %v7135, 2
  %v7137 = vmax.f32 %v7135, %v7136
  %v7138 = vrot.slane %v7137, 1
  %v7139 = vmax.f32 %v7137, %v7138
  %v7140 = vsel %vm5487, %v5153, -inf
  %v7141 = vrot.slane %v7140, 4
  %v7142 = vmax.f32 %v7140, %v7141
  %v7143 = vrot.slane %v7142, 2
  %v7144 = vmax.f32 %v7142, %v7143
  %v7145 = vrot.slane %v7144, 1
  %v7146 = vmax.f32 %v7144, %v7145
  %v7147 = vsel %vm5487, %v5161, -inf
  %v7148 = vrot.slane %v7147, 4
  %v7149 = vmax.f32 %v7147, %v7148
  %v7150 = vrot.slane %v7149, 2
  %v7151 = vmax.f32 %v7149, %v7150
  %v7152 = vrot.slane %v7151, 1
  %v7153 = vmax.f32 %v7151, %v7152
  %v7154 = vsel %vm5487, %v5160, -inf
  %v7155 = vrot.slane %v7154, 4
  %v7156 = vmax.f32 %v7154, %v7155
  %v7157 = vrot.slane %v7156, 2
  %v7158 = vmax.f32 %v7156, %v7157
  %v7159 = vrot.slane %v7158, 1
  %v7160 = vmax.f32 %v7158, %v7159
  %v7161 = vsel %vm5487, %v5162, -inf
  %v7162 = vrot.slane %v7161, 4
  %v7163 = vmax.f32 %v7161, %v7162
  %v7164 = vrot.slane %v7163, 2
  %v7165 = vmax.f32 %v7163, %v7164
  %v7166 = vrot.slane %v7165, 1
  %v7167 = vmax.f32 %v7165, %v7166
  %v7168 = vsel %vm5487, %v5170, -inf
  %v7169 = vrot.slane %v7168, 4
  %v7170 = vmax.f32 %v7168, %v7169
  %v7171 = vrot.slane %v7170, 2
  %v7172 = vmax.f32 %v7170, %v7171
  %v7173 = vrot.slane %v7172, 1
  %v7174 = vmax.f32 %v7172, %v7173
  %v7175 = vsel %vm5487, %v5178, -inf
  %v7176 = vrot.slane %v7175, 4
  %v7177 = vmax.f32 %v7175, %v7176
  %v7178 = vrot.slane %v7177, 2
  %v7179 = vmax.f32 %v7177, %v7178
  %v7180 = vrot.slane %v7179, 1
  %v7181 = vmax.f32 %v7179, %v7180
  %v7182 = vsel %vm5487, %v5177, -inf
  %v7183 = vrot.slane %v7182, 4
  %v7184 = vmax.f32 %v7182, %v7183
  %v7185 = vrot.slane %v7184, 2
  %v7186 = vmax.f32 %v7184, %v7185
  %v7187 = vrot.slane %v7186, 1
  %v7188 = vmax.f32 %v7186, %v7187
  %v7189 = vsel %vm5487, %v5179, -inf
  %v7190 = vrot.slane %v7189, 4
  %v7191 = vmax.f32 %v7189, %v7190
  %v7192 = vrot.slane %v7191, 2
  %v7193 = vmax.f32 %v7191, %v7192
  %v7194 = vrot.slane %v7193, 1
  %v7195 = vmax.f32 %v7193, %v7194
  %v7196 = vsel %vm5487, %v5187, -inf
  %v7197 = vrot.slane %v7196, 4
  %v7198 = vmax.f32 %v7196, %v7197
  %v7199 = vrot.slane %v7198, 2
  %v7200 = vmax.f32 %v7198, %v7199
  %v7201 = vrot.slane %v7200, 1
  %v7202 = vmax.f32 %v7200, %v7201
  %v7203 = vsel %vm5487, %v5195, -inf
  %v7204 = vrot.slane %v7203, 4
  %v7205 = vmax.f32 %v7203, %v7204
  %v7206 = vrot.slane %v7205, 2
  %v7207 = vmax.f32 %v7205, %v7206
  %v7208 = vrot.slane %v7207, 1
  %v7209 = vmax.f32 %v7207, %v7208
  %v7210 = vsel %vm5487, %v5194, -inf
  %v7211 = vrot.slane %v7210, 4
  %v7212 = vmax.f32 %v7210, %v7211
  %v7213 = vrot.slane %v7212, 2
  %v7214 = vmax.f32 %v7212, %v7213
  %v7215 = vrot.slane %v7214, 1
  %v7216 = vmax.f32 %v7214, %v7215
  %v7217 = vsel %vm5487, %v5196, -inf
  %v7218 = vrot.slane %v7217, 4
  %v7219 = vmax.f32 %v7217, %v7218
  %v7220 = vrot.slane %v7219, 2
  %v7221 = vmax.f32 %v7219, %v7220
  %v7222 = vrot.slane %v7221, 1
  %v7223 = vmax.f32 %v7221, %v7222
  %v7224 = vsel %vm5487, %v5204, -inf
  %v7225 = vrot.slane %v7224, 4
  %v7226 = vmax.f32 %v7224, %v7225
  %v7227 = vrot.slane %v7226, 2
  %v7228 = vmax.f32 %v7226, %v7227
  %v7229 = vrot.slane %v7228, 1
  %v7230 = vmax.f32 %v7228, %v7229
  %v7231 = vsel %vm5487, %v5212, -inf
  %v7232 = vrot.slane %v7231, 4
  %v7233 = vmax.f32 %v7231, %v7232
  %v7234 = vrot.slane %v7233, 2
  %v7235 = vmax.f32 %v7233, %v7234
  %v7236 = vrot.slane %v7235, 1
  %v7237 = vmax.f32 %v7235, %v7236
  %v7238 = vsel %vm5487, %v5211, -inf
  %v7239 = vrot.slane %v7238, 4
  %v7240 = vmax.f32 %v7238, %v7239
  %v7241 = vrot.slane %v7240, 2
  %v7242 = vmax.f32 %v7240, %v7241
  %v7243 = vrot.slane %v7242, 1
  %v7244 = vmax.f32 %v7242, %v7243
  %v7245 = vsel %vm5487, %v5213, -inf
  %v7246 = vrot.slane %v7245, 4
  %v7247 = vmax.f32 %v7245, %v7246
  %v7248 = vrot.slane %v7247, 2
  %v7249 = vmax.f32 %v7247, %v7248
  %v7250 = vrot.slane %v7249, 1
  %v7251 = vmax.f32 %v7249, %v7250
  %v7252 = vsel %vm5487, %v5221, -inf
  %v7253 = vrot.slane %v7252, 4
  %v7254 = vmax.f32 %v7252, %v7253
  %v7255 = vrot.slane %v7254, 2
  %v7256 = vmax.f32 %v7254, %v7255
  %v7257 = vrot.slane %v7256, 1
  %v7258 = vmax.f32 %v7256, %v7257
  %v7259 = vsel %vm5487, %v5229, -inf
  %v7260 = vrot.slane %v7259, 4
  %v7261 = vmax.f32 %v7259, %v7260
  %v7262 = vrot.slane %v7261, 2
  %v7263 = vmax.f32 %v7261, %v7262
  %v7264 = vrot.slane %v7263, 1
  %v7265 = vmax.f32 %v7263, %v7264
  %v7266 = vsel %vm5487, %v5228, -inf
  %v7267 = vrot.slane %v7266, 4
  %v7268 = vmax.f32 %v7266, %v7267
  %v7269 = vrot.slane %v7268, 2
  %v7270 = vmax.f32 %v7268, %v7269
  %v7271 = vrot.slane %v7270, 1
  %v7272 = vmax.f32 %v7270, %v7271
  %v7273 = vsel %vm5487, %v5230, -inf
  %v7274 = vrot.slane %v7273, 4
  %v7275 = vmax.f32 %v7273, %v7274
  %v7276 = vrot.slane %v7275, 2
  %v7277 = vmax.f32 %v7275, %v7276
  %v7278 = vrot.slane %v7277, 1
  %v7279 = vmax.f32 %v7277, %v7278
  %v7280 = vmax.f32 %v5494, %v5550
  %v7281 = vmax.f32 %v5501, %v5557
  %v7282 = vmax.f32 %v5508, %v5564
  %v7283 = vmax.f32 %v5515, %v5571
  %v7284 = vmax.f32 %v5522, %v5578
  %v7285 = vmax.f32 %v5529, %v5585
  %v7286 = vmax.f32 %v5536, %v5592
  %v7287 = vmax.f32 %v5543, %v5599
  %v7288 = vmax.f32 %v5606, %v5662
  %v7289 = vmax.f32 %v5613, %v5669
  %v7290 = vmax.f32 %v5620, %v5676
  %v7291 = vmax.f32 %v5627, %v5683
  %v7292 = vmax.f32 %v5634, %v5690
  %v7293 = vmax.f32 %v5641, %v5697
  %v7294 = vmax.f32 %v5648, %v5704
  %v7295 = vmax.f32 %v5655, %v5711
  %v7296 = vmax.f32 %v5718, %v5774
  %v7297 = vmax.f32 %v5725, %v5781
  %v7298 = vmax.f32 %v5732, %v5788
  %v7299 = vmax.f32 %v5739, %v5795
  %v7300 = vmax.f32 %v5746, %v5802
  %v7301 = vmax.f32 %v5753, %v5809
  %v7302 = vmax.f32 %v5760, %v5816
  %v7303 = vmax.f32 %v5767, %v5823
  %v7304 = vmax.f32 %v5830, %v5886
  %v7305 = vmax.f32 %v5837, %v5893
  %v7306 = vmax.f32 %v5844, %v5900
  %v7307 = vmax.f32 %v5851, %v5907
  %v7308 = vmax.f32 %v5858, %v5914
  %v7309 = vmax.f32 %v5865, %v5921
  %v7310 = vmax.f32 %v5872, %v5928
  %v7311 = vmax.f32 %v5879, %v5935
  %v7312 = vmax.f32 %v5942, %v5998
  %v7313 = vmax.f32 %v5949, %v6005
  %v7314 = vmax.f32 %v5956, %v6012
  %v7315 = vmax.f32 %v5963, %v6019
  %v7316 = vmax.f32 %v5970, %v6026
  %v7317 = vmax.f32 %v5977, %v6033
  %v7318 = vmax.f32 %v5984, %v6040
  %v7319 = vmax.f32 %v5991, %v6047
  %v7320 = vmax.f32 %v6054, %v6110
  %v7321 = vmax.f32 %v6061, %v6117
  %v7322 = vmax.f32 %v6068, %v6124
  %v7323 = vmax.f32 %v6075, %v6131
  %v7324 = vmax.f32 %v6082, %v6138
  %v7325 = vmax.f32 %v6089, %v6145
  %v7326 = vmax.f32 %v6096, %v6152
  %v7327 = vmax.f32 %v6103, %v6159
  %v7328 = vmax.f32 %v6166, %v6222
  %v7329 = vmax.f32 %v6173, %v6229
  %v7330 = vmax.f32 %v6180, %v6236
  %v7331 = vmax.f32 %v6187, %v6243
  %v7332 = vmax.f32 %v6194, %v6250
  %v7333 = vmax.f32 %v6201, %v6257
  %v7334 = vmax.f32 %v6208, %v6264
  %v7335 = vmax.f32 %v6215, %v6271
  %v7336 = vmax.f32 %v6278, %v6334
  %v7337 = vmax.f32 %v6285, %v6341
  %v7338 = vmax.f32 %v6292, %v6348
  %v7339 = vmax.f32 %v6299, %v6355
  %v7340 = vmax.f32 %v6306, %v6362
  %v7341 = vmax.f32 %v6313, %v6369
  %v7342 = vmax.f32 %v6320, %v6376
  %v7343 = vmax.f32 %v6327, %v6383
  %v7344 = vmax.f32 %v6390, %v6446
  %v7345 = vmax.f32 %v6397, %v6453
  %v7346 = vmax.f32 %v6404, %v6460
  %v7347 = vmax.f32 %v6411, %v6467
  %v7348 = vmax.f32 %v6418, %v6474
  %v7349 = vmax.f32 %v6425, %v6481
  %v7350 = vmax.f32 %v6432, %v6488
  %v7351 = vmax.f32 %v6439, %v6495
  %v7352 = vmax.f32 %v6502, %v6558
  %v7353 = vmax.f32 %v6509, %v6565
  %v7354 = vmax.f32 %v6516, %v6572
  %v7355 = vmax.f32 %v6523, %v6579
  %v7356 = vmax.f32 %v6530, %v6586
  %v7357 = vmax.f32 %v6537, %v6593
  %v7358 = vmax.f32 %v6544, %v6600
  %v7359 = vmax.f32 %v6551, %v6607
  %v7360 = vmax.f32 %v6614, %v6670
  %v7361 = vmax.f32 %v6621, %v6677
  %v7362 = vmax.f32 %v6628, %v6684
  %v7363 = vmax.f32 %v6635, %v6691
  %v7364 = vmax.f32 %v6642, %v6698
  %v7365 = vmax.f32 %v6649, %v6705
  %v7366 = vmax.f32 %v6656, %v6712
  %v7367 = vmax.f32 %v6663, %v6719
  %v7368 = vmax.f32 %v6726, %v6782
  %v7369 = vmax.f32 %v6733, %v6789
  %v7370 = vmax.f32 %v6740, %v6796
  %v7371 = vmax.f32 %v6747, %v6803
  %v7372 = vmax.f32 %v6754, %v6810
  %v7373 = vmax.f32 %v6761, %v6817
  %v7374 = vmax.f32 %v6768, %v6824
  %v7375 = vmax.f32 %v6775, %v6831
  %v7376 = vmax.f32 %v6838, %v6894
  %v7377 = vmax.f32 %v6845, %v6901
  %v7378 = vmax.f32 %v6852, %v6908
  %v7379 = vmax.f32 %v6859, %v6915
  %v7380 = vmax.f32 %v6866, %v6922
  %v7381 = vmax.f32 %v6873, %v6929
  %v7382 = vmax.f32 %v6880, %v6936
  %v7383 = vmax.f32 %v6887, %v6943
  %v7384 = vmax.f32 %v6950, %v7006
  %v7385 = vmax.f32 %v6957, %v7013
  %v7386 = vmax.f32 %v6964, %v7020
  %v7387 = vmax.f32 %v6971, %v7027
  %v7388 = vmax.f32 %v6978, %v7034
  %v7389 = vmax.f32 %v6985, %v7041
  %v7390 = vmax.f32 %v6992, %v7048
  %v7391 = vmax.f32 %v6999, %v7055
  %v7392 = vmax.f32 %v7062, %v7118
  %v7393 = vmax.f32 %v7069, %v7125
  %v7394 = vmax.f32 %v7076, %v7132
  %v7395 = vmax.f32 %v7083, %v7139
  %v7396 = vmax.f32 %v7090, %v7146
  %v7397 = vmax.f32 %v7097, %v7153
  %v7398 = vmax.f32 %v7104, %v7160
  %v7399 = vmax.f32 %v7111, %v7167
  %v7400 = vmax.f32 %v7174, %v7230
  %v7401 = vmax.f32 %v7181, %v7237
  %v7402 = vmax.f32 %v7188, %v7244
  %v7403 = vmax.f32 %v7195, %v7251
  %v7404 = vmax.f32 %v7202, %v7258
  %v7405 = vmax.f32 %v7209, %v7265
  %v7406 = vmax.f32 %v7216, %v7272
  %v7407 = vmax.f32 %v7223, %v7279
  %vm7408 = vcmask 15360
  %7409 = vst.msk [vmem:[#allocation3] sm:$0xff] %vm7408, 0.0
  %7410 = vst.msk [vmem:[#allocation3 + $0x8] sm:$0x3] %vm5487, 0.0
  %7411 = vst.msk [vmem:[#allocation3 + $0x10] sm:$0xff] %vm7408, 0.0
  %7412 = vst.msk [vmem:[#allocation3 + $0x18] sm:$0x3] %vm5487, 0.0
  %7413 = vst.msk [vmem:[#allocation3 + $0x20] sm:$0xff] %vm7408, 0.0
  %7414 = vst.msk [vmem:[#allocation3 + $0x28] sm:$0x3] %vm5487, 0.0
  %7415 = vst.msk [vmem:[#allocation3 + $0x30] sm:$0xff] %vm7408, 0.0
  %7416 = vst.msk [vmem:[#allocation3 + $0x38] sm:$0x3] %vm5487, 0.0
  %7417 = vst.msk [vmem:[#allocation3 + $0x40] sm:$0xff] %vm7408, 0.0
  %7418 = vst.msk [vmem:[#allocation3 + $0x48] sm:$0x3] %vm5487, 0.0
  %7419 = vst.msk [vmem:[#allocation3 + $0x50] sm:$0xff] %vm7408, 0.0
  %7420 = vst.msk [vmem:[#allocation3 + $0x58] sm:$0x3] %vm5487, 0.0
  %7421 = vst.msk [vmem:[#allocation3 + $0x60] sm:$0xff] %vm7408, 0.0
  %7422 = vst.msk [vmem:[#allocation3 + $0x68] sm:$0x3] %vm5487, 0.0
  %7423 = vst.msk [vmem:[#allocation3 + $0x70] sm:$0xff] %vm7408, 0.0
  %7424 = vst.msk [vmem:[#allocation3 + $0x78] sm:$0x3] %vm5487, 0.0
  %7425 = vst.msk [vmem:[#allocation3 + $0x80] sm:$0xff] %vm7408, 0.0
  %7426 = vst.msk [vmem:[#allocation3 + $0x88] sm:$0x3] %vm5487, 0.0
  %7427 = vst.msk [vmem:[#allocation3 + $0x90] sm:$0xff] %vm7408, 0.0
  %7428 = vst.msk [vmem:[#allocation3 + $0x98] sm:$0x3] %vm5487, 0.0
  %7429 = vst.msk [vmem:[#allocation3 + $0xa0] sm:$0xff] %vm7408, 0.0
  %7430 = vst.msk [vmem:[#allocation3 + $0xa8] sm:$0x3] %vm5487, 0.0
  %7431 = vst.msk [vmem:[#allocation3 + $0xb0] sm:$0xff] %vm7408, 0.0
  %7432 = vst.msk [vmem:[#allocation3 + $0xb8] sm:$0x3] %vm5487, 0.0
  %7433 = vst.msk [vmem:[#allocation3 + $0xc0] sm:$0xff] %vm7408, 0.0
  %7434 = vst.msk [vmem:[#allocation3 + $0xc8] sm:$0x3] %vm5487, 0.0
  %7435 = vst.msk [vmem:[#allocation3 + $0xd0] sm:$0xff] %vm7408, 0.0
  %7436 = vst.msk [vmem:[#allocation3 + $0xd8] sm:$0x3] %vm5487, 0.0
  %7437 = vst.msk [vmem:[#allocation3 + $0xe0] sm:$0xff] %vm7408, 0.0
  %7438 = vst.msk [vmem:[#allocation3 + $0xe8] sm:$0x3] %vm5487, 0.0
  %7439 = vst.msk [vmem:[#allocation3 + $0xf0] sm:$0xff] %vm7408, 0.0
  %7440 = vst.msk [vmem:[#allocation3 + $0xf8] sm:$0x3] %vm5487, 0.0
  %7441 = vst.msk [vmem:[#allocation3 + $0x100] sm:$0xff] %vm7408, 0.0
  %7442 = vst.msk [vmem:[#allocation3 + $0x108] sm:$0x3] %vm5487, 0.0
  %7443 = vst.msk [vmem:[#allocation3 + $0x110] sm:$0xff] %vm7408, 0.0
  %7444 = vst.msk [vmem:[#allocation3 + $0x118] sm:$0x3] %vm5487, 0.0
  %7445 = vst.msk [vmem:[#allocation3 + $0x120] sm:$0xff] %vm7408, 0.0
  %7446 = vst.msk [vmem:[#allocation3 + $0x128] sm:$0x3] %vm5487, 0.0
  %7447 = vst.msk [vmem:[#allocation3 + $0x130] sm:$0xff] %vm7408, 0.0
  %7448 = vst.msk [vmem:[#allocation3 + $0x138] sm:$0x3] %vm5487, 0.0
  %vm7577 = vcmask 1041409
  %v7578 = vsel %vm7577, %v7281, %v7280
  %vm7579 = vcmask 1042434
  %v7580 = vsel %vm7579, %v7282, %v7578
  %vm7581 = vcmask 1043459
  %v7582 = vsel %vm7581, %v7283, %v7580
  %vm7583 = vcmask 1044484
  %v7584 = vsel %vm7583, %v7284, %v7582
  %vm7585 = vcmask 1045509
  %v7586 = vsel %vm7585, %v7285, %v7584
  %vm7587 = vcmask 1046534
  %v7588 = vsel %vm7587, %v7286, %v7586
  %vm7589 = vcmask 1047559
  %v7590 = vsel %vm7589, %v7287, %v7588
  %v7591 = vsel %vm7577, %v7289, %v7288
  %v7592 = vsel %vm7579, %v7290, %v7591
  %v7593 = vsel %vm7581, %v7291, %v7592
  %v7594 = vsel %vm7583, %v7292, %v7593
  %v7595 = vsel %vm7585, %v7293, %v7594
  %v7596 = vsel %vm7587, %v7294, %v7595
  %v7597 = vsel %vm7589, %v7295, %v7596
  %v7598 = vsel %vm7577, %v7297, %v7296
  %v7599 = vsel %vm7579, %v7298, %v7598
  %v7600 = vsel %vm7581, %v7299, %v7599
  %v7601 = vsel %vm7583, %v7300, %v7600
  %v7602 = vsel %vm7585, %v7301, %v7601
  %v7603 = vsel %vm7587, %v7302, %v7602
  %v7604 = vsel %vm7589, %v7303, %v7603
  %v7605 = vsel %vm7577, %v7305, %v7304
  %v7606 = vsel %vm7579, %v7306, %v7605
  %v7607 = vsel %vm7581, %v7307, %v7606
  %v7608 = vsel %vm7583, %v7308, %v7607
  %v7609 = vsel %vm7585, %v7309, %v7608
  %v7610 = vsel %vm7587, %v7310, %v7609
  %v7611 = vsel %vm7589, %v7311, %v7610
  %v7612 = vsel %vm7577, %v7313, %v7312
  %v7613 = vsel %vm7579, %v7314, %v7612
  %v7614 = vsel %vm7581, %v7315, %v7613
  %v7615 = vsel %vm7583, %v7316, %v7614
  %v7616 = vsel %vm7585, %v7317, %v7615
  %v7617 = vsel %vm7587, %v7318, %v7616
  %v7618 = vsel %vm7589, %v7319, %v7617
  %v7619 = vsel %vm7577, %v7321, %v7320
  %v7620 = vsel %vm7579, %v7322, %v7619
  %v7621 = vsel %vm7581, %v7323, %v7620
  %v7622 = vsel %vm7583, %v7324, %v7621
  %v7623 = vsel %vm7585, %v7325, %v7622
  %v7624 = vsel %vm7587, %v7326, %v7623
  %v7625 = vsel %vm7589, %v7327, %v7624
  %v7626 = vsel %vm7577, %v7329, %v7328
  %v7627 = vsel %vm7579, %v7330, %v7626
  %v7628 = vsel %vm7581, %v7331, %v7627
  %v7629 = vsel %vm7583, %v7332, %v7628
  %v7630 = vsel %vm7585, %v7333, %v7629
  %v7631 = vsel %vm7587, %v7334, %v7630
  %v7632 = vsel %vm7589, %v7335, %v7631
  %v7633 = vsel %vm7577, %v7337, %v7336
  %v7634 = vsel %vm7579, %v7338, %v7633
  %v7635 = vsel %vm7581, %v7339, %v7634
  %v7636 = vsel %vm7583, %v7340, %v7635
  %v7637 = vsel %vm7585, %v7341, %v7636
  %v7638 = vsel %vm7587, %v7342, %v7637
  %v7639 = vsel %vm7589, %v7343, %v7638
  %v7640 = vsel %vm7577, %v7345, %v7344
  %v7641 = vsel %vm7579, %v7346, %v7640
  %v7642 = vsel %vm7581, %v7347, %v7641
  %v7643 = vsel %vm7583, %v7348, %v7642
  %v7644 = vsel %vm7585, %v7349, %v7643
  %v7645 = vsel %vm7587, %v7350, %v7644
  %v7646 = vsel %vm7589, %v7351, %v7645
  %v7647 = vsel %vm7577, %v7353, %v7352
  %v7648 = vsel %vm7579, %v7354, %v7647
  %v7649 = vsel %vm7581, %v7355, %v7648
  %v7650 = vsel %vm7583, %v7356, %v7649
  %v7651 = vsel %vm7585, %v7357, %v7650
  %v7652 = vsel %vm7587, %v7358, %v7651
  %v7653 = vsel %vm7589, %v7359, %v7652
  %v7654 = vsel %vm7577, %v7361, %v7360
  %v7655 = vsel %vm7579, %v7362, %v7654
  %v7656 = vsel %vm7581, %v7363, %v7655
  %v7657 = vsel %vm7583, %v7364, %v7656
  %v7658 = vsel %vm7585, %v7365, %v7657
  %v7659 = vsel %vm7587, %v7366, %v7658
  %v7660 = vsel %vm7589, %v7367, %v7659
  %v7661 = vsel %vm7577, %v7369, %v7368
  %v7662 = vsel %vm7579, %v7370, %v7661
  %v7663 = vsel %vm7581, %v7371, %v7662
  %v7664 = vsel %vm7583, %v7372, %v7663
  %v7665 = vsel %vm7585, %v7373, %v7664
  %v7666 = vsel %vm7587, %v7374, %v7665
  %v7667 = vsel %vm7589, %v7375, %v7666
  %v7668 = vsel %vm7577, %v7377, %v7376
  %v7669 = vsel %vm7579, %v7378, %v7668
  %v7670 = vsel %vm7581, %v7379, %v7669
  %v7671 = vsel %vm7583, %v7380, %v7670
  %v7672 = vsel %vm7585, %v7381, %v7671
  %v7673 = vsel %vm7587, %v7382, %v7672
  %v7674 = vsel %vm7589, %v7383, %v7673
  %v7675 = vsel %vm7577, %v7385, %v7384
  %v7676 = vsel %vm7579, %v7386, %v7675
  %v7677 = vsel %vm7581, %v7387, %v7676
  %v7678 = vsel %vm7583, %v7388, %v7677
  %v7679 = vsel %vm7585, %v7389, %v7678
  %v7680 = vsel %vm7587, %v7390, %v7679
  %v7681 = vsel %vm7589, %v7391, %v7680
  %v7682 = vsel %vm7577, %v7393, %v7392
  %v7683 = vsel %vm7579, %v7394, %v7682
  %v7684 = vsel %vm7581, %v7395, %v7683
  %v7685 = vsel %vm7583, %v7396, %v7684
  %v7686 = vsel %vm7585, %v7397, %v7685
  %v7687 = vsel %vm7587, %v7398, %v7686
  %v7688 = vsel %vm7589, %v7399, %v7687
  %v7689 = vsel %vm7577, %v7401, %v7400
  %v7690 = vsel %vm7579, %v7402, %v7689
  %v7691 = vsel %vm7581, %v7403, %v7690
  %v7692 = vsel %vm7583, %v7404, %v7691
  %v7693 = vsel %vm7585, %v7405, %v7692
  %v7694 = vsel %vm7587, %v7406, %v7693
  %v7695 = vsel %vm7589, %v7407, %v7694
  %s7712 = scalar_lea.vmem [#allocation3], 16
  %7713 = vst.msk [vmem:[%s7712 + $0x1] sm:$0xff] %vm7408, %v7590
  %7714 = vst.msk [vmem:[%s7712 + $0x11] sm:$0xff] %vm7408, %v7597
  %7715 = vst.msk [vmem:[%s7712 + $0x21] sm:$0xff] %vm7408, %v7604
  %7716 = vst.msk [vmem:[%s7712 + $0x31] sm:$0xff] %vm7408, %v7611
  %7717 = vst.msk [vmem:[%s7712 + $0x41] sm:$0xff] %vm7408, %v7618
  %7718 = vst.msk [vmem:[%s7712 + $0x51] sm:$0xff] %vm7408, %v7625
  %7719 = vst.msk [vmem:[%s7712 + $0x61] sm:$0xff] %vm7408, %v7632
  %7720 = vst.msk [vmem:[%s7712 + $0x71] sm:$0xff] %vm7408, %v7639
  %7721 = vst.msk [vmem:[%s7712 + $0xa1] sm:$0xff] %vm7408, %v7646
  %7722 = vst.msk [vmem:[%s7712 + $0xb1] sm:$0xff] %vm7408, %v7653
  %7723 = vst.msk [vmem:[%s7712 + $0xc1] sm:$0xff] %vm7408, %v7660
  %7724 = vst.msk [vmem:[%s7712 + $0xd1] sm:$0xff] %vm7408, %v7667
  %7725 = vst.msk [vmem:[%s7712 + $0xe1] sm:$0xff] %vm7408, %v7674
  %7726 = vst.msk [vmem:[%s7712 + $0xf1] sm:$0xff] %vm7408, %v7681
  %7727 = vst.msk [vmem:[%s7712 + $0x101] sm:$0xff] %vm7408, %v7688
  %7728 = vst.msk [vmem:[%s7712 + $0x111] sm:$0xff] %vm7408, %v7695
  %v7729 = vld [vmem:[#allocation3] sm:$0xff]
  %v7730 = vld [vmem:[#allocation3 + $0x10] sm:$0xff]
  %v7731 = vld [vmem:[#allocation3 + $0x20] sm:$0xff]
  %v7732 = vld [vmem:[#allocation3 + $0x30] sm:$0xff]
  %v7733 = vld [vmem:[#allocation3 + $0x40] sm:$0xff]
  %v7734 = vld [vmem:[#allocation3 + $0x50] sm:$0xff]
  %v7735 = vld [vmem:[#allocation3 + $0x60] sm:$0xff]
  %v7736 = vld [vmem:[#allocation3 + $0x70] sm:$0xff]
  %v7737 = vld [vmem:[#allocation3 + $0xa0] sm:$0xff]
  %v7738 = vld [vmem:[#allocation3 + $0xb0] sm:$0xff]
  %v7739 = vld [vmem:[#allocation3 + $0xc0] sm:$0xff]
  %v7740 = vld [vmem:[#allocation3 + $0xd0] sm:$0xff]
  %v7741 = vld [vmem:[#allocation3 + $0xe0] sm:$0xff]
  %v7742 = vld [vmem:[#allocation3 + $0xf0] sm:$0xff]
  %v7743 = vld [vmem:[#allocation3 + $0x100] sm:$0xff]
  %v7744 = vld [vmem:[#allocation3 + $0x110] sm:$0xff]
  %v7745 = vld [vmem:[#allocation3 + $0x1] sm:$0xff]
  %v7746 = vld [vmem:[#allocation3 + $0x11] sm:$0xff]
  %v7747 = vld [vmem:[#allocation3 + $0x21] sm:$0xff]
  %v7748 = vld [vmem:[#allocation3 + $0x31] sm:$0xff]
  %v7749 = vld [vmem:[#allocation3 + $0x41] sm:$0xff]
  %v7750 = vld [vmem:[#allocation3 + $0x51] sm:$0xff]
  %v7751 = vld [vmem:[#allocation3 + $0x61] sm:$0xff]
  %v7752 = vld [vmem:[#allocation3 + $0x71] sm:$0xff]
  %v7753 = vld [vmem:[#allocation3 + $0xa1] sm:$0xff]
  %v7754 = vld [vmem:[#allocation3 + $0xb1] sm:$0xff]
  %v7755 = vld [vmem:[#allocation3 + $0xc1] sm:$0xff]
  %v7756 = vld [vmem:[#allocation3 + $0xd1] sm:$0xff]
  %v7757 = vld [vmem:[#allocation3 + $0xe1] sm:$0xff]
  %v7758 = vld [vmem:[#allocation3 + $0xf1] sm:$0xff]
  %v7759 = vld [vmem:[#allocation3 + $0x101] sm:$0xff]
  %v7760 = vld [vmem:[#allocation3 + $0x111] sm:$0xff]
  %v7761 = vld [vmem:[#allocation3 + $0x2] sm:$0xff]
  %v7762 = vld [vmem:[#allocation3 + $0x12] sm:$0xff]
  %v7763 = vld [vmem:[#allocation3 + $0x22] sm:$0xff]
  %v7764 = vld [vmem:[#allocation3 + $0x32] sm:$0xff]
  %v7765 = vld [vmem:[#allocation3 + $0x42] sm:$0xff]
  %v7766 = vld [vmem:[#allocation3 + $0x52] sm:$0xff]
  %v7767 = vld [vmem:[#allocation3 + $0x62] sm:$0xff]
  %v7768 = vld [vmem:[#allocation3 + $0x72] sm:$0xff]
  %v7769 = vld [vmem:[#allocation3 + $0xa2] sm:$0xff]
  %v7770 = vld [vmem:[#allocation3 + $0xb2] sm:$0xff]
  %v7771 = vld [vmem:[#allocation3 + $0xc2] sm:$0xff]
  %v7772 = vld [vmem:[#allocation3 + $0xd2] sm:$0xff]
  %v7773 = vld [vmem:[#allocation3 + $0xe2] sm:$0xff]
  %v7774 = vld [vmem:[#allocation3 + $0xf2] sm:$0xff]
  %v7775 = vld [vmem:[#allocation3 + $0x102] sm:$0xff]
  %v7776 = vld [vmem:[#allocation3 + $0x112] sm:$0xff]
  %v7777 = vld [vmem:[%s7712] sm:$0xff]
  %v7778 = vld [vmem:[%s7712 + $0x10] sm:$0xff]
  %v7779 = vld [vmem:[%s7712 + $0x20] sm:$0xff]
  %v7780 = vld [vmem:[%s7712 + $0x30] sm:$0xff]
  %v7781 = vld [vmem:[%s7712 + $0x40] sm:$0xff]
  %v7782 = vld [vmem:[%s7712 + $0x50] sm:$0xff]
  %v7783 = vld [vmem:[%s7712 + $0x60] sm:$0xff]
  %v7784 = vld [vmem:[%s7712 + $0x70] sm:$0xff]
  %v7785 = vld [vmem:[%s7712 + $0xa0] sm:$0xff]
  %v7786 = vld [vmem:[%s7712 + $0xb0] sm:$0xff]
  %v7787 = vld [vmem:[%s7712 + $0xc0] sm:$0xff]
  %v7788 = vld [vmem:[%s7712 + $0xd0] sm:$0xff]
  %v7789 = vld [vmem:[%s7712 + $0xe0] sm:$0xff]
  %v7790 = vld [vmem:[%s7712 + $0xf0] sm:$0xff]
  %v7791 = vld [vmem:[%s7712 + $0x100] sm:$0xff]
  %v7792 = vld [vmem:[%s7712 + $0x110] sm:$0xff]
  %v7793 = vld [vmem:[%s7712 + $0x1] sm:$0xff]
  %v7794 = vld [vmem:[%s7712 + $0x11] sm:$0xff]
  %v7795 = vld [vmem:[%s7712 + $0x21] sm:$0xff]
  %v7796 = vld [vmem:[%s7712 + $0x31] sm:$0xff]
  %v7797 = vld [vmem:[%s7712 + $0x41] sm:$0xff]
  %v7798 = vld [vmem:[%s7712 + $0x51] sm:$0xff]
  %v7799 = vld [vmem:[%s7712 + $0x61] sm:$0xff]
  %v7800 = vld [vmem:[%s7712 + $0x71] sm:$0xff]
  %v7801 = vld [vmem:[%s7712 + $0xa1] sm:$0xff]
  %v7802 = vld [vmem:[%s7712 + $0xb1] sm:$0xff]
  %v7803 = vld [vmem:[%s7712 + $0xc1] sm:$0xff]
  %v7804 = vld [vmem:[%s7712 + $0xd1] sm:$0xff]
  %v7805 = vld [vmem:[%s7712 + $0xe1] sm:$0xff]
  %v7806 = vld [vmem:[%s7712 + $0xf1] sm:$0xff]
  %v7807 = vld [vmem:[%s7712 + $0x101] sm:$0xff]
  %v7808 = vld [vmem:[%s7712 + $0x111] sm:$0xff]
  %v7809 = vld [vmem:[%s7712 + $0x2] sm:$0xff]
  %v7810 = vld [vmem:[%s7712 + $0x12] sm:$0xff]
  %v7811 = vld [vmem:[%s7712 + $0x22] sm:$0xff]
  %v7812 = vld [vmem:[%s7712 + $0x32] sm:$0xff]
  %v7813 = vld [vmem:[%s7712 + $0x42] sm:$0xff]
  %v7814 = vld [vmem:[%s7712 + $0x52] sm:$0xff]
  %v7815 = vld [vmem:[%s7712 + $0x62] sm:$0xff]
  %v7816 = vld [vmem:[%s7712 + $0x72] sm:$0xff]
  %v7817 = vld [vmem:[%s7712 + $0xa2] sm:$0xff]
  %v7818 = vld [vmem:[%s7712 + $0xb2] sm:$0xff]
  %v7819 = vld [vmem:[%s7712 + $0xc2] sm:$0xff]
  %v7820 = vld [vmem:[%s7712 + $0xd2] sm:$0xff]
  %v7821 = vld [vmem:[%s7712 + $0xe2] sm:$0xff]
  %v7822 = vld [vmem:[%s7712 + $0xf2] sm:$0xff]
  %v7823 = vld [vmem:[%s7712 + $0x102] sm:$0xff]
  %v7824 = vld [vmem:[%s7712 + $0x112] sm:$0xff]
  %s7825 = scalar_lea.vmem [#allocation3], 32
  %v7826 = vld [vmem:[%s7825] sm:$0xff]
  %v7827 = vld [vmem:[%s7825 + $0x10] sm:$0xff]
  %v7828 = vld [vmem:[%s7825 + $0x20] sm:$0xff]
  %v7829 = vld [vmem:[%s7825 + $0x30] sm:$0xff]
  %v7830 = vld [vmem:[%s7825 + $0x40] sm:$0xff]
  %v7831 = vld [vmem:[%s7825 + $0x50] sm:$0xff]
  %v7832 = vld [vmem:[%s7825 + $0x60] sm:$0xff]
  %v7833 = vld [vmem:[%s7825 + $0x70] sm:$0xff]
  %v7834 = vld [vmem:[%s7825 + $0xa0] sm:$0xff]
  %v7835 = vld [vmem:[%s7825 + $0xb0] sm:$0xff]
  %v7836 = vld [vmem:[%s7825 + $0xc0] sm:$0xff]
  %v7837 = vld [vmem:[%s7825 + $0xd0] sm:$0xff]
  %v7838 = vld [vmem:[%s7825 + $0xe0] sm:$0xff]
  %v7839 = vld [vmem:[%s7825 + $0xf0] sm:$0xff]
  %v7840 = vld [vmem:[%s7825 + $0x100] sm:$0xff]
  %v7841 = vld [vmem:[%s7825 + $0x110] sm:$0xff]
  %v7842 = vld [vmem:[%s7825 + $0x1] sm:$0xff]
  %v7843 = vld [vmem:[%s7825 + $0x11] sm:$0xff]
  %v7844 = vld [vmem:[%s7825 + $0x21] sm:$0xff]
  %v7845 = vld [vmem:[%s7825 + $0x31] sm:$0xff]
  %v7846 = vld [vmem:[%s7825 + $0x41] sm:$0xff]
  %v7847 = vld [vmem:[%s7825 + $0x51] sm:$0xff]
  %v7848 = vld [vmem:[%s7825 + $0x61] sm:$0xff]
  %v7849 = vld [vmem:[%s7825 + $0x71] sm:$0xff]
  %v7850 = vld [vmem:[%s7825 + $0xa1] sm:$0xff]
  %v7851 = vld [vmem:[%s7825 + $0xb1] sm:$0xff]
  %v7852 = vld [vmem:[%s7825 + $0xc1] sm:$0xff]
  %v7853 = vld [vmem:[%s7825 + $0xd1] sm:$0xff]
  %v7854 = vld [vmem:[%s7825 + $0xe1] sm:$0xff]
  %v7855 = vld [vmem:[%s7825 + $0xf1] sm:$0xff]
  %v7856 = vld [vmem:[%s7825 + $0x101] sm:$0xff]
  %v7857 = vld [vmem:[%s7825 + $0x111] sm:$0xff]
  %v7858 = vld [vmem:[%s7825 + $0x2] sm:$0xff]
  %v7859 = vld [vmem:[%s7825 + $0x12] sm:$0xff]
  %v7860 = vld [vmem:[%s7825 + $0x22] sm:$0xff]
  %v7861 = vld [vmem:[%s7825 + $0x32] sm:$0xff]
  %v7862 = vld [vmem:[%s7825 + $0x42] sm:$0xff]
  %v7863 = vld [vmem:[%s7825 + $0x52] sm:$0xff]
  %v7864 = vld [vmem:[%s7825 + $0x62] sm:$0xff]
  %v7865 = vld [vmem:[%s7825 + $0x72] sm:$0xff]
  %v7866 = vld [vmem:[%s7825 + $0xa2] sm:$0xff]
  %v7867 = vld [vmem:[%s7825 + $0xb2] sm:$0xff]
  %v7868 = vld [vmem:[%s7825 + $0xc2] sm:$0xff]
  %v7869 = vld [vmem:[%s7825 + $0xd2] sm:$0xff]
  %v7870 = vld [vmem:[%s7825 + $0xe2] sm:$0xff]
  %v7871 = vld [vmem:[%s7825 + $0xf2] sm:$0xff]
  %v7872 = vld [vmem:[%s7825 + $0x102] sm:$0xff]
  %v7873 = vld [vmem:[%s7825 + $0x112] sm:$0xff]
  %7890 = vrot.lane.b32.xlu0 %v7745, 2
  %v7891 = vpop.permute.xlu0 %7890
  %7892 = vrot.lane.b32.xlu0 %v7746, 2
  %v7893 = vpop.permute.xlu0 %7892
  %7894 = vrot.lane.b32.xlu0 %v7747, 2
  %v7895 = vpop.permute.xlu0 %7894
  %7896 = vrot.lane.b32.xlu0 %v7748, 2
  %v7897 = vpop.permute.xlu0 %7896
  %7898 = vrot.lane.b32.xlu0 %v7749, 2
  %v7899 = vpop.permute.xlu0 %7898
  %7900 = vrot.lane.b32.xlu0 %v7750, 2
  %v7901 = vpop.permute.xlu0 %7900
  %7902 = vrot.lane.b32.xlu0 %v7751, 2
  %v7903 = vpop.permute.xlu0 %7902
  %7904 = vrot.lane.b32.xlu0 %v7752, 2
  %v7905 = vpop.permute.xlu0 %7904
  %7906 = vrot.lane.b32.xlu0 %v7753, 2
  %v7907 = vpop.permute.xlu0 %7906
  %7908 = vrot.lane.b32.xlu0 %v7754, 2
  %v7909 = vpop.permute.xlu0 %7908
  %7910 = vrot.lane.b32.xlu0 %v7755, 2
  %v7911 = vpop.permute.xlu0 %7910
  %7912 = vrot.lane.b32.xlu0 %v7756, 2
  %v7913 = vpop.permute.xlu0 %7912
  %7914 = vrot.lane.b32.xlu0 %v7757, 2
  %v7915 = vpop.permute.xlu0 %7914
  %7916 = vrot.lane.b32.xlu0 %v7758, 2
  %v7917 = vpop.permute.xlu0 %7916
  %7918 = vrot.lane.b32.xlu0 %v7759, 2
  %v7919 = vpop.permute.xlu0 %7918
  %7920 = vrot.lane.b32.xlu0 %v7760, 2
  %v7921 = vpop.permute.xlu0 %7920
  %7954 = vrot.lane.b32.xlu0 %v7761, 4
  %v7955 = vpop.permute.xlu0 %7954
  %7956 = vrot.lane.b32.xlu0 %v7762, 4
  %v7957 = vpop.permute.xlu0 %7956
  %7958 = vrot.lane.b32.xlu0 %v7763, 4
  %v7959 = vpop.permute.xlu0 %7958
  %7960 = vrot.lane.b32.xlu0 %v7764, 4
  %v7961 = vpop.permute.xlu0 %7960
  %7962 = vrot.lane.b32.xlu0 %v7765, 4
  %v7963 = vpop.permute.xlu0 %7962
  %7964 = vrot.lane.b32.xlu0 %v7766, 4
  %v7965 = vpop.permute.xlu0 %7964
  %7966 = vrot.lane.b32.xlu0 %v7767, 4
  %v7967 = vpop.permute.xlu0 %7966
  %7968 = vrot.lane.b32.xlu0 %v7768, 4
  %v7969 = vpop.permute.xlu0 %7968
  %7970 = vrot.lane.b32.xlu0 %v7769, 4
  %v7971 = vpop.permute.xlu0 %7970
  %7972 = vrot.lane.b32.xlu0 %v7770, 4
  %v7973 = vpop.permute.xlu0 %7972
  %7974 = vrot.lane.b32.xlu0 %v7771, 4
  %v7975 = vpop.permute.xlu0 %7974
  %7976 = vrot.lane.b32.xlu0 %v7772, 4
  %v7977 = vpop.permute.xlu0 %7976
  %7978 = vrot.lane.b32.xlu0 %v7773, 4
  %v7979 = vpop.permute.xlu0 %7978
  %7980 = vrot.lane.b32.xlu0 %v7774, 4
  %v7981 = vpop.permute.xlu0 %7980
  %7982 = vrot.lane.b32.xlu0 %v7775, 4
  %v7983 = vpop.permute.xlu0 %7982
  %7984 = vrot.lane.b32.xlu0 %v7776, 4
  %v7985 = vpop.permute.xlu0 %7984
  %8018 = vrot.lane.b32.xlu0 %v7777, 6
  %v8019 = vpop.permute.xlu0 %8018
  %8020 = vrot.lane.b32.xlu0 %v7778, 6
  %v8021 = vpop.permute.xlu0 %8020
  %8022 = vrot.lane.b32.xlu0 %v7779, 6
  %v8023 = vpop.permute.xlu0 %8022
  %8024 = vrot.lane.b32.xlu0 %v7780, 6
  %v8025 = vpop.permute.xlu0 %8024
  %8026 = vrot.lane.b32.xlu0 %v7781, 6
  %v8027 = vpop.permute.xlu0 %8026
  %8028 = vrot.lane.b32.xlu0 %v7782, 6
  %v8029 = vpop.permute.xlu0 %8028
  %8030 = vrot.lane.b32.xlu0 %v7783, 6
  %v8031 = vpop.permute.xlu0 %8030
  %8032 = vrot.lane.b32.xlu0 %v7784, 6
  %v8033 = vpop.permute.xlu0 %8032
  %8034 = vrot.lane.b32.xlu0 %v7785, 6
  %v8035 = vpop.permute.xlu0 %8034
  %8036 = vrot.lane.b32.xlu0 %v7786, 6
  %v8037 = vpop.permute.xlu0 %8036
  %8038 = vrot.lane.b32.xlu0 %v7787, 6
  %v8039 = vpop.permute.xlu0 %8038
  %8040 = vrot.lane.b32.xlu0 %v7788, 6
  %v8041 = vpop.permute.xlu0 %8040
  %8042 = vrot.lane.b32.xlu0 %v7789, 6
  %v8043 = vpop.permute.xlu0 %8042
  %8044 = vrot.lane.b32.xlu0 %v7790, 6
  %v8045 = vpop.permute.xlu0 %8044
  %8046 = vrot.lane.b32.xlu0 %v7791, 6
  %v8047 = vpop.permute.xlu0 %8046
  %8048 = vrot.lane.b32.xlu0 %v7792, 6
  %v8049 = vpop.permute.xlu0 %8048
  %8082 = vrot.lane.b32.xlu0 %v7793, 8
  %v8083 = vpop.permute.xlu0 %8082
  %8084 = vrot.lane.b32.xlu0 %v7794, 8
  %v8085 = vpop.permute.xlu0 %8084
  %8086 = vrot.lane.b32.xlu0 %v7795, 8
  %v8087 = vpop.permute.xlu0 %8086
  %8088 = vrot.lane.b32.xlu0 %v7796, 8
  %v8089 = vpop.permute.xlu0 %8088
  %8090 = vrot.lane.b32.xlu0 %v7797, 8
  %v8091 = vpop.permute.xlu0 %8090
  %8092 = vrot.lane.b32.xlu0 %v7798, 8
  %v8093 = vpop.permute.xlu0 %8092
  %8094 = vrot.lane.b32.xlu0 %v7799, 8
  %v8095 = vpop.permute.xlu0 %8094
  %8096 = vrot.lane.b32.xlu0 %v7800, 8
  %v8097 = vpop.permute.xlu0 %8096
  %8098 = vrot.lane.b32.xlu0 %v7801, 8
  %v8099 = vpop.permute.xlu0 %8098
  %8100 = vrot.lane.b32.xlu0 %v7802, 8
  %v8101 = vpop.permute.xlu0 %8100
  %8102 = vrot.lane.b32.xlu0 %v7803, 8
  %v8103 = vpop.permute.xlu0 %8102
  %8104 = vrot.lane.b32.xlu0 %v7804, 8
  %v8105 = vpop.permute.xlu0 %8104
  %8106 = vrot.lane.b32.xlu0 %v7805, 8
  %v8107 = vpop.permute.xlu0 %8106
  %8108 = vrot.lane.b32.xlu0 %v7806, 8
  %v8109 = vpop.permute.xlu0 %8108
  %8110 = vrot.lane.b32.xlu0 %v7807, 8
  %v8111 = vpop.permute.xlu0 %8110
  %8112 = vrot.lane.b32.xlu0 %v7808, 8
  %v8113 = vpop.permute.xlu0 %8112
  %8146 = vrot.lane.b32.xlu0 %v7809, 10
  %v8147 = vpop.permute.xlu0 %8146
  %8148 = vrot.lane.b32.xlu0 %v7810, 10
  %v8149 = vpop.permute.xlu0 %8148
  %8150 = vrot.lane.b32.xlu0 %v7811, 10
  %v8151 = vpop.permute.xlu0 %8150
  %8152 = vrot.lane.b32.xlu0 %v7812, 10
  %v8153 = vpop.permute.xlu0 %8152
  %8154 = vrot.lane.b32.xlu0 %v7813, 10
  %v8155 = vpop.permute.xlu0 %8154
  %8156 = vrot.lane.b32.xlu0 %v7814, 10
  %v8157 = vpop.permute.xlu0 %8156
  %8158 = vrot.lane.b32.xlu0 %v7815, 10
  %v8159 = vpop.permute.xlu0 %8158
  %8160 = vrot.lane.b32.xlu0 %v7816, 10
  %v8161 = vpop.permute.xlu0 %8160
  %8162 = vrot.lane.b32.xlu0 %v7817, 10
  %v8163 = vpop.permute.xlu0 %8162
  %8164 = vrot.lane.b32.xlu0 %v7818, 10
  %v8165 = vpop.permute.xlu0 %8164
  %8166 = vrot.lane.b32.xlu0 %v7819, 10
  %v8167 = vpop.permute.xlu0 %8166
  %8168 = vrot.lane.b32.xlu0 %v7820, 10
  %v8169 = vpop.permute.xlu0 %8168
  %8170 = vrot.lane.b32.xlu0 %v7821, 10
  %v8171 = vpop.permute.xlu0 %8170
  %8172 = vrot.lane.b32.xlu0 %v7822, 10
  %v8173 = vpop.permute.xlu0 %8172
  %8174 = vrot.lane.b32.xlu0 %v7823, 10
  %v8175 = vpop.permute.xlu0 %8174
  %8176 = vrot.lane.b32.xlu0 %v7824, 10
  %v8177 = vpop.permute.xlu0 %8176
  %8210 = vrot.lane.b32.xlu0 %v7826, 12
  %v8211 = vpop.permute.xlu0 %8210
  %8212 = vrot.lane.b32.xlu0 %v7827, 12
  %v8213 = vpop.permute.xlu0 %8212
  %8214 = vrot.lane.b32.xlu0 %v7828, 12
  %v8215 = vpop.permute.xlu0 %8214
  %8216 = vrot.lane.b32.xlu0 %v7829, 12
  %v8217 = vpop.permute.xlu0 %8216
  %8218 = vrot.lane.b32.xlu0 %v7830, 12
  %v8219 = vpop.permute.xlu0 %8218
  %8220 = vrot.lane.b32.xlu0 %v7831, 12
  %v8221 = vpop.permute.xlu0 %8220
  %8222 = vrot.lane.b32.xlu0 %v7832, 12
  %v8223 = vpop.permute.xlu0 %8222
  %8224 = vrot.lane.b32.xlu0 %v7833, 12
  %v8225 = vpop.permute.xlu0 %8224
  %8226 = vrot.lane.b32.xlu0 %v7834, 12
  %v8227 = vpop.permute.xlu0 %8226
  %8228 = vrot.lane.b32.xlu0 %v7835, 12
  %v8229 = vpop.permute.xlu0 %8228
  %8230 = vrot.lane.b32.xlu0 %v7836, 12
  %v8231 = vpop.permute.xlu0 %8230
  %8232 = vrot.lane.b32.xlu0 %v7837, 12
  %v8233 = vpop.permute.xlu0 %8232
  %8234 = vrot.lane.b32.xlu0 %v7838, 12
  %v8235 = vpop.permute.xlu0 %8234
  %8236 = vrot.lane.b32.xlu0 %v7839, 12
  %v8237 = vpop.permute.xlu0 %8236
  %8238 = vrot.lane.b32.xlu0 %v7840, 12
  %v8239 = vpop.permute.xlu0 %8238
  %8240 = vrot.lane.b32.xlu0 %v7841, 12
  %v8241 = vpop.permute.xlu0 %8240
  %8274 = vrot.lane.b32.xlu0 %v7842, 14
  %v8275 = vpop.permute.xlu0 %8274
  %8276 = vrot.lane.b32.xlu0 %v7843, 14
  %v8277 = vpop.permute.xlu0 %8276
  %8278 = vrot.lane.b32.xlu0 %v7844, 14
  %v8279 = vpop.permute.xlu0 %8278
  %8280 = vrot.lane.b32.xlu0 %v7845, 14
  %v8281 = vpop.permute.xlu0 %8280
  %8282 = vrot.lane.b32.xlu0 %v7846, 14
  %v8283 = vpop.permute.xlu0 %8282
  %8284 = vrot.lane.b32.xlu0 %v7847, 14
  %v8285 = vpop.permute.xlu0 %8284
  %8286 = vrot.lane.b32.xlu0 %v7848, 14
  %v8287 = vpop.permute.xlu0 %8286
  %8288 = vrot.lane.b32.xlu0 %v7849, 14
  %v8289 = vpop.permute.xlu0 %8288
  %8290 = vrot.lane.b32.xlu0 %v7850, 14
  %v8291 = vpop.permute.xlu0 %8290
  %8292 = vrot.lane.b32.xlu0 %v7851, 14
  %v8293 = vpop.permute.xlu0 %8292
  %8294 = vrot.lane.b32.xlu0 %v7852, 14
  %v8295 = vpop.permute.xlu0 %8294
  %8296 = vrot.lane.b32.xlu0 %v7853, 14
  %v8297 = vpop.permute.xlu0 %8296
  %8298 = vrot.lane.b32.xlu0 %v7854, 14
  %v8299 = vpop.permute.xlu0 %8298
  %8300 = vrot.lane.b32.xlu0 %v7855, 14
  %v8301 = vpop.permute.xlu0 %8300
  %8302 = vrot.lane.b32.xlu0 %v7856, 14
  %v8303 = vpop.permute.xlu0 %8302
  %8304 = vrot.lane.b32.xlu0 %v7857, 14
  %v8305 = vpop.permute.xlu0 %8304
  %8338 = vrot.lane.b32.xlu0 %v7858, 16
  %v8339 = vpop.permute.xlu0 %8338
  %8340 = vrot.lane.b32.xlu0 %v7859, 16
  %v8341 = vpop.permute.xlu0 %8340
  %8342 = vrot.lane.b32.xlu0 %v7860, 16
  %v8343 = vpop.permute.xlu0 %8342
  %8344 = vrot.lane.b32.xlu0 %v7861, 16
  %v8345 = vpop.permute.xlu0 %8344
  %8346 = vrot.lane.b32.xlu0 %v7862, 16
  %v8347 = vpop.permute.xlu0 %8346
  %8348 = vrot.lane.b32.xlu0 %v7863, 16
  %v8349 = vpop.permute.xlu0 %8348
  %8350 = vrot.lane.b32.xlu0 %v7864, 16
  %v8351 = vpop.permute.xlu0 %8350
  %8352 = vrot.lane.b32.xlu0 %v7865, 16
  %v8353 = vpop.permute.xlu0 %8352
  %8354 = vrot.lane.b32.xlu0 %v7866, 16
  %v8355 = vpop.permute.xlu0 %8354
  %8356 = vrot.lane.b32.xlu0 %v7867, 16
  %v8357 = vpop.permute.xlu0 %8356
  %8358 = vrot.lane.b32.xlu0 %v7868, 16
  %v8359 = vpop.permute.xlu0 %8358
  %8360 = vrot.lane.b32.xlu0 %v7869, 16
  %v8361 = vpop.permute.xlu0 %8360
  %8362 = vrot.lane.b32.xlu0 %v7870, 16
  %v8363 = vpop.permute.xlu0 %8362
  %8364 = vrot.lane.b32.xlu0 %v7871, 16
  %v8365 = vpop.permute.xlu0 %8364
  %8366 = vrot.lane.b32.xlu0 %v7872, 16
  %v8367 = vpop.permute.xlu0 %8366
  %8368 = vrot.lane.b32.xlu0 %v7873, 16
  %v8369 = vpop.permute.xlu0 %8368
  %v8386 = vsel %vm7408, %v7729, %v7891
  %v8387 = vsel %vm7408, %v7730, %v7893
  %v8388 = vsel %vm7408, %v7731, %v7895
  %v8389 = vsel %vm7408, %v7732, %v7897
  %v8390 = vsel %vm7408, %v7733, %v7899
  %v8391 = vsel %vm7408, %v7734, %v7901
  %v8392 = vsel %vm7408, %v7735, %v7903
  %v8393 = vsel %vm7408, %v7736, %v7905
  %v8394 = vsel %vm7408, %v7737, %v7907
  %v8395 = vsel %vm7408, %v7738, %v7909
  %v8396 = vsel %vm7408, %v7739, %v7911
  %v8397 = vsel %vm7408, %v7740, %v7913
  %v8398 = vsel %vm7408, %v7741, %v7915
  %v8399 = vsel %vm7408, %v7742, %v7917
  %v8400 = vsel %vm7408, %v7743, %v7919
  %v8401 = vsel %vm7408, %v7744, %v7921
  %v8402 = vsel %vm38, %v8386, %v7955
  %v8403 = vsel %vm38, %v8387, %v7957
  %v8404 = vsel %vm38, %v8388, %v7959
  %v8405 = vsel %vm38, %v8389, %v7961
  %v8406 = vsel %vm38, %v8390, %v7963
  %v8407 = vsel %vm38, %v8391, %v7965
  %v8408 = vsel %vm38, %v8392, %v7967
  %v8409 = vsel %vm38, %v8393, %v7969
  %v8410 = vsel %vm38, %v8394, %v7971
  %v8411 = vsel %vm38, %v8395, %v7973
  %v8412 = vsel %vm38, %v8396, %v7975
  %v8413 = vsel %vm38, %v8397, %v7977
  %v8414 = vsel %vm38, %v8398, %v7979
  %v8415 = vsel %vm38, %v8399, %v7981
  %v8416 = vsel %vm38, %v8400, %v7983
  %v8417 = vsel %vm38, %v8401, %v7985
  %vm8418 = vcmask 48128
  %v8419 = vsel %vm8418, %v8402, %v8019
  %v8420 = vsel %vm8418, %v8403, %v8021
  %v8421 = vsel %vm8418, %v8404, %v8023
  %v8422 = vsel %vm8418, %v8405, %v8025
  %v8423 = vsel %vm8418, %v8406, %v8027
  %v8424 = vsel %vm8418, %v8407, %v8029
  %v8425 = vsel %vm8418, %v8408, %v8031
  %v8426 = vsel %vm8418, %v8409, %v8033
  %v8427 = vsel %vm8418, %v8410, %v8035
  %v8428 = vsel %vm8418, %v8411, %v8037
  %v8429 = vsel %vm8418, %v8412, %v8039
  %v8430 = vsel %vm8418, %v8413, %v8041
  %v8431 = vsel %vm8418, %v8414, %v8043
  %v8432 = vsel %vm8418, %v8415, %v8045
  %v8433 = vsel %vm8418, %v8416, %v8047
  %v8434 = vsel %vm8418, %v8417, %v8049
  %v8435 = vsel %vm2966, %v8419, %v8083
  %v8436 = vsel %vm2966, %v8420, %v8085
  %v8437 = vsel %vm2966, %v8421, %v8087
  %v8438 = vsel %vm2966, %v8422, %v8089
  %v8439 = vsel %vm2966, %v8423, %v8091
  %v8440 = vsel %vm2966, %v8424, %v8093
  %v8441 = vsel %vm2966, %v8425, %v8095
  %v8442 = vsel %vm2966, %v8426, %v8097
  %v8443 = vsel %vm2966, %v8427, %v8099
  %v8444 = vsel %vm2966, %v8428, %v8101
  %v8445 = vsel %vm2966, %v8429, %v8103
  %v8446 = vsel %vm2966, %v8430, %v8105
  %v8447 = vsel %vm2966, %v8431, %v8107
  %v8448 = vsel %vm2966, %v8432, %v8109
  %v8449 = vsel %vm2966, %v8433, %v8111
  %v8450 = vsel %vm2966, %v8434, %v8113
  %vm8451 = vcmask 80896
  %v8452 = vsel %vm8451, %v8435, %v8147
  %v8453 = vsel %vm8451, %v8436, %v8149
  %v8454 = vsel %vm8451, %v8437, %v8151
  %v8455 = vsel %vm8451, %v8438, %v8153
  %v8456 = vsel %vm8451, %v8439, %v8155
  %v8457 = vsel %vm8451, %v8440, %v8157
  %v8458 = vsel %vm8451, %v8441, %v8159
  %v8459 = vsel %vm8451, %v8442, %v8161
  %v8460 = vsel %vm8451, %v8443, %v8163
  %v8461 = vsel %vm8451, %v8444, %v8165
  %v8462 = vsel %vm8451, %v8445, %v8167
  %v8463 = vsel %vm8451, %v8446, %v8169
  %v8464 = vsel %vm8451, %v8447, %v8171
  %v8465 = vsel %vm8451, %v8448, %v8173
  %v8466 = vsel %vm8451, %v8449, %v8175
  %v8467 = vsel %vm8451, %v8450, %v8177
  %v8468 = vsel %vm3031, %v8452, %v8211
  %v8469 = vsel %vm3031, %v8453, %v8213
  %v8470 = vsel %vm3031, %v8454, %v8215
  %v8471 = vsel %vm3031, %v8455, %v8217
  %v8472 = vsel %vm3031, %v8456, %v8219
  %v8473 = vsel %vm3031, %v8457, %v8221
  %v8474 = vsel %vm3031, %v8458, %v8223
  %v8475 = vsel %vm3031, %v8459, %v8225
  %v8476 = vsel %vm3031, %v8460, %v8227
  %v8477 = vsel %vm3031, %v8461, %v8229
  %v8478 = vsel %vm3031, %v8462, %v8231
  %v8479 = vsel %vm3031, %v8463, %v8233
  %v8480 = vsel %vm3031, %v8464, %v8235
  %v8481 = vsel %vm3031, %v8465, %v8237
  %v8482 = vsel %vm3031, %v8466, %v8239
  %v8483 = vsel %vm3031, %v8467, %v8241
  %vm8484 = vcmask 113664
  %v8485 = vsel %vm8484, %v8468, %v8275
  %v8486 = vsel %vm8484, %v8469, %v8277
  %v8487 = vsel %vm8484, %v8470, %v8279
  %v8488 = vsel %vm8484, %v8471, %v8281
  %v8489 = vsel %vm8484, %v8472, %v8283
  %v8490 = vsel %vm8484, %v8473, %v8285
  %v8491 = vsel %vm8484, %v8474, %v8287
  %v8492 = vsel %vm8484, %v8475, %v8289
  %v8493 = vsel %vm8484, %v8476, %v8291
  %v8494 = vsel %vm8484, %v8477, %v8293
  %v8495 = vsel %vm8484, %v8478, %v8295
  %v8496 = vsel %vm8484, %v8479, %v8297
  %v8497 = vsel %vm8484, %v8480, %v8299
  %v8498 = vsel %vm8484, %v8481, %v8301
  %v8499 = vsel %vm8484, %v8482, %v8303
  %v8500 = vsel %vm8484, %v8483, %v8305
  %v8501 = vsel %vm3096, %v8485, %v8339
  %v8502 = vsel %vm3096, %v8486, %v8341
  %v8503 = vsel %vm3096, %v8487, %v8343
  %v8504 = vsel %vm3096, %v8488, %v8345
  %v8505 = vsel %vm3096, %v8489, %v8347
  %v8506 = vsel %vm3096, %v8490, %v8349
  %v8507 = vsel %vm3096, %v8491, %v8351
  %v8508 = vsel %vm3096, %v8492, %v8353
  %v8509 = vsel %vm3096, %v8493, %v8355
  %v8510 = vsel %vm3096, %v8494, %v8357
  %v8511 = vsel %vm3096, %v8495, %v8359
  %v8512 = vsel %vm3096, %v8496, %v8361
  %v8513 = vsel %vm3096, %v8497, %v8363
  %v8514 = vsel %vm3096, %v8498, %v8365
  %v8515 = vsel %vm3096, %v8499, %v8367
  %v8516 = vsel %vm3096, %v8500, %v8369
  %v8517 = vld [vmem:[%s3] sm:$0xff]
  %v8518 = vld [vmem:[%s3 + $0x8] sm:$0xff]
  %v8519 = vld [vmem:[%s3 + $0x10] sm:$0x3]
  %v8520 = vld [vmem:[%s4] sm:$0x1]
  %v8522 = vlaneseq
  %v8523 = vshrl.u32 %v8522, 7
  %v8524 = vsub.s32 0, %v8523
  %v8525 = vrot.slane %v8520, %v8524
  %vm8527 = vcmask 146432
  %v8529 = vsel %vm8527, %v8501, 0
  %v8532 = vsel %vm8527, %v8502, 0
  %v8535 = vsel %vm8527, %v8503, 0
  %v8538 = vsel %vm8527, %v8504, 0
  %v8541 = vsel %vm8527, %v8505, 0
  %v8544 = vsel %vm8527, %v8506, 0
  %v8547 = vsel %vm8527, %v8507, 0
  %v8550 = vsel %vm8527, %v8508, 0
  %v8553 = vsel %vm8527, %v8509, 0
  %v8556 = vsel %vm8527, %v8510, 0
  %v8559 = vsel %vm8527, %v8511, 0
  %v8562 = vsel %vm8527, %v8512, 0
  %v8565 = vsel %vm8527, %v8513, 0
  %v8568 = vsel %vm8527, %v8514, 0
  %v8571 = vsel %vm8527, %v8515, 0
  %v8574 = vsel %vm8527, %v8516, 0
  %vm8576 = vcmask 1041408
  %v8578 = vsel %vm8576, %v8519, 0
  %8580 = vmatprep.subr.mxu0 0.0
  %8581 = vmatpush1.msra.mxu0 %v8517
  %8582 = vmatprep.subr.mxu0 0.0
  %8583 = vmatpush1.msra.mxu0 %v8518
  %8584 = vmatprep.subr.mxu0 0.0
  %8585 = vmatpush1.msra.mxu0 %v8578
  %8586 = vmatprep.subr.mxu0 0.0
  %8587 = vmatpush1.msra.mxu0 0.0
  %8588 = vmatprep.subr.mxu0 0.0
  %8589 = vmatpush1.msra.mxu0 0.0
  %8590 = vmatprep.subr.mxu0 0.0
  %8591 = vmatpush1.msra.mxu0 0.0
  %8592 = vmatprep.subr.mxu0 0.0
  %8593 = vmatpush1.msra.mxu0 0.0
  %8594 = vmatprep.subr.mxu0 0.0
  %8595 = vmatpush1.msra.mxu0 0.0
  %8596 = vmatprep.subr.mxu0 0.0
  %8597 = vmatpush1.msra.mxu0 0.0
  %8598 = vmatprep.subr.mxu0 0.0
  %8599 = vmatpush1.msra.mxu0 0.0
  %8600 = vmatprep.subr.mxu0 0.0
  %8601 = vmatpush1.msra.mxu0 0.0
  %8602 = vmatprep.subr.mxu0 0.0
  %8603 = vmatpush1.msra.mxu0 0.0
  %8604 = vmatprep.subr.mxu0 0.0
  %8605 = vmatpush1.msra.mxu0 0.0
  %8606 = vmatprep.subr.mxu0 0.0
  %8607 = vmatpush1.msra.mxu0 0.0
  %8608 = vmatprep.subr.mxu0 0.0
  %8609 = vmatpush1.msra.mxu0 0.0
  %8610 = vmatprep.subr.mxu0 0.0
  %8611 = vmatpush1.msra.mxu0 0.0
  %8612 = vmatprep.subr.mxu0 0.0
  %8613 = vmatpush1.msra.mxu0 0.0
  %8614 = vmatprep.subr.mxu0 0.0
  %8615 = vmatpush1.msra.mxu0 0.0
  %8616 = vmatprep.subr.mxu0 0.0
  %8617 = vmatpush1.msra.mxu0 0.0
  %8618 = vmatprep.subr.mxu0 0.0
  %8619 = vmatpush1.msra.mxu0 0.0
  %8620 = vmatprep.subr.mxu0 0.0
  %8621 = vmatpush1.msra.mxu0 0.0
  %8622 = vmatprep.subr.mxu0 0.0
  %8623 = vmatpush1.msra.mxu0 0.0
  %8624 = vmatprep.subr.mxu0 0.0
  %8625 = vmatpush1.msra.mxu0 0.0
  %8626 = vmatprep.subr.mxu0 0.0
  %8627 = vmatpush1.msra.mxu0 0.0
  %8628 = vmatprep.subr.mxu0 0.0
  %8629 = vmatpush1.msra.mxu0 0.0
  %8630 = vmatprep.subr.mxu0 0.0
  %8631 = vmatpush1.msra.mxu0 0.0
  %8632 = vmatprep.subr.mxu0 0.0
  %8633 = vmatpush1.msra.mxu0 0.0
  %8634 = vmatprep.subr.mxu0 0.0
  %8635 = vmatpush1.msra.mxu0 0.0
  %8636 = vmatprep.subr.mxu0 0.0
  %8637 = vmatpush1.msra.mxu0 0.0
  %8638 = vmatprep.subr.mxu0 0.0
  %8639 = vmatpush1.msra.mxu0 0.0
  %8640 = vmatprep.subr.mxu0 0.0
  %8641 = vmatpush1.msra.mxu0 0.0
  %8642 = vmatprep.subr.mxu0 0.0
  %8643 = vmatpush1.msra.mxu0 0.0
  %8644 = vmatprep.mubr.f32.mxu0 0.0
  %8645 = vmatmul.mubr.f32.gmra.mrb[0].mxu0 %v8529
  %v8646 = vpop.f32.mrb[0].mxu0
  %v8647 = vadd.f32 %v8525, %v8646
  %v8648 = vpop.f32.mrb[0].mxu0
  %8649 = vmatprep.mubr.f32.mxu0 0.0
  %8650 = vmatmul.mubr.f32.gmra.mrb[0].mxu0 %v8532
  %v8651 = vpop.f32.mrb[0].mxu0
  %v8652 = vadd.f32 %v8525, %v8651
  %v8653 = vpop.f32.mrb[0].mxu0
  %8654 = vmatprep.mubr.f32.mxu0 0.0
  %8655 = vmatmul.mubr.f32.gmra.mrb[0].mxu0 %v8535
  %v8656 = vpop.f32.mrb[0].mxu0
  %v8657 = vadd.f32 %v8525, %v8656
  %v8658 = vpop.f32.mrb[0].mxu0
  %8659 = vmatprep.mubr.f32.mxu0 0.0
  %8660 = vmatmul.mubr.f32.gmra.mrb[0].mxu0 %v8538
  %v8661 = vpop.f32.mrb[0].mxu0
  %v8662 = vadd.f32 %v8525, %v8661
  %v8663 = vpop.f32.mrb[0].mxu0
  %8664 = vmatprep.mubr.f32.mxu0 0.0
  %8665 = vmatmul.mubr.f32.gmra.mrb[0].mxu0 %v8541
  %v8666 = vpop.f32.mrb[0].mxu0
  %v8667 = vadd.f32 %v8525, %v8666
  %v8668 = vpop.f32.mrb[0].mxu0
  %8669 = vmatprep.mubr.f32.mxu0 0.0
  %8670 = vmatmul.mubr.f32.gmra.mrb[0].mxu0 %v8544
  %v8671 = vpop.f32.mrb[0].mxu0
  %v8672 = vadd.f32 %v8525, %v8671
  %v8673 = vpop.f32.mrb[0].mxu0
  %8674 = vmatprep.mubr.f32.mxu0 0.0
  %8675 = vmatmul.mubr.f32.gmra.mrb[0].mxu0 %v8547
  %v8676 = vpop.f32.mrb[0].mxu0
  %v8677 = vadd.f32 %v8525, %v8676
  %v8678 = vpop.f32.mrb[0].mxu0
  %8679 = vmatprep.mubr.f32.mxu0 0.0
  %8680 = vmatmul.mubr.f32.gmra.mrb[0].mxu0 %v8550
  %v8681 = vpop.f32.mrb[0].mxu0
  %v8682 = vadd.f32 %v8525, %v8681
  %v8683 = vpop.f32.mrb[0].mxu0
  %8684 = vmatprep.mubr.f32.mxu0 0.0
  %8685 = vmatmul.mubr.f32.gmra.mrb[0].mxu0 %v8553
  %v8686 = vpop.f32.mrb[0].mxu0
  %v8687 = vadd.f32 %v8525, %v8686
  %v8688 = vpop.f32.mrb[0].mxu0
  %8689 = vmatprep.mubr.f32.mxu0 0.0
  %8690 = vmatmul.mubr.f32.gmra.mrb[0].mxu0 %v8556
  %v8691 = vpop.f32.mrb[0].mxu0
  %v8692 = vadd.f32 %v8525, %v8691
  %v8693 = vpop.f32.mrb[0].mxu0
  %8694 = vmatprep.mubr.f32.mxu0 0.0
  %8695 = vmatmul.mubr.f32.gmra.mrb[0].mxu0 %v8559
  %v8696 = vpop.f32.mrb[0].mxu0
  %v8697 = vadd.f32 %v8525, %v8696
  %v8698 = vpop.f32.mrb[0].mxu0
  %8699 = vmatprep.mubr.f32.mxu0 0.0
  %8700 = vmatmul.mubr.f32.gmra.mrb[0].mxu0 %v8562
  %v8701 = vpop.f32.mrb[0].mxu0
  %v8702 = vadd.f32 %v8525, %v8701
  %v8703 = vpop.f32.mrb[0].mxu0
  %8704 = vmatprep.mubr.f32.mxu0 0.0
  %8705 = vmatmul.mubr.f32.gmra.mrb[0].mxu0 %v8565
  %v8706 = vpop.f32.mrb[0].mxu0
  %v8707 = vadd.f32 %v8525, %v8706
  %v8708 = vpop.f32.mrb[0].mxu0
  %8709 = vmatprep.mubr.f32.mxu0 0.0
  %8710 = vmatmul.mubr.f32.gmra.mrb[0].mxu0 %v8568
  %v8711 = vpop.f32.mrb[0].mxu0
  %v8712 = vadd.f32 %v8525, %v8711
  %v8713 = vpop.f32.mrb[0].mxu0
  %8714 = vmatprep.mubr.f32.mxu0 0.0
  %8715 = vmatmul.mubr.f32.gmra.mrb[0].mxu0 %v8571
  %v8716 = vpop.f32.mrb[0].mxu0
  %v8717 = vadd.f32 %v8525, %v8716
  %v8718 = vpop.f32.mrb[0].mxu0
  %8719 = vmatprep.mubr.f32.mxu0 0.0
  %8720 = vmatmul.mubr.f32.gmra.mrb[0].mxu0 %v8574
  %v8721 = vpop.f32.mrb[0].mxu0
  %v8722 = vadd.f32 %v8525, %v8721
  %v8723 = vpop.f32.mrb[0].mxu0
  %8724 = vdwg.mxu0
  %v8725 = vmax.f32 %v8647, 0.0
  %v8726 = vmax.f32 %v8652, 0.0
  %v8727 = vmax.f32 %v8657, 0.0
  %v8728 = vmax.f32 %v8662, 0.0
  %v8729 = vmax.f32 %v8667, 0.0
  %v8730 = vmax.f32 %v8672, 0.0
  %v8731 = vmax.f32 %v8677, 0.0
  %v8732 = vmax.f32 %v8682, 0.0
  %v8733 = vmax.f32 %v8687, 0.0
  %v8734 = vmax.f32 %v8692, 0.0
  %v8735 = vmax.f32 %v8697, 0.0
  %v8736 = vmax.f32 %v8702, 0.0
  %v8737 = vmax.f32 %v8707, 0.0
  %v8738 = vmax.f32 %v8712, 0.0
  %v8739 = vmax.f32 %v8717, 0.0
  %v8740 = vmax.f32 %v8722, 0.0
  %v8757 = vcombine.high %v8725, %v8725
  %v8759 = vunpack.c.l.s4 1983009808
  %v8760 = vunpack.c.0.s8 %v8759
  %v8761 = vlaneseq
  %v8762 = vshrl.u32 %v8761, 7
  %v8763 = vsub.s32 %v8760, %v8762
  %v8764 = vrot.slane %v8725, %v8763
  %v8766 = vunpack.c.l.s4 1983009808
  %v8767 = vunpack.c.0.s8 %v8766
  %v8768 = vlaneseq
  %v8769 = vshrl.u32 %v8768, 7
  %v8770 = vsub.s32 %v8767, %v8769
  %v8771 = vrot.slane %v8757, %v8770
  %v8772 = vcombine.high %v8764, %v8764
  %v8773 = vcombine.high %v8771, %v8771
  %v8774 = vcombine.high %v8726, %v8726
  %v8776 = vunpack.c.l.s4 1983009808
  %v8777 = vunpack.c.0.s8 %v8776
  %v8778 = vlaneseq
  %v8779 = vshrl.u32 %v8778, 7
  %v8780 = vsub.s32 %v8777, %v8779
  %v8781 = vrot.slane %v8726, %v8780
  %v8783 = vunpack.c.l.s4 1983009808
  %v8784 = vunpack.c.0.s8 %v8783
  %v8785 = vlaneseq
  %v8786 = vshrl.u32 %v8785, 7
  %v8787 = vsub.s32 %v8784, %v8786
  %v8788 = vrot.slane %v8774, %v8787
  %v8789 = vcombine.high %v8781, %v8781
  %v8790 = vcombine.high %v8788, %v8788
  %v8791 = vcombine.high %v8727, %v8727
  %v8793 = vunpack.c.l.s4 1983009808
  %v8794 = vunpack.c.0.s8 %v8793
  %v8795 = vlaneseq
  %v8796 = vshrl.u32 %v8795, 7
  %v8797 = vsub.s32 %v8794, %v8796
  %v8798 = vrot.slane %v8727, %v8797
  %v8800 = vunpack.c.l.s4 1983009808
  %v8801 = vunpack.c.0.s8 %v8800
  %v8802 = vlaneseq
  %v8803 = vshrl.u32 %v8802, 7
  %v8804 = vsub.s32 %v8801, %v8803
  %v8805 = vrot.slane %v8791, %v8804
  %v8806 = vcombine.high %v8798, %v8798
  %v8807 = vcombine.high %v8805, %v8805
  %v8808 = vcombine.high %v8728, %v8728
  %v8810 = vunpack.c.l.s4 1983009808
  %v8811 = vunpack.c.0.s8 %v8810
  %v8812 = vlaneseq
  %v8813 = vshrl.u32 %v8812, 7
  %v8814 = vsub.s32 %v8811, %v8813
  %v8815 = vrot.slane %v8728, %v8814
  %v8817 = vunpack.c.l.s4 1983009808
  %v8818 = vunpack.c.0.s8 %v8817
  %v8819 = vlaneseq
  %v8820 = vshrl.u32 %v8819, 7
  %v8821 = vsub.s32 %v8818, %v8820
  %v8822 = vrot.slane %v8808, %v8821
  %v8823 = vcombine.high %v8815, %v8815
  %v8824 = vcombine.high %v8822, %v8822
  %v8825 = vcombine.high %v8729, %v8729
  %v8827 = vunpack.c.l.s4 1983009808
  %v8828 = vunpack.c.0.s8 %v8827
  %v8829 = vlaneseq
  %v8830 = vshrl.u32 %v8829, 7
  %v8831 = vsub.s32 %v8828, %v8830
  %v8832 = vrot.slane %v8729, %v8831
  %v8834 = vunpack.c.l.s4 1983009808
  %v8835 = vunpack.c.0.s8 %v8834
  %v8836 = vlaneseq
  %v8837 = vshrl.u32 %v8836, 7
  %v8838 = vsub.s32 %v8835, %v8837
  %v8839 = vrot.slane %v8825, %v8838
  %v8840 = vcombine.high %v8832, %v8832
  %v8841 = vcombine.high %v8839, %v8839
  %v8842 = vcombine.high %v8730, %v8730
  %v8844 = vunpack.c.l.s4 1983009808
  %v8845 = vunpack.c.0.s8 %v8844
  %v8846 = vlaneseq
  %v8847 = vshrl.u32 %v8846, 7
  %v8848 = vsub.s32 %v8845, %v8847
  %v8849 = vrot.slane %v8730, %v8848
  %v8851 = vunpack.c.l.s4 1983009808
  %v8852 = vunpack.c.0.s8 %v8851
  %v8853 = vlaneseq
  %v8854 = vshrl.u32 %v8853, 7
  %v8855 = vsub.s32 %v8852, %v8854
  %v8856 = vrot.slane %v8842, %v8855
  %v8857 = vcombine.high %v8849, %v8849
  %v8858 = vcombine.high %v8856, %v8856
  %v8859 = vcombine.high %v8731, %v8731
  %v8861 = vunpack.c.l.s4 1983009808
  %v8862 = vunpack.c.0.s8 %v8861
  %v8863 = vlaneseq
  %v8864 = vshrl.u32 %v8863, 7
  %v8865 = vsub.s32 %v8862, %v8864
  %v8866 = vrot.slane %v8731, %v8865
  %v8868 = vunpack.c.l.s4 1983009808
  %v8869 = vunpack.c.0.s8 %v8868
  %v8870 = vlaneseq
  %v8871 = vshrl.u32 %v8870, 7
  %v8872 = vsub.s32 %v8869, %v8871
  %v8873 = vrot.slane %v8859, %v8872
  %v8874 = vcombine.high %v8866, %v8866
  %v8875 = vcombine.high %v8873, %v8873
  %v8876 = vcombine.high %v8732, %v8732
  %v8878 = vunpack.c.l.s4 1983009808
  %v8879 = vunpack.c.0.s8 %v8878
  %v8880 = vlaneseq
  %v8881 = vshrl.u32 %v8880, 7
  %v8882 = vsub.s32 %v8879, %v8881
  %v8883 = vrot.slane %v8732, %v8882
  %v8885 = vunpack.c.l.s4 1983009808
  %v8886 = vunpack.c.0.s8 %v8885
  %v8887 = vlaneseq
  %v8888 = vshrl.u32 %v8887, 7
  %v8889 = vsub.s32 %v8886, %v8888
  %v8890 = vrot.slane %v8876, %v8889
  %v8891 = vcombine.high %v8883, %v8883
  %v8892 = vcombine.high %v8890, %v8890
  %v8893 = vcombine.high %v8733, %v8733
  %v8895 = vunpack.c.l.s4 1983009808
  %v8896 = vunpack.c.0.s8 %v8895
  %v8897 = vlaneseq
  %v8898 = vshrl.u32 %v8897, 7
  %v8899 = vsub.s32 %v8896, %v8898
  %v8900 = vrot.slane %v8733, %v8899
  %v8902 = vunpack.c.l.s4 1983009808
  %v8903 = vunpack.c.0.s8 %v8902
  %v8904 = vlaneseq
  %v8905 = vshrl.u32 %v8904, 7
  %v8906 = vsub.s32 %v8903, %v8905
  %v8907 = vrot.slane %v8893, %v8906
  %v8908 = vcombine.high %v8900, %v8900
  %v8909 = vcombine.high %v8907, %v8907
  %v8910 = vcombine.high %v8734, %v8734
  %v8912 = vunpack.c.l.s4 1983009808
  %v8913 = vunpack.c.0.s8 %v8912
  %v8914 = vlaneseq
  %v8915 = vshrl.u32 %v8914, 7
  %v8916 = vsub.s32 %v8913, %v8915
  %v8917 = vrot.slane %v8734, %v8916
  %v8919 = vunpack.c.l.s4 1983009808
  %v8920 = vunpack.c.0.s8 %v8919
  %v8921 = vlaneseq
  %v8922 = vshrl.u32 %v8921, 7
  %v8923 = vsub.s32 %v8920, %v8922
  %v8924 = vrot.slane %v8910, %v8923
  %v8925 = vcombine.high %v8917, %v8917
  %v8926 = vcombine.high %v8924, %v8924
  %v8927 = vcombine.high %v8735, %v8735
  %v8929 = vunpack.c.l.s4 1983009808
  %v8930 = vunpack.c.0.s8 %v8929
  %v8931 = vlaneseq
  %v8932 = vshrl.u32 %v8931, 7
  %v8933 = vsub.s32 %v8930, %v8932
  %v8934 = vrot.slane %v8735, %v8933
  %v8936 = vunpack.c.l.s4 1983009808
  %v8937 = vunpack.c.0.s8 %v8936
  %v8938 = vlaneseq
  %v8939 = vshrl.u32 %v8938, 7
  %v8940 = vsub.s32 %v8937, %v8939
  %v8941 = vrot.slane %v8927, %v8940
  %v8942 = vcombine.high %v8934, %v8934
  %v8943 = vcombine.high %v8941, %v8941
  %v8944 = vcombine.high %v8736, %v8736
  %v8946 = vunpack.c.l.s4 1983009808
  %v8947 = vunpack.c.0.s8 %v8946
  %v8948 = vlaneseq
  %v8949 = vshrl.u32 %v8948, 7
  %v8950 = vsub.s32 %v8947, %v8949
  %v8951 = vrot.slane %v8736, %v8950
  %v8953 = vunpack.c.l.s4 1983009808
  %v8954 = vunpack.c.0.s8 %v8953
  %v8955 = vlaneseq
  %v8956 = vshrl.u32 %v8955, 7
  %v8957 = vsub.s32 %v8954, %v8956
  %v8958 = vrot.slane %v8944, %v8957
  %v8959 = vcombine.high %v8951, %v8951
  %v8960 = vcombine.high %v8958, %v8958
  %v8961 = vcombine.high %v8737, %v8737
  %v8963 = vunpack.c.l.s4 1983009808
  %v8964 = vunpack.c.0.s8 %v8963
  %v8965 = vlaneseq
  %v8966 = vshrl.u32 %v8965, 7
  %v8967 = vsub.s32 %v8964, %v8966
  %v8968 = vrot.slane %v8737, %v8967
  %v8970 = vunpack.c.l.s4 1983009808
  %v8971 = vunpack.c.0.s8 %v8970
  %v8972 = vlaneseq
  %v8973 = vshrl.u32 %v8972, 7
  %v8974 = vsub.s32 %v8971, %v8973
  %v8975 = vrot.slane %v8961, %v8974
  %v8976 = vcombine.high %v8968, %v8968
  %v8977 = vcombine.high %v8975, %v8975
  %v8978 = vcombine.high %v8738, %v8738
  %v8980 = vunpack.c.l.s4 1983009808
  %v8981 = vunpack.c.0.s8 %v8980
  %v8982 = vlaneseq
  %v8983 = vshrl.u32 %v8982, 7
  %v8984 = vsub.s32 %v8981, %v8983
  %v8985 = vrot.slane %v8738, %v8984
  %v8987 = vunpack.c.l.s4 1983009808
  %v8988 = vunpack.c.0.s8 %v8987
  %v8989 = vlaneseq
  %v8990 = vshrl.u32 %v8989, 7
  %v8991 = vsub.s32 %v8988, %v8990
  %v8992 = vrot.slane %v8978, %v8991
  %v8993 = vcombine.high %v8985, %v8985
  %v8994 = vcombine.high %v8992, %v8992
  %v8995 = vcombine.high %v8739, %v8739
  %v8997 = vunpack.c.l.s4 1983009808
  %v8998 = vunpack.c.0.s8 %v8997
  %v8999 = vlaneseq
  %v9000 = vshrl.u32 %v8999, 7
  %v9001 = vsub.s32 %v8998, %v9000
  %v9002 = vrot.slane %v8739, %v9001
  %v9004 = vunpack.c.l.s4 1983009808
  %v9005 = vunpack.c.0.s8 %v9004
  %v9006 = vlaneseq
  %v9007 = vshrl.u32 %v9006, 7
  %v9008 = vsub.s32 %v9005, %v9007
  %v9009 = vrot.slane %v8995, %v9008
  %v9010 = vcombine.high %v9002, %v9002
  %v9011 = vcombine.high %v9009, %v9009
  %v9012 = vcombine.high %v8740, %v8740
  %v9014 = vunpack.c.l.s4 1983009808
  %v9015 = vunpack.c.0.s8 %v9014
  %v9016 = vlaneseq
  %v9017 = vshrl.u32 %v9016, 7
  %v9018 = vsub.s32 %v9015, %v9017
  %v9019 = vrot.slane %v8740, %v9018
  %v9021 = vunpack.c.l.s4 1983009808
  %v9022 = vunpack.c.0.s8 %v9021
  %v9023 = vlaneseq
  %v9024 = vshrl.u32 %v9023, 7
  %v9025 = vsub.s32 %v9022, %v9024
  %v9026 = vrot.slane %v9012, %v9025
  %v9027 = vcombine.high %v9019, %v9019
  %v9028 = vcombine.high %v9026, %v9026
  %v9093 = vsel %vm41, %v8764, -inf
  %v9094 = vrot.slane %v9093, 4
  %v9095 = vmax.f32 %v9093, %v9094
  %v9096 = vrot.slane %v9095, 2
  %v9097 = vmax.f32 %v9095, %v9096
  %v9098 = vrot.slane %v9097, 1
  %v9099 = vmax.f32 %v9097, %v9098
  %v9100 = vsel %vm41, %v8772, -inf
  %v9101 = vrot.slane %v9100, 4
  %v9102 = vmax.f32 %v9100, %v9101
  %v9103 = vrot.slane %v9102, 2
  %v9104 = vmax.f32 %v9102, %v9103
  %v9105 = vrot.slane %v9104, 1
  %v9106 = vmax.f32 %v9104, %v9105
  %v9107 = vsel %vm41, %v8771, -inf
  %v9108 = vrot.slane %v9107, 4
  %v9109 = vmax.f32 %v9107, %v9108
  %v9110 = vrot.slane %v9109, 2
  %v9111 = vmax.f32 %v9109, %v9110
  %v9112 = vrot.slane %v9111, 1
  %v9113 = vmax.f32 %v9111, %v9112
  %v9114 = vsel %vm41, %v8773, -inf
  %v9115 = vrot.slane %v9114, 4
  %v9116 = vmax.f32 %v9114, %v9115
  %v9117 = vrot.slane %v9116, 2
  %v9118 = vmax.f32 %v9116, %v9117
  %v9119 = vrot.slane %v9118, 1
  %v9120 = vmax.f32 %v9118, %v9119
  %v9121 = vsel %vm41, %v8781, -inf
  %v9122 = vrot.slane %v9121, 4
  %v9123 = vmax.f32 %v9121, %v9122
  %v9124 = vrot.slane %v9123, 2
  %v9125 = vmax.f32 %v9123, %v9124
  %v9126 = vrot.slane %v9125, 1
  %v9127 = vmax.f32 %v9125, %v9126
  %v9128 = vsel %vm41, %v8789, -inf
  %v9129 = vrot.slane %v9128, 4
  %v9130 = vmax.f32 %v9128, %v9129
  %v9131 = vrot.slane %v9130, 2
  %v9132 = vmax.f32 %v9130, %v9131
  %v9133 = vrot.slane %v9132, 1
  %v9134 = vmax.f32 %v9132, %v9133
  %v9135 = vsel %vm41, %v8788, -inf
  %v9136 = vrot.slane %v9135, 4
  %v9137 = vmax.f32 %v9135, %v9136
  %v9138 = vrot.slane %v9137, 2
  %v9139 = vmax.f32 %v9137, %v9138
  %v9140 = vrot.slane %v9139, 1
  %v9141 = vmax.f32 %v9139, %v9140
  %v9142 = vsel %vm41, %v8790, -inf
  %v9143 = vrot.slane %v9142, 4
  %v9144 = vmax.f32 %v9142, %v9143
  %v9145 = vrot.slane %v9144, 2
  %v9146 = vmax.f32 %v9144, %v9145
  %v9147 = vrot.slane %v9146, 1
  %v9148 = vmax.f32 %v9146, %v9147
  %v9149 = vsel %vm41, %v8798, -inf
  %v9150 = vrot.slane %v9149, 4
  %v9151 = vmax.f32 %v9149, %v9150
  %v9152 = vrot.slane %v9151, 2
  %v9153 = vmax.f32 %v9151, %v9152
  %v9154 = vrot.slane %v9153, 1
  %v9155 = vmax.f32 %v9153, %v9154
  %v9156 = vsel %vm41, %v8806, -inf
  %v9157 = vrot.slane %v9156, 4
  %v9158 = vmax.f32 %v9156, %v9157
  %v9159 = vrot.slane %v9158, 2
  %v9160 = vmax.f32 %v9158, %v9159
  %v9161 = vrot.slane %v9160, 1
  %v9162 = vmax.f32 %v9160, %v9161
  %v9163 = vsel %vm41, %v8805, -inf
  %v9164 = vrot.slane %v9163, 4
  %v9165 = vmax.f32 %v9163, %v9164
  %v9166 = vrot.slane %v9165, 2
  %v9167 = vmax.f32 %v9165, %v9166
  %v9168 = vrot.slane %v9167, 1
  %v9169 = vmax.f32 %v9167, %v9168
  %v9170 = vsel %vm41, %v8807, -inf
  %v9171 = vrot.slane %v9170, 4
  %v9172 = vmax.f32 %v9170, %v9171
  %v9173 = vrot.slane %v9172, 2
  %v9174 = vmax.f32 %v9172, %v9173
  %v9175 = vrot.slane %v9174, 1
  %v9176 = vmax.f32 %v9174, %v9175
  %v9177 = vsel %vm41, %v8815, -inf
  %v9178 = vrot.slane %v9177, 4
  %v9179 = vmax.f32 %v9177, %v9178
  %v9180 = vrot.slane %v9179, 2
  %v9181 = vmax.f32 %v9179, %v9180
  %v9182 = vrot.slane %v9181, 1
  %v9183 = vmax.f32 %v9181, %v9182
  %v9184 = vsel %vm41, %v8823, -inf
  %v9185 = vrot.slane %v9184, 4
  %v9186 = vmax.f32 %v9184, %v9185
  %v9187 = vrot.slane %v9186, 2
  %v9188 = vmax.f32 %v9186, %v9187
  %v9189 = vrot.slane %v9188, 1
  %v9190 = vmax.f32 %v9188, %v9189
  %v9191 = vsel %vm41, %v8822, -inf
  %v9192 = vrot.slane %v9191, 4
  %v9193 = vmax.f32 %v9191, %v9192
  %v9194 = vrot.slane %v9193, 2
  %v9195 = vmax.f32 %v9193, %v9194
  %v9196 = vrot.slane %v9195, 1
  %v9197 = vmax.f32 %v9195, %v9196
  %v9198 = vsel %vm41, %v8824, -inf
  %v9199 = vrot.slane %v9198, 4
  %v9200 = vmax.f32 %v9198, %v9199
  %v9201 = vrot.slane %v9200, 2
  %v9202 = vmax.f32 %v9200, %v9201
  %v9203 = vrot.slane %v9202, 1
  %v9204 = vmax.f32 %v9202, %v9203
  %v9205 = vsel %vm41, %v8832, -inf
  %v9206 = vrot.slane %v9205, 4
  %v9207 = vmax.f32 %v9205, %v9206
  %v9208 = vrot.slane %v9207, 2
  %v9209 = vmax.f32 %v9207, %v9208
  %v9210 = vrot.slane %v9209, 1
  %v9211 = vmax.f32 %v9209, %v9210
  %v9212 = vsel %vm41, %v8840, -inf
  %v9213 = vrot.slane %v9212, 4
  %v9214 = vmax.f32 %v9212, %v9213
  %v9215 = vrot.slane %v9214, 2
  %v9216 = vmax.f32 %v9214, %v9215
  %v9217 = vrot.slane %v9216, 1
  %v9218 = vmax.f32 %v9216, %v9217
  %v9219 = vsel %vm41, %v8839, -inf
  %v9220 = vrot.slane %v9219, 4
  %v9221 = vmax.f32 %v9219, %v9220
  %v9222 = vrot.slane %v9221, 2
  %v9223 = vmax.f32 %v9221, %v9222
  %v9224 = vrot.slane %v9223, 1
  %v9225 = vmax.f32 %v9223, %v9224
  %v9226 = vsel %vm41, %v8841, -inf
  %v9227 = vrot.slane %v9226, 4
  %v9228 = vmax.f32 %v9226, %v9227
  %v9229 = vrot.slane %v9228, 2
  %v9230 = vmax.f32 %v9228, %v9229
  %v9231 = vrot.slane %v9230, 1
  %v9232 = vmax.f32 %v9230, %v9231
  %v9233 = vsel %vm41, %v8849, -inf
  %v9234 = vrot.slane %v9233, 4
  %v9235 = vmax.f32 %v9233, %v9234
  %v9236 = vrot.slane %v9235, 2
  %v9237 = vmax.f32 %v9235, %v9236
  %v9238 = vrot.slane %v9237, 1
  %v9239 = vmax.f32 %v9237, %v9238
  %v9240 = vsel %vm41, %v8857, -inf
  %v9241 = vrot.slane %v9240, 4
  %v9242 = vmax.f32 %v9240, %v9241
  %v9243 = vrot.slane %v9242, 2
  %v9244 = vmax.f32 %v9242, %v9243
  %v9245 = vrot.slane %v9244, 1
  %v9246 = vmax.f32 %v9244, %v9245
  %v9247 = vsel %vm41, %v8856, -inf
  %v9248 = vrot.slane %v9247, 4
  %v9249 = vmax.f32 %v9247, %v9248
  %v9250 = vrot.slane %v9249, 2
  %v9251 = vmax.f32 %v9249, %v9250
  %v9252 = vrot.slane %v9251, 1
  %v9253 = vmax.f32 %v9251, %v9252
  %v9254 = vsel %vm41, %v8858, -inf
  %v9255 = vrot.slane %v9254, 4
  %v9256 = vmax.f32 %v9254, %v9255
  %v9257 = vrot.slane %v9256, 2
  %v9258 = vmax.f32 %v9256, %v9257
  %v9259 = vrot.slane %v9258, 1
  %v9260 = vmax.f32 %v9258, %v9259
  %v9261 = vsel %vm41, %v8866, -inf
  %v9262 = vrot.slane %v9261, 4
  %v9263 = vmax.f32 %v9261, %v9262
  %v9264 = vrot.slane %v9263, 2
  %v9265 = vmax.f32 %v9263, %v9264
  %v9266 = vrot.slane %v9265, 1
  %v9267 = vmax.f32 %v9265, %v9266
  %v9268 = vsel %vm41, %v8874, -inf
  %v9269 = vrot.slane %v9268, 4
  %v9270 = vmax.f32 %v9268, %v9269
  %v9271 = vrot.slane %v9270, 2
  %v9272 = vmax.f32 %v9270, %v9271
  %v9273 = vrot.slane %v9272, 1
  %v9274 = vmax.f32 %v9272, %v9273
  %v9275 = vsel %vm41, %v8873, -inf
  %v9276 = vrot.slane %v9275, 4
  %v9277 = vmax.f32 %v9275, %v9276
  %v9278 = vrot.slane %v9277, 2
  %v9279 = vmax.f32 %v9277, %v9278
  %v9280 = vrot.slane %v9279, 1
  %v9281 = vmax.f32 %v9279, %v9280
  %v9282 = vsel %vm41, %v8875, -inf
  %v9283 = vrot.slane %v9282, 4
  %v9284 = vmax.f32 %v9282, %v9283
  %v9285 = vrot.slane %v9284, 2
  %v9286 = vmax.f32 %v9284, %v9285
  %v9287 = vrot.slane %v9286, 1
  %v9288 = vmax.f32 %v9286, %v9287
  %v9289 = vsel %vm41, %v8883, -inf
  %v9290 = vrot.slane %v9289, 4
  %v9291 = vmax.f32 %v9289, %v9290
  %v9292 = vrot.slane %v9291, 2
  %v9293 = vmax.f32 %v9291, %v9292
  %v9294 = vrot.slane %v9293, 1
  %v9295 = vmax.f32 %v9293, %v9294
  %v9296 = vsel %vm41, %v8891, -inf
  %v9297 = vrot.slane %v9296, 4
  %v9298 = vmax.f32 %v9296, %v9297
  %v9299 = vrot.slane %v9298, 2
  %v9300 = vmax.f32 %v9298, %v9299
  %v9301 = vrot.slane %v9300, 1
  %v9302 = vmax.f32 %v9300, %v9301
  %v9303 = vsel %vm41, %v8890, -inf
  %v9304 = vrot.slane %v9303, 4
  %v9305 = vmax.f32 %v9303, %v9304
  %v9306 = vrot.slane %v9305, 2
  %v9307 = vmax.f32 %v9305, %v9306
  %v9308 = vrot.slane %v9307, 1
  %v9309 = vmax.f32 %v9307, %v9308
  %v9310 = vsel %vm41, %v8892, -inf
  %v9311 = vrot.slane %v9310, 4
  %v9312 = vmax.f32 %v9310, %v9311
  %v9313 = vrot.slane %v9312, 2
  %v9314 = vmax.f32 %v9312, %v9313
  %v9315 = vrot.slane %v9314, 1
  %v9316 = vmax.f32 %v9314, %v9315
  %v9317 = vsel %vm41, %v8900, -inf
  %v9318 = vrot.slane %v9317, 4
  %v9319 = vmax.f32 %v9317, %v9318
  %v9320 = vrot.slane %v9319, 2
  %v9321 = vmax.f32 %v9319, %v9320
  %v9322 = vrot.slane %v9321, 1
  %v9323 = vmax.f32 %v9321, %v9322
  %v9324 = vsel %vm41, %v8908, -inf
  %v9325 = vrot.slane %v9324, 4
  %v9326 = vmax.f32 %v9324, %v9325
  %v9327 = vrot.slane %v9326, 2
  %v9328 = vmax.f32 %v9326, %v9327
  %v9329 = vrot.slane %v9328, 1
  %v9330 = vmax.f32 %v9328, %v9329
  %v9331 = vsel %vm41, %v8907, -inf
  %v9332 = vrot.slane %v9331, 4
  %v9333 = vmax.f32 %v9331, %v9332
  %v9334 = vrot.slane %v9333, 2
  %v9335 = vmax.f32 %v9333, %v9334
  %v9336 = vrot.slane %v9335, 1
  %v9337 = vmax.f32 %v9335, %v9336
  %v9338 = vsel %vm41, %v8909, -inf
  %v9339 = vrot.slane %v9338, 4
  %v9340 = vmax.f32 %v9338, %v9339
  %v9341 = vrot.slane %v9340, 2
  %v9342 = vmax.f32 %v9340, %v9341
  %v9343 = vrot.slane %v9342, 1
  %v9344 = vmax.f32 %v9342, %v9343
  %v9345 = vsel %vm41, %v8917, -inf
  %v9346 = vrot.slane %v9345, 4
  %v9347 = vmax.f32 %v9345, %v9346
  %v9348 = vrot.slane %v9347, 2
  %v9349 = vmax.f32 %v9347, %v9348
  %v9350 = vrot.slane %v9349, 1
  %v9351 = vmax.f32 %v9349, %v9350
  %v9352 = vsel %vm41, %v8925, -inf
  %v9353 = vrot.slane %v9352, 4
  %v9354 = vmax.f32 %v9352, %v9353
  %v9355 = vrot.slane %v9354, 2
  %v9356 = vmax.f32 %v9354, %v9355
  %v9357 = vrot.slane %v9356, 1
  %v9358 = vmax.f32 %v9356, %v9357
  %v9359 = vsel %vm41, %v8924, -inf
  %v9360 = vrot.slane %v9359, 4
  %v9361 = vmax.f32 %v9359, %v9360
  %v9362 = vrot.slane %v9361, 2
  %v9363 = vmax.f32 %v9361, %v9362
  %v9364 = vrot.slane %v9363, 1
  %v9365 = vmax.f32 %v9363, %v9364
  %v9366 = vsel %vm41, %v8926, -inf
  %v9367 = vrot.slane %v9366, 4
  %v9368 = vmax.f32 %v9366, %v9367
  %v9369 = vrot.slane %v9368, 2
  %v9370 = vmax.f32 %v9368, %v9369
  %v9371 = vrot.slane %v9370, 1
  %v9372 = vmax.f32 %v9370, %v9371
  %v9373 = vsel %vm41, %v8934, -inf
  %v9374 = vrot.slane %v9373, 4
  %v9375 = vmax.f32 %v9373, %v9374
  %v9376 = vrot.slane %v9375, 2
  %v9377 = vmax.f32 %v9375, %v9376
  %v9378 = vrot.slane %v9377, 1
  %v9379 = vmax.f32 %v9377, %v9378
  %v9380 = vsel %vm41, %v8942, -inf
  %v9381 = vrot.slane %v9380, 4
  %v9382 = vmax.f32 %v9380, %v9381
  %v9383 = vrot.slane %v9382, 2
  %v9384 = vmax.f32 %v9382, %v9383
  %v9385 = vrot.slane %v9384, 1
  %v9386 = vmax.f32 %v9384, %v9385
  %v9387 = vsel %vm41, %v8941, -inf
  %v9388 = vrot.slane %v9387, 4
  %v9389 = vmax.f32 %v9387, %v9388
  %v9390 = vrot.slane %v9389, 2
  %v9391 = vmax.f32 %v9389, %v9390
  %v9392 = vrot.slane %v9391, 1
  %v9393 = vmax.f32 %v9391, %v9392
  %v9394 = vsel %vm41, %v8943, -inf
  %v9395 = vrot.slane %v9394, 4
  %v9396 = vmax.f32 %v9394, %v9395
  %v9397 = vrot.slane %v9396, 2
  %v9398 = vmax.f32 %v9396, %v9397
  %v9399 = vrot.slane %v9398, 1
  %v9400 = vmax.f32 %v9398, %v9399
  %v9401 = vsel %vm41, %v8951, -inf
  %v9402 = vrot.slane %v9401, 4
  %v9403 = vmax.f32 %v9401, %v9402
  %v9404 = vrot.slane %v9403, 2
  %v9405 = vmax.f32 %v9403, %v9404
  %v9406 = vrot.slane %v9405, 1
  %v9407 = vmax.f32 %v9405, %v9406
  %v9408 = vsel %vm41, %v8959, -inf
  %v9409 = vrot.slane %v9408, 4
  %v9410 = vmax.f32 %v9408, %v9409
  %v9411 = vrot.slane %v9410, 2
  %v9412 = vmax.f32 %v9410, %v9411
  %v9413 = vrot.slane %v9412, 1
  %v9414 = vmax.f32 %v9412, %v9413
  %v9415 = vsel %vm41, %v8958, -inf
  %v9416 = vrot.slane %v9415, 4
  %v9417 = vmax.f32 %v9415, %v9416
  %v9418 = vrot.slane %v9417, 2
  %v9419 = vmax.f32 %v9417, %v9418
  %v9420 = vrot.slane %v9419, 1
  %v9421 = vmax.f32 %v9419, %v9420
  %v9422 = vsel %vm41, %v8960, -inf
  %v9423 = vrot.slane %v9422, 4
  %v9424 = vmax.f32 %v9422, %v9423
  %v9425 = vrot.slane %v9424, 2
  %v9426 = vmax.f32 %v9424, %v9425
  %v9427 = vrot.slane %v9426, 1
  %v9428 = vmax.f32 %v9426, %v9427
  %v9429 = vsel %vm41, %v8968, -inf
  %v9430 = vrot.slane %v9429, 4
  %v9431 = vmax.f32 %v9429, %v9430
  %v9432 = vrot.slane %v9431, 2
  %v9433 = vmax.f32 %v9431, %v9432
  %v9434 = vrot.slane %v9433, 1
  %v9435 = vmax.f32 %v9433, %v9434
  %v9436 = vsel %vm41, %v8976, -inf
  %v9437 = vrot.slane %v9436, 4
  %v9438 = vmax.f32 %v9436, %v9437
  %v9439 = vrot.slane %v9438, 2
  %v9440 = vmax.f32 %v9438, %v9439
  %v9441 = vrot.slane %v9440, 1
  %v9442 = vmax.f32 %v9440, %v9441
  %v9443 = vsel %vm41, %v8975, -inf
  %v9444 = vrot.slane %v9443, 4
  %v9445 = vmax.f32 %v9443, %v9444
  %v9446 = vrot.slane %v9445, 2
  %v9447 = vmax.f32 %v9445, %v9446
  %v9448 = vrot.slane %v9447, 1
  %v9449 = vmax.f32 %v9447, %v9448
  %v9450 = vsel %vm41, %v8977, -inf
  %v9451 = vrot.slane %v9450, 4
  %v9452 = vmax.f32 %v9450, %v9451
  %v9453 = vrot.slane %v9452, 2
  %v9454 = vmax.f32 %v9452, %v9453
  %v9455 = vrot.slane %v9454, 1
  %v9456 = vmax.f32 %v9454, %v9455
  %v9457 = vsel %vm41, %v8985, -inf
  %v9458 = vrot.slane %v9457, 4
  %v9459 = vmax.f32 %v9457, %v9458
  %v9460 = vrot.slane %v9459, 2
  %v9461 = vmax.f32 %v9459, %v9460
  %v9462 = vrot.slane %v9461, 1
  %v9463 = vmax.f32 %v9461, %v9462
  %v9464 = vsel %vm41, %v8993, -inf
  %v9465 = vrot.slane %v9464, 4
  %v9466 = vmax.f32 %v9464, %v9465
  %v9467 = vrot.slane %v9466, 2
  %v9468 = vmax.f32 %v9466, %v9467
  %v9469 = vrot.slane %v9468, 1
  %v9470 = vmax.f32 %v9468, %v9469
  %v9471 = vsel %vm41, %v8992, -inf
  %v9472 = vrot.slane %v9471, 4
  %v9473 = vmax.f32 %v9471, %v9472
  %v9474 = vrot.slane %v9473, 2
  %v9475 = vmax.f32 %v9473, %v9474
  %v9476 = vrot.slane %v9475, 1
  %v9477 = vmax.f32 %v9475, %v9476
  %v9478 = vsel %vm41, %v8994, -inf
  %v9479 = vrot.slane %v9478, 4
  %v9480 = vmax.f32 %v9478, %v9479
  %v9481 = vrot.slane %v9480, 2
  %v9482 = vmax.f32 %v9480, %v9481
  %v9483 = vrot.slane %v9482, 1
  %v9484 = vmax.f32 %v9482, %v9483
  %v9485 = vsel %vm41, %v9002, -inf
  %v9486 = vrot.slane %v9485, 4
  %v9487 = vmax.f32 %v9485, %v9486
  %v9488 = vrot.slane %v9487, 2
  %v9489 = vmax.f32 %v9487, %v9488
  %v9490 = vrot.slane %v9489, 1
  %v9491 = vmax.f32 %v9489, %v9490
  %v9492 = vsel %vm41, %v9010, -inf
  %v9493 = vrot.slane %v9492, 4
  %v9494 = vmax.f32 %v9492, %v9493
  %v9495 = vrot.slane %v9494, 2
  %v9496 = vmax.f32 %v9494, %v9495
  %v9497 = vrot.slane %v9496, 1
  %v9498 = vmax.f32 %v9496, %v9497
  %v9499 = vsel %vm41, %v9009, -inf
  %v9500 = vrot.slane %v9499, 4
  %v9501 = vmax.f32 %v9499, %v9500
  %v9502 = vrot.slane %v9501, 2
  %v9503 = vmax.f32 %v9501, %v9502
  %v9504 = vrot.slane %v9503, 1
  %v9505 = vmax.f32 %v9503, %v9504
  %v9506 = vsel %vm41, %v9011, -inf
  %v9507 = vrot.slane %v9506, 4
  %v9508 = vmax.f32 %v9506, %v9507
  %v9509 = vrot.slane %v9508, 2
  %v9510 = vmax.f32 %v9508, %v9509
  %v9511 = vrot.slane %v9510, 1
  %v9512 = vmax.f32 %v9510, %v9511
  %v9513 = vsel %vm41, %v9019, -inf
  %v9514 = vrot.slane %v9513, 4
  %v9515 = vmax.f32 %v9513, %v9514
  %v9516 = vrot.slane %v9515, 2
  %v9517 = vmax.f32 %v9515, %v9516
  %v9518 = vrot.slane %v9517, 1
  %v9519 = vmax.f32 %v9517, %v9518
  %v9520 = vsel %vm41, %v9027, -inf
  %v9521 = vrot.slane %v9520, 4
  %v9522 = vmax.f32 %v9520, %v9521
  %v9523 = vrot.slane %v9522, 2
  %v9524 = vmax.f32 %v9522, %v9523
  %v9525 = vrot.slane %v9524, 1
  %v9526 = vmax.f32 %v9524, %v9525
  %v9527 = vsel %vm41, %v9026, -inf
  %v9528 = vrot.slane %v9527, 4
  %v9529 = vmax.f32 %v9527, %v9528
  %v9530 = vrot.slane %v9529, 2
  %v9531 = vmax.f32 %v9529, %v9530
  %v9532 = vrot.slane %v9531, 1
  %v9533 = vmax.f32 %v9531, %v9532
  %v9534 = vsel %vm41, %v9028, -inf
  %v9535 = vrot.slane %v9534, 4
  %v9536 = vmax.f32 %v9534, %v9535
  %v9537 = vrot.slane %v9536, 2
  %v9538 = vmax.f32 %v9536, %v9537
  %v9539 = vrot.slane %v9538, 1
  %v9540 = vmax.f32 %v9538, %v9539
  %v9541 = vmax.f32 %v9099, %v9127
  %v9542 = vmax.f32 %v9106, %v9134
  %v9543 = vmax.f32 %v9113, %v9141
  %v9544 = vmax.f32 %v9120, %v9148
  %v9545 = vmax.f32 %v9155, %v9183
  %v9546 = vmax.f32 %v9162, %v9190
  %v9547 = vmax.f32 %v9169, %v9197
  %v9548 = vmax.f32 %v9176, %v9204
  %v9549 = vmax.f32 %v9211, %v9239
  %v9550 = vmax.f32 %v9218, %v9246
  %v9551 = vmax.f32 %v9225, %v9253
  %v9552 = vmax.f32 %v9232, %v9260
  %v9553 = vmax.f32 %v9267, %v9295
  %v9554 = vmax.f32 %v9274, %v9302
  %v9555 = vmax.f32 %v9281, %v9309
  %v9556 = vmax.f32 %v9288, %v9316
  %v9557 = vmax.f32 %v9323, %v9351
  %v9558 = vmax.f32 %v9330, %v9358
  %v9559 = vmax.f32 %v9337, %v9365
  %v9560 = vmax.f32 %v9344, %v9372
  %v9561 = vmax.f32 %v9379, %v9407
  %v9562 = vmax.f32 %v9386, %v9414
  %v9563 = vmax.f32 %v9393, %v9421
  %v9564 = vmax.f32 %v9400, %v9428
  %v9565 = vmax.f32 %v9435, %v9463
  %v9566 = vmax.f32 %v9442, %v9470
  %v9567 = vmax.f32 %v9449, %v9477
  %v9568 = vmax.f32 %v9456, %v9484
  %v9569 = vmax.f32 %v9491, %v9519
  %v9570 = vmax.f32 %v9498, %v9526
  %v9571 = vmax.f32 %v9505, %v9533
  %v9572 = vmax.f32 %v9512, %v9540
  %vm9573 = vcmask 29696
  %9574 = vst.msk [vmem:[#allocation4] sm:$0x3f] %vm9573, 0.0
  %9575 = vst.msk [vmem:[#allocation4 + $0x8] sm:$0x3f] %vm9573, 0.0
  %9576 = vst.msk [vmem:[#allocation4 + $0x10] sm:$0x3f] %vm9573, 0.0
  %9577 = vst.msk [vmem:[#allocation4 + $0x18] sm:$0x3f] %vm9573, 0.0
  %9578 = vst.msk [vmem:[#allocation4 + $0x20] sm:$0x3f] %vm9573, 0.0
  %9579 = vst.msk [vmem:[#allocation4 + $0x28] sm:$0x3f] %vm9573, 0.0
  %9580 = vst.msk [vmem:[#allocation4 + $0x30] sm:$0x3f] %vm9573, 0.0
  %9581 = vst.msk [vmem:[#allocation4 + $0x38] sm:$0x3f] %vm9573, 0.0
  %9582 = vst.msk [vmem:[#allocation4 + $0x40] sm:$0x3f] %vm9573, 0.0
  %9583 = vst.msk [vmem:[#allocation4 + $0x48] sm:$0x3f] %vm9573, 0.0
  %9584 = vst.msk [vmem:[#allocation4 + $0x50] sm:$0x3f] %vm9573, 0.0
  %9585 = vst.msk [vmem:[#allocation4 + $0x58] sm:$0x3f] %vm9573, 0.0
  %v9618 = vsel %vm7577, %v9542, %v9541
  %v9619 = vsel %vm7579, %v9543, %v9618
  %v9620 = vsel %vm7581, %v9544, %v9619
  %v9621 = vsel %vm7577, %v9546, %v9545
  %v9622 = vsel %vm7579, %v9547, %v9621
  %v9623 = vsel %vm7581, %v9548, %v9622
  %v9624 = vsel %vm7577, %v9550, %v9549
  %v9625 = vsel %vm7579, %v9551, %v9624
  %v9626 = vsel %vm7581, %v9552, %v9625
  %v9627 = vsel %vm7577, %v9554, %v9553
  %v9628 = vsel %vm7579, %v9555, %v9627
  %v9629 = vsel %vm7581, %v9556, %v9628
  %v9630 = vsel %vm7577, %v9558, %v9557
  %v9631 = vsel %vm7579, %v9559, %v9630
  %v9632 = vsel %vm7581, %v9560, %v9631
  %v9633 = vsel %vm7577, %v9562, %v9561
  %v9634 = vsel %vm7579, %v9563, %v9633
  %v9635 = vsel %vm7581, %v9564, %v9634
  %v9636 = vsel %vm7577, %v9566, %v9565
  %v9637 = vsel %vm7579, %v9567, %v9636
  %v9638 = vsel %vm7581, %v9568, %v9637
  %v9639 = vsel %vm7577, %v9570, %v9569
  %v9640 = vsel %vm7579, %v9571, %v9639
  %v9641 = vsel %vm7581, %v9572, %v9640
  %s9650 = scalar_lea.vmem [#allocation4], 8
  %vm9651 = vcmask 27648
  %9652 = vst.msk [vmem:[%s9650 + $0x1] sm:$0xf] %vm9651, %v9620
  %9653 = vst.msk [vmem:[%s9650 + $0x9] sm:$0xf] %vm9651, %v9623
  %9654 = vst.msk [vmem:[%s9650 + $0x11] sm:$0xf] %vm9651, %v9626
  %9655 = vst.msk [vmem:[%s9650 + $0x19] sm:$0xf] %vm9651, %v9629
  %9656 = vst.msk [vmem:[%s9650 + $0x31] sm:$0xf] %vm9651, %v9632
  %9657 = vst.msk [vmem:[%s9650 + $0x39] sm:$0xf] %vm9651, %v9635
  %9658 = vst.msk [vmem:[%s9650 + $0x41] sm:$0xf] %vm9651, %v9638
  %9659 = vst.msk [vmem:[%s9650 + $0x49] sm:$0xf] %vm9651, %v9641
  %v9660 = vld [vmem:[#allocation4] sm:$0xf]
  %v9661 = vld [vmem:[#allocation4 + $0x8] sm:$0xf]
  %v9662 = vld [vmem:[#allocation4 + $0x10] sm:$0xf]
  %v9663 = vld [vmem:[#allocation4 + $0x18] sm:$0xf]
  %v9664 = vld [vmem:[#allocation4 + $0x30] sm:$0xf]
  %v9665 = vld [vmem:[#allocation4 + $0x38] sm:$0xf]
  %v9666 = vld [vmem:[#allocation4 + $0x40] sm:$0xf]
  %v9667 = vld [vmem:[#allocation4 + $0x48] sm:$0xf]
  %v9668 = vld [vmem:[#allocation4 + $0x1] sm:$0xf]
  %v9669 = vld [vmem:[#allocation4 + $0x9] sm:$0xf]
  %v9670 = vld [vmem:[#allocation4 + $0x11] sm:$0xf]
  %v9671 = vld [vmem:[#allocation4 + $0x19] sm:$0xf]
  %v9672 = vld [vmem:[#allocation4 + $0x31] sm:$0xf]
  %v9673 = vld [vmem:[#allocation4 + $0x39] sm:$0xf]
  %v9674 = vld [vmem:[#allocation4 + $0x41] sm:$0xf]
  %v9675 = vld [vmem:[#allocation4 + $0x49] sm:$0xf]
  %v9676 = vld [vmem:[#allocation4 + $0x2] sm:$0xf]
  %v9677 = vld [vmem:[#allocation4 + $0xa] sm:$0xf]
  %v9678 = vld [vmem:[#allocation4 + $0x12] sm:$0xf]
  %v9679 = vld [vmem:[#allocation4 + $0x1a] sm:$0xf]
  %v9680 = vld [vmem:[#allocation4 + $0x32] sm:$0xf]
  %v9681 = vld [vmem:[#allocation4 + $0x3a] sm:$0xf]
  %v9682 = vld [vmem:[#allocation4 + $0x42] sm:$0xf]
  %v9683 = vld [vmem:[#allocation4 + $0x4a] sm:$0xf]
  %v9684 = vld [vmem:[%s9650] sm:$0xf]
  %v9685 = vld [vmem:[%s9650 + $0x8] sm:$0xf]
  %v9686 = vld [vmem:[%s9650 + $0x10] sm:$0xf]
  %v9687 = vld [vmem:[%s9650 + $0x18] sm:$0xf]
  %v9688 = vld [vmem:[%s9650 + $0x30] sm:$0xf]
  %v9689 = vld [vmem:[%s9650 + $0x38] sm:$0xf]
  %v9690 = vld [vmem:[%s9650 + $0x40] sm:$0xf]
  %v9691 = vld [vmem:[%s9650 + $0x48] sm:$0xf]
  %v9692 = vld [vmem:[%s9650 + $0x1] sm:$0xf]
  %v9693 = vld [vmem:[%s9650 + $0x9] sm:$0xf]
  %v9694 = vld [vmem:[%s9650 + $0x11] sm:$0xf]
  %v9695 = vld [vmem:[%s9650 + $0x19] sm:$0xf]
  %v9696 = vld [vmem:[%s9650 + $0x31] sm:$0xf]
  %v9697 = vld [vmem:[%s9650 + $0x39] sm:$0xf]
  %v9698 = vld [vmem:[%s9650 + $0x41] sm:$0xf]
  %v9699 = vld [vmem:[%s9650 + $0x49] sm:$0xf]
  %v9700 = vld [vmem:[%s9650 + $0x2] sm:$0xf]
  %v9701 = vld [vmem:[%s9650 + $0xa] sm:$0xf]
  %v9702 = vld [vmem:[%s9650 + $0x12] sm:$0xf]
  %v9703 = vld [vmem:[%s9650 + $0x1a] sm:$0xf]
  %v9704 = vld [vmem:[%s9650 + $0x32] sm:$0xf]
  %v9705 = vld [vmem:[%s9650 + $0x3a] sm:$0xf]
  %v9706 = vld [vmem:[%s9650 + $0x42] sm:$0xf]
  %v9707 = vld [vmem:[%s9650 + $0x4a] sm:$0xf]
  %s9708 = scalar_lea.vmem [#allocation4], 16
  %v9709 = vld [vmem:[%s9708] sm:$0xf]
  %v9710 = vld [vmem:[%s9708 + $0x8] sm:$0xf]
  %v9711 = vld [vmem:[%s9708 + $0x10] sm:$0xf]
  %v9712 = vld [vmem:[%s9708 + $0x18] sm:$0xf]
  %v9713 = vld [vmem:[%s9708 + $0x30] sm:$0xf]
  %v9714 = vld [vmem:[%s9708 + $0x38] sm:$0xf]
  %v9715 = vld [vmem:[%s9708 + $0x40] sm:$0xf]
  %v9716 = vld [vmem:[%s9708 + $0x48] sm:$0xf]
  %v9717 = vld [vmem:[%s9708 + $0x1] sm:$0xf]
  %v9718 = vld [vmem:[%s9708 + $0x9] sm:$0xf]
  %v9719 = vld [vmem:[%s9708 + $0x11] sm:$0xf]
  %v9720 = vld [vmem:[%s9708 + $0x19] sm:$0xf]
  %v9721 = vld [vmem:[%s9708 + $0x31] sm:$0xf]
  %v9722 = vld [vmem:[%s9708 + $0x39] sm:$0xf]
  %v9723 = vld [vmem:[%s9708 + $0x41] sm:$0xf]
  %v9724 = vld [vmem:[%s9708 + $0x49] sm:$0xf]
  %v9725 = vld [vmem:[%s9708 + $0x2] sm:$0xf]
  %v9726 = vld [vmem:[%s9708 + $0xa] sm:$0xf]
  %v9727 = vld [vmem:[%s9708 + $0x12] sm:$0xf]
  %v9728 = vld [vmem:[%s9708 + $0x1a] sm:$0xf]
  %v9729 = vld [vmem:[%s9708 + $0x32] sm:$0xf]
  %v9730 = vld [vmem:[%s9708 + $0x3a] sm:$0xf]
  %v9731 = vld [vmem:[%s9708 + $0x42] sm:$0xf]
  %v9732 = vld [vmem:[%s9708 + $0x4a] sm:$0xf]
  %v9741 = vcombine.low %v9660, %v9661
  %v9742 = vcombine.low %v9662, %v9663
  %v9743 = vcombine.low %v9664, %v9665
  %v9744 = vcombine.low %v9666, %v9667
  %v9757 = vcombine.low %v9668, %v9669
  %v9758 = vcombine.low %v9670, %v9671
  %v9759 = vcombine.low %v9672, %v9673
  %v9760 = vcombine.low %v9674, %v9675
  %9761 = vrot.lane.b32.xlu0 %v9757, 4
  %v9762 = vpop.permute.xlu0 %9761
  %9763 = vrot.lane.b32.xlu0 %v9758, 4
  %v9764 = vpop.permute.xlu0 %9763
  %9765 = vrot.lane.b32.xlu0 %v9759, 4
  %v9766 = vpop.permute.xlu0 %9765
  %9767 = vrot.lane.b32.xlu0 %v9760, 4
  %v9768 = vpop.permute.xlu0 %9767
  %v9781 = vcombine.low %v9676, %v9677
  %v9782 = vcombine.low %v9678, %v9679
  %v9783 = vcombine.low %v9680, %v9681
  %v9784 = vcombine.low %v9682, %v9683
  %9785 = vrot.lane.b32.xlu0 %v9781, 8
  %v9786 = vpop.permute.xlu0 %9785
  %9787 = vrot.lane.b32.xlu0 %v9782, 8
  %v9788 = vpop.permute.xlu0 %9787
  %9789 = vrot.lane.b32.xlu0 %v9783, 8
  %v9790 = vpop.permute.xlu0 %9789
  %9791 = vrot.lane.b32.xlu0 %v9784, 8
  %v9792 = vpop.permute.xlu0 %9791
  %v9805 = vcombine.low %v9684, %v9685
  %v9806 = vcombine.low %v9686, %v9687
  %v9807 = vcombine.low %v9688, %v9689
  %v9808 = vcombine.low %v9690, %v9691
  %9809 = vrot.lane.b32.xlu0 %v9805, 12
  %v9810 = vpop.permute.xlu0 %9809
  %9811 = vrot.lane.b32.xlu0 %v9806, 12
  %v9812 = vpop.permute.xlu0 %9811
  %9813 = vrot.lane.b32.xlu0 %v9807, 12
  %v9814 = vpop.permute.xlu0 %9813
  %9815 = vrot.lane.b32.xlu0 %v9808, 12
  %v9816 = vpop.permute.xlu0 %9815
  %v9829 = vcombine.low %v9692, %v9693
  %v9830 = vcombine.low %v9694, %v9695
  %v9831 = vcombine.low %v9696, %v9697
  %v9832 = vcombine.low %v9698, %v9699
  %9833 = vrot.lane.b32.xlu0 %v9829, 16
  %v9834 = vpop.permute.xlu0 %9833
  %9835 = vrot.lane.b32.xlu0 %v9830, 16
  %v9836 = vpop.permute.xlu0 %9835
  %9837 = vrot.lane.b32.xlu0 %v9831, 16
  %v9838 = vpop.permute.xlu0 %9837
  %9839 = vrot.lane.b32.xlu0 %v9832, 16
  %v9840 = vpop.permute.xlu0 %9839
  %v9853 = vcombine.low %v9700, %v9701
  %v9854 = vcombine.low %v9702, %v9703
  %v9855 = vcombine.low %v9704, %v9705
  %v9856 = vcombine.low %v9706, %v9707
  %9857 = vrot.lane.b32.xlu0 %v9853, 20
  %v9858 = vpop.permute.xlu0 %9857
  %9859 = vrot.lane.b32.xlu0 %v9854, 20
  %v9860 = vpop.permute.xlu0 %9859
  %9861 = vrot.lane.b32.xlu0 %v9855, 20
  %v9862 = vpop.permute.xlu0 %9861
  %9863 = vrot.lane.b32.xlu0 %v9856, 20
  %v9864 = vpop.permute.xlu0 %9863
  %v9877 = vcombine.low %v9709, %v9710
  %v9878 = vcombine.low %v9711, %v9712
  %v9879 = vcombine.low %v9713, %v9714
  %v9880 = vcombine.low %v9715, %v9716
  %9881 = vrot.lane.b32.xlu0 %v9877, 24
  %v9882 = vpop.permute.xlu0 %9881
  %9883 = vrot.lane.b32.xlu0 %v9878, 24
  %v9884 = vpop.permute.xlu0 %9883
  %9885 = vrot.lane.b32.xlu0 %v9879, 24
  %v9886 = vpop.permute.xlu0 %9885
  %9887 = vrot.lane.b32.xlu0 %v9880, 24
  %v9888 = vpop.permute.xlu0 %9887
  %v9901 = vcombine.low %v9717, %v9718
  %v9902 = vcombine.low %v9719, %v9720
  %v9903 = vcombine.low %v9721, %v9722
  %v9904 = vcombine.low %v9723, %v9724
  %9905 = vrot.lane.b32.xlu0 %v9901, 28
  %v9906 = vpop.permute.xlu0 %9905
  %9907 = vrot.lane.b32.xlu0 %v9902, 28
  %v9908 = vpop.permute.xlu0 %9907
  %9909 = vrot.lane.b32.xlu0 %v9903, 28
  %v9910 = vpop.permute.xlu0 %9909
  %9911 = vrot.lane.b32.xlu0 %v9904, 28
  %v9912 = vpop.permute.xlu0 %9911
  %v9925 = vcombine.low %v9725, %v9726
  %v9926 = vcombine.low %v9727, %v9728
  %v9927 = vcombine.low %v9729, %v9730
  %v9928 = vcombine.low %v9731, %v9732
  %9929 = vrot.lane.b32.xlu0 %v9925, 32
  %v9930 = vpop.permute.xlu0 %9929
  %9931 = vrot.lane.b32.xlu0 %v9926, 32
  %v9932 = vpop.permute.xlu0 %9931
  %9933 = vrot.lane.b32.xlu0 %v9927, 32
  %v9934 = vpop.permute.xlu0 %9933
  %9935 = vrot.lane.b32.xlu0 %v9928, 32
  %v9936 = vpop.permute.xlu0 %9935
  %v9941 = vsel %vm38, %v9741, %v9762
  %v9942 = vsel %vm38, %v9742, %v9764
  %v9943 = vsel %vm38, %v9743, %v9766
  %v9944 = vsel %vm38, %v9744, %v9768
  %v9945 = vsel %vm2966, %v9941, %v9786
  %v9946 = vsel %vm2966, %v9942, %v9788
  %v9947 = vsel %vm2966, %v9943, %v9790
  %v9948 = vsel %vm2966, %v9944, %v9792
  %v9949 = vsel %vm3031, %v9945, %v9810
  %v9950 = vsel %vm3031, %v9946, %v9812
  %v9951 = vsel %vm3031, %v9947, %v9814
  %v9952 = vsel %vm3031, %v9948, %v9816
  %v9953 = vsel %vm3096, %v9949, %v9834
  %v9954 = vsel %vm3096, %v9950, %v9836
  %v9955 = vsel %vm3096, %v9951, %v9838
  %v9956 = vsel %vm3096, %v9952, %v9840
  %v9957 = vsel %vm3161, %v9953, %v9858
  %v9958 = vsel %vm3161, %v9954, %v9860
  %v9959 = vsel %vm3161, %v9955, %v9862
  %v9960 = vsel %vm3161, %v9956, %v9864
  %v9961 = vsel %vm3226, %v9957, %v9882
  %v9962 = vsel %vm3226, %v9958, %v9884
  %v9963 = vsel %vm3226, %v9959, %v9886
  %v9964 = vsel %vm3226, %v9960, %v9888
  %v9965 = vsel %vm3291, %v9961, %v9906
  %v9966 = vsel %vm3291, %v9962, %v9908
  %v9967 = vsel %vm3291, %v9963, %v9910
  %v9968 = vsel %vm3291, %v9964, %v9912
  %v9969 = vsel %vm3356, %v9965, %v9930
  %v9970 = vsel %vm3356, %v9966, %v9932
  %v9971 = vsel %vm3356, %v9967, %v9934
  %v9972 = vsel %vm3356, %v9968, %v9936
  %v9973 = vld [vmem:[%s5] sm:$0xff]
  %v9974 = vld [vmem:[%s5 + $0x8] sm:$0xff]
  %v9975 = vld [vmem:[%s5 + $0x10] sm:$0xff]
  %v9976 = vld [vmem:[%s5 + $0x18] sm:$0xff]
  %v9977 = vld [vmem:[%s5 + $0x20] sm:$0xf]
  %v9978 = vld [vmem:[%s6] sm:$0x1]
  %v9980 = vlaneseq
  %v9981 = vshrl.u32 %v9980, 7
  %v9982 = vsub.s32 0, %v9981
  %v9983 = vrot.slane %v9978, %v9982
  %v9986 = vsel %vm3433, %v9969, 0
  %v9989 = vsel %vm3433, %v9970, 0
  %v9992 = vsel %vm3433, %v9971, 0
  %v9995 = vsel %vm3433, %v9972, 0
  %v9998 = vsel %vm3626, %v9977, 0
  %10000 = vmatprep.subr.mxu0 0.0
  %10001 = vmatpush1.msra.mxu0 %v9973
  %10002 = vmatprep.subr.mxu0 0.0
  %10003 = vmatpush1.msra.mxu0 %v9974
  %10004 = vmatprep.subr.mxu0 0.0
  %10005 = vmatpush1.msra.mxu0 %v9975
  %10006 = vmatprep.subr.mxu0 0.0
  %10007 = vmatpush1.msra.mxu0 %v9976
  %10008 = vmatprep.subr.mxu0 0.0
  %10009 = vmatpush1.msra.mxu0 %v9998
  %10010 = vmatprep.subr.mxu0 0.0
  %10011 = vmatpush1.msra.mxu0 0.0
  %10012 = vmatprep.subr.mxu0 0.0
  %10013 = vmatpush1.msra.mxu0 0.0
  %10014 = vmatprep.subr.mxu0 0.0
  %10015 = vmatpush1.msra.mxu0 0.0
  %10016 = vmatprep.subr.mxu0 0.0
  %10017 = vmatpush1.msra.mxu0 0.0
  %10018 = vmatprep.subr.mxu0 0.0
  %10019 = vmatpush1.msra.mxu0 0.0
  %10020 = vmatprep.subr.mxu0 0.0
  %10021 = vmatpush1.msra.mxu0 0.0
  %10022 = vmatprep.subr.mxu0 0.0
  %10023 = vmatpush1.msra.mxu0 0.0
  %10024 = vmatprep.subr.mxu0 0.0
  %10025 = vmatpush1.msra.mxu0 0.0
  %10026 = vmatprep.subr.mxu0 0.0
  %10027 = vmatpush1.msra.mxu0 0.0
  %10028 = vmatprep.subr.mxu0 0.0
  %10029 = vmatpush1.msra.mxu0 0.0
  %10030 = vmatprep.subr.mxu0 0.0
  %10031 = vmatpush1.msra.mxu0 0.0
  %10032 = vmatprep.subr.mxu0 0.0
  %10033 = vmatpush1.msra.mxu0 0.0
  %10034 = vmatprep.subr.mxu0 0.0
  %10035 = vmatpush1.msra.mxu0 0.0
  %10036 = vmatprep.subr.mxu0 0.0
  %10037 = vmatpush1.msra.mxu0 0.0
  %10038 = vmatprep.subr.mxu0 0.0
  %10039 = vmatpush1.msra.mxu0 0.0
  %10040 = vmatprep.subr.mxu0 0.0
  %10041 = vmatpush1.msra.mxu0 0.0
  %10042 = vmatprep.subr.mxu0 0.0
  %10043 = vmatpush1.msra.mxu0 0.0
  %10044 = vmatprep.subr.mxu0 0.0
  %10045 = vmatpush1.msra.mxu0 0.0
  %10046 = vmatprep.subr.mxu0 0.0
  %10047 = vmatpush1.msra.mxu0 0.0
  %10048 = vmatprep.subr.mxu0 0.0
  %10049 = vmatpush1.msra.mxu0 0.0
  %10050 = vmatprep.subr.mxu0 0.0
  %10051 = vmatpush1.msra.mxu0 0.0
  %10052 = vmatprep.subr.mxu0 0.0
  %10053 = vmatpush1.msra.mxu0 0.0
  %10054 = vmatprep.subr.mxu0 0.0
  %10055 = vmatpush1.msra.mxu0 0.0
  %10056 = vmatprep.subr.mxu0 0.0
  %10057 = vmatpush1.msra.mxu0 0.0
  %10058 = vmatprep.subr.mxu0 0.0
  %10059 = vmatpush1.msra.mxu0 0.0
  %10060 = vmatprep.subr.mxu0 0.0
  %10061 = vmatpush1.msra.mxu0 0.0
  %10062 = vmatprep.subr.mxu0 0.0
  %10063 = vmatpush1.msra.mxu0 0.0
  %10064 = vmatprep.mubr.f32.mxu0 0.0
  %10065 = vmatmul.mubr.f32.gmra.mrb[0].mxu0 %v9986
  %v10066 = vpop.f32.mrb[0].mxu0
  %v10067 = vadd.f32 %v9983, %v10066
  %v10068 = vpop.f32.mrb[0].mxu0
  %10069 = vmatprep.mubr.f32.mxu0 0.0
  %10070 = vmatmul.mubr.f32.gmra.mrb[0].mxu0 %v9989
  %v10071 = vpop.f32.mrb[0].mxu0
  %v10072 = vadd.f32 %v9983, %v10071
  %v10073 = vpop.f32.mrb[0].mxu0
  %10074 = vmatprep.mubr.f32.mxu0 0.0
  %10075 = vmatmul.mubr.f32.gmra.mrb[0].mxu0 %v9992
  %v10076 = vpop.f32.mrb[0].mxu0
  %v10077 = vadd.f32 %v9983, %v10076
  %v10078 = vpop.f32.mrb[0].mxu0
  %10079 = vmatprep.mubr.f32.mxu0 0.0
  %10080 = vmatmul.mubr.f32.gmra.mrb[0].mxu0 %v9995
  %v10081 = vpop.f32.mrb[0].mxu0
  %v10082 = vadd.f32 %v9983, %v10081
  %v10083 = vpop.f32.mrb[0].mxu0
  %10084 = vdwg.mxu0
  %v10085 = vmax.f32 %v10067, 0.0
  %v10086 = vmax.f32 %v10072, 0.0
  %v10087 = vmax.f32 %v10077, 0.0
  %v10088 = vmax.f32 %v10082, 0.0
  %v10089 = vsel %vm2966, %v10085, 0.0
  %v10090 = vsel %vm2966, %v10086, 0.0
  %v10091 = vadd.f32 %v10089, %v10090
  %v10092 = vrot.slane %v10091, 4
  %v10093 = vadd.f32 %v10091, %v10092
  %v10094 = vrot.slane %v10093, 2
  %v10095 = vadd.f32 %v10093, %v10094
  %v10096 = vrot.slane %v10095, 1
  %v10097 = vadd.f32 %v10095, %v10096
  %v10098 = vsel %vm2966, %v10087, 0.0
  %v10099 = vsel %vm2966, %v10088, 0.0
  %v10100 = vadd.f32 %v10098, %v10099
  %v10101 = vrot.slane %v10100, 4
  %v10102 = vadd.f32 %v10100, %v10101
  %v10103 = vrot.slane %v10102, 2
  %v10104 = vadd.f32 %v10102, %v10103
  %v10105 = vrot.slane %v10104, 1
  %v10106 = vadd.f32 %v10104, %v10105
  %v10107 = vrcp.pop 16.0
  %v10108 = vmul.f32 %v10097, %v10107
  %v10109 = vmul.f32 %v10106, %v10107
  %v10110 = vmax.f32 %v10108, 0.0
  %v10111 = vmax.f32 %v10109, 0.0
  %v10112 = vld [vmem:[%s7] sm:$0xff]
  %v10113 = vld [vmem:[%s8] sm:$0x1]
  %v10115 = vlaneseq
  %v10116 = vshrl.u32 %v10115, 7
  %v10117 = vsub.s32 0, %v10116
  %v10118 = vrot.slane %v10113, %v10117
  %v10122 = vsel %vm7577, %v10111, %v10110
  %v10123 = vsel %vm2966, %v10122, 0
  %10125 = vmatprep.subr.mxu0 0.0
  %10126 = vmatpush1.msra.mxu0 %v10112
  %10127 = vmatprep.subr.mxu0 0.0
  %10128 = vmatpush1.msra.mxu0 0.0
  %10129 = vmatprep.subr.mxu0 0.0
  %10130 = vmatpush1.msra.mxu0 0.0
  %10131 = vmatprep.subr.mxu0 0.0
  %10132 = vmatpush1.msra.mxu0 0.0
  %10133 = vmatprep.subr.mxu0 0.0
  %10134 = vmatpush1.msra.mxu0 0.0
  %10135 = vmatprep.subr.mxu0 0.0
  %10136 = vmatpush1.msra.mxu0 0.0
  %10137 = vmatprep.subr.mxu0 0.0
  %10138 = vmatpush1.msra.mxu0 0.0
  %10139 = vmatprep.subr.mxu0 0.0
  %10140 = vmatpush1.msra.mxu0 0.0
  %10141 = vmatprep.subr.mxu0 0.0
  %10142 = vmatpush1.msra.mxu0 0.0
  %10143 = vmatprep.subr.mxu0 0.0
  %10144 = vmatpush1.msra.mxu0 0.0
  %10145 = vmatprep.subr.mxu0 0.0
  %10146 = vmatpush1.msra.mxu0 0.0
  %10147 = vmatprep.subr.mxu0 0.0
  %10148 = vmatpush1.msra.mxu0 0.0
  %10149 = vmatprep.subr.mxu0 0.0
  %10150 = vmatpush1.msra.mxu0 0.0
  %10151 = vmatprep.subr.mxu0 0.0
  %10152 = vmatpush1.msra.mxu0 0.0
  %10153 = vmatprep.subr.mxu0 0.0
  %10154 = vmatpush1.msra.mxu0 0.0
  %10155 = vmatprep.subr.mxu0 0.0
  %10156 = vmatpush1.msra.mxu0 0.0
  %10157 = vmatprep.subr.mxu0 0.0
  %10158 = vmatpush1.msra.mxu0 0.0
  %10159 = vmatprep.subr.mxu0 0.0
  %10160 = vmatpush1.msra.mxu0 0.0
  %10161 = vmatprep.subr.mxu0 0.0
  %10162 = vmatpush1.msra.mxu0 0.0
  %10163 = vmatprep.subr.mxu0 0.0
  %10164 = vmatpush1.msra.mxu0 0.0
  %10165 = vmatprep.subr.mxu0 0.0
  %10166 = vmatpush1.msra.mxu0 0.0
  %10167 = vmatprep.subr.mxu0 0.0
  %10168 = vmatpush1.msra.mxu0 0.0
  %10169 = vmatprep.subr.mxu0 0.0
  %10170 = vmatpush1.msra.mxu0 0.0
  %10171 = vmatprep.subr.mxu0 0.0
  %10172 = vmatpush1.msra.mxu0 0.0
  %10173 = vmatprep.subr.mxu0 0.0
  %10174 = vmatpush1.msra.mxu0 0.0
  %10175 = vmatprep.subr.mxu0 0.0
  %10176 = vmatpush1.msra.mxu0 0.0
  %10177 = vmatprep.subr.mxu0 0.0
  %10178 = vmatpush1.msra.mxu0 0.0
  %10179 = vmatprep.subr.mxu0 0.0
  %10180 = vmatpush1.msra.mxu0 0.0
  %10181 = vmatprep.subr.mxu0 0.0
  %10182 = vmatpush1.msra.mxu0 0.0
  %10183 = vmatprep.subr.mxu0 0.0
  %10184 = vmatpush1.msra.mxu0 0.0
  %10185 = vmatprep.subr.mxu0 0.0
  %10186 = vmatpush1.msra.mxu0 0.0
  %10187 = vmatprep.subr.mxu0 0.0
  %10188 = vmatpush1.msra.mxu0 0.0
  %10189 = vmatprep.mubr.f32.mxu0 0.0
  %10190 = vmatmul.mubr.f32.gmra.mrb[0].mxu0 %v10123
  %v10191 = vpop.f32.mrb[0].mxu0
  %v10192 = vadd.f32 %v10118, %v10191
  %v10193 = vpop.f32.mrb[0].mxu0
  %10194 = vdwg.mxu0
  %vm10195 = vcmask 74752
  %v10196 = vsel %vm10195, %v10192, -inf
  %10197 = vmax.xlane.f32.xlu0 %v10196
  %v10198 = vpop.xlane.xlu0 %10197
  %v10199 = vsub.f32 %v10192, %v10198
  %v10200 = vmul.f32 %v10199, 1.442695
  %v10201 = vpow.pop %v10200
  %v10202 = vsel %vm10195, %v10201, 0.0
  %10203 = vadd.xlane.f32.xlu0 %v10202
  %v10204 = vpop.xlane.xlu0 %10203
  %v10205 = vlog2.pop %v10204
  %v10206 = vmul.f32 %v10205, 0.6931472
  %v10207 = vadd.f32 %v10198, %v10206
  %v10208 = vsub.f32 %v10192, %v10207
  %v10209 = vld [vmem:[%s9] sm:$0xff]
  %v10210 = vld [vmem:[%s10] sm:$0x1]
  %v10212 = vlaneseq
  %v10213 = vshrl.u32 %v10212, 7
  %v10214 = vsub.s32 0, %v10213
  %v10215 = vrot.slane %v10210, %v10214
  %10217 = vmatprep.subr.mxu0 0.0
  %10218 = vmatpush1.msra.mxu0 %v10209
  %10219 = vmatprep.subr.mxu0 0.0
  %10220 = vmatpush1.msra.mxu0 0.0
  %10221 = vmatprep.subr.mxu0 0.0
  %10222 = vmatpush1.msra.mxu0 0.0
  %10223 = vmatprep.subr.mxu0 0.0
  %10224 = vmatpush1.msra.mxu0 0.0
  %10225 = vmatprep.subr.mxu0 0.0
  %10226 = vmatpush1.msra.mxu0 0.0
  %10227 = vmatprep.subr.mxu0 0.0
  %10228 = vmatpush1.msra.mxu0 0.0
  %10229 = vmatprep.subr.mxu0 0.0
  %10230 = vmatpush1.msra.mxu0 0.0
  %10231 = vmatprep.subr.mxu0 0.0
  %10232 = vmatpush1.msra.mxu0 0.0
  %10233 = vmatprep.subr.mxu0 0.0
  %10234 = vmatpush1.msra.mxu0 0.0
  %10235 = vmatprep.subr.mxu0 0.0
  %10236 = vmatpush1.msra.mxu0 0.0
  %10237 = vmatprep.subr.mxu0 0.0
  %10238 = vmatpush1.msra.mxu0 0.0
  %10239 = vmatprep.subr.mxu0 0.0
  %10240 = vmatpush1.msra.mxu0 0.0
  %10241 = vmatprep.subr.mxu0 0.0
  %10242 = vmatpush1.msra.mxu0 0.0
  %10243 = vmatprep.subr.mxu0 0.0
  %10244 = vmatpush1.msra.mxu0 0.0
  %10245 = vmatprep.subr.mxu0 0.0
  %10246 = vmatpush1.msra.mxu0 0.0
  %10247 = vmatprep.subr.mxu0 0.0
  %10248 = vmatpush1.msra.mxu0 0.0
  %10249 = vmatprep.subr.mxu0 0.0
  %10250 = vmatpush1.msra.mxu0 0.0
  %10251 = vmatprep.subr.mxu0 0.0
  %10252 = vmatpush1.msra.mxu0 0.0
  %10253 = vmatprep.subr.mxu0 0.0
  %10254 = vmatpush1.msra.mxu0 0.0
  %10255 = vmatprep.subr.mxu0 0.0
  %10256 = vmatpush1.msra.mxu0 0.0
  %10257 = vmatprep.subr.mxu0 0.0
  %10258 = vmatpush1.msra.mxu0 0.0
  %10259 = vmatprep.subr.mxu0 0.0
  %10260 = vmatpush1.msra.mxu0 0.0
  %10261 = vmatprep.subr.mxu0 0.0
  %10262 = vmatpush1.msra.mxu0 0.0
  %10263 = vmatprep.subr.mxu0 0.0
  %10264 = vmatpush1.msra.mxu0 0.0
  %10265 = vmatprep.subr.mxu0 0.0
  %10266 = vmatpush1.msra.mxu0 0.0
  %10267 = vmatprep.subr.mxu0 0.0
  %10268 = vmatpush1.msra.mxu0 0.0
  %10269 = vmatprep.subr.mxu0 0.0
  %10270 = vmatpush1.msra.mxu0 0.0
  %10271 = vmatprep.subr.mxu0 0.0
  %10272 = vmatpush1.msra.mxu0 0.0
  %10273 = vmatprep.subr.mxu0 0.0
  %10274 = vmatpush1.msra.mxu0 0.0
  %10275 = vmatprep.subr.mxu0 0.0
  %10276 = vmatpush1.msra.mxu0 0.0
  %10277 = vmatprep.subr.mxu0 0.0
  %10278 = vmatpush1.msra.mxu0 0.0
  %10279 = vmatprep.subr.mxu0 0.0
  %10280 = vmatpush1.msra.mxu0 0.0
  %10281 = vmatprep.mubr.f32.mxu0 0.0
  %10282 = vmatmul.mubr.f32.gmra.mrb[0].mxu0 %v10123
  %v10283 = vpop.f32.mrb[0].mxu0
  %v10284 = vadd.f32 %v10215, %v10283
  %v10285 = vpop.f32.mrb[0].mxu0
  %10286 = vdwg.mxu0
  %10287 = vrot.lane.b32.xlu0 %v10122, 10
  %v10288 = vpop.permute.xlu0 %10287
  %10291 = vrot.lane.b32.xlu0 %v10284, 18
  %v10292 = vpop.permute.xlu0 %10291
  %v10294 = vsel %vm8451, %v10208, %v10288
  %v10295 = vsel %vm8527, %v10294, %v10292
  %vm10296 = vcmask 408576
  %v10297 = vsel %vm10296, %v10295, 0.0
  %10298 = vst [vmem:[%s11] sm:$0x3] %v10297
  // Predicated region
  $region46: #{asif_forward.1} parent=0 // pred_check
    _
  $region47: #{asif_forward.1} parent=0 // pred_check_branch
    %10300 = sbr.rel (0) target = $region49
  $region48: #{asif_forward.1} parent=0 // pred_region
    _
  $region49: #{asif_forward.1} parent=0 // pred_fallthru
    _
  // Predicated region
  $region50: #{asif_forward.1} parent=0 // pred_check
    _
  $region51: #{asif_forward.1} parent=0 // pred_check_branch
    %10302 = sbr.rel (0) target = $region53
  $region52: #{asif_forward.1} parent=0 // pred_region
    _
  $region53: #{asif_forward.1} parent=0 // pred_fallthru
    _

</llo_original>
